<compile_context>
chip_gen: v7x
topology: tpu7x:2x2x1
jax: 0.10.0
libtpu: 0.0.40
codegen_flags: <defaults>
</compile_context>

<pallas_src>
import functools

import jax
import jax.numpy as jnp
from jax.experimental import pallas as pl
from jax.experimental.pallas import tpu as pltpu

_VMEM = pl.BlockSpec(memory_space=pltpu.MemorySpace.VMEM)


# ----------------------------------------------------------------------------
# Fused kernel: encoder -> pre-VQ -> VQ -> decoder, all activations stay in VMEM/vregs
# ----------------------------------------------------------------------------
def _fused_vqvae_kernel(*refs, num_res_layers, beta):
    it = iter(refs)
    x_ref, shd_ref, shu_ref = next(it), next(it), next(it)
    encA_w, encA_b = next(it), next(it)
    encB_w, encB_b = next(it), next(it)
    enc3_w, enc3_b = next(it), next(it)
    enc_res = [(next(it), next(it)) for _ in range(num_res_layers)]
    prevq_w, prevq_b = next(it), next(it)
    emb_ref = next(it)
    dec1_w, dec1_b = next(it), next(it)
    dec_res = [(next(it), next(it)) for _ in range(num_res_layers)]
    t1_w, t1_b = next(it), next(it)
    t2_w, t2_b = next(it), next(it)
    recon_ref, loss_ref, ppl_ref = next(it), next(it), next(it)

    f32 = jnp.float32
    shd = shd_ref[...]   # (N, N): y = shd @ x  ->  y[s] = x[s-1], 0 at sequence starts
    shu = shu_ref[...]   # (N, N): y = shu @ x  ->  y[s] = x[s+1], 0 at sequence ends

    def conv3(x, w_ref, b_ref, relu):
        """k=3 / pad=1 / stride=1 conv on (N, Cin) channels-last rows; taps via MXU."""
        xm1 = jnp.dot(shd, x, preferred_element_type=f32)
        xp1 = jnp.dot(shu, x, preferred_element_type=f32)
        y = (jnp.dot(xm1, w_ref[0], preferred_element_type=f32)
             + jnp.dot(x, w_ref[1], preferred_element_type=f32)
             + jnp.dot(xp1, w_ref[2], preferred_element_type=f32))
        if b_ref is not None:
            y = y + b_ref[...]
        if relu:
            y = jnp.maximum(y, 0.0)
        return y

    def res_stack(h, blocks):
        for w3_ref, w1_ref in blocks:
            t = jnp.maximum(h, 0.0)
            t = conv3(t, w3_ref, None, relu=True)
            h = h + jnp.dot(t, w1_ref[...], preferred_element_type=f32)
        return jnp.maximum(h, 0.0)

    # ---- Encoder (stride-2 convs expressed as polyphase convs on the T/4 grid) ----
    h = conv3(x_ref[...], encA_w, encA_b, relu=True)   # Conv1d(1->H/2, k4 s2 p1) + ReLU
    h = conv3(h, encB_w, encB_b, relu=True)            # Conv1d(H/2->H, k4 s2 p1) + ReLU
    h = conv3(h, enc3_w, enc3_b, relu=False)           # Conv1d(H->H,   k3 s1 p1)
    h = res_stack(h, enc_res)

    # ---- pre-VQ 1x1 conv ----
    z = jnp.dot(h, prevq_w[...], preferred_element_type=f32) + prevq_b[...]   # (N, D)

    # ---- Vector quantizer ----
    emb = emb_ref[...]                         # (E, D)
    n, d = z.shape
    num_emb = emb.shape[0]
    z2 = jnp.sum(z * z, axis=1, keepdims=True)                                 # (N, 1)
    ze = jax.lax.dot_general(z, emb, (((1,), (1,)), ((), ())),
                             preferred_element_type=f32)                       # (N, E)
    e2 = jax.lax.dot_general(jnp.ones((n, d), f32), emb * emb,
                             (((1,), (1,)), ((), ())),
                             preferred_element_type=f32)                       # (N, E)
    dist = z2 - 2.0 * ze + e2

    # argmin (first index on ties, matches torch.argmin) -> one-hot encodings
    dmin = jnp.min(dist, axis=1, keepdims=True)
    iota_e = jax.lax.broadcasted_iota(jnp.int32, (n, num_emb), 1)
    idx = jnp.min(jnp.where(dist <= dmin, iota_e, num_emb), axis=1, keepdims=True)
    enc = (iota_e == idx).astype(f32)                                          # (N, E)
    q = jnp.dot(enc, emb, preferred_element_type=f32)                          # (N, D)

    # loss = q_latent_loss + beta * e_latent_loss ; both equal mean((q - z)^2) in value
    sq = (q - z) * (q - z)
    mse = jnp.sum(jnp.sum(sq, axis=1, keepdims=True), axis=0, keepdims=True) / (n * d)
    loss_ref[...] = (1.0 + beta) * mse

    # perplexity
    avg = jnp.sum(enc, axis=0, keepdims=True) / n                              # (1, E)
    ent = jnp.sum(avg * jnp.log(avg + 1e-10), axis=1, keepdims=True)           # (1, 1)
    ppl_ref[...] = jnp.exp(-ent)

    # ---- Decoder ----
    g = conv3(q, dec1_w, dec1_b, relu=False)            # Conv1d(D->H, k3 s1 p1)
    g = res_stack(g, dec_res)
    g = conv3(g, t1_w, t1_b, relu=True)                 # ConvTranspose1 -> [even|odd] phases
    recon_ref[...] = conv3(g, t2_w, t2_b, relu=False)   # ConvTranspose2 -> 4 output phases


# ----------------------------------------------------------------------------
# Wrapper-side weight preparation (tiny, one-shot transforms of torch-layout params)
# ----------------------------------------------------------------------------
def _shift_matrices(bsz, s):
    n = bsz * s
    i = jnp.arange(n)[:, None]
    j = jnp.arange(n)[None, :]
    same = (i // s) == (j // s)
    shd = ((j == i - 1) & same).astype(jnp.float32)
    shu = ((j == i + 1) & same).astype(jnp.float32)
    return shd, shu


def _effective_params(params):
    f32 = jnp.float32

    def conv3_eff(w, b=None):                 # torch Conv1d weight (Cout, Cin, 3)
        w_eff = jnp.stack([w[:, :, k].T for k in range(3)], axis=0)   # (3, Cin, Cout)
        return (w_eff, None) if b is None else (w_eff, b.reshape(1, -1))

    # Encoder conv1: Conv1d(1 -> H/2, k=4, s=2, p=1) on the x4 space-to-depth input.
    # Output channels = [phase q0 | phase q1] of the original length-T/2 signal.
    w1, b1 = params["enc_conv1_w"], params["enc_conv1_b"]
    h2 = w1.shape[0]
    W = [w1[:, 0, k] for k in range(4)]
    zv = jnp.zeros((h2,), f32)
    a_m1 = jnp.stack([jnp.concatenate([zv, zv]),
                      jnp.concatenate([zv, zv]),
                      jnp.concatenate([zv, zv]),
                      jnp.concatenate([W[0], zv])], axis=0)
    a_0 = jnp.stack([jnp.concatenate([W[1], zv]),
                     jnp.concatenate([W[2], W[0]]),
                     jnp.concatenate([W[3], W[1]]),
                     jnp.concatenate([zv, W[2]])], axis=0)
    a_p1 = jnp.stack([jnp.concatenate([zv, W[3]]),
                      jnp.concatenate([zv, zv]),
                      jnp.concatenate([zv, zv]),
                      jnp.concatenate([zv, zv])], axis=0)
    encA_w = jnp.stack([a_m1, a_0, a_p1], axis=0)            # (3, 4, H)
    encA_b = jnp.concatenate([b1, b1]).reshape(1, -1)

    # Encoder conv2: Conv1d(H/2 -> H, k=4, s=2, p=1), input channels = [q0 | q1].
    w2, b2 = params["enc_conv2_w"], params["enc_conv2_b"]
    c_in2 = w2.shape[1]
    c_out2 = w2.shape[0]
    V = [w2[:, :, k].T for k in range(4)]                    # (H/2, H)
    zm = jnp.zeros((c_in2, c_out2), f32)
    encB_w = jnp.stack([jnp.concatenate([zm, V[0]], axis=0),
                        jnp.concatenate([V[1], V[2]], axis=0),
                        jnp.concatenate([V[3], zm], axis=0)], axis=0)   # (3, H, H)
    encB_b = b2.reshape(1, -1)

    enc3_w, enc3_b = conv3_eff(params["enc_conv3_w"], params["enc_conv3_b"])

    # Decoder ConvTranspose1d(H -> H/2, k=4, s=2, p=1): polyphase, output = [even|odd].
    wt1, bt1 = params["dec_trans1_w"], params["dec_trans1_b"]
    U = [wt1[:, :, k] for k in range(4)]                     # (H, H/2)
    zt = jnp.zeros_like(U[0])
    t1_w = jnp.stack([jnp.concatenate([U[3], zt], axis=1),
                      jnp.concatenate([U[1], U[2]], axis=1),
                      jnp.concatenate([zt, U[0]], axis=1)], axis=0)     # (3, H, H)
    t1_b = jnp.concatenate([bt1, bt1]).reshape(1, -1)

    # Decoder ConvTranspose1d(H/2 -> 1, k=4, s=2, p=1): output = 4 phases of x_recon.
    wt2, bt2 = params["dec_trans2_w"], params["dec_trans2_b"]
    hc = wt2.shape[0]
    v = [wt2[:, 0, k] for k in range(4)]                     # (H/2,)
    zc = jnp.zeros((hc,), f32)
    m_m1 = jnp.concatenate([jnp.stack([zc, zc, zc, zc], axis=1),
                            jnp.stack([v[3], zc, zc, zc], axis=1)], axis=0)
    m_0 = jnp.concatenate([jnp.stack([v[1], v[2], v[3], zc], axis=1),
                           jnp.stack([zc, v[0], v[1], v[2]], axis=1)], axis=0)
    m_p1 = jnp.concatenate([jnp.stack([zc, zc, zc, v[0]], axis=1),
                            jnp.stack([zc, zc, zc, zc], axis=1)], axis=0)
    t2_w = jnp.stack([m_m1, m_0, m_p1], axis=0)              # (3, 2*H/2, 4)
    t2_b = jnp.broadcast_to(bt2.reshape(1, 1), (1, 4))

    eff = [encA_w, encA_b, encB_w, encB_b, enc3_w, enc3_b]
    for rw3, rw1 in params["enc_res"]:
        eff += [conv3_eff(rw3)[0], rw1[:, :, 0].T]
    eff += [params["pre_vq_w"][:, :, 0].T, params["pre_vq_b"].reshape(1, -1)]
    eff += [params["embedding"]]
    dw, db = conv3_eff(params["dec_conv1_w"], params["dec_conv1_b"])
    eff += [dw, db]
    for rw3, rw1 in params["dec_res"]:
        eff += [conv3_eff(rw3)[0], rw1[:, :, 0].T]
    eff += [t1_w, t1_b, t2_w, t2_b]
    return [a.astype(f32) for a in eff]


# ----------------------------------------------------------------------------
# SpeechVQVAE forward
# ----------------------------------------------------------------------------
def speech_vqvae_forward(params, x, commitment_cost):
    """x: (B, 1, T) float32 (PyTorch NCW). Returns (loss, x_recon (B,1,T), perplexity)."""
    bsz, cin, t = x.shape
    assert cin == 1 and t % 4 == 0, "raw-waveform path expects 1 channel and T % 4 == 0"
    s = t // 4                                   # latent length after two stride-2 convs
    n = bsz * s

    x_s2d = x.reshape(bsz, s, 4).reshape(n, 4).astype(jnp.float32)   # x4 space-to-depth
    shd, shu = _shift_matrices(bsz, s)
    eff = _effective_params(params)
    nres = len(params["enc_res"])

    recon, loss, ppl = pl.pallas_call(
        functools.partial(_fused_vqvae_kernel, num_res_layers=nres, beta=commitment_cost),
        out_shape=(
            jax.ShapeDtypeStruct((n, 4), jnp.float32),   # 4 waveform phases per latent step
            jax.ShapeDtypeStruct((1, 1), jnp.float32),   # VQ loss
            jax.ShapeDtypeStruct((1, 1), jnp.float32),   # perplexity
        ),
        in_specs=[_VMEM] * (3 + len(eff)),
        out_specs=(_VMEM, _VMEM, _VMEM),
    )(x_s2d, shd, shu, *eff)

    x_recon = recon.reshape(bsz, 1, t)           # (N,4) -> (B,1,T) phase interleave
    return loss[0, 0], x_recon, ppl[0, 0]


# ----------------------------------------------------------------------------
# Deterministic parameter init (synthetic, torch layouts; no checkpoint loading)
# ----------------------------------------------------------------------------
def init_params(key, num_hiddens, num_res_hiddens, num_res_layers, num_embeddings, embedding_dim):
    keys = iter(jax.random.split(key, 64))

    def nrm(shape, scale=0.05):
        return scale * jax.random.normal(next(keys), shape, dtype=jnp.float32)

    h, r = num_hiddens, num_res_hiddens
    e, d = num_embeddings, embedding_dim
    return {
        "enc_conv1_w": nrm((h // 2, 1, 4)),      "enc_conv1_b": nrm((h // 2,), 0.01),
        "enc_conv2_w": nrm((h, h // 2, 4)),      "enc_conv2_b": nrm((h,), 0.01),
        "enc_conv3_w": nrm((h, h, 3)),           "enc_conv3_b": nrm((h,), 0.01),
        "enc_res": [(nrm((r, h, 3)), nrm((h, r, 1))) for _ in range(num_res_layers)],
        "pre_vq_w": nrm((d, h, 1)),              "pre_vq_b": nrm((d,), 0.01),
        # VectorQuantizer embedding init: uniform(-1/E, 1/E)
        "embedding": (1.0 / e) * (2.0 * jax.random.uniform(next(keys), (e, d), dtype=jnp.float32) - 1.0),
        "dec_conv1_w": nrm((h, d, 3)),           "dec_conv1_b": nrm((h,), 0.01),
        "dec_res": [(nrm((r, h, 3)), nrm((h, r, 1))) for _ in range(num_res_layers)],
        "dec_trans1_w": nrm((h, h // 2, 4)),     "dec_trans1_b": nrm((h // 2,), 0.01),
        "dec_trans2_w": nrm((h // 2, 1, 4)),     "dec_trans2_b": nrm((1,), 0.01),
    }


if __name__ == "__main__":
    NUM_HIDDENS = 32
    NUM_RES_LAYERS = 2
    NUM_RES_HIDDENS = 16
    NUM_EMBEDDINGS = 64
    EMBEDDING_DIM = 16
    COMMITMENT_COST = 0.25

    key = jax.random.PRNGKey(0)
    pkey, xkey = jax.random.split(key)
    params = init_params(pkey, NUM_HIDDENS, NUM_RES_HIDDENS, NUM_RES_LAYERS,
                         NUM_EMBEDDINGS, EMBEDDING_DIM)

    # Raw-waveform input (B, 1, T): two stride-2 encoder convs -> latent length T/4.
    x = jax.random.normal(xkey, (2, 1, 64), dtype=jnp.float32)

    fwd = jax.jit(functools.partial(speech_vqvae_forward, commitment_cost=COMMITMENT_COST))
    loss, x_recon, perplexity = fwd(params, x)
    jax.block_until_ready((loss, x_recon, perplexity))

    assert x_recon.shape == (2, 1, 64)
    assert loss.shape == () and perplexity.shape == ()
    print("KERNEL_OK")
</pallas_src>

<mosaic_0001>
module attributes {stable_mosaic.version = 11 : i64} {
  func.func @_fused_vqvae_kernel(%arg0: memref<32x4xf32, #tpu.memory_space<vmem>>, %arg1: memref<32x32xf32, #tpu.memory_space<vmem>>, %arg2: memref<32x32xf32, #tpu.memory_space<vmem>>, %arg3: memref<3x4x32xf32, #tpu.memory_space<vmem>>, %arg4: memref<1x32xf32, #tpu.memory_space<vmem>>, %arg5: memref<3x32x32xf32, #tpu.memory_space<vmem>>, %arg6: memref<1x32xf32, #tpu.memory_space<vmem>>, %arg7: memref<3x32x32xf32, #tpu.memory_space<vmem>>, %arg8: memref<1x32xf32, #tpu.memory_space<vmem>>, %arg9: memref<3x32x16xf32, #tpu.memory_space<vmem>>, %arg10: memref<16x32xf32, #tpu.memory_space<vmem>>, %arg11: memref<3x32x16xf32, #tpu.memory_space<vmem>>, %arg12: memref<16x32xf32, #tpu.memory_space<vmem>>, %arg13: memref<32x16xf32, #tpu.memory_space<vmem>>, %arg14: memref<1x16xf32, #tpu.memory_space<vmem>>, %arg15: memref<64x16xf32, #tpu.memory_space<vmem>>, %arg16: memref<3x16x32xf32, #tpu.memory_space<vmem>>, %arg17: memref<1x32xf32, #tpu.memory_space<vmem>>, %arg18: memref<3x32x16xf32, #tpu.memory_space<vmem>>, %arg19: memref<16x32xf32, #tpu.memory_space<vmem>>, %arg20: memref<3x32x16xf32, #tpu.memory_space<vmem>>, %arg21: memref<16x32xf32, #tpu.memory_space<vmem>>, %arg22: memref<3x32x32xf32, #tpu.memory_space<vmem>>, %arg23: memref<1x32xf32, #tpu.memory_space<vmem>>, %arg24: memref<3x32x4xf32, #tpu.memory_space<vmem>>, %arg25: memref<1x4xf32, #tpu.memory_space<vmem>>, %arg26: memref<32x4xf32, #tpu.memory_space<vmem>>, %arg27: memref<1x1xf32, #tpu.memory_space<vmem>>, %arg28: memref<1x1xf32, #tpu.memory_space<vmem>>) attributes {dimension_semantics = [], scalar_prefetch = 0 : i64, scratch_operands = 0 : i64, tpu.core_type = #tpu.core_type<tc>} {
    %c0 = arith.constant 0 : index
    %c0_0 = arith.constant 0 : index
    %0 = vector.load %arg1[%c0, %c0_0] : memref<32x32xf32, #tpu.memory_space<vmem>>, vector<32x32xf32>
    %c0_1 = arith.constant 0 : index
    %c0_2 = arith.constant 0 : index
    %1 = vector.load %arg2[%c0_1, %c0_2] : memref<32x32xf32, #tpu.memory_space<vmem>>, vector<32x32xf32>
    %c0_3 = arith.constant 0 : index
    %c0_4 = arith.constant 0 : index
    %2 = vector.load %arg0[%c0_3, %c0_4] : memref<32x4xf32, #tpu.memory_space<vmem>>, vector<32x4xf32>
    %cst = arith.constant dense<0.000000e+00> : vector<32x4xf32>
    %3 = tpu.matmul %0, %2, %cst {dimension_numbers = #tpu.dot_dimension_numbers<[1], [0], [0], [1], [0, 0, 1, 1], [], []>} : vector<32x32xf32>, vector<32x4xf32>, vector<32x4xf32> -> vector<32x4xf32>
    %cst_5 = arith.constant dense<0.000000e+00> : vector<32x4xf32>
    %4 = tpu.matmul %1, %2, %cst_5 {dimension_numbers = #tpu.dot_dimension_numbers<[1], [0], [0], [1], [0, 0, 1, 1], [], []>} : vector<32x32xf32>, vector<32x4xf32>, vector<32x4xf32> -> vector<32x4xf32>
    %c0_6 = arith.constant 0 : index
    %c0_7 = arith.constant 0 : index
    %c0_8 = arith.constant 0 : index
    %5 = vector.load %arg3[%c0_6, %c0_7, %c0_8] : memref<3x4x32xf32, #tpu.memory_space<vmem>>, vector<1x4x32xf32>
    %6 = vector.shape_cast %5 : vector<1x4x32xf32> to vector<4x32xf32>
    %cst_9 = arith.constant dense<0.000000e+00> : vector<32x32xf32>
    %7 = tpu.matmul %3, %6, %cst_9 {dimension_numbers = #tpu.dot_dimension_numbers<[1], [0], [0], [1], [0, 0, 1, 1], [], []>} : vector<32x4xf32>, vector<4x32xf32>, vector<32x32xf32> -> vector<32x32xf32>
    %c1 = arith.constant 1 : index
    %c0_10 = arith.constant 0 : index
    %c0_11 = arith.constant 0 : index
    %8 = vector.load %arg3[%c1, %c0_10, %c0_11] : memref<3x4x32xf32, #tpu.memory_space<vmem>>, vector<1x4x32xf32>
    %9 = vector.shape_cast %8 : vector<1x4x32xf32> to vector<4x32xf32>
    %cst_12 = arith.constant dense<0.000000e+00> : vector<32x32xf32>
    %10 = tpu.matmul %2, %9, %cst_12 {dimension_numbers = #tpu.dot_dimension_numbers<[1], [0], [0], [1], [0, 0, 1, 1], [], []>} : vector<32x4xf32>, vector<4x32xf32>, vector<32x32xf32> -> vector<32x32xf32>
    %11 = arith.addf %7, %10 : vector<32x32xf32>
    %c2 = arith.constant 2 : index
    %c0_13 = arith.constant 0 : index
    %c0_14 = arith.constant 0 : index
    %12 = vector.load %arg3[%c2, %c0_13, %c0_14] : memref<3x4x32xf32, #tpu.memory_space<vmem>>, vector<1x4x32xf32>
    %13 = vector.shape_cast %12 : vector<1x4x32xf32> to vector<4x32xf32>
    %cst_15 = arith.constant dense<0.000000e+00> : vector<32x32xf32>
    %14 = tpu.matmul %4, %13, %cst_15 {dimension_numbers = #tpu.dot_dimension_numbers<[1], [0], [0], [1], [0, 0, 1, 1], [], []>} : vector<32x4xf32>, vector<4x32xf32>, vector<32x32xf32> -> vector<32x32xf32>
    %15 = arith.addf %11, %14 : vector<32x32xf32>
    %c0_16 = arith.constant 0 : index
    %c0_17 = arith.constant 0 : index
    %16 = vector.load %arg4[%c0_16, %c0_17] : memref<1x32xf32, #tpu.memory_space<vmem>>, vector<1x32xf32>
    %17 = vector.broadcast %16 : vector<1x32xf32> to vector<32x32xf32>
    %18 = arith.addf %15, %17 : vector<32x32xf32>
    %cst_18 = arith.constant 0.000000e+00 : f32
    %19 = vector.broadcast %cst_18 : f32 to vector<32x32xf32>
    %20 = arith.maximumf %18, %19 : vector<32x32xf32>
    %cst_19 = arith.constant dense<0.000000e+00> : vector<32x32xf32>
    %21 = tpu.matmul %0, %20, %cst_19 {dimension_numbers = #tpu.dot_dimension_numbers<[1], [0], [0], [1], [0, 0, 1, 1], [], []>} : vector<32x32xf32>, vector<32x32xf32>, vector<32x32xf32> -> vector<32x32xf32>
    %cst_20 = arith.constant dense<0.000000e+00> : vector<32x32xf32>
    %22 = tpu.matmul %1, %20, %cst_20 {dimension_numbers = #tpu.dot_dimension_numbers<[1], [0], [0], [1], [0, 0, 1, 1], [], []>} : vector<32x32xf32>, vector<32x32xf32>, vector<32x32xf32> -> vector<32x32xf32>
    %c0_21 = arith.constant 0 : index
    %c0_22 = arith.constant 0 : index
    %c0_23 = arith.constant 0 : index
    %23 = vector.load %arg5[%c0_21, %c0_22, %c0_23] : memref<3x32x32xf32, #tpu.memory_space<vmem>>, vector<1x32x32xf32>
    %24 = vector.shape_cast %23 : vector<1x32x32xf32> to vector<32x32xf32>
    %cst_24 = arith.constant dense<0.000000e+00> : vector<32x32xf32>
    %25 = tpu.matmul %21, %24, %cst_24 {dimension_numbers = #tpu.dot_dimension_numbers<[1], [0], [0], [1], [0, 0, 1, 1], [], []>} : vector<32x32xf32>, vector<32x32xf32>, vector<32x32xf32> -> vector<32x32xf32>
    %c1_25 = arith.constant 1 : index
    %c0_26 = arith.constant 0 : index
    %c0_27 = arith.constant 0 : index
    %26 = vector.load %arg5[%c1_25, %c0_26, %c0_27] : memref<3x32x32xf32, #tpu.memory_space<vmem>>, vector<1x32x32xf32>
    %27 = vector.shape_cast %26 : vector<1x32x32xf32> to vector<32x32xf32>
    %cst_28 = arith.constant dense<0.000000e+00> : vector<32x32xf32>
    %28 = tpu.matmul %20, %27, %cst_28 {dimension_numbers = #tpu.dot_dimension_numbers<[1], [0], [0], [1], [0, 0, 1, 1], [], []>} : vector<32x32xf32>, vector<32x32xf32>, vector<32x32xf32> -> vector<32x32xf32>
    %29 = arith.addf %25, %28 : vector<32x32xf32>
    %c2_29 = arith.constant 2 : index
    %c0_30 = arith.constant 0 : index
    %c0_31 = arith.constant 0 : index
    %30 = vector.load %arg5[%c2_29, %c0_30, %c0_31] : memref<3x32x32xf32, #tpu.memory_space<vmem>>, vector<1x32x32xf32>
    %31 = vector.shape_cast %30 : vector<1x32x32xf32> to vector<32x32xf32>
    %cst_32 = arith.constant dense<0.000000e+00> : vector<32x32xf32>
    %32 = tpu.matmul %22, %31, %cst_32 {dimension_numbers = #tpu.dot_dimension_numbers<[1], [0], [0], [1], [0, 0, 1, 1], [], []>} : vector<32x32xf32>, vector<32x32xf32>, vector<32x32xf32> -> vector<32x32xf32>
    %33 = arith.addf %29, %32 : vector<32x32xf32>
    %c0_33 = arith.constant 0 : index
    %c0_34 = arith.constant 0 : index
    %34 = vector.load %arg6[%c0_33, %c0_34] : memref<1x32xf32, #tpu.memory_space<vmem>>, vector<1x32xf32>
    %35 = vector.broadcast %34 : vector<1x32xf32> to vector<32x32xf32>
    %36 = arith.addf %33, %35 : vector<32x32xf32>
    %cst_35 = arith.constant 0.000000e+00 : f32
    %37 = vector.broadcast %cst_35 : f32 to vector<32x32xf32>
    %38 = arith.maximumf %36, %37 : vector<32x32xf32>
    %cst_36 = arith.constant dense<0.000000e+00> : vector<32x32xf32>
    %39 = tpu.matmul %0, %38, %cst_36 {dimension_numbers = #tpu.dot_dimension_numbers<[1], [0], [0], [1], [0, 0, 1, 1], [], []>} : vector<32x32xf32>, vector<32x32xf32>, vector<32x32xf32> -> vector<32x32xf32>
    %cst_37 = arith.constant dense<0.000000e+00> : vector<32x32xf32>
    %40 = tpu.matmul %1, %38, %cst_37 {dimension_numbers = #tpu.dot_dimension_numbers<[1], [0], [0], [1], [0, 0, 1, 1], [], []>} : vector<32x32xf32>, vector<32x32xf32>, vector<32x32xf32> -> vector<32x32xf32>
    %c0_38 = arith.constant 0 : index
    %c0_39 = arith.constant 0 : index
    %c0_40 = arith.constant 0 : index
    %41 = vector.load %arg7[%c0_38, %c0_39, %c0_40] : memref<3x32x32xf32, #tpu.memory_space<vmem>>, vector<1x32x32xf32>
    %42 = vector.shape_cast %41 : vector<1x32x32xf32> to vector<32x32xf32>
    %cst_41 = arith.constant dense<0.000000e+00> : vector<32x32xf32>
    %43 = tpu.matmul %39, %42, %cst_41 {dimension_numbers = #tpu.dot_dimension_numbers<[1], [0], [0], [1], [0, 0, 1, 1], [], []>} : vector<32x32xf32>, vector<32x32xf32>, vector<32x32xf32> -> vector<32x32xf32>
    %c1_42 = arith.constant 1 : index
    %c0_43 = arith.constant 0 : index
    %c0_44 = arith.constant 0 : index
    %44 = vector.load %arg7[%c1_42, %c0_43, %c0_44] : memref<3x32x32xf32, #tpu.memory_space<vmem>>, vector<1x32x32xf32>
    %45 = vector.shape_cast %44 : vector<1x32x32xf32> to vector<32x32xf32>
    %cst_45 = arith.constant dense<0.000000e+00> : vector<32x32xf32>
    %46 = tpu.matmul %38, %45, %cst_45 {dimension_numbers = #tpu.dot_dimension_numbers<[1], [0], [0], [1], [0, 0, 1, 1], [], []>} : vector<32x32xf32>, vector<32x32xf32>, vector<32x32xf32> -> vector<32x32xf32>
    %47 = arith.addf %43, %46 : vector<32x32xf32>
    %c2_46 = arith.constant 2 : index
    %c0_47 = arith.constant 0 : index
    %c0_48 = arith.constant 0 : index
    %48 = vector.load %arg7[%c2_46, %c0_47, %c0_48] : memref<3x32x32xf32, #tpu.memory_space<vmem>>, vector<1x32x32xf32>
    %49 = vector.shape_cast %48 : vector<1x32x32xf32> to vector<32x32xf32>
    %cst_49 = arith.constant dense<0.000000e+00> : vector<32x32xf32>
    %50 = tpu.matmul %40, %49, %cst_49 {dimension_numbers = #tpu.dot_dimension_numbers<[1], [0], [0], [1], [0, 0, 1, 1], [], []>} : vector<32x32xf32>, vector<32x32xf32>, vector<32x32xf32> -> vector<32x32xf32>
    %51 = arith.addf %47, %50 : vector<32x32xf32>
    %c0_50 = arith.constant 0 : index
    %c0_51 = arith.constant 0 : index
    %52 = vector.load %arg8[%c0_50, %c0_51] : memref<1x32xf32, #tpu.memory_space<vmem>>, vector<1x32xf32>
    %53 = vector.broadcast %52 : vector<1x32xf32> to vector<32x32xf32>
    %54 = arith.addf %51, %53 : vector<32x32xf32>
    %cst_52 = arith.constant 0.000000e+00 : f32
    %55 = vector.broadcast %cst_52 : f32 to vector<32x32xf32>
    %56 = arith.maximumf %54, %55 : vector<32x32xf32>
    %cst_53 = arith.constant dense<0.000000e+00> : vector<32x32xf32>
    %57 = tpu.matmul %0, %56, %cst_53 {dimension_numbers = #tpu.dot_dimension_numbers<[1], [0], [0], [1], [0, 0, 1, 1], [], []>} : vector<32x32xf32>, vector<32x32xf32>, vector<32x32xf32> -> vector<32x32xf32>
    %cst_54 = arith.constant dense<0.000000e+00> : vector<32x32xf32>
    %58 = tpu.matmul %1, %56, %cst_54 {dimension_numbers = #tpu.dot_dimension_numbers<[1], [0], [0], [1], [0, 0, 1, 1], [], []>} : vector<32x32xf32>, vector<32x32xf32>, vector<32x32xf32> -> vector<32x32xf32>
    %c0_55 = arith.constant 0 : index
    %c0_56 = arith.constant 0 : index
    %c0_57 = arith.constant 0 : index
    %59 = vector.load %arg9[%c0_55, %c0_56, %c0_57] : memref<3x32x16xf32, #tpu.memory_space<vmem>>, vector<1x32x16xf32>
    %60 = vector.shape_cast %59 : vector<1x32x16xf32> to vector<32x16xf32>
    %cst_58 = arith.constant dense<0.000000e+00> : vector<32x16xf32>
    %61 = tpu.matmul %57, %60, %cst_58 {dimension_numbers = #tpu.dot_dimension_numbers<[1], [0], [0], [1], [0, 0, 1, 1], [], []>} : vector<32x32xf32>, vector<32x16xf32>, vector<32x16xf32> -> vector<32x16xf32>
    %c1_59 = arith.constant 1 : index
    %c0_60 = arith.constant 0 : index
    %c0_61 = arith.constant 0 : index
    %62 = vector.load %arg9[%c1_59, %c0_60, %c0_61] : memref<3x32x16xf32, #tpu.memory_space<vmem>>, vector<1x32x16xf32>
    %63 = vector.shape_cast %62 : vector<1x32x16xf32> to vector<32x16xf32>
    %cst_62 = arith.constant dense<0.000000e+00> : vector<32x16xf32>
    %64 = tpu.matmul %56, %63, %cst_62 {dimension_numbers = #tpu.dot_dimension_numbers<[1], [0], [0], [1], [0, 0, 1, 1], [], []>} : vector<32x32xf32>, vector<32x16xf32>, vector<32x16xf32> -> vector<32x16xf32>
    %65 = arith.addf %61, %64 : vector<32x16xf32>
    %c2_63 = arith.constant 2 : index
    %c0_64 = arith.constant 0 : index
    %c0_65 = arith.constant 0 : index
    %66 = vector.load %arg9[%c2_63, %c0_64, %c0_65] : memref<3x32x16xf32, #tpu.memory_space<vmem>>, vector<1x32x16xf32>
    %67 = vector.shape_cast %66 : vector<1x32x16xf32> to vector<32x16xf32>
    %cst_66 = arith.constant dense<0.000000e+00> : vector<32x16xf32>
    %68 = tpu.matmul %58, %67, %cst_66 {dimension_numbers = #tpu.dot_dimension_numbers<[1], [0], [0], [1], [0, 0, 1, 1], [], []>} : vector<32x32xf32>, vector<32x16xf32>, vector<32x16xf32> -> vector<32x16xf32>
    %69 = arith.addf %65, %68 : vector<32x16xf32>
    %cst_67 = arith.constant 0.000000e+00 : f32
    %70 = vector.broadcast %cst_67 : f32 to vector<32x16xf32>
    %71 = arith.maximumf %69, %70 : vector<32x16xf32>
    %c0_68 = arith.constant 0 : index
    %c0_69 = arith.constant 0 : index
    %72 = vector.load %arg10[%c0_68, %c0_69] : memref<16x32xf32, #tpu.memory_space<vmem>>, vector<16x32xf32>
    %cst_70 = arith.constant dense<0.000000e+00> : vector<32x32xf32>
    %73 = tpu.matmul %71, %72, %cst_70 {dimension_numbers = #tpu.dot_dimension_numbers<[1], [0], [0], [1], [0, 0, 1, 1], [], []>} : vector<32x16xf32>, vector<16x32xf32>, vector<32x32xf32> -> vector<32x32xf32>
    %74 = arith.addf %54, %73 : vector<32x32xf32>
    %cst_71 = arith.constant 0.000000e+00 : f32
    %75 = vector.broadcast %cst_71 : f32 to vector<32x32xf32>
    %76 = arith.maximumf %74, %75 : vector<32x32xf32>
    %cst_72 = arith.constant dense<0.000000e+00> : vector<32x32xf32>
    %77 = tpu.matmul %0, %76, %cst_72 {dimension_numbers = #tpu.dot_dimension_numbers<[1], [0], [0], [1], [0, 0, 1, 1], [], []>} : vector<32x32xf32>, vector<32x32xf32>, vector<32x32xf32> -> vector<32x32xf32>
    %cst_73 = arith.constant dense<0.000000e+00> : vector<32x32xf32>
    %78 = tpu.matmul %1, %76, %cst_73 {dimension_numbers = #tpu.dot_dimension_numbers<[1], [0], [0], [1], [0, 0, 1, 1], [], []>} : vector<32x32xf32>, vector<32x32xf32>, vector<32x32xf32> -> vector<32x32xf32>
    %c0_74 = arith.constant 0 : index
    %c0_75 = arith.constant 0 : index
    %c0_76 = arith.constant 0 : index
    %79 = vector.load %arg11[%c0_74, %c0_75, %c0_76] : memref<3x32x16xf32, #tpu.memory_space<vmem>>, vector<1x32x16xf32>
    %80 = vector.shape_cast %79 : vector<1x32x16xf32> to vector<32x16xf32>
    %cst_77 = arith.constant dense<0.000000e+00> : vector<32x16xf32>
    %81 = tpu.matmul %77, %80, %cst_77 {dimension_numbers = #tpu.dot_dimension_numbers<[1], [0], [0], [1], [0, 0, 1, 1], [], []>} : vector<32x32xf32>, vector<32x16xf32>, vector<32x16xf32> -> vector<32x16xf32>
    %c1_78 = arith.constant 1 : index
    %c0_79 = arith.constant 0 : index
    %c0_80 = arith.constant 0 : index
    %82 = vector.load %arg11[%c1_78, %c0_79, %c0_80] : memref<3x32x16xf32, #tpu.memory_space<vmem>>, vector<1x32x16xf32>
    %83 = vector.shape_cast %82 : vector<1x32x16xf32> to vector<32x16xf32>
    %cst_81 = arith.constant dense<0.000000e+00> : vector<32x16xf32>
    %84 = tpu.matmul %76, %83, %cst_81 {dimension_numbers = #tpu.dot_dimension_numbers<[1], [0], [0], [1], [0, 0, 1, 1], [], []>} : vector<32x32xf32>, vector<32x16xf32>, vector<32x16xf32> -> vector<32x16xf32>
    %85 = arith.addf %81, %84 : vector<32x16xf32>
    %c2_82 = arith.constant 2 : index
    %c0_83 = arith.constant 0 : index
    %c0_84 = arith.constant 0 : index
    %86 = vector.load %arg11[%c2_82, %c0_83, %c0_84] : memref<3x32x16xf32, #tpu.memory_space<vmem>>, vector<1x32x16xf32>
    %87 = vector.shape_cast %86 : vector<1x32x16xf32> to vector<32x16xf32>
    %cst_85 = arith.constant dense<0.000000e+00> : vector<32x16xf32>
    %88 = tpu.matmul %78, %87, %cst_85 {dimension_numbers = #tpu.dot_dimension_numbers<[1], [0], [0], [1], [0, 0, 1, 1], [], []>} : vector<32x32xf32>, vector<32x16xf32>, vector<32x16xf32> -> vector<32x16xf32>
    %89 = arith.addf %85, %88 : vector<32x16xf32>
    %cst_86 = arith.constant 0.000000e+00 : f32
    %90 = vector.broadcast %cst_86 : f32 to vector<32x16xf32>
    %91 = arith.maximumf %89, %90 : vector<32x16xf32>
    %c0_87 = arith.constant 0 : index
    %c0_88 = arith.constant 0 : index
    %92 = vector.load %arg12[%c0_87, %c0_88] : memref<16x32xf32, #tpu.memory_space<vmem>>, vector<16x32xf32>
    %cst_89 = arith.constant dense<0.000000e+00> : vector<32x32xf32>
    %93 = tpu.matmul %91, %92, %cst_89 {dimension_numbers = #tpu.dot_dimension_numbers<[1], [0], [0], [1], [0, 0, 1, 1], [], []>} : vector<32x16xf32>, vector<16x32xf32>, vector<32x32xf32> -> vector<32x32xf32>
    %94 = arith.addf %74, %93 : vector<32x32xf32>
    %cst_90 = arith.constant 0.000000e+00 : f32
    %95 = vector.broadcast %cst_90 : f32 to vector<32x32xf32>
    %96 = arith.maximumf %94, %95 : vector<32x32xf32>
    %c0_91 = arith.constant 0 : index
    %c0_92 = arith.constant 0 : index
    %97 = vector.load %arg13[%c0_91, %c0_92] : memref<32x16xf32, #tpu.memory_space<vmem>>, vector<32x16xf32>
    %cst_93 = arith.constant dense<0.000000e+00> : vector<32x16xf32>
    %98 = tpu.matmul %96, %97, %cst_93 {dimension_numbers = #tpu.dot_dimension_numbers<[1], [0], [0], [1], [0, 0, 1, 1], [], []>} : vector<32x32xf32>, vector<32x16xf32>, vector<32x16xf32> -> vector<32x16xf32>
    %c0_94 = arith.constant 0 : index
    %c0_95 = arith.constant 0 : index
    %99 = vector.load %arg14[%c0_94, %c0_95] : memref<1x16xf32, #tpu.memory_space<vmem>>, vector<1x16xf32>
    %100 = vector.broadcast %99 : vector<1x16xf32> to vector<32x16xf32>
    %101 = arith.addf %98, %100 : vector<32x16xf32>
    %c0_96 = arith.constant 0 : index
    %c0_97 = arith.constant 0 : index
    %102 = vector.load %arg15[%c0_96, %c0_97] : memref<64x16xf32, #tpu.memory_space<vmem>>, vector<64x16xf32>
    %103 = arith.mulf %101, %101 : vector<32x16xf32>
    %cst_98 = arith.constant dense<0.000000e+00> : vector<32xf32>
    %104 = vector.multi_reduction <add>, %103, %cst_98 [1] : vector<32x16xf32> to vector<32xf32>
    %105 = vector.shape_cast %104 : vector<32xf32> to vector<32x1xf32>
    %cst_99 = arith.constant dense<0.000000e+00> : vector<32x64xf32>
    %106 = tpu.matmul %101, %102, %cst_99 {dimension_numbers = #tpu.dot_dimension_numbers<[1], [1], [0], [0], [0, 0, 1, 0], [], []>} : vector<32x16xf32>, vector<64x16xf32>, vector<32x64xf32> -> vector<32x64xf32>
    %cst_100 = arith.constant 1.000000e+00 : f32
    %107 = vector.broadcast %cst_100 : f32 to vector<32x16xf32>
    %108 = arith.mulf %102, %102 : vector<64x16xf32>
    %cst_101 = arith.constant dense<0.000000e+00> : vector<32x64xf32>
    %109 = tpu.matmul %107, %108, %cst_101 {dimension_numbers = #tpu.dot_dimension_numbers<[1], [1], [0], [0], [0, 0, 1, 0], [], []>} : vector<32x16xf32>, vector<64x16xf32>, vector<32x64xf32> -> vector<32x64xf32>
    %cst_102 = arith.constant 2.000000e+00 : f32
    %110 = vector.broadcast %cst_102 : f32 to vector<32x64xf32>
    %111 = arith.mulf %110, %106 : vector<32x64xf32>
    %112 = vector.broadcast %105 : vector<32x1xf32> to vector<32x64xf32>
    %113 = arith.subf %112, %111 : vector<32x64xf32>
    %114 = arith.addf %113, %109 : vector<32x64xf32>
    %cst_103 = arith.constant dense<0x7F800000> : vector<32xf32>
    %115 = vector.multi_reduction <minimumf>, %114, %cst_103 [1] : vector<32x64xf32> to vector<32xf32>
    %116 = vector.shape_cast %115 : vector<32xf32> to vector<32x1xf32>
    %117 = tpu.iota {dimensions = array<i32: 1>} : vector<32x64xi32>
    %118 = vector.broadcast %116 : vector<32x1xf32> to vector<32x64xf32>
    %119 = arith.cmpf ole, %114, %118 : vector<32x64xf32>
    %c64_i32 = arith.constant 64 : i32
    %120 = vector.broadcast %c64_i32 : i32 to vector<32x64xi32>
    %121 = arith.select %119, %117, %120 : vector<32x64xi1>, vector<32x64xi32>
    %cst_104 = arith.constant dense<2147483647> : vector<32xi32>
    %122 = vector.multi_reduction <minsi>, %121, %cst_104 [1] : vector<32x64xi32> to vector<32xi32>
    %123 = vector.shape_cast %122 : vector<32xi32> to vector<32x1xi32>
    %124 = vector.broadcast %123 : vector<32x1xi32> to vector<32x64xi32>
    %125 = arith.cmpi eq, %117, %124 : vector<32x64xi32>
    %126 = arith.extui %125 : vector<32x64xi1> to vector<32x64xi32>
    %127 = arith.sitofp %126 : vector<32x64xi32> to vector<32x64xf32>
    %cst_105 = arith.constant dense<0.000000e+00> : vector<32x16xf32>
    %128 = tpu.matmul %127, %102, %cst_105 {dimension_numbers = #tpu.dot_dimension_numbers<[1], [0], [0], [1], [0, 0, 1, 1], [], []>} : vector<32x64xf32>, vector<64x16xf32>, vector<32x16xf32> -> vector<32x16xf32>
    %129 = arith.subf %128, %101 : vector<32x16xf32>
    %130 = arith.subf %128, %101 : vector<32x16xf32>
    %131 = arith.mulf %129, %130 : vector<32x16xf32>
    %cst_106 = arith.constant dense<0.000000e+00> : vector<32xf32>
    %132 = vector.multi_reduction <add>, %131, %cst_106 [1] : vector<32x16xf32> to vector<32xf32>
    %133 = vector.shape_cast %132 : vector<32xf32> to vector<32x1xf32>
    %cst_107 = arith.constant dense<0.000000e+00> : vector<1xf32>
    %134 = vector.multi_reduction <add>, %133, %cst_107 [0] : vector<32x1xf32> to vector<1xf32>
    %135 = vector.shape_cast %134 : vector<1xf32> to vector<1x1xf32>
    %cst_108 = arith.constant 5.120000e+02 : f32
    %136 = vector.broadcast %cst_108 : f32 to vector<1x1xf32>
    %137 = arith.divf %135, %136 : vector<1x1xf32>
    %cst_109 = arith.constant 1.250000e+00 : f32
    %138 = vector.broadcast %cst_109 : f32 to vector<1x1xf32>
    %139 = arith.mulf %138, %137 : vector<1x1xf32>
    %c0_110 = arith.constant 0 : index
    %c0_111 = arith.constant 0 : index
    %140 = vector.load %arg27[%c0_110, %c0_111] : memref<1x1xf32, #tpu.memory_space<vmem>>, vector<1x1xf32>
    tpu.vector_store %arg27[%c0_110, %c0_111], %139 {strides = array<i32>} : memref<1x1xf32, #tpu.memory_space<vmem>>, vector<1x1xf32>,
    %cst_112 = arith.constant dense<0.000000e+00> : vector<64xf32>
    %141 = vector.multi_reduction <add>, %127, %cst_112 [0] : vector<32x64xf32> to vector<64xf32>
    %142 = vector.shape_cast %141 : vector<64xf32> to vector<1x64xf32>
    %cst_113 = arith.constant 3.200000e+01 : f32
    %143 = vector.broadcast %cst_113 : f32 to vector<1x64xf32>
    %144 = arith.divf %142, %143 : vector<1x64xf32>
    %cst_114 = arith.constant 1.000000e-10 : f32
    %145 = vector.broadcast %cst_114 : f32 to vector<1x64xf32>
    %146 = arith.addf %144, %145 : vector<1x64xf32>
    %147 = math.log %146 : vector<1x64xf32>
    %148 = arith.mulf %144, %147 : vector<1x64xf32>
    %cst_115 = arith.constant dense<0.000000e+00> : vector<1xf32>
    %149 = vector.multi_reduction <add>, %148, %cst_115 [1] : vector<1x64xf32> to vector<1xf32>
    %150 = vector.shape_cast %149 : vector<1xf32> to vector<1x1xf32>
    %cst_116 = arith.constant 0.000000e+00 : f32
    %151 = vector.broadcast %cst_116 : f32 to vector<1x1xf32>
    %152 = arith.subf %151, %150 : vector<1x1xf32>
    %153 = math.exp %152 : vector<1x1xf32>
    %c0_117 = arith.constant 0 : index
    %c0_118 = arith.constant 0 : index
    %154 = vector.load %arg28[%c0_117, %c0_118] : memref<1x1xf32, #tpu.memory_space<vmem>>, vector<1x1xf32>
    tpu.vector_store %arg28[%c0_117, %c0_118], %153 {strides = array<i32>} : memref<1x1xf32, #tpu.memory_space<vmem>>, vector<1x1xf32>,
    %cst_119 = arith.constant dense<0.000000e+00> : vector<32x16xf32>
    %155 = tpu.matmul %0, %128, %cst_119 {dimension_numbers = #tpu.dot_dimension_numbers<[1], [0], [0], [1], [0, 0, 1, 1], [], []>} : vector<32x32xf32>, vector<32x16xf32>, vector<32x16xf32> -> vector<32x16xf32>
    %cst_120 = arith.constant dense<0.000000e+00> : vector<32x16xf32>
    %156 = tpu.matmul %1, %128, %cst_120 {dimension_numbers = #tpu.dot_dimension_numbers<[1], [0], [0], [1], [0, 0, 1, 1], [], []>} : vector<32x32xf32>, vector<32x16xf32>, vector<32x16xf32> -> vector<32x16xf32>
    %c0_121 = arith.constant 0 : index
    %c0_122 = arith.constant 0 : index
    %c0_123 = arith.constant 0 : index
    %157 = vector.load %arg16[%c0_121, %c0_122, %c0_123] : memref<3x16x32xf32, #tpu.memory_space<vmem>>, vector<1x16x32xf32>
    %158 = vector.shape_cast %157 : vector<1x16x32xf32> to vector<16x32xf32>
    %cst_124 = arith.constant dense<0.000000e+00> : vector<32x32xf32>
    %159 = tpu.matmul %155, %158, %cst_124 {dimension_numbers = #tpu.dot_dimension_numbers<[1], [0], [0], [1], [0, 0, 1, 1], [], []>} : vector<32x16xf32>, vector<16x32xf32>, vector<32x32xf32> -> vector<32x32xf32>
    %c1_125 = arith.constant 1 : index
    %c0_126 = arith.constant 0 : index
    %c0_127 = arith.constant 0 : index
    %160 = vector.load %arg16[%c1_125, %c0_126, %c0_127] : memref<3x16x32xf32, #tpu.memory_space<vmem>>, vector<1x16x32xf32>
    %161 = vector.shape_cast %160 : vector<1x16x32xf32> to vector<16x32xf32>
    %cst_128 = arith.constant dense<0.000000e+00> : vector<32x32xf32>
    %162 = tpu.matmul %128, %161, %cst_128 {dimension_numbers = #tpu.dot_dimension_numbers<[1], [0], [0], [1], [0, 0, 1, 1], [], []>} : vector<32x16xf32>, vector<16x32xf32>, vector<32x32xf32> -> vector<32x32xf32>
    %163 = arith.addf %159, %162 : vector<32x32xf32>
    %c2_129 = arith.constant 2 : index
    %c0_130 = arith.constant 0 : index
    %c0_131 = arith.constant 0 : index
    %164 = vector.load %arg16[%c2_129, %c0_130, %c0_131] : memref<3x16x32xf32, #tpu.memory_space<vmem>>, vector<1x16x32xf32>
    %165 = vector.shape_cast %164 : vector<1x16x32xf32> to vector<16x32xf32>
    %cst_132 = arith.constant dense<0.000000e+00> : vector<32x32xf32>
    %166 = tpu.matmul %156, %165, %cst_132 {dimension_numbers = #tpu.dot_dimension_numbers<[1], [0], [0], [1], [0, 0, 1, 1], [], []>} : vector<32x16xf32>, vector<16x32xf32>, vector<32x32xf32> -> vector<32x32xf32>
    %167 = arith.addf %163, %166 : vector<32x32xf32>
    %c0_133 = arith.constant 0 : index
    %c0_134 = arith.constant 0 : index
    %168 = vector.load %arg17[%c0_133, %c0_134] : memref<1x32xf32, #tpu.memory_space<vmem>>, vector<1x32xf32>
    %169 = vector.broadcast %168 : vector<1x32xf32> to vector<32x32xf32>
    %170 = arith.addf %167, %169 : vector<32x32xf32>
    %cst_135 = arith.constant 0.000000e+00 : f32
    %171 = vector.broadcast %cst_135 : f32 to vector<32x32xf32>
    %172 = arith.maximumf %170, %171 : vector<32x32xf32>
    %cst_136 = arith.constant dense<0.000000e+00> : vector<32x32xf32>
    %173 = tpu.matmul %0, %172, %cst_136 {dimension_numbers = #tpu.dot_dimension_numbers<[1], [0], [0], [1], [0, 0, 1, 1], [], []>} : vector<32x32xf32>, vector<32x32xf32>, vector<32x32xf32> -> vector<32x32xf32>
    %cst_137 = arith.constant dense<0.000000e+00> : vector<32x32xf32>
    %174 = tpu.matmul %1, %172, %cst_137 {dimension_numbers = #tpu.dot_dimension_numbers<[1], [0], [0], [1], [0, 0, 1, 1], [], []>} : vector<32x32xf32>, vector<32x32xf32>, vector<32x32xf32> -> vector<32x32xf32>
    %c0_138 = arith.constant 0 : index
    %c0_139 = arith.constant 0 : index
    %c0_140 = arith.constant 0 : index
    %175 = vector.load %arg18[%c0_138, %c0_139, %c0_140] : memref<3x32x16xf32, #tpu.memory_space<vmem>>, vector<1x32x16xf32>
    %176 = vector.shape_cast %175 : vector<1x32x16xf32> to vector<32x16xf32>
    %cst_141 = arith.constant dense<0.000000e+00> : vector<32x16xf32>
    %177 = tpu.matmul %173, %176, %cst_141 {dimension_numbers = #tpu.dot_dimension_numbers<[1], [0], [0], [1], [0, 0, 1, 1], [], []>} : vector<32x32xf32>, vector<32x16xf32>, vector<32x16xf32> -> vector<32x16xf32>
    %c1_142 = arith.constant 1 : index
    %c0_143 = arith.constant 0 : index
    %c0_144 = arith.constant 0 : index
    %178 = vector.load %arg18[%c1_142, %c0_143, %c0_144] : memref<3x32x16xf32, #tpu.memory_space<vmem>>, vector<1x32x16xf32>
    %179 = vector.shape_cast %178 : vector<1x32x16xf32> to vector<32x16xf32>
    %cst_145 = arith.constant dense<0.000000e+00> : vector<32x16xf32>
    %180 = tpu.matmul %172, %179, %cst_145 {dimension_numbers = #tpu.dot_dimension_numbers<[1], [0], [0], [1], [0, 0, 1, 1], [], []>} : vector<32x32xf32>, vector<32x16xf32>, vector<32x16xf32> -> vector<32x16xf32>
    %181 = arith.addf %177, %180 : vector<32x16xf32>
    %c2_146 = arith.constant 2 : index
    %c0_147 = arith.constant 0 : index
    %c0_148 = arith.constant 0 : index
    %182 = vector.load %arg18[%c2_146, %c0_147, %c0_148] : memref<3x32x16xf32, #tpu.memory_space<vmem>>, vector<1x32x16xf32>
    %183 = vector.shape_cast %182 : vector<1x32x16xf32> to vector<32x16xf32>
    %cst_149 = arith.constant dense<0.000000e+00> : vector<32x16xf32>
    %184 = tpu.matmul %174, %183, %cst_149 {dimension_numbers = #tpu.dot_dimension_numbers<[1], [0], [0], [1], [0, 0, 1, 1], [], []>} : vector<32x32xf32>, vector<32x16xf32>, vector<32x16xf32> -> vector<32x16xf32>
    %185 = arith.addf %181, %184 : vector<32x16xf32>
    %cst_150 = arith.constant 0.000000e+00 : f32
    %186 = vector.broadcast %cst_150 : f32 to vector<32x16xf32>
    %187 = arith.maximumf %185, %186 : vector<32x16xf32>
    %c0_151 = arith.constant 0 : index
    %c0_152 = arith.constant 0 : index
    %188 = vector.load %arg19[%c0_151, %c0_152] : memref<16x32xf32, #tpu.memory_space<vmem>>, vector<16x32xf32>
    %cst_153 = arith.constant dense<0.000000e+00> : vector<32x32xf32>
    %189 = tpu.matmul %187, %188, %cst_153 {dimension_numbers = #tpu.dot_dimension_numbers<[1], [0], [0], [1], [0, 0, 1, 1], [], []>} : vector<32x16xf32>, vector<16x32xf32>, vector<32x32xf32> -> vector<32x32xf32>
    %190 = arith.addf %170, %189 : vector<32x32xf32>
    %cst_154 = arith.constant 0.000000e+00 : f32
    %191 = vector.broadcast %cst_154 : f32 to vector<32x32xf32>
    %192 = arith.maximumf %190, %191 : vector<32x32xf32>
    %cst_155 = arith.constant dense<0.000000e+00> : vector<32x32xf32>
    %193 = tpu.matmul %0, %192, %cst_155 {dimension_numbers = #tpu.dot_dimension_numbers<[1], [0], [0], [1], [0, 0, 1, 1], [], []>} : vector<32x32xf32>, vector<32x32xf32>, vector<32x32xf32> -> vector<32x32xf32>
    %cst_156 = arith.constant dense<0.000000e+00> : vector<32x32xf32>
    %194 = tpu.matmul %1, %192, %cst_156 {dimension_numbers = #tpu.dot_dimension_numbers<[1], [0], [0], [1], [0, 0, 1, 1], [], []>} : vector<32x32xf32>, vector<32x32xf32>, vector<32x32xf32> -> vector<32x32xf32>
    %c0_157 = arith.constant 0 : index
    %c0_158 = arith.constant 0 : index
    %c0_159 = arith.constant 0 : index
    %195 = vector.load %arg20[%c0_157, %c0_158, %c0_159] : memref<3x32x16xf32, #tpu.memory_space<vmem>>, vector<1x32x16xf32>
    %196 = vector.shape_cast %195 : vector<1x32x16xf32> to vector<32x16xf32>
    %cst_160 = arith.constant dense<0.000000e+00> : vector<32x16xf32>
    %197 = tpu.matmul %193, %196, %cst_160 {dimension_numbers = #tpu.dot_dimension_numbers<[1], [0], [0], [1], [0, 0, 1, 1], [], []>} : vector<32x32xf32>, vector<32x16xf32>, vector<32x16xf32> -> vector<32x16xf32>
    %c1_161 = arith.constant 1 : index
    %c0_162 = arith.constant 0 : index
    %c0_163 = arith.constant 0 : index
    %198 = vector.load %arg20[%c1_161, %c0_162, %c0_163] : memref<3x32x16xf32, #tpu.memory_space<vmem>>, vector<1x32x16xf32>
    %199 = vector.shape_cast %198 : vector<1x32x16xf32> to vector<32x16xf32>
    %cst_164 = arith.constant dense<0.000000e+00> : vector<32x16xf32>
    %200 = tpu.matmul %192, %199, %cst_164 {dimension_numbers = #tpu.dot_dimension_numbers<[1], [0], [0], [1], [0, 0, 1, 1], [], []>} : vector<32x32xf32>, vector<32x16xf32>, vector<32x16xf32> -> vector<32x16xf32>
    %201 = arith.addf %197, %200 : vector<32x16xf32>
    %c2_165 = arith.constant 2 : index
    %c0_166 = arith.constant 0 : index
    %c0_167 = arith.constant 0 : index
    %202 = vector.load %arg20[%c2_165, %c0_166, %c0_167] : memref<3x32x16xf32, #tpu.memory_space<vmem>>, vector<1x32x16xf32>
    %203 = vector.shape_cast %202 : vector<1x32x16xf32> to vector<32x16xf32>
    %cst_168 = arith.constant dense<0.000000e+00> : vector<32x16xf32>
    %204 = tpu.matmul %194, %203, %cst_168 {dimension_numbers = #tpu.dot_dimension_numbers<[1], [0], [0], [1], [0, 0, 1, 1], [], []>} : vector<32x32xf32>, vector<32x16xf32>, vector<32x16xf32> -> vector<32x16xf32>
    %205 = arith.addf %201, %204 : vector<32x16xf32>
    %cst_169 = arith.constant 0.000000e+00 : f32
    %206 = vector.broadcast %cst_169 : f32 to vector<32x16xf32>
    %207 = arith.maximumf %205, %206 : vector<32x16xf32>
    %c0_170 = arith.constant 0 : index
    %c0_171 = arith.constant 0 : index
    %208 = vector.load %arg21[%c0_170, %c0_171] : memref<16x32xf32, #tpu.memory_space<vmem>>, vector<16x32xf32>
    %cst_172 = arith.constant dense<0.000000e+00> : vector<32x32xf32>
    %209 = tpu.matmul %207, %208, %cst_172 {dimension_numbers = #tpu.dot_dimension_numbers<[1], [0], [0], [1], [0, 0, 1, 1], [], []>} : vector<32x16xf32>, vector<16x32xf32>, vector<32x32xf32> -> vector<32x32xf32>
    %210 = arith.addf %190, %209 : vector<32x32xf32>
    %cst_173 = arith.constant 0.000000e+00 : f32
    %211 = vector.broadcast %cst_173 : f32 to vector<32x32xf32>
    %212 = arith.maximumf %210, %211 : vector<32x32xf32>
    %cst_174 = arith.constant dense<0.000000e+00> : vector<32x32xf32>
    %213 = tpu.matmul %0, %212, %cst_174 {dimension_numbers = #tpu.dot_dimension_numbers<[1], [0], [0], [1], [0, 0, 1, 1], [], []>} : vector<32x32xf32>, vector<32x32xf32>, vector<32x32xf32> -> vector<32x32xf32>
    %cst_175 = arith.constant dense<0.000000e+00> : vector<32x32xf32>
    %214 = tpu.matmul %1, %212, %cst_175 {dimension_numbers = #tpu.dot_dimension_numbers<[1], [0], [0], [1], [0, 0, 1, 1], [], []>} : vector<32x32xf32>, vector<32x32xf32>, vector<32x32xf32> -> vector<32x32xf32>
    %c0_176 = arith.constant 0 : index
    %c0_177 = arith.constant 0 : index
    %c0_178 = arith.constant 0 : index
    %215 = vector.load %arg22[%c0_176, %c0_177, %c0_178] : memref<3x32x32xf32, #tpu.memory_space<vmem>>, vector<1x32x32xf32>
    %216 = vector.shape_cast %215 : vector<1x32x32xf32> to vector<32x32xf32>
    %cst_179 = arith.constant dense<0.000000e+00> : vector<32x32xf32>
    %217 = tpu.matmul %213, %216, %cst_179 {dimension_numbers = #tpu.dot_dimension_numbers<[1], [0], [0], [1], [0, 0, 1, 1], [], []>} : vector<32x32xf32>, vector<32x32xf32>, vector<32x32xf32> -> vector<32x32xf32>
    %c1_180 = arith.constant 1 : index
    %c0_181 = arith.constant 0 : index
    %c0_182 = arith.constant 0 : index
    %218 = vector.load %arg22[%c1_180, %c0_181, %c0_182] : memref<3x32x32xf32, #tpu.memory_space<vmem>>, vector<1x32x32xf32>
    %219 = vector.shape_cast %218 : vector<1x32x32xf32> to vector<32x32xf32>
    %cst_183 = arith.constant dense<0.000000e+00> : vector<32x32xf32>
    %220 = tpu.matmul %212, %219, %cst_183 {dimension_numbers = #tpu.dot_dimension_numbers<[1], [0], [0], [1], [0, 0, 1, 1], [], []>} : vector<32x32xf32>, vector<32x32xf32>, vector<32x32xf32> -> vector<32x32xf32>
    %221 = arith.addf %217, %220 : vector<32x32xf32>
    %c2_184 = arith.constant 2 : index
    %c0_185 = arith.constant 0 : index
    %c0_186 = arith.constant 0 : index
    %222 = vector.load %arg22[%c2_184, %c0_185, %c0_186] : memref<3x32x32xf32, #tpu.memory_space<vmem>>, vector<1x32x32xf32>
    %223 = vector.shape_cast %222 : vector<1x32x32xf32> to vector<32x32xf32>
    %cst_187 = arith.constant dense<0.000000e+00> : vector<32x32xf32>
    %224 = tpu.matmul %214, %223, %cst_187 {dimension_numbers = #tpu.dot_dimension_numbers<[1], [0], [0], [1], [0, 0, 1, 1], [], []>} : vector<32x32xf32>, vector<32x32xf32>, vector<32x32xf32> -> vector<32x32xf32>
    %225 = arith.addf %221, %224 : vector<32x32xf32>
    %c0_188 = arith.constant 0 : index
    %c0_189 = arith.constant 0 : index
    %226 = vector.load %arg23[%c0_188, %c0_189] : memref<1x32xf32, #tpu.memory_space<vmem>>, vector<1x32xf32>
    %227 = vector.broadcast %226 : vector<1x32xf32> to vector<32x32xf32>
    %228 = arith.addf %225, %227 : vector<32x32xf32>
    %cst_190 = arith.constant 0.000000e+00 : f32
    %229 = vector.broadcast %cst_190 : f32 to vector<32x32xf32>
    %230 = arith.maximumf %228, %229 : vector<32x32xf32>
    %cst_191 = arith.constant dense<0.000000e+00> : vector<32x32xf32>
    %231 = tpu.matmul %0, %230, %cst_191 {dimension_numbers = #tpu.dot_dimension_numbers<[1], [0], [0], [1], [0, 0, 1, 1], [], []>} : vector<32x32xf32>, vector<32x32xf32>, vector<32x32xf32> -> vector<32x32xf32>
    %cst_192 = arith.constant dense<0.000000e+00> : vector<32x32xf32>
    %232 = tpu.matmul %1, %230, %cst_192 {dimension_numbers = #tpu.dot_dimension_numbers<[1], [0], [0], [1], [0, 0, 1, 1], [], []>} : vector<32x32xf32>, vector<32x32xf32>, vector<32x32xf32> -> vector<32x32xf32>
    %c0_193 = arith.constant 0 : index
    %c0_194 = arith.constant 0 : index
    %c0_195 = arith.constant 0 : index
    %233 = vector.load %arg24[%c0_193, %c0_194, %c0_195] : memref<3x32x4xf32, #tpu.memory_space<vmem>>, vector<1x32x4xf32>
    %234 = vector.shape_cast %233 : vector<1x32x4xf32> to vector<32x4xf32>
    %cst_196 = arith.constant dense<0.000000e+00> : vector<32x4xf32>
    %235 = tpu.matmul %231, %234, %cst_196 {dimension_numbers = #tpu.dot_dimension_numbers<[1], [0], [0], [1], [0, 0, 1, 1], [], []>} : vector<32x32xf32>, vector<32x4xf32>, vector<32x4xf32> -> vector<32x4xf32>
    %c1_197 = arith.constant 1 : index
    %c0_198 = arith.constant 0 : index
    %c0_199 = arith.constant 0 : index
    %236 = vector.load %arg24[%c1_197, %c0_198, %c0_199] : memref<3x32x4xf32, #tpu.memory_space<vmem>>, vector<1x32x4xf32>
    %237 = vector.shape_cast %236 : vector<1x32x4xf32> to vector<32x4xf32>
    %cst_200 = arith.constant dense<0.000000e+00> : vector<32x4xf32>
    %238 = tpu.matmul %230, %237, %cst_200 {dimension_numbers = #tpu.dot_dimension_numbers<[1], [0], [0], [1], [0, 0, 1, 1], [], []>} : vector<32x32xf32>, vector<32x4xf32>, vector<32x4xf32> -> vector<32x4xf32>
    %239 = arith.addf %235, %238 : vector<32x4xf32>
    %c2_201 = arith.constant 2 : index
    %c0_202 = arith.constant 0 : index
    %c0_203 = arith.constant 0 : index
    %240 = vector.load %arg24[%c2_201, %c0_202, %c0_203] : memref<3x32x4xf32, #tpu.memory_space<vmem>>, vector<1x32x4xf32>
    %241 = vector.shape_cast %240 : vector<1x32x4xf32> to vector<32x4xf32>
    %cst_204 = arith.constant dense<0.000000e+00> : vector<32x4xf32>
    %242 = tpu.matmul %232, %241, %cst_204 {dimension_numbers = #tpu.dot_dimension_numbers<[1], [0], [0], [1], [0, 0, 1, 1], [], []>} : vector<32x32xf32>, vector<32x4xf32>, vector<32x4xf32> -> vector<32x4xf32>
    %243 = arith.addf %239, %242 : vector<32x4xf32>
    %c0_205 = arith.constant 0 : index
    %c0_206 = arith.constant 0 : index
    %244 = vector.load %arg25[%c0_205, %c0_206] : memref<1x4xf32, #tpu.memory_space<vmem>>, vector<1x4xf32>
    %245 = vector.broadcast %244 : vector<1x4xf32> to vector<32x4xf32>
    %246 = arith.addf %243, %245 : vector<32x4xf32>
    %c0_207 = arith.constant 0 : index
    %c0_208 = arith.constant 0 : index
    %247 = vector.load %arg26[%c0_207, %c0_208] : memref<32x4xf32, #tpu.memory_space<vmem>>, vector<32x4xf32>
    tpu.vector_store %arg26[%c0_207, %c0_208], %246 {strides = array<i32>} : memref<32x4xf32, #tpu.memory_space<vmem>>, vector<32x4xf32>,
    return
  }
}

</mosaic_0001>

<llo_original>
// kernel: speech_vqvae_forward.1
$region0: #{speech_vqvae_forward.1}
  #allocation0 [shape = 'u32[]', space=smem, size = 0x4, offset = 0x4, fixed_abs, tag = 'smem constant byte address 0x4 - core index']
  #allocation1 [shape = 'u32[144,128]{1,0:T(1,128)}', space=vmem, size = 0x12000, scoped, tag = 'internal scratch']
  %s0 = inlined_call_operand.vmem [shape: f32[32,4], index: 0, kind: input, shape index: {}]
  %s1 = inlined_call_operand.vmem [shape: f32[32,32], index: 1, kind: input, shape index: {}]
  %s2 = inlined_call_operand.vmem [shape: f32[32,32], index: 2, kind: input, shape index: {}]
  %s3 = inlined_call_operand.vmem [shape: f32[3,4,32], index: 3, kind: input, shape index: {}]
  %s4 = inlined_call_operand.vmem [shape: f32[1,32], index: 4, kind: input, shape index: {}]
  %s5 = inlined_call_operand.vmem [shape: f32[3,32,32], index: 5, kind: input, shape index: {}]
  %s6 = inlined_call_operand.vmem [shape: f32[1,32], index: 6, kind: input, shape index: {}]
  %s7 = inlined_call_operand.vmem [shape: f32[3,32,32], index: 7, kind: input, shape index: {}]
  %s8 = inlined_call_operand.vmem [shape: f32[1,32], index: 8, kind: input, shape index: {}]
  %s9 = inlined_call_operand.vmem [shape: f32[3,32,16], index: 9, kind: input, shape index: {}]
  %s10 = inlined_call_operand.vmem [shape: f32[16,32], index: 10, kind: input, shape index: {}]
  %s11 = inlined_call_operand.vmem [shape: f32[3,32,16], index: 11, kind: input, shape index: {}]
  %s12 = inlined_call_operand.vmem [shape: f32[16,32], index: 12, kind: input, shape index: {}]
  %s13 = inlined_call_operand.vmem [shape: f32[32,16], index: 13, kind: input, shape index: {}]
  %s14 = inlined_call_operand.vmem [shape: f32[1,16], index: 14, kind: input, shape index: {}]
  %s15 = inlined_call_operand.vmem [shape: f32[64,16], index: 15, kind: input, shape index: {}]
  %s16 = inlined_call_operand.vmem [shape: f32[3,16,32], index: 16, kind: input, shape index: {}]
  %s17 = inlined_call_operand.vmem [shape: f32[1,32], index: 17, kind: input, shape index: {}]
  %s18 = inlined_call_operand.vmem [shape: f32[3,32,16], index: 18, kind: input, shape index: {}]
  %s19 = inlined_call_operand.vmem [shape: f32[16,32], index: 19, kind: input, shape index: {}]
  %s20 = inlined_call_operand.vmem [shape: f32[3,32,16], index: 20, kind: input, shape index: {}]
  %s21 = inlined_call_operand.vmem [shape: f32[16,32], index: 21, kind: input, shape index: {}]
  %s22 = inlined_call_operand.vmem [shape: f32[3,32,32], index: 22, kind: input, shape index: {}]
  %s23 = inlined_call_operand.vmem [shape: f32[1,32], index: 23, kind: input, shape index: {}]
  %s24 = inlined_call_operand.vmem [shape: f32[3,32,4], index: 24, kind: input, shape index: {}]
  %s25 = inlined_call_operand.vmem [shape: f32[1,4], index: 25, kind: input, shape index: {}]
  %s26 = inlined_call_operand.vmem [shape: f32[32,4], index: 26, kind: output, shape index: {0}]
  %s27 = inlined_call_operand.hbm [shape: f32[1,1], index: 27, kind: output, shape index: {1}]
  %s28 = inlined_call_operand.hbm [shape: f32[1,1], index: 28, kind: output, shape index: {2}]
  %29 = xla_tuple %s26, %s27, %s28
  %s30 = sld [smem:[#allocation0]]
  $region130: #{speech_vqvae_forward.1} parent=0
    _
  %s32 = ssub.s32 1, %s30
  %s33 = scalar_select 0, %s32, %s30
  $region1: #{speech_vqvae_forward.1} parent=0
    #allocation2 [shape = 'u8[512]{0}', space=vmem, size = 0x400, scoped, tag = 'output window, operand 1, single buffered']
    #allocation3 [shape = 's32[1]{0}', space=sflag, size = 0x4, scoped, tag = 'scoped memory for speech_vqvae_forward.1']
    #allocation4 [shape = 'u8[512]{0}', space=vmem, size = 0x400, scoped, tag = 'output window, operand 2, single buffered']
    #allocation5 [shape = 's32[1]{0}', space=sflag, size = 0x4, scoped, tag = 'scoped memory for speech_vqvae_forward.1']
    %34 = vsyncpa [#allocation3], 0
    %35 = vsyncpa [#allocation5], 0
    // Predicated region
    $region2: #{speech_vqvae_forward.1} parent=1 // pred_check
      _
    $region3: #{speech_vqvae_forward.1} parent=1 // pred_check_branch
      %37 = sbr.rel (0) target = $region5
    $region4: #{speech_vqvae_forward.1} parent=1 // pred_region
      _
    $region5: #{speech_vqvae_forward.1} parent=1 // pred_fallthru
      _
    // Predicated region
    $region6: #{speech_vqvae_forward.1} parent=1 // pred_check
      _
    $region7: #{speech_vqvae_forward.1} parent=1 // pred_check_branch
      %39 = sbr.rel (0) target = $region9
    $region8: #{speech_vqvae_forward.1} parent=1 // pred_region
      _
    $region9: #{speech_vqvae_forward.1} parent=1 // pred_fallthru
      _
    // Predicated region
    $region10: #{speech_vqvae_forward.1} parent=1 // pred_check
      _
    $region11: #{speech_vqvae_forward.1} parent=1 // pred_check_branch
      %41 = sbr.rel (0) target = $region13
    $region12: #{speech_vqvae_forward.1} parent=1 // pred_region
      _
    $region13: #{speech_vqvae_forward.1} parent=1 // pred_fallthru
      _
    // Predicated region
    $region14: #{speech_vqvae_forward.1} parent=1 // pred_check
      _
    $region15: #{speech_vqvae_forward.1} parent=1 // pred_check_branch
      %43 = sbr.rel (0) target = $region17
    $region16: #{speech_vqvae_forward.1} parent=1 // pred_region
      _
    $region17: #{speech_vqvae_forward.1} parent=1 // pred_fallthru
      _
    // Predicated region
    $region18: #{speech_vqvae_forward.1} parent=1 // pred_check
      _
    $region19: #{speech_vqvae_forward.1} parent=1 // pred_check_branch
      %45 = sbr.rel (0) target = $region21
    $region20: #{speech_vqvae_forward.1} parent=1 // pred_region
      _
    $region21: #{speech_vqvae_forward.1} parent=1 // pred_fallthru
      _
    // Predicated region
    $region22: #{speech_vqvae_forward.1} parent=1 // pred_check
      _
    $region23: #{speech_vqvae_forward.1} parent=1 // pred_check_branch
      %47 = sbr.rel (0) target = $region25
    $region24: #{speech_vqvae_forward.1} parent=1 // pred_region
      _
    $region25: #{speech_vqvae_forward.1} parent=1 // pred_fallthru
      _
    // Predicated region
    $region26: #{speech_vqvae_forward.1} parent=1 // pred_check
      _
    $region27: #{speech_vqvae_forward.1} parent=1 // pred_check_branch
      %49 = sbr.rel (0) target = $region29
    $region28: #{speech_vqvae_forward.1} parent=1 // pred_region
      _
    $region29: #{speech_vqvae_forward.1} parent=1 // pred_fallthru
      _
    // Predicated region
    $region30: #{speech_vqvae_forward.1} parent=1 // pred_check
      _
    $region31: #{speech_vqvae_forward.1} parent=1 // pred_check_branch
      %51 = sbr.rel (0) target = $region33
    $region32: #{speech_vqvae_forward.1} parent=1 // pred_region
      _
    $region33: #{speech_vqvae_forward.1} parent=1 // pred_fallthru
      _
    // Predicated region
    $region34: #{speech_vqvae_forward.1} parent=1 // pred_check
      _
    $region35: #{speech_vqvae_forward.1} parent=1 // pred_check_branch
      %53 = sbr.rel (0) target = $region37
    $region36: #{speech_vqvae_forward.1} parent=1 // pred_region
      _
    $region37: #{speech_vqvae_forward.1} parent=1 // pred_fallthru
      _
    // Predicated region
    $region38: #{speech_vqvae_forward.1} parent=1 // pred_check
      _
    $region39: #{speech_vqvae_forward.1} parent=1 // pred_check_branch
      %55 = sbr.rel (0) target = $region41
    $region40: #{speech_vqvae_forward.1} parent=1 // pred_region
      _
    $region41: #{speech_vqvae_forward.1} parent=1 // pred_fallthru
      _
    // Predicated region
    $region42: #{speech_vqvae_forward.1} parent=1 // pred_check
      _
    $region43: #{speech_vqvae_forward.1} parent=1 // pred_check_branch
      %57 = sbr.rel (0) target = $region45
    $region44: #{speech_vqvae_forward.1} parent=1 // pred_region
      _
    $region45: #{speech_vqvae_forward.1} parent=1 // pred_fallthru
      _
    // Predicated region
    $region46: #{speech_vqvae_forward.1} parent=1 // pred_check
      _
    $region47: #{speech_vqvae_forward.1} parent=1 // pred_check_branch
      %59 = sbr.rel (0) target = $region49
    $region48: #{speech_vqvae_forward.1} parent=1 // pred_region
      _
    $region49: #{speech_vqvae_forward.1} parent=1 // pred_fallthru
      _
    // Predicated region
    $region50: #{speech_vqvae_forward.1} parent=1 // pred_check
      _
    $region51: #{speech_vqvae_forward.1} parent=1 // pred_check_branch
      %61 = sbr.rel (0) target = $region53
    $region52: #{speech_vqvae_forward.1} parent=1 // pred_region
      _
    $region53: #{speech_vqvae_forward.1} parent=1 // pred_fallthru
      _
    // Predicated region
    $region54: #{speech_vqvae_forward.1} parent=1 // pred_check
      _
    $region55: #{speech_vqvae_forward.1} parent=1 // pred_check_branch
      %63 = sbr.rel (0) target = $region57
    $region56: #{speech_vqvae_forward.1} parent=1 // pred_region
      _
    $region57: #{speech_vqvae_forward.1} parent=1 // pred_fallthru
      _
    // Predicated region
    $region58: #{speech_vqvae_forward.1} parent=1 // pred_check
      _
    $region59: #{speech_vqvae_forward.1} parent=1 // pred_check_branch
      %65 = sbr.rel (0) target = $region61
    $region60: #{speech_vqvae_forward.1} parent=1 // pred_region
      _
    $region61: #{speech_vqvae_forward.1} parent=1 // pred_fallthru
      _
    // Predicated region
    $region62: #{speech_vqvae_forward.1} parent=1 // pred_check
      _
    $region63: #{speech_vqvae_forward.1} parent=1 // pred_check_branch
      %67 = sbr.rel (0) target = $region65
    $region64: #{speech_vqvae_forward.1} parent=1 // pred_region
      _
    $region65: #{speech_vqvae_forward.1} parent=1 // pred_fallthru
      _
    // Predicated region
    $region66: #{speech_vqvae_forward.1} parent=1 // pred_check
      _
    $region67: #{speech_vqvae_forward.1} parent=1 // pred_check_branch
      %69 = sbr.rel (0) target = $region69
    $region68: #{speech_vqvae_forward.1} parent=1 // pred_region
      _
    $region69: #{speech_vqvae_forward.1} parent=1 // pred_fallthru
      _
    // Predicated region
    $region70: #{speech_vqvae_forward.1} parent=1 // pred_check
      _
    $region71: #{speech_vqvae_forward.1} parent=1 // pred_check_branch
      %71 = sbr.rel (0) target = $region73
    $region72: #{speech_vqvae_forward.1} parent=1 // pred_region
      _
    $region73: #{speech_vqvae_forward.1} parent=1 // pred_fallthru
      _
    // Predicated region
    $region74: #{speech_vqvae_forward.1} parent=1 // pred_check
      _
    $region75: #{speech_vqvae_forward.1} parent=1 // pred_check_branch
      %73 = sbr.rel (0) target = $region77
    $region76: #{speech_vqvae_forward.1} parent=1 // pred_region
      _
    $region77: #{speech_vqvae_forward.1} parent=1 // pred_fallthru
      _
    // Predicated region
    $region78: #{speech_vqvae_forward.1} parent=1 // pred_check
      _
    $region79: #{speech_vqvae_forward.1} parent=1 // pred_check_branch
      %75 = sbr.rel (0) target = $region81
    $region80: #{speech_vqvae_forward.1} parent=1 // pred_region
      _
    $region81: #{speech_vqvae_forward.1} parent=1 // pred_fallthru
      _
    // Predicated region
    $region82: #{speech_vqvae_forward.1} parent=1 // pred_check
      _
    $region83: #{speech_vqvae_forward.1} parent=1 // pred_check_branch
      %77 = sbr.rel (0) target = $region85
    $region84: #{speech_vqvae_forward.1} parent=1 // pred_region
      _
    $region85: #{speech_vqvae_forward.1} parent=1 // pred_fallthru
      _
    // Predicated region
    $region86: #{speech_vqvae_forward.1} parent=1 // pred_check
      _
    $region87: #{speech_vqvae_forward.1} parent=1 // pred_check_branch
      %79 = sbr.rel (0) target = $region89
    $region88: #{speech_vqvae_forward.1} parent=1 // pred_region
      _
    $region89: #{speech_vqvae_forward.1} parent=1 // pred_fallthru
      _
    // Predicated region
    $region90: #{speech_vqvae_forward.1} parent=1 // pred_check
      _
    $region91: #{speech_vqvae_forward.1} parent=1 // pred_check_branch
      %81 = sbr.rel (0) target = $region93
    $region92: #{speech_vqvae_forward.1} parent=1 // pred_region
      _
    $region93: #{speech_vqvae_forward.1} parent=1 // pred_fallthru
      _
    // Predicated region
    $region94: #{speech_vqvae_forward.1} parent=1 // pred_check
      _
    $region95: #{speech_vqvae_forward.1} parent=1 // pred_check_branch
      %83 = sbr.rel (0) target = $region97
    $region96: #{speech_vqvae_forward.1} parent=1 // pred_region
      _
    $region97: #{speech_vqvae_forward.1} parent=1 // pred_fallthru
      _
    // Predicated region
    $region98: #{speech_vqvae_forward.1} parent=1 // pred_check
      _
    $region99: #{speech_vqvae_forward.1} parent=1 // pred_check_branch
      %85 = sbr.rel (0) target = $region101
    $region100: #{speech_vqvae_forward.1} parent=1 // pred_region
      _
    $region101: #{speech_vqvae_forward.1} parent=1 // pred_fallthru
      _
    // Predicated region
    $region102: #{speech_vqvae_forward.1} parent=1 // pred_check
      _
    $region103: #{speech_vqvae_forward.1} parent=1 // pred_check_branch
      %87 = sbr.rel (0) target = $region105
    $region104: #{speech_vqvae_forward.1} parent=1 // pred_region
      _
    $region105: #{speech_vqvae_forward.1} parent=1 // pred_fallthru
      _
    %v88 = vld [vmem:[%s1] sm:$0xff]
    %v89 = vld [vmem:[%s1 + $0x8] sm:$0xff]
    %v90 = vld [vmem:[%s1 + $0x10] sm:$0xff]
    %v91 = vld [vmem:[%s1 + $0x18] sm:$0xff]
    %v92 = vld [vmem:[%s2] sm:$0xff]
    %v93 = vld [vmem:[%s2 + $0x8] sm:$0xff]
    %v94 = vld [vmem:[%s2 + $0x10] sm:$0xff]
    %v95 = vld [vmem:[%s2 + $0x18] sm:$0xff]
    %v96 = vld [vmem:[%s0] sm:$0xff]
    %v97 = vld [vmem:[%s0 + $0x8] sm:$0xff]
    %v98 = vld [vmem:[%s0 + $0x10] sm:$0xff]
    %v99 = vld [vmem:[%s0 + $0x18] sm:$0xff]
    %vm100 = vcmask 261120
    %v102 = vsel %vm100, %v88, 0
    %v105 = vsel %vm100, %v89, 0
    %v108 = vsel %vm100, %v90, 0
    %v111 = vsel %vm100, %v91, 0
    %113 = vmatprep.subr.mxu0 0.0
    %114 = vmatpush1.msra.mxu0 %v96
    %115 = vmatprep.subr.mxu0 0.0
    %116 = vmatpush1.msra.mxu0 %v97
    %117 = vmatprep.subr.mxu0 0.0
    %118 = vmatpush1.msra.mxu0 %v98
    %119 = vmatprep.subr.mxu0 0.0
    %120 = vmatpush1.msra.mxu0 %v99
    %121 = vmatprep.subr.mxu0 0.0
    %122 = vmatpush1.msra.mxu0 0.0
    %123 = vmatprep.subr.mxu0 0.0
    %124 = vmatpush1.msra.mxu0 0.0
    %125 = vmatprep.subr.mxu0 0.0
    %126 = vmatpush1.msra.mxu0 0.0
    %127 = vmatprep.subr.mxu0 0.0
    %128 = vmatpush1.msra.mxu0 0.0
    %129 = vmatprep.subr.mxu0 0.0
    %130 = vmatpush1.msra.mxu0 0.0
    %131 = vmatprep.subr.mxu0 0.0
    %132 = vmatpush1.msra.mxu0 0.0
    %133 = vmatprep.subr.mxu0 0.0
    %134 = vmatpush1.msra.mxu0 0.0
    %135 = vmatprep.subr.mxu0 0.0
    %136 = vmatpush1.msra.mxu0 0.0
    %137 = vmatprep.subr.mxu0 0.0
    %138 = vmatpush1.msra.mxu0 0.0
    %139 = vmatprep.subr.mxu0 0.0
    %140 = vmatpush1.msra.mxu0 0.0
    %141 = vmatprep.subr.mxu0 0.0
    %142 = vmatpush1.msra.mxu0 0.0
    %143 = vmatprep.subr.mxu0 0.0
    %144 = vmatpush1.msra.mxu0 0.0
    %145 = vmatprep.subr.mxu0 0.0
    %146 = vmatpush1.msra.mxu0 0.0
    %147 = vmatprep.subr.mxu0 0.0
    %148 = vmatpush1.msra.mxu0 0.0
    %149 = vmatprep.subr.mxu0 0.0
    %150 = vmatpush1.msra.mxu0 0.0
    %151 = vmatprep.subr.mxu0 0.0
    %152 = vmatpush1.msra.mxu0 0.0
    %153 = vmatprep.subr.mxu0 0.0
    %154 = vmatpush1.msra.mxu0 0.0
    %155 = vmatprep.subr.mxu0 0.0
    %156 = vmatpush1.msra.mxu0 0.0
    %157 = vmatprep.subr.mxu0 0.0
    %158 = vmatpush1.msra.mxu0 0.0
    %159 = vmatprep.subr.mxu0 0.0
    %160 = vmatpush1.msra.mxu0 0.0
    %161 = vmatprep.subr.mxu0 0.0
    %162 = vmatpush1.msra.mxu0 0.0
    %163 = vmatprep.subr.mxu0 0.0
    %164 = vmatpush1.msra.mxu0 0.0
    %165 = vmatprep.subr.mxu0 0.0
    %166 = vmatpush1.msra.mxu0 0.0
    %167 = vmatprep.subr.mxu0 0.0
    %168 = vmatpush1.msra.mxu0 0.0
    %169 = vmatprep.subr.mxu0 0.0
    %170 = vmatpush1.msra.mxu0 0.0
    %171 = vmatprep.subr.mxu0 0.0
    %172 = vmatpush1.msra.mxu0 0.0
    %173 = vmatprep.subr.mxu0 0.0
    %174 = vmatpush1.msra.mxu0 0.0
    %175 = vmatprep.subr.mxu0 0.0
    %176 = vmatpush1.msra.mxu0 0.0
    %177 = vmatprep.mubr.f32.mxu0 0.0
    %178 = vmatmul.mubr.f32.gmra.mrb[0].mxu0 %v102
    %v179 = vpop.f32.mrb[0].mxu0
    %v180 = vadd.f32 0.0, %v179
    %v181 = vpop.f32.mrb[0].mxu0
    %182 = vmatprep.mubr.f32.mxu0 0.0
    %183 = vmatmul.mubr.f32.gmra.mrb[0].mxu0 %v105
    %v184 = vpop.f32.mrb[0].mxu0
    %v185 = vadd.f32 0.0, %v184
    %v186 = vpop.f32.mrb[0].mxu0
    %187 = vmatprep.mubr.f32.mxu0 0.0
    %188 = vmatmul.mubr.f32.gmra.mrb[0].mxu0 %v108
    %v189 = vpop.f32.mrb[0].mxu0
    %v190 = vadd.f32 0.0, %v189
    %v191 = vpop.f32.mrb[0].mxu0
    %192 = vmatprep.mubr.f32.mxu0 0.0
    %193 = vmatmul.mubr.f32.gmra.mrb[0].mxu0 %v111
    %v194 = vpop.f32.mrb[0].mxu0
    %v195 = vadd.f32 0.0, %v194
    %v196 = vpop.f32.mrb[0].mxu0
    %197 = vdwg.mxu0
    %v199 = vsel %vm100, %v92, 0
    %v202 = vsel %vm100, %v93, 0
    %v205 = vsel %vm100, %v94, 0
    %v208 = vsel %vm100, %v95, 0
    %210 = vmatprep.subr.mxu0 0.0
    %211 = vmatpush1.msra.mxu0 %v96
    %212 = vmatprep.subr.mxu0 0.0
    %213 = vmatpush1.msra.mxu0 %v97
    %214 = vmatprep.subr.mxu0 0.0
    %215 = vmatpush1.msra.mxu0 %v98
    %216 = vmatprep.subr.mxu0 0.0
    %217 = vmatpush1.msra.mxu0 %v99
    %218 = vmatprep.subr.mxu0 0.0
    %219 = vmatpush1.msra.mxu0 0.0
    %220 = vmatprep.subr.mxu0 0.0
    %221 = vmatpush1.msra.mxu0 0.0
    %222 = vmatprep.subr.mxu0 0.0
    %223 = vmatpush1.msra.mxu0 0.0
    %224 = vmatprep.subr.mxu0 0.0
    %225 = vmatpush1.msra.mxu0 0.0
    %226 = vmatprep.subr.mxu0 0.0
    %227 = vmatpush1.msra.mxu0 0.0
    %228 = vmatprep.subr.mxu0 0.0
    %229 = vmatpush1.msra.mxu0 0.0
    %230 = vmatprep.subr.mxu0 0.0
    %231 = vmatpush1.msra.mxu0 0.0
    %232 = vmatprep.subr.mxu0 0.0
    %233 = vmatpush1.msra.mxu0 0.0
    %234 = vmatprep.subr.mxu0 0.0
    %235 = vmatpush1.msra.mxu0 0.0
    %236 = vmatprep.subr.mxu0 0.0
    %237 = vmatpush1.msra.mxu0 0.0
    %238 = vmatprep.subr.mxu0 0.0
    %239 = vmatpush1.msra.mxu0 0.0
    %240 = vmatprep.subr.mxu0 0.0
    %241 = vmatpush1.msra.mxu0 0.0
    %242 = vmatprep.subr.mxu0 0.0
    %243 = vmatpush1.msra.mxu0 0.0
    %244 = vmatprep.subr.mxu0 0.0
    %245 = vmatpush1.msra.mxu0 0.0
    %246 = vmatprep.subr.mxu0 0.0
    %247 = vmatpush1.msra.mxu0 0.0
    %248 = vmatprep.subr.mxu0 0.0
    %249 = vmatpush1.msra.mxu0 0.0
    %250 = vmatprep.subr.mxu0 0.0
    %251 = vmatpush1.msra.mxu0 0.0
    %252 = vmatprep.subr.mxu0 0.0
    %253 = vmatpush1.msra.mxu0 0.0
    %254 = vmatprep.subr.mxu0 0.0
    %255 = vmatpush1.msra.mxu0 0.0
    %256 = vmatprep.subr.mxu0 0.0
    %257 = vmatpush1.msra.mxu0 0.0
    %258 = vmatprep.subr.mxu0 0.0
    %259 = vmatpush1.msra.mxu0 0.0
    %260 = vmatprep.subr.mxu0 0.0
    %261 = vmatpush1.msra.mxu0 0.0
    %262 = vmatprep.subr.mxu0 0.0
    %263 = vmatpush1.msra.mxu0 0.0
    %264 = vmatprep.subr.mxu0 0.0
    %265 = vmatpush1.msra.mxu0 0.0
    %266 = vmatprep.subr.mxu0 0.0
    %267 = vmatpush1.msra.mxu0 0.0
    %268 = vmatprep.subr.mxu0 0.0
    %269 = vmatpush1.msra.mxu0 0.0
    %270 = vmatprep.subr.mxu0 0.0
    %271 = vmatpush1.msra.mxu0 0.0
    %272 = vmatprep.subr.mxu0 0.0
    %273 = vmatpush1.msra.mxu0 0.0
    %274 = vmatprep.mubr.f32.mxu0 0.0
    %275 = vmatmul.mubr.f32.gmra.mrb[0].mxu0 %v199
    %v276 = vpop.f32.mrb[0].mxu0
    %v277 = vadd.f32 0.0, %v276
    %v278 = vpop.f32.mrb[0].mxu0
    %279 = vmatprep.mubr.f32.mxu0 0.0
    %280 = vmatmul.mubr.f32.gmra.mrb[0].mxu0 %v202
    %v281 = vpop.f32.mrb[0].mxu0
    %v282 = vadd.f32 0.0, %v281
    %v283 = vpop.f32.mrb[0].mxu0
    %284 = vmatprep.mubr.f32.mxu0 0.0
    %285 = vmatmul.mubr.f32.gmra.mrb[0].mxu0 %v205
    %v286 = vpop.f32.mrb[0].mxu0
    %v287 = vadd.f32 0.0, %v286
    %v288 = vpop.f32.mrb[0].mxu0
    %289 = vmatprep.mubr.f32.mxu0 0.0
    %290 = vmatmul.mubr.f32.gmra.mrb[0].mxu0 %v208
    %v291 = vpop.f32.mrb[0].mxu0
    %v292 = vadd.f32 0.0, %v291
    %v293 = vpop.f32.mrb[0].mxu0
    %294 = vdwg.mxu0
    %v295 = vld [vmem:[%s3] sm:$0xf]
    %s296 = scalar_lea.vmem %s3, 4
    %v297 = vld [vmem:[%s296] sm:$0xf]
    %vm298 = vcmask 31744
    %v300 = vsel %vm298, %v96, 0
    %v303 = vsel %vm298, %v97, 0
    %v306 = vsel %vm298, %v98, 0
    %v309 = vsel %vm298, %v99, 0
    %vm311 = vcmask 1043456
    %v313 = vsel %vm311, %v297, 0
    %315 = vmatprep.subr.mxu0 0.0
    %316 = vmatpush1.msra.mxu0 %v313
    %317 = vmatprep.subr.mxu0 0.0
    %318 = vmatpush1.msra.mxu0 0.0
    %319 = vmatprep.subr.mxu0 0.0
    %320 = vmatpush1.msra.mxu0 0.0
    %321 = vmatprep.subr.mxu0 0.0
    %322 = vmatpush1.msra.mxu0 0.0
    %323 = vmatprep.subr.mxu0 0.0
    %324 = vmatpush1.msra.mxu0 0.0
    %325 = vmatprep.subr.mxu0 0.0
    %326 = vmatpush1.msra.mxu0 0.0
    %327 = vmatprep.subr.mxu0 0.0
    %328 = vmatpush1.msra.mxu0 0.0
    %329 = vmatprep.subr.mxu0 0.0
    %330 = vmatpush1.msra.mxu0 0.0
    %331 = vmatprep.subr.mxu0 0.0
    %332 = vmatpush1.msra.mxu0 0.0
    %333 = vmatprep.subr.mxu0 0.0
    %334 = vmatpush1.msra.mxu0 0.0
    %335 = vmatprep.subr.mxu0 0.0
    %336 = vmatpush1.msra.mxu0 0.0
    %337 = vmatprep.subr.mxu0 0.0
    %338 = vmatpush1.msra.mxu0 0.0
    %339 = vmatprep.subr.mxu0 0.0
    %340 = vmatpush1.msra.mxu0 0.0
    %341 = vmatprep.subr.mxu0 0.0
    %342 = vmatpush1.msra.mxu0 0.0
    %343 = vmatprep.subr.mxu0 0.0
    %344 = vmatpush1.msra.mxu0 0.0
    %345 = vmatprep.subr.mxu0 0.0
    %346 = vmatpush1.msra.mxu0 0.0
    %347 = vmatprep.subr.mxu0 0.0
    %348 = vmatpush1.msra.mxu0 0.0
    %349 = vmatprep.subr.mxu0 0.0
    %350 = vmatpush1.msra.mxu0 0.0
    %351 = vmatprep.subr.mxu0 0.0
    %352 = vmatpush1.msra.mxu0 0.0
    %353 = vmatprep.subr.mxu0 0.0
    %354 = vmatpush1.msra.mxu0 0.0
    %355 = vmatprep.subr.mxu0 0.0
    %356 = vmatpush1.msra.mxu0 0.0
    %357 = vmatprep.subr.mxu0 0.0
    %358 = vmatpush1.msra.mxu0 0.0
    %359 = vmatprep.subr.mxu0 0.0
    %360 = vmatpush1.msra.mxu0 0.0
    %361 = vmatprep.subr.mxu0 0.0
    %362 = vmatpush1.msra.mxu0 0.0
    %363 = vmatprep.subr.mxu0 0.0
    %364 = vmatpush1.msra.mxu0 0.0
    %365 = vmatprep.subr.mxu0 0.0
    %366 = vmatpush1.msra.mxu0 0.0
    %367 = vmatprep.subr.mxu0 0.0
    %368 = vmatpush1.msra.mxu0 0.0
    %369 = vmatprep.subr.mxu0 0.0
    %370 = vmatpush1.msra.mxu0 0.0
    %371 = vmatprep.subr.mxu0 0.0
    %372 = vmatpush1.msra.mxu0 0.0
    %373 = vmatprep.subr.mxu0 0.0
    %374 = vmatpush1.msra.mxu0 0.0
    %375 = vmatprep.subr.mxu0 0.0
    %376 = vmatpush1.msra.mxu0 0.0
    %377 = vmatprep.subr.mxu0 0.0
    %378 = vmatpush1.msra.mxu0 0.0
    %379 = vmatprep.mubr.f32.mxu0 0.0
    %380 = vmatmul.mubr.f32.gmra.mrb[0].mxu0 %v300
    %v381 = vpop.f32.mrb[0].mxu0
    %v382 = vadd.f32 0.0, %v381
    %v383 = vpop.f32.mrb[0].mxu0
    %384 = vmatprep.mubr.f32.mxu0 0.0
    %385 = vmatmul.mubr.f32.gmra.mrb[0].mxu0 %v303
    %v386 = vpop.f32.mrb[0].mxu0
    %v387 = vadd.f32 0.0, %v386
    %v388 = vpop.f32.mrb[0].mxu0
    %389 = vmatprep.mubr.f32.mxu0 0.0
    %390 = vmatmul.mubr.f32.gmra.mrb[0].mxu0 %v306
    %v391 = vpop.f32.mrb[0].mxu0
    %v392 = vadd.f32 0.0, %v391
    %v393 = vpop.f32.mrb[0].mxu0
    %394 = vmatprep.mubr.f32.mxu0 0.0
    %395 = vmatmul.mubr.f32.gmra.mrb[0].mxu0 %v309
    %v396 = vpop.f32.mrb[0].mxu0
    %v397 = vadd.f32 0.0, %v396
    %v398 = vpop.f32.mrb[0].mxu0
    %399 = vdwg.mxu0
    %v401 = vsel %vm298, %v180, 0
    %v404 = vsel %vm298, %v185, 0
    %v407 = vsel %vm298, %v190, 0
    %v410 = vsel %vm298, %v195, 0
    %v413 = vsel %vm311, %v295, 0
    %415 = vmatprep.subr.mxu0 0.0
    %416 = vmatpush1.msra.mxu0 %v413
    %417 = vmatprep.subr.mxu0 0.0
    %418 = vmatpush1.msra.mxu0 0.0
    %419 = vmatprep.subr.mxu0 0.0
    %420 = vmatpush1.msra.mxu0 0.0
    %421 = vmatprep.subr.mxu0 0.0
    %422 = vmatpush1.msra.mxu0 0.0
    %423 = vmatprep.subr.mxu0 0.0
    %424 = vmatpush1.msra.mxu0 0.0
    %425 = vmatprep.subr.mxu0 0.0
    %426 = vmatpush1.msra.mxu0 0.0
    %427 = vmatprep.subr.mxu0 0.0
    %428 = vmatpush1.msra.mxu0 0.0
    %429 = vmatprep.subr.mxu0 0.0
    %430 = vmatpush1.msra.mxu0 0.0
    %431 = vmatprep.subr.mxu0 0.0
    %432 = vmatpush1.msra.mxu0 0.0
    %433 = vmatprep.subr.mxu0 0.0
    %434 = vmatpush1.msra.mxu0 0.0
    %435 = vmatprep.subr.mxu0 0.0
    %436 = vmatpush1.msra.mxu0 0.0
    %437 = vmatprep.subr.mxu0 0.0
    %438 = vmatpush1.msra.mxu0 0.0
    %439 = vmatprep.subr.mxu0 0.0
    %440 = vmatpush1.msra.mxu0 0.0
    %441 = vmatprep.subr.mxu0 0.0
    %442 = vmatpush1.msra.mxu0 0.0
    %443 = vmatprep.subr.mxu0 0.0
    %444 = vmatpush1.msra.mxu0 0.0
    %445 = vmatprep.subr.mxu0 0.0
    %446 = vmatpush1.msra.mxu0 0.0
    %447 = vmatprep.subr.mxu0 0.0
    %448 = vmatpush1.msra.mxu0 0.0
    %449 = vmatprep.subr.mxu0 0.0
    %450 = vmatpush1.msra.mxu0 0.0
    %451 = vmatprep.subr.mxu0 0.0
    %452 = vmatpush1.msra.mxu0 0.0
    %453 = vmatprep.subr.mxu0 0.0
    %454 = vmatpush1.msra.mxu0 0.0
    %455 = vmatprep.subr.mxu0 0.0
    %456 = vmatpush1.msra.mxu0 0.0
    %457 = vmatprep.subr.mxu0 0.0
    %458 = vmatpush1.msra.mxu0 0.0
    %459 = vmatprep.subr.mxu0 0.0
    %460 = vmatpush1.msra.mxu0 0.0
    %461 = vmatprep.subr.mxu0 0.0
    %462 = vmatpush1.msra.mxu0 0.0
    %463 = vmatprep.subr.mxu0 0.0
    %464 = vmatpush1.msra.mxu0 0.0
    %465 = vmatprep.subr.mxu0 0.0
    %466 = vmatpush1.msra.mxu0 0.0
    %467 = vmatprep.subr.mxu0 0.0
    %468 = vmatpush1.msra.mxu0 0.0
    %469 = vmatprep.subr.mxu0 0.0
    %470 = vmatpush1.msra.mxu0 0.0
    %471 = vmatprep.subr.mxu0 0.0
    %472 = vmatpush1.msra.mxu0 0.0
    %473 = vmatprep.subr.mxu0 0.0
    %474 = vmatpush1.msra.mxu0 0.0
    %475 = vmatprep.subr.mxu0 0.0
    %476 = vmatpush1.msra.mxu0 0.0
    %477 = vmatprep.subr.mxu0 0.0
    %478 = vmatpush1.msra.mxu0 0.0
    %479 = vmatprep.mubr.f32.mxu0 0.0
    %480 = vmatmul.mubr.f32.gmra.mrb[0].mxu0 %v401
    %v481 = vpop.f32.mrb[0].mxu0
    %v482 = vadd.f32 %v382, %v481
    %v483 = vpop.f32.mrb[0].mxu0
    %484 = vmatprep.mubr.f32.mxu0 0.0
    %485 = vmatmul.mubr.f32.gmra.mrb[0].mxu0 %v404
    %v486 = vpop.f32.mrb[0].mxu0
    %v487 = vadd.f32 %v387, %v486
    %v488 = vpop.f32.mrb[0].mxu0
    %489 = vmatprep.mubr.f32.mxu0 0.0
    %490 = vmatmul.mubr.f32.gmra.mrb[0].mxu0 %v407
    %v491 = vpop.f32.mrb[0].mxu0
    %v492 = vadd.f32 %v392, %v491
    %v493 = vpop.f32.mrb[0].mxu0
    %494 = vmatprep.mubr.f32.mxu0 0.0
    %495 = vmatmul.mubr.f32.gmra.mrb[0].mxu0 %v410
    %v496 = vpop.f32.mrb[0].mxu0
    %v497 = vadd.f32 %v397, %v496
    %v498 = vpop.f32.mrb[0].mxu0
    %499 = vdwg.mxu0
    %s500 = scalar_lea.vmem %s3, 8
    %v501 = vld [vmem:[%s500] sm:$0xf]
    %v503 = vsel %vm298, %v277, 0
    %v506 = vsel %vm298, %v282, 0
    %v509 = vsel %vm298, %v287, 0
    %v512 = vsel %vm298, %v292, 0
    %v515 = vsel %vm311, %v501, 0
    %517 = vmatprep.subr.mxu0 0.0
    %518 = vmatpush1.msra.mxu0 %v515
    %519 = vmatprep.subr.mxu0 0.0
    %520 = vmatpush1.msra.mxu0 0.0
    %521 = vmatprep.subr.mxu0 0.0
    %522 = vmatpush1.msra.mxu0 0.0
    %523 = vmatprep.subr.mxu0 0.0
    %524 = vmatpush1.msra.mxu0 0.0
    %525 = vmatprep.subr.mxu0 0.0
    %526 = vmatpush1.msra.mxu0 0.0
    %527 = vmatprep.subr.mxu0 0.0
    %528 = vmatpush1.msra.mxu0 0.0
    %529 = vmatprep.subr.mxu0 0.0
    %530 = vmatpush1.msra.mxu0 0.0
    %531 = vmatprep.subr.mxu0 0.0
    %532 = vmatpush1.msra.mxu0 0.0
    %533 = vmatprep.subr.mxu0 0.0
    %534 = vmatpush1.msra.mxu0 0.0
    %535 = vmatprep.subr.mxu0 0.0
    %536 = vmatpush1.msra.mxu0 0.0
    %537 = vmatprep.subr.mxu0 0.0
    %538 = vmatpush1.msra.mxu0 0.0
    %539 = vmatprep.subr.mxu0 0.0
    %540 = vmatpush1.msra.mxu0 0.0
    %541 = vmatprep.subr.mxu0 0.0
    %542 = vmatpush1.msra.mxu0 0.0
    %543 = vmatprep.subr.mxu0 0.0
    %544 = vmatpush1.msra.mxu0 0.0
    %545 = vmatprep.subr.mxu0 0.0
    %546 = vmatpush1.msra.mxu0 0.0
    %547 = vmatprep.subr.mxu0 0.0
    %548 = vmatpush1.msra.mxu0 0.0
    %549 = vmatprep.subr.mxu0 0.0
    %550 = vmatpush1.msra.mxu0 0.0
    %551 = vmatprep.subr.mxu0 0.0
    %552 = vmatpush1.msra.mxu0 0.0
    %553 = vmatprep.subr.mxu0 0.0
    %554 = vmatpush1.msra.mxu0 0.0
    %555 = vmatprep.subr.mxu0 0.0
    %556 = vmatpush1.msra.mxu0 0.0
    %557 = vmatprep.subr.mxu0 0.0
    %558 = vmatpush1.msra.mxu0 0.0
    %559 = vmatprep.subr.mxu0 0.0
    %560 = vmatpush1.msra.mxu0 0.0
    %561 = vmatprep.subr.mxu0 0.0
    %562 = vmatpush1.msra.mxu0 0.0
    %563 = vmatprep.subr.mxu0 0.0
    %564 = vmatpush1.msra.mxu0 0.0
    %565 = vmatprep.subr.mxu0 0.0
    %566 = vmatpush1.msra.mxu0 0.0
    %567 = vmatprep.subr.mxu0 0.0
    %568 = vmatpush1.msra.mxu0 0.0
    %569 = vmatprep.subr.mxu0 0.0
    %570 = vmatpush1.msra.mxu0 0.0
    %571 = vmatprep.subr.mxu0 0.0
    %572 = vmatpush1.msra.mxu0 0.0
    %573 = vmatprep.subr.mxu0 0.0
    %574 = vmatpush1.msra.mxu0 0.0
    %575 = vmatprep.subr.mxu0 0.0
    %576 = vmatpush1.msra.mxu0 0.0
    %577 = vmatprep.subr.mxu0 0.0
    %578 = vmatpush1.msra.mxu0 0.0
    %579 = vmatprep.subr.mxu0 0.0
    %580 = vmatpush1.msra.mxu0 0.0
    %581 = vmatprep.mubr.f32.mxu0 0.0
    %582 = vmatmul.mubr.f32.gmra.mrb[0].mxu0 %v503
    %v583 = vpop.f32.mrb[0].mxu0
    %v584 = vadd.f32 0.0, %v583
    %v585 = vpop.f32.mrb[0].mxu0
    %586 = vmatprep.mubr.f32.mxu0 0.0
    %587 = vmatmul.mubr.f32.gmra.mrb[0].mxu0 %v506
    %v588 = vpop.f32.mrb[0].mxu0
    %v589 = vadd.f32 0.0, %v588
    %v590 = vpop.f32.mrb[0].mxu0
    %591 = vmatprep.mubr.f32.mxu0 0.0
    %592 = vmatmul.mubr.f32.gmra.mrb[0].mxu0 %v509
    %v593 = vpop.f32.mrb[0].mxu0
    %v594 = vadd.f32 0.0, %v593
    %v595 = vpop.f32.mrb[0].mxu0
    %596 = vmatprep.mubr.f32.mxu0 0.0
    %597 = vmatmul.mubr.f32.gmra.mrb[0].mxu0 %v512
    %v598 = vpop.f32.mrb[0].mxu0
    %v599 = vadd.f32 0.0, %v598
    %v600 = vpop.f32.mrb[0].mxu0
    %601 = vdwg.mxu0
    %v602 = vadd.f32 %v482, %v584
    %v603 = vadd.f32 %v487, %v589
    %v604 = vadd.f32 %v492, %v594
    %v605 = vadd.f32 %v497, %v599
    %v606 = vld [vmem:[%s4] sm:$0x1]
    %v608 = vlaneseq
    %v609 = vshrl.u32 %v608, 7
    %v610 = vsub.s32 0, %v609
    %v611 = vrot.slane %v606, %v610
    %v613 = vadd.f32 %v602, %v611
    %v614 = vadd.f32 %v603, %v611
    %v615 = vadd.f32 %v604, %v611
    %v616 = vadd.f32 %v605, %v611
    %v617 = vmax.f32 %v613, 0.0
    %v618 = vmax.f32 %v614, 0.0
    %v619 = vmax.f32 %v615, 0.0
    %v620 = vmax.f32 %v616, 0.0
    %621 = vmatprep.subr.mxu0 0.0
    %622 = vmatpush1.msra.mxu0 %v617
    %623 = vmatprep.subr.mxu0 0.0
    %624 = vmatpush1.msra.mxu0 %v618
    %625 = vmatprep.subr.mxu0 0.0
    %626 = vmatpush1.msra.mxu0 %v619
    %627 = vmatprep.subr.mxu0 0.0
    %628 = vmatpush1.msra.mxu0 %v620
    %629 = vmatprep.subr.mxu0 0.0
    %630 = vmatpush1.msra.mxu0 0.0
    %631 = vmatprep.subr.mxu0 0.0
    %632 = vmatpush1.msra.mxu0 0.0
    %633 = vmatprep.subr.mxu0 0.0
    %634 = vmatpush1.msra.mxu0 0.0
    %635 = vmatprep.subr.mxu0 0.0
    %636 = vmatpush1.msra.mxu0 0.0
    %637 = vmatprep.subr.mxu0 0.0
    %638 = vmatpush1.msra.mxu0 0.0
    %639 = vmatprep.subr.mxu0 0.0
    %640 = vmatpush1.msra.mxu0 0.0
    %641 = vmatprep.subr.mxu0 0.0
    %642 = vmatpush1.msra.mxu0 0.0
    %643 = vmatprep.subr.mxu0 0.0
    %644 = vmatpush1.msra.mxu0 0.0
    %645 = vmatprep.subr.mxu0 0.0
    %646 = vmatpush1.msra.mxu0 0.0
    %647 = vmatprep.subr.mxu0 0.0
    %648 = vmatpush1.msra.mxu0 0.0
    %649 = vmatprep.subr.mxu0 0.0
    %650 = vmatpush1.msra.mxu0 0.0
    %651 = vmatprep.subr.mxu0 0.0
    %652 = vmatpush1.msra.mxu0 0.0
    %653 = vmatprep.subr.mxu0 0.0
    %654 = vmatpush1.msra.mxu0 0.0
    %655 = vmatprep.subr.mxu0 0.0
    %656 = vmatpush1.msra.mxu0 0.0
    %657 = vmatprep.subr.mxu0 0.0
    %658 = vmatpush1.msra.mxu0 0.0
    %659 = vmatprep.subr.mxu0 0.0
    %660 = vmatpush1.msra.mxu0 0.0
    %661 = vmatprep.subr.mxu0 0.0
    %662 = vmatpush1.msra.mxu0 0.0
    %663 = vmatprep.subr.mxu0 0.0
    %664 = vmatpush1.msra.mxu0 0.0
    %665 = vmatprep.subr.mxu0 0.0
    %666 = vmatpush1.msra.mxu0 0.0
    %667 = vmatprep.subr.mxu0 0.0
    %668 = vmatpush1.msra.mxu0 0.0
    %669 = vmatprep.subr.mxu0 0.0
    %670 = vmatpush1.msra.mxu0 0.0
    %671 = vmatprep.subr.mxu0 0.0
    %672 = vmatpush1.msra.mxu0 0.0
    %673 = vmatprep.subr.mxu0 0.0
    %674 = vmatpush1.msra.mxu0 0.0
    %675 = vmatprep.subr.mxu0 0.0
    %676 = vmatpush1.msra.mxu0 0.0
    %677 = vmatprep.subr.mxu0 0.0
    %678 = vmatpush1.msra.mxu0 0.0
    %679 = vmatprep.subr.mxu0 0.0
    %680 = vmatpush1.msra.mxu0 0.0
    %681 = vmatprep.subr.mxu0 0.0
    %682 = vmatpush1.msra.mxu0 0.0
    %683 = vmatprep.subr.mxu0 0.0
    %684 = vmatpush1.msra.mxu0 0.0
    %685 = vmatprep.mubr.f32.mxu0 0.0
    %686 = vmatmul.mubr.f32.gmra.mrb[0].mxu0 %v102
    %v687 = vpop.f32.mrb[0].mxu0
    %v688 = vadd.f32 0.0, %v687
    %v689 = vpop.f32.mrb[0].mxu0
    %690 = vmatprep.mubr.f32.mxu0 0.0
    %691 = vmatmul.mubr.f32.gmra.mrb[0].mxu0 %v105
    %v692 = vpop.f32.mrb[0].mxu0
    %v693 = vadd.f32 0.0, %v692
    %v694 = vpop.f32.mrb[0].mxu0
    %695 = vmatprep.mubr.f32.mxu0 0.0
    %696 = vmatmul.mubr.f32.gmra.mrb[0].mxu0 %v108
    %v697 = vpop.f32.mrb[0].mxu0
    %v698 = vadd.f32 0.0, %v697
    %v699 = vpop.f32.mrb[0].mxu0
    %700 = vmatprep.mubr.f32.mxu0 0.0
    %701 = vmatmul.mubr.f32.gmra.mrb[0].mxu0 %v111
    %v702 = vpop.f32.mrb[0].mxu0
    %v703 = vadd.f32 0.0, %v702
    %v704 = vpop.f32.mrb[0].mxu0
    %705 = vdwg.mxu0
    %706 = vmatprep.subr.mxu0 0.0
    %707 = vmatpush1.msra.mxu0 %v617
    %708 = vmatprep.subr.mxu0 0.0
    %709 = vmatpush1.msra.mxu0 %v618
    %710 = vmatprep.subr.mxu0 0.0
    %711 = vmatpush1.msra.mxu0 %v619
    %712 = vmatprep.subr.mxu0 0.0
    %713 = vmatpush1.msra.mxu0 %v620
    %714 = vmatprep.subr.mxu0 0.0
    %715 = vmatpush1.msra.mxu0 0.0
    %716 = vmatprep.subr.mxu0 0.0
    %717 = vmatpush1.msra.mxu0 0.0
    %718 = vmatprep.subr.mxu0 0.0
    %719 = vmatpush1.msra.mxu0 0.0
    %720 = vmatprep.subr.mxu0 0.0
    %721 = vmatpush1.msra.mxu0 0.0
    %722 = vmatprep.subr.mxu0 0.0
    %723 = vmatpush1.msra.mxu0 0.0
    %724 = vmatprep.subr.mxu0 0.0
    %725 = vmatpush1.msra.mxu0 0.0
    %726 = vmatprep.subr.mxu0 0.0
    %727 = vmatpush1.msra.mxu0 0.0
    %728 = vmatprep.subr.mxu0 0.0
    %729 = vmatpush1.msra.mxu0 0.0
    %730 = vmatprep.subr.mxu0 0.0
    %731 = vmatpush1.msra.mxu0 0.0
    %732 = vmatprep.subr.mxu0 0.0
    %733 = vmatpush1.msra.mxu0 0.0
    %734 = vmatprep.subr.mxu0 0.0
    %735 = vmatpush1.msra.mxu0 0.0
    %736 = vmatprep.subr.mxu0 0.0
    %737 = vmatpush1.msra.mxu0 0.0
    %738 = vmatprep.subr.mxu0 0.0
    %739 = vmatpush1.msra.mxu0 0.0
    %740 = vmatprep.subr.mxu0 0.0
    %741 = vmatpush1.msra.mxu0 0.0
    %742 = vmatprep.subr.mxu0 0.0
    %743 = vmatpush1.msra.mxu0 0.0
    %744 = vmatprep.subr.mxu0 0.0
    %745 = vmatpush1.msra.mxu0 0.0
    %746 = vmatprep.subr.mxu0 0.0
    %747 = vmatpush1.msra.mxu0 0.0
    %748 = vmatprep.subr.mxu0 0.0
    %749 = vmatpush1.msra.mxu0 0.0
    %750 = vmatprep.subr.mxu0 0.0
    %751 = vmatpush1.msra.mxu0 0.0
    %752 = vmatprep.subr.mxu0 0.0
    %753 = vmatpush1.msra.mxu0 0.0
    %754 = vmatprep.subr.mxu0 0.0
    %755 = vmatpush1.msra.mxu0 0.0
    %756 = vmatprep.subr.mxu0 0.0
    %757 = vmatpush1.msra.mxu0 0.0
    %758 = vmatprep.subr.mxu0 0.0
    %759 = vmatpush1.msra.mxu0 0.0
    %760 = vmatprep.subr.mxu0 0.0
    %761 = vmatpush1.msra.mxu0 0.0
    %762 = vmatprep.subr.mxu0 0.0
    %763 = vmatpush1.msra.mxu0 0.0
    %764 = vmatprep.subr.mxu0 0.0
    %765 = vmatpush1.msra.mxu0 0.0
    %766 = vmatprep.subr.mxu0 0.0
    %767 = vmatpush1.msra.mxu0 0.0
    %768 = vmatprep.subr.mxu0 0.0
    %769 = vmatpush1.msra.mxu0 0.0
    %770 = vmatprep.mubr.f32.mxu0 0.0
    %771 = vmatmul.mubr.f32.gmra.mrb[0].mxu0 %v199
    %v772 = vpop.f32.mrb[0].mxu0
    %v773 = vadd.f32 0.0, %v772
    %v774 = vpop.f32.mrb[0].mxu0
    %775 = vmatprep.mubr.f32.mxu0 0.0
    %776 = vmatmul.mubr.f32.gmra.mrb[0].mxu0 %v202
    %v777 = vpop.f32.mrb[0].mxu0
    %v778 = vadd.f32 0.0, %v777
    %v779 = vpop.f32.mrb[0].mxu0
    %780 = vmatprep.mubr.f32.mxu0 0.0
    %781 = vmatmul.mubr.f32.gmra.mrb[0].mxu0 %v205
    %v782 = vpop.f32.mrb[0].mxu0
    %v783 = vadd.f32 0.0, %v782
    %v784 = vpop.f32.mrb[0].mxu0
    %785 = vmatprep.mubr.f32.mxu0 0.0
    %786 = vmatmul.mubr.f32.gmra.mrb[0].mxu0 %v208
    %v787 = vpop.f32.mrb[0].mxu0
    %v788 = vadd.f32 0.0, %v787
    %v789 = vpop.f32.mrb[0].mxu0
    %790 = vdwg.mxu0
    %v791 = vld [vmem:[%s5] sm:$0xff]
    %v792 = vld [vmem:[%s5 + $0x8] sm:$0xff]
    %v793 = vld [vmem:[%s5 + $0x10] sm:$0xff]
    %v794 = vld [vmem:[%s5 + $0x18] sm:$0xff]
    %s795 = scalar_lea.vmem %s5, 32
    %v796 = vld [vmem:[%s795] sm:$0xff]
    %v797 = vld [vmem:[%s795 + $0x8] sm:$0xff]
    %v798 = vld [vmem:[%s795 + $0x10] sm:$0xff]
    %v799 = vld [vmem:[%s795 + $0x18] sm:$0xff]
    %v801 = vsel %vm100, %v617, 0
    %v804 = vsel %vm100, %v618, 0
    %v807 = vsel %vm100, %v619, 0
    %v810 = vsel %vm100, %v620, 0
    %812 = vmatprep.subr.mxu0 0.0
    %813 = vmatpush1.msra.mxu0 %v796
    %814 = vmatprep.subr.mxu0 0.0
    %815 = vmatpush1.msra.mxu0 %v797
    %816 = vmatprep.subr.mxu0 0.0
    %817 = vmatpush1.msra.mxu0 %v798
    %818 = vmatprep.subr.mxu0 0.0
    %819 = vmatpush1.msra.mxu0 %v799
    %820 = vmatprep.subr.mxu0 0.0
    %821 = vmatpush1.msra.mxu0 0.0
    %822 = vmatprep.subr.mxu0 0.0
    %823 = vmatpush1.msra.mxu0 0.0
    %824 = vmatprep.subr.mxu0 0.0
    %825 = vmatpush1.msra.mxu0 0.0
    %826 = vmatprep.subr.mxu0 0.0
    %827 = vmatpush1.msra.mxu0 0.0
    %828 = vmatprep.subr.mxu0 0.0
    %829 = vmatpush1.msra.mxu0 0.0
    %830 = vmatprep.subr.mxu0 0.0
    %831 = vmatpush1.msra.mxu0 0.0
    %832 = vmatprep.subr.mxu0 0.0
    %833 = vmatpush1.msra.mxu0 0.0
    %834 = vmatprep.subr.mxu0 0.0
    %835 = vmatpush1.msra.mxu0 0.0
    %836 = vmatprep.subr.mxu0 0.0
    %837 = vmatpush1.msra.mxu0 0.0
    %838 = vmatprep.subr.mxu0 0.0
    %839 = vmatpush1.msra.mxu0 0.0
    %840 = vmatprep.subr.mxu0 0.0
    %841 = vmatpush1.msra.mxu0 0.0
    %842 = vmatprep.subr.mxu0 0.0
    %843 = vmatpush1.msra.mxu0 0.0
    %844 = vmatprep.subr.mxu0 0.0
    %845 = vmatpush1.msra.mxu0 0.0
    %846 = vmatprep.subr.mxu0 0.0
    %847 = vmatpush1.msra.mxu0 0.0
    %848 = vmatprep.subr.mxu0 0.0
    %849 = vmatpush1.msra.mxu0 0.0
    %850 = vmatprep.subr.mxu0 0.0
    %851 = vmatpush1.msra.mxu0 0.0
    %852 = vmatprep.subr.mxu0 0.0
    %853 = vmatpush1.msra.mxu0 0.0
    %854 = vmatprep.subr.mxu0 0.0
    %855 = vmatpush1.msra.mxu0 0.0
    %856 = vmatprep.subr.mxu0 0.0
    %857 = vmatpush1.msra.mxu0 0.0
    %858 = vmatprep.subr.mxu0 0.0
    %859 = vmatpush1.msra.mxu0 0.0
    %860 = vmatprep.subr.mxu0 0.0
    %861 = vmatpush1.msra.mxu0 0.0
    %862 = vmatprep.subr.mxu0 0.0
    %863 = vmatpush1.msra.mxu0 0.0
    %864 = vmatprep.subr.mxu0 0.0
    %865 = vmatpush1.msra.mxu0 0.0
    %866 = vmatprep.subr.mxu0 0.0
    %867 = vmatpush1.msra.mxu0 0.0
    %868 = vmatprep.subr.mxu0 0.0
    %869 = vmatpush1.msra.mxu0 0.0
    %870 = vmatprep.subr.mxu0 0.0
    %871 = vmatpush1.msra.mxu0 0.0
    %872 = vmatprep.subr.mxu0 0.0
    %873 = vmatpush1.msra.mxu0 0.0
    %874 = vmatprep.subr.mxu0 0.0
    %875 = vmatpush1.msra.mxu0 0.0
    %876 = vmatprep.mubr.f32.mxu0 0.0
    %877 = vmatmul.mubr.f32.gmra.mrb[0].mxu0 %v801
    %v878 = vpop.f32.mrb[0].mxu0
    %v879 = vadd.f32 0.0, %v878
    %v880 = vpop.f32.mrb[0].mxu0
    %881 = vmatprep.mubr.f32.mxu0 0.0
    %882 = vmatmul.mubr.f32.gmra.mrb[0].mxu0 %v804
    %v883 = vpop.f32.mrb[0].mxu0
    %v884 = vadd.f32 0.0, %v883
    %v885 = vpop.f32.mrb[0].mxu0
    %886 = vmatprep.mubr.f32.mxu0 0.0
    %887 = vmatmul.mubr.f32.gmra.mrb[0].mxu0 %v807
    %v888 = vpop.f32.mrb[0].mxu0
    %v889 = vadd.f32 0.0, %v888
    %v890 = vpop.f32.mrb[0].mxu0
    %891 = vmatprep.mubr.f32.mxu0 0.0
    %892 = vmatmul.mubr.f32.gmra.mrb[0].mxu0 %v810
    %v893 = vpop.f32.mrb[0].mxu0
    %v894 = vadd.f32 0.0, %v893
    %v895 = vpop.f32.mrb[0].mxu0
    %896 = vdwg.mxu0
    %v898 = vsel %vm100, %v688, 0
    %v901 = vsel %vm100, %v693, 0
    %v904 = vsel %vm100, %v698, 0
    %v907 = vsel %vm100, %v703, 0
    %909 = vmatprep.subr.mxu0 0.0
    %910 = vmatpush1.msra.mxu0 %v791
    %911 = vmatprep.subr.mxu0 0.0
    %912 = vmatpush1.msra.mxu0 %v792
    %913 = vmatprep.subr.mxu0 0.0
    %914 = vmatpush1.msra.mxu0 %v793
    %915 = vmatprep.subr.mxu0 0.0
    %916 = vmatpush1.msra.mxu0 %v794
    %917 = vmatprep.subr.mxu0 0.0
    %918 = vmatpush1.msra.mxu0 0.0
    %919 = vmatprep.subr.mxu0 0.0
    %920 = vmatpush1.msra.mxu0 0.0
    %921 = vmatprep.subr.mxu0 0.0
    %922 = vmatpush1.msra.mxu0 0.0
    %923 = vmatprep.subr.mxu0 0.0
    %924 = vmatpush1.msra.mxu0 0.0
    %925 = vmatprep.subr.mxu0 0.0
    %926 = vmatpush1.msra.mxu0 0.0
    %927 = vmatprep.subr.mxu0 0.0
    %928 = vmatpush1.msra.mxu0 0.0
    %929 = vmatprep.subr.mxu0 0.0
    %930 = vmatpush1.msra.mxu0 0.0
    %931 = vmatprep.subr.mxu0 0.0
    %932 = vmatpush1.msra.mxu0 0.0
    %933 = vmatprep.subr.mxu0 0.0
    %934 = vmatpush1.msra.mxu0 0.0
    %935 = vmatprep.subr.mxu0 0.0
    %936 = vmatpush1.msra.mxu0 0.0
    %937 = vmatprep.subr.mxu0 0.0
    %938 = vmatpush1.msra.mxu0 0.0
    %939 = vmatprep.subr.mxu0 0.0
    %940 = vmatpush1.msra.mxu0 0.0
    %941 = vmatprep.subr.mxu0 0.0
    %942 = vmatpush1.msra.mxu0 0.0
    %943 = vmatprep.subr.mxu0 0.0
    %944 = vmatpush1.msra.mxu0 0.0
    %945 = vmatprep.subr.mxu0 0.0
    %946 = vmatpush1.msra.mxu0 0.0
    %947 = vmatprep.subr.mxu0 0.0
    %948 = vmatpush1.msra.mxu0 0.0
    %949 = vmatprep.subr.mxu0 0.0
    %950 = vmatpush1.msra.mxu0 0.0
    %951 = vmatprep.subr.mxu0 0.0
    %952 = vmatpush1.msra.mxu0 0.0
    %953 = vmatprep.subr.mxu0 0.0
    %954 = vmatpush1.msra.mxu0 0.0
    %955 = vmatprep.subr.mxu0 0.0
    %956 = vmatpush1.msra.mxu0 0.0
    %957 = vmatprep.subr.mxu0 0.0
    %958 = vmatpush1.msra.mxu0 0.0
    %959 = vmatprep.subr.mxu0 0.0
    %960 = vmatpush1.msra.mxu0 0.0
    %961 = vmatprep.subr.mxu0 0.0
    %962 = vmatpush1.msra.mxu0 0.0
    %963 = vmatprep.subr.mxu0 0.0
    %964 = vmatpush1.msra.mxu0 0.0
    %965 = vmatprep.subr.mxu0 0.0
    %966 = vmatpush1.msra.mxu0 0.0
    %967 = vmatprep.subr.mxu0 0.0
    %968 = vmatpush1.msra.mxu0 0.0
    %969 = vmatprep.subr.mxu0 0.0
    %970 = vmatpush1.msra.mxu0 0.0
    %971 = vmatprep.subr.mxu0 0.0
    %972 = vmatpush1.msra.mxu0 0.0
    %973 = vmatprep.mubr.f32.mxu0 0.0
    %974 = vmatmul.mubr.f32.gmra.mrb[0].mxu0 %v898
    %v975 = vpop.f32.mrb[0].mxu0
    %v976 = vadd.f32 %v879, %v975
    %v977 = vpop.f32.mrb[0].mxu0
    %978 = vmatprep.mubr.f32.mxu0 0.0
    %979 = vmatmul.mubr.f32.gmra.mrb[0].mxu0 %v901
    %v980 = vpop.f32.mrb[0].mxu0
    %v981 = vadd.f32 %v884, %v980
    %v982 = vpop.f32.mrb[0].mxu0
    %983 = vmatprep.mubr.f32.mxu0 0.0
    %984 = vmatmul.mubr.f32.gmra.mrb[0].mxu0 %v904
    %v985 = vpop.f32.mrb[0].mxu0
    %v986 = vadd.f32 %v889, %v985
    %v987 = vpop.f32.mrb[0].mxu0
    %988 = vmatprep.mubr.f32.mxu0 0.0
    %989 = vmatmul.mubr.f32.gmra.mrb[0].mxu0 %v907
    %v990 = vpop.f32.mrb[0].mxu0
    %v991 = vadd.f32 %v894, %v990
    %v992 = vpop.f32.mrb[0].mxu0
    %993 = vdwg.mxu0
    %s994 = scalar_lea.vmem %s5, 64
    %v995 = vld [vmem:[%s994] sm:$0xff]
    %v996 = vld [vmem:[%s994 + $0x8] sm:$0xff]
    %v997 = vld [vmem:[%s994 + $0x10] sm:$0xff]
    %v998 = vld [vmem:[%s994 + $0x18] sm:$0xff]
    %v1000 = vsel %vm100, %v773, 0
    %v1003 = vsel %vm100, %v778, 0
    %v1006 = vsel %vm100, %v783, 0
    %v1009 = vsel %vm100, %v788, 0
    %1011 = vmatprep.subr.mxu0 0.0
    %1012 = vmatpush1.msra.mxu0 %v995
    %1013 = vmatprep.subr.mxu0 0.0
    %1014 = vmatpush1.msra.mxu0 %v996
    %1015 = vmatprep.subr.mxu0 0.0
    %1016 = vmatpush1.msra.mxu0 %v997
    %1017 = vmatprep.subr.mxu0 0.0
    %1018 = vmatpush1.msra.mxu0 %v998
    %1019 = vmatprep.subr.mxu0 0.0
    %1020 = vmatpush1.msra.mxu0 0.0
    %1021 = vmatprep.subr.mxu0 0.0
    %1022 = vmatpush1.msra.mxu0 0.0
    %1023 = vmatprep.subr.mxu0 0.0
    %1024 = vmatpush1.msra.mxu0 0.0
    %1025 = vmatprep.subr.mxu0 0.0
    %1026 = vmatpush1.msra.mxu0 0.0
    %1027 = vmatprep.subr.mxu0 0.0
    %1028 = vmatpush1.msra.mxu0 0.0
    %1029 = vmatprep.subr.mxu0 0.0
    %1030 = vmatpush1.msra.mxu0 0.0
    %1031 = vmatprep.subr.mxu0 0.0
    %1032 = vmatpush1.msra.mxu0 0.0
    %1033 = vmatprep.subr.mxu0 0.0
    %1034 = vmatpush1.msra.mxu0 0.0
    %1035 = vmatprep.subr.mxu0 0.0
    %1036 = vmatpush1.msra.mxu0 0.0
    %1037 = vmatprep.subr.mxu0 0.0
    %1038 = vmatpush1.msra.mxu0 0.0
    %1039 = vmatprep.subr.mxu0 0.0
    %1040 = vmatpush1.msra.mxu0 0.0
    %1041 = vmatprep.subr.mxu0 0.0
    %1042 = vmatpush1.msra.mxu0 0.0
    %1043 = vmatprep.subr.mxu0 0.0
    %1044 = vmatpush1.msra.mxu0 0.0
    %1045 = vmatprep.subr.mxu0 0.0
    %1046 = vmatpush1.msra.mxu0 0.0
    %1047 = vmatprep.subr.mxu0 0.0
    %1048 = vmatpush1.msra.mxu0 0.0
    %1049 = vmatprep.subr.mxu0 0.0
    %1050 = vmatpush1.msra.mxu0 0.0
    %1051 = vmatprep.subr.mxu0 0.0
    %1052 = vmatpush1.msra.mxu0 0.0
    %1053 = vmatprep.subr.mxu0 0.0
    %1054 = vmatpush1.msra.mxu0 0.0
    %1055 = vmatprep.subr.mxu0 0.0
    %1056 = vmatpush1.msra.mxu0 0.0
    %1057 = vmatprep.subr.mxu0 0.0
    %1058 = vmatpush1.msra.mxu0 0.0
    %1059 = vmatprep.subr.mxu0 0.0
    %1060 = vmatpush1.msra.mxu0 0.0
    %1061 = vmatprep.subr.mxu0 0.0
    %1062 = vmatpush1.msra.mxu0 0.0
    %1063 = vmatprep.subr.mxu0 0.0
    %1064 = vmatpush1.msra.mxu0 0.0
    %1065 = vmatprep.subr.mxu0 0.0
    %1066 = vmatpush1.msra.mxu0 0.0
    %1067 = vmatprep.subr.mxu0 0.0
    %1068 = vmatpush1.msra.mxu0 0.0
    %1069 = vmatprep.subr.mxu0 0.0
    %1070 = vmatpush1.msra.mxu0 0.0
    %1071 = vmatprep.subr.mxu0 0.0
    %1072 = vmatpush1.msra.mxu0 0.0
    %1073 = vmatprep.subr.mxu0 0.0
    %1074 = vmatpush1.msra.mxu0 0.0
    %1075 = vmatprep.mubr.f32.mxu0 0.0
    %1076 = vmatmul.mubr.f32.gmra.mrb[0].mxu0 %v1000
    %v1077 = vpop.f32.mrb[0].mxu0
    %v1078 = vadd.f32 0.0, %v1077
    %v1079 = vpop.f32.mrb[0].mxu0
    %1080 = vmatprep.mubr.f32.mxu0 0.0
    %1081 = vmatmul.mubr.f32.gmra.mrb[0].mxu0 %v1003
    %v1082 = vpop.f32.mrb[0].mxu0
    %v1083 = vadd.f32 0.0, %v1082
    %v1084 = vpop.f32.mrb[0].mxu0
    %1085 = vmatprep.mubr.f32.mxu0 0.0
    %1086 = vmatmul.mubr.f32.gmra.mrb[0].mxu0 %v1006
    %v1087 = vpop.f32.mrb[0].mxu0
    %v1088 = vadd.f32 0.0, %v1087
    %v1089 = vpop.f32.mrb[0].mxu0
    %1090 = vmatprep.mubr.f32.mxu0 0.0
    %1091 = vmatmul.mubr.f32.gmra.mrb[0].mxu0 %v1009
    %v1092 = vpop.f32.mrb[0].mxu0
    %v1093 = vadd.f32 0.0, %v1092
    %v1094 = vpop.f32.mrb[0].mxu0
    %1095 = vdwg.mxu0
    %v1096 = vadd.f32 %v976, %v1078
    %v1097 = vadd.f32 %v981, %v1083
    %v1098 = vadd.f32 %v986, %v1088
    %v1099 = vadd.f32 %v991, %v1093
    %v1100 = vld [vmem:[%s6] sm:$0x1]
    %v1102 = vlaneseq
    %v1103 = vshrl.u32 %v1102, 7
    %v1104 = vsub.s32 0, %v1103
    %v1105 = vrot.slane %v1100, %v1104
    %v1107 = vadd.f32 %v1096, %v1105
    %v1108 = vadd.f32 %v1097, %v1105
    %v1109 = vadd.f32 %v1098, %v1105
    %v1110 = vadd.f32 %v1099, %v1105
    %v1111 = vmax.f32 %v1107, 0.0
    %v1112 = vmax.f32 %v1108, 0.0
    %v1113 = vmax.f32 %v1109, 0.0
    %v1114 = vmax.f32 %v1110, 0.0
    %1115 = vmatprep.subr.mxu0 0.0
    %1116 = vmatpush1.msra.mxu0 %v1111
    %1117 = vmatprep.subr.mxu0 0.0
    %1118 = vmatpush1.msra.mxu0 %v1112
    %1119 = vmatprep.subr.mxu0 0.0
    %1120 = vmatpush1.msra.mxu0 %v1113
    %1121 = vmatprep.subr.mxu0 0.0
    %1122 = vmatpush1.msra.mxu0 %v1114
    %1123 = vmatprep.subr.mxu0 0.0
    %1124 = vmatpush1.msra.mxu0 0.0
    %1125 = vmatprep.subr.mxu0 0.0
    %1126 = vmatpush1.msra.mxu0 0.0
    %1127 = vmatprep.subr.mxu0 0.0
    %1128 = vmatpush1.msra.mxu0 0.0
    %1129 = vmatprep.subr.mxu0 0.0
    %1130 = vmatpush1.msra.mxu0 0.0
    %1131 = vmatprep.subr.mxu0 0.0
    %1132 = vmatpush1.msra.mxu0 0.0
    %1133 = vmatprep.subr.mxu0 0.0
    %1134 = vmatpush1.msra.mxu0 0.0
    %1135 = vmatprep.subr.mxu0 0.0
    %1136 = vmatpush1.msra.mxu0 0.0
    %1137 = vmatprep.subr.mxu0 0.0
    %1138 = vmatpush1.msra.mxu0 0.0
    %1139 = vmatprep.subr.mxu0 0.0
    %1140 = vmatpush1.msra.mxu0 0.0
    %1141 = vmatprep.subr.mxu0 0.0
    %1142 = vmatpush1.msra.mxu0 0.0
    %1143 = vmatprep.subr.mxu0 0.0
    %1144 = vmatpush1.msra.mxu0 0.0
    %1145 = vmatprep.subr.mxu0 0.0
    %1146 = vmatpush1.msra.mxu0 0.0
    %1147 = vmatprep.subr.mxu0 0.0
    %1148 = vmatpush1.msra.mxu0 0.0
    %1149 = vmatprep.subr.mxu0 0.0
    %1150 = vmatpush1.msra.mxu0 0.0
    %1151 = vmatprep.subr.mxu0 0.0
    %1152 = vmatpush1.msra.mxu0 0.0
    %1153 = vmatprep.subr.mxu0 0.0
    %1154 = vmatpush1.msra.mxu0 0.0
    %1155 = vmatprep.subr.mxu0 0.0
    %1156 = vmatpush1.msra.mxu0 0.0
    %1157 = vmatprep.subr.mxu0 0.0
    %1158 = vmatpush1.msra.mxu0 0.0
    %1159 = vmatprep.subr.mxu0 0.0
    %1160 = vmatpush1.msra.mxu0 0.0
    %1161 = vmatprep.subr.mxu0 0.0
    %1162 = vmatpush1.msra.mxu0 0.0
    %1163 = vmatprep.subr.mxu0 0.0
    %1164 = vmatpush1.msra.mxu0 0.0
    %1165 = vmatprep.subr.mxu0 0.0
    %1166 = vmatpush1.msra.mxu0 0.0
    %1167 = vmatprep.subr.mxu0 0.0
    %1168 = vmatpush1.msra.mxu0 0.0
    %1169 = vmatprep.subr.mxu0 0.0
    %1170 = vmatpush1.msra.mxu0 0.0
    %1171 = vmatprep.subr.mxu0 0.0
    %1172 = vmatpush1.msra.mxu0 0.0
    %1173 = vmatprep.subr.mxu0 0.0
    %1174 = vmatpush1.msra.mxu0 0.0
    %1175 = vmatprep.subr.mxu0 0.0
    %1176 = vmatpush1.msra.mxu0 0.0
    %1177 = vmatprep.subr.mxu0 0.0
    %1178 = vmatpush1.msra.mxu0 0.0
    %1179 = vmatprep.mubr.f32.mxu0 0.0
    %1180 = vmatmul.mubr.f32.gmra.mrb[0].mxu0 %v102
    %v1181 = vpop.f32.mrb[0].mxu0
    %v1182 = vadd.f32 0.0, %v1181
    %v1183 = vpop.f32.mrb[0].mxu0
    %1184 = vmatprep.mubr.f32.mxu0 0.0
    %1185 = vmatmul.mubr.f32.gmra.mrb[0].mxu0 %v105
    %v1186 = vpop.f32.mrb[0].mxu0
    %v1187 = vadd.f32 0.0, %v1186
    %v1188 = vpop.f32.mrb[0].mxu0
    %1189 = vmatprep.mubr.f32.mxu0 0.0
    %1190 = vmatmul.mubr.f32.gmra.mrb[0].mxu0 %v108
    %v1191 = vpop.f32.mrb[0].mxu0
    %v1192 = vadd.f32 0.0, %v1191
    %v1193 = vpop.f32.mrb[0].mxu0
    %1194 = vmatprep.mubr.f32.mxu0 0.0
    %1195 = vmatmul.mubr.f32.gmra.mrb[0].mxu0 %v111
    %v1196 = vpop.f32.mrb[0].mxu0
    %v1197 = vadd.f32 0.0, %v1196
    %v1198 = vpop.f32.mrb[0].mxu0
    %1199 = vdwg.mxu0
    %1200 = vmatprep.subr.mxu0 0.0
    %1201 = vmatpush1.msra.mxu0 %v1111
    %1202 = vmatprep.subr.mxu0 0.0
    %1203 = vmatpush1.msra.mxu0 %v1112
    %1204 = vmatprep.subr.mxu0 0.0
    %1205 = vmatpush1.msra.mxu0 %v1113
    %1206 = vmatprep.subr.mxu0 0.0
    %1207 = vmatpush1.msra.mxu0 %v1114
    %1208 = vmatprep.subr.mxu0 0.0
    %1209 = vmatpush1.msra.mxu0 0.0
    %1210 = vmatprep.subr.mxu0 0.0
    %1211 = vmatpush1.msra.mxu0 0.0
    %1212 = vmatprep.subr.mxu0 0.0
    %1213 = vmatpush1.msra.mxu0 0.0
    %1214 = vmatprep.subr.mxu0 0.0
    %1215 = vmatpush1.msra.mxu0 0.0
    %1216 = vmatprep.subr.mxu0 0.0
    %1217 = vmatpush1.msra.mxu0 0.0
    %1218 = vmatprep.subr.mxu0 0.0
    %1219 = vmatpush1.msra.mxu0 0.0
    %1220 = vmatprep.subr.mxu0 0.0
    %1221 = vmatpush1.msra.mxu0 0.0
    %1222 = vmatprep.subr.mxu0 0.0
    %1223 = vmatpush1.msra.mxu0 0.0
    %1224 = vmatprep.subr.mxu0 0.0
    %1225 = vmatpush1.msra.mxu0 0.0
    %1226 = vmatprep.subr.mxu0 0.0
    %1227 = vmatpush1.msra.mxu0 0.0
    %1228 = vmatprep.subr.mxu0 0.0
    %1229 = vmatpush1.msra.mxu0 0.0
    %1230 = vmatprep.subr.mxu0 0.0
    %1231 = vmatpush1.msra.mxu0 0.0
    %1232 = vmatprep.subr.mxu0 0.0
    %1233 = vmatpush1.msra.mxu0 0.0
    %1234 = vmatprep.subr.mxu0 0.0
    %1235 = vmatpush1.msra.mxu0 0.0
    %1236 = vmatprep.subr.mxu0 0.0
    %1237 = vmatpush1.msra.mxu0 0.0
    %1238 = vmatprep.subr.mxu0 0.0
    %1239 = vmatpush1.msra.mxu0 0.0
    %1240 = vmatprep.subr.mxu0 0.0
    %1241 = vmatpush1.msra.mxu0 0.0
    %1242 = vmatprep.subr.mxu0 0.0
    %1243 = vmatpush1.msra.mxu0 0.0
    %1244 = vmatprep.subr.mxu0 0.0
    %1245 = vmatpush1.msra.mxu0 0.0
    %1246 = vmatprep.subr.mxu0 0.0
    %1247 = vmatpush1.msra.mxu0 0.0
    %1248 = vmatprep.subr.mxu0 0.0
    %1249 = vmatpush1.msra.mxu0 0.0
    %1250 = vmatprep.subr.mxu0 0.0
    %1251 = vmatpush1.msra.mxu0 0.0
    %1252 = vmatprep.subr.mxu0 0.0
    %1253 = vmatpush1.msra.mxu0 0.0
    %1254 = vmatprep.subr.mxu0 0.0
    %1255 = vmatpush1.msra.mxu0 0.0
    %1256 = vmatprep.subr.mxu0 0.0
    %1257 = vmatpush1.msra.mxu0 0.0
    %1258 = vmatprep.subr.mxu0 0.0
    %1259 = vmatpush1.msra.mxu0 0.0
    %1260 = vmatprep.subr.mxu0 0.0
    %1261 = vmatpush1.msra.mxu0 0.0
    %1262 = vmatprep.subr.mxu0 0.0
    %1263 = vmatpush1.msra.mxu0 0.0
    %1264 = vmatprep.mubr.f32.mxu0 0.0
    %1265 = vmatmul.mubr.f32.gmra.mrb[0].mxu0 %v199
    %v1266 = vpop.f32.mrb[0].mxu0
    %v1267 = vadd.f32 0.0, %v1266
    %v1268 = vpop.f32.mrb[0].mxu0
    %1269 = vmatprep.mubr.f32.mxu0 0.0
    %1270 = vmatmul.mubr.f32.gmra.mrb[0].mxu0 %v202
    %v1271 = vpop.f32.mrb[0].mxu0
    %v1272 = vadd.f32 0.0, %v1271
    %v1273 = vpop.f32.mrb[0].mxu0
    %1274 = vmatprep.mubr.f32.mxu0 0.0
    %1275 = vmatmul.mubr.f32.gmra.mrb[0].mxu0 %v205
    %v1276 = vpop.f32.mrb[0].mxu0
    %v1277 = vadd.f32 0.0, %v1276
    %v1278 = vpop.f32.mrb[0].mxu0
    %1279 = vmatprep.mubr.f32.mxu0 0.0
    %1280 = vmatmul.mubr.f32.gmra.mrb[0].mxu0 %v208
    %v1281 = vpop.f32.mrb[0].mxu0
    %v1282 = vadd.f32 0.0, %v1281
    %v1283 = vpop.f32.mrb[0].mxu0
    %1284 = vdwg.mxu0
    %v1285 = vld [vmem:[%s7] sm:$0xff]
    %v1286 = vld [vmem:[%s7 + $0x8] sm:$0xff]
    %v1287 = vld [vmem:[%s7 + $0x10] sm:$0xff]
    %v1288 = vld [vmem:[%s7 + $0x18] sm:$0xff]
    %s1289 = scalar_lea.vmem %s7, 32
    %v1290 = vld [vmem:[%s1289] sm:$0xff]
    %v1291 = vld [vmem:[%s1289 + $0x8] sm:$0xff]
    %v1292 = vld [vmem:[%s1289 + $0x10] sm:$0xff]
    %v1293 = vld [vmem:[%s1289 + $0x18] sm:$0xff]
    %v1295 = vsel %vm100, %v1111, 0
    %v1298 = vsel %vm100, %v1112, 0
    %v1301 = vsel %vm100, %v1113, 0
    %v1304 = vsel %vm100, %v1114, 0
    %1306 = vmatprep.subr.mxu0 0.0
    %1307 = vmatpush1.msra.mxu0 %v1290
    %1308 = vmatprep.subr.mxu0 0.0
    %1309 = vmatpush1.msra.mxu0 %v1291
    %1310 = vmatprep.subr.mxu0 0.0
    %1311 = vmatpush1.msra.mxu0 %v1292
    %1312 = vmatprep.subr.mxu0 0.0
    %1313 = vmatpush1.msra.mxu0 %v1293
    %1314 = vmatprep.subr.mxu0 0.0
    %1315 = vmatpush1.msra.mxu0 0.0
    %1316 = vmatprep.subr.mxu0 0.0
    %1317 = vmatpush1.msra.mxu0 0.0
    %1318 = vmatprep.subr.mxu0 0.0
    %1319 = vmatpush1.msra.mxu0 0.0
    %1320 = vmatprep.subr.mxu0 0.0
    %1321 = vmatpush1.msra.mxu0 0.0
    %1322 = vmatprep.subr.mxu0 0.0
    %1323 = vmatpush1.msra.mxu0 0.0
    %1324 = vmatprep.subr.mxu0 0.0
    %1325 = vmatpush1.msra.mxu0 0.0
    %1326 = vmatprep.subr.mxu0 0.0
    %1327 = vmatpush1.msra.mxu0 0.0
    %1328 = vmatprep.subr.mxu0 0.0
    %1329 = vmatpush1.msra.mxu0 0.0
    %1330 = vmatprep.subr.mxu0 0.0
    %1331 = vmatpush1.msra.mxu0 0.0
    %1332 = vmatprep.subr.mxu0 0.0
    %1333 = vmatpush1.msra.mxu0 0.0
    %1334 = vmatprep.subr.mxu0 0.0
    %1335 = vmatpush1.msra.mxu0 0.0
    %1336 = vmatprep.subr.mxu0 0.0
    %1337 = vmatpush1.msra.mxu0 0.0
    %1338 = vmatprep.subr.mxu0 0.0
    %1339 = vmatpush1.msra.mxu0 0.0
    %1340 = vmatprep.subr.mxu0 0.0
    %1341 = vmatpush1.msra.mxu0 0.0
    %1342 = vmatprep.subr.mxu0 0.0
    %1343 = vmatpush1.msra.mxu0 0.0
    %1344 = vmatprep.subr.mxu0 0.0
    %1345 = vmatpush1.msra.mxu0 0.0
    %1346 = vmatprep.subr.mxu0 0.0
    %1347 = vmatpush1.msra.mxu0 0.0
    %1348 = vmatprep.subr.mxu0 0.0
    %1349 = vmatpush1.msra.mxu0 0.0
    %1350 = vmatprep.subr.mxu0 0.0
    %1351 = vmatpush1.msra.mxu0 0.0
    %1352 = vmatprep.subr.mxu0 0.0
    %1353 = vmatpush1.msra.mxu0 0.0
    %1354 = vmatprep.subr.mxu0 0.0
    %1355 = vmatpush1.msra.mxu0 0.0
    %1356 = vmatprep.subr.mxu0 0.0
    %1357 = vmatpush1.msra.mxu0 0.0
    %1358 = vmatprep.subr.mxu0 0.0
    %1359 = vmatpush1.msra.mxu0 0.0
    %1360 = vmatprep.subr.mxu0 0.0
    %1361 = vmatpush1.msra.mxu0 0.0
    %1362 = vmatprep.subr.mxu0 0.0
    %1363 = vmatpush1.msra.mxu0 0.0
    %1364 = vmatprep.subr.mxu0 0.0
    %1365 = vmatpush1.msra.mxu0 0.0
    %1366 = vmatprep.subr.mxu0 0.0
    %1367 = vmatpush1.msra.mxu0 0.0
    %1368 = vmatprep.subr.mxu0 0.0
    %1369 = vmatpush1.msra.mxu0 0.0
    %1370 = vmatprep.mubr.f32.mxu0 0.0
    %1371 = vmatmul.mubr.f32.gmra.mrb[0].mxu0 %v1295
    %v1372 = vpop.f32.mrb[0].mxu0
    %v1373 = vadd.f32 0.0, %v1372
    %v1374 = vpop.f32.mrb[0].mxu0
    %1375 = vmatprep.mubr.f32.mxu0 0.0
    %1376 = vmatmul.mubr.f32.gmra.mrb[0].mxu0 %v1298
    %v1377 = vpop.f32.mrb[0].mxu0
    %v1378 = vadd.f32 0.0, %v1377
    %v1379 = vpop.f32.mrb[0].mxu0
    %1380 = vmatprep.mubr.f32.mxu0 0.0
    %1381 = vmatmul.mubr.f32.gmra.mrb[0].mxu0 %v1301
    %v1382 = vpop.f32.mrb[0].mxu0
    %v1383 = vadd.f32 0.0, %v1382
    %v1384 = vpop.f32.mrb[0].mxu0
    %1385 = vmatprep.mubr.f32.mxu0 0.0
    %1386 = vmatmul.mubr.f32.gmra.mrb[0].mxu0 %v1304
    %v1387 = vpop.f32.mrb[0].mxu0
    %v1388 = vadd.f32 0.0, %v1387
    %v1389 = vpop.f32.mrb[0].mxu0
    %1390 = vdwg.mxu0
    %v1392 = vsel %vm100, %v1182, 0
    %v1395 = vsel %vm100, %v1187, 0
    %v1398 = vsel %vm100, %v1192, 0
    %v1401 = vsel %vm100, %v1197, 0
    %1403 = vmatprep.subr.mxu0 0.0
    %1404 = vmatpush1.msra.mxu0 %v1285
    %1405 = vmatprep.subr.mxu0 0.0
    %1406 = vmatpush1.msra.mxu0 %v1286
    %1407 = vmatprep.subr.mxu0 0.0
    %1408 = vmatpush1.msra.mxu0 %v1287
    %1409 = vmatprep.subr.mxu0 0.0
    %1410 = vmatpush1.msra.mxu0 %v1288
    %1411 = vmatprep.subr.mxu0 0.0
    %1412 = vmatpush1.msra.mxu0 0.0
    %1413 = vmatprep.subr.mxu0 0.0
    %1414 = vmatpush1.msra.mxu0 0.0
    %1415 = vmatprep.subr.mxu0 0.0
    %1416 = vmatpush1.msra.mxu0 0.0
    %1417 = vmatprep.subr.mxu0 0.0
    %1418 = vmatpush1.msra.mxu0 0.0
    %1419 = vmatprep.subr.mxu0 0.0
    %1420 = vmatpush1.msra.mxu0 0.0
    %1421 = vmatprep.subr.mxu0 0.0
    %1422 = vmatpush1.msra.mxu0 0.0
    %1423 = vmatprep.subr.mxu0 0.0
    %1424 = vmatpush1.msra.mxu0 0.0
    %1425 = vmatprep.subr.mxu0 0.0
    %1426 = vmatpush1.msra.mxu0 0.0
    %1427 = vmatprep.subr.mxu0 0.0
    %1428 = vmatpush1.msra.mxu0 0.0
    %1429 = vmatprep.subr.mxu0 0.0
    %1430 = vmatpush1.msra.mxu0 0.0
    %1431 = vmatprep.subr.mxu0 0.0
    %1432 = vmatpush1.msra.mxu0 0.0
    %1433 = vmatprep.subr.mxu0 0.0
    %1434 = vmatpush1.msra.mxu0 0.0
    %1435 = vmatprep.subr.mxu0 0.0
    %1436 = vmatpush1.msra.mxu0 0.0
    %1437 = vmatprep.subr.mxu0 0.0
    %1438 = vmatpush1.msra.mxu0 0.0
    %1439 = vmatprep.subr.mxu0 0.0
    %1440 = vmatpush1.msra.mxu0 0.0
    %1441 = vmatprep.subr.mxu0 0.0
    %1442 = vmatpush1.msra.mxu0 0.0
    %1443 = vmatprep.subr.mxu0 0.0
    %1444 = vmatpush1.msra.mxu0 0.0
    %1445 = vmatprep.subr.mxu0 0.0
    %1446 = vmatpush1.msra.mxu0 0.0
    %1447 = vmatprep.subr.mxu0 0.0
    %1448 = vmatpush1.msra.mxu0 0.0
    %1449 = vmatprep.subr.mxu0 0.0
    %1450 = vmatpush1.msra.mxu0 0.0
    %1451 = vmatprep.subr.mxu0 0.0
    %1452 = vmatpush1.msra.mxu0 0.0
    %1453 = vmatprep.subr.mxu0 0.0
    %1454 = vmatpush1.msra.mxu0 0.0
    %1455 = vmatprep.subr.mxu0 0.0
    %1456 = vmatpush1.msra.mxu0 0.0
    %1457 = vmatprep.subr.mxu0 0.0
    %1458 = vmatpush1.msra.mxu0 0.0
    %1459 = vmatprep.subr.mxu0 0.0
    %1460 = vmatpush1.msra.mxu0 0.0
    %1461 = vmatprep.subr.mxu0 0.0
    %1462 = vmatpush1.msra.mxu0 0.0
    %1463 = vmatprep.subr.mxu0 0.0
    %1464 = vmatpush1.msra.mxu0 0.0
    %1465 = vmatprep.subr.mxu0 0.0
    %1466 = vmatpush1.msra.mxu0 0.0
    %1467 = vmatprep.mubr.f32.mxu0 0.0
    %1468 = vmatmul.mubr.f32.gmra.mrb[0].mxu0 %v1392
    %v1469 = vpop.f32.mrb[0].mxu0
    %v1470 = vadd.f32 %v1373, %v1469
    %v1471 = vpop.f32.mrb[0].mxu0
    %1472 = vmatprep.mubr.f32.mxu0 0.0
    %1473 = vmatmul.mubr.f32.gmra.mrb[0].mxu0 %v1395
    %v1474 = vpop.f32.mrb[0].mxu0
    %v1475 = vadd.f32 %v1378, %v1474
    %v1476 = vpop.f32.mrb[0].mxu0
    %1477 = vmatprep.mubr.f32.mxu0 0.0
    %1478 = vmatmul.mubr.f32.gmra.mrb[0].mxu0 %v1398
    %v1479 = vpop.f32.mrb[0].mxu0
    %v1480 = vadd.f32 %v1383, %v1479
    %v1481 = vpop.f32.mrb[0].mxu0
    %1482 = vmatprep.mubr.f32.mxu0 0.0
    %1483 = vmatmul.mubr.f32.gmra.mrb[0].mxu0 %v1401
    %v1484 = vpop.f32.mrb[0].mxu0
    %v1485 = vadd.f32 %v1388, %v1484
    %v1486 = vpop.f32.mrb[0].mxu0
    %1487 = vdwg.mxu0
    %s1488 = scalar_lea.vmem %s7, 64
    %v1489 = vld [vmem:[%s1488] sm:$0xff]
    %v1490 = vld [vmem:[%s1488 + $0x8] sm:$0xff]
    %v1491 = vld [vmem:[%s1488 + $0x10] sm:$0xff]
    %v1492 = vld [vmem:[%s1488 + $0x18] sm:$0xff]
    %v1494 = vsel %vm100, %v1267, 0
    %v1497 = vsel %vm100, %v1272, 0
    %v1500 = vsel %vm100, %v1277, 0
    %v1503 = vsel %vm100, %v1282, 0
    %1505 = vmatprep.subr.mxu0 0.0
    %1506 = vmatpush1.msra.mxu0 %v1489
    %1507 = vmatprep.subr.mxu0 0.0
    %1508 = vmatpush1.msra.mxu0 %v1490
    %1509 = vmatprep.subr.mxu0 0.0
    %1510 = vmatpush1.msra.mxu0 %v1491
    %1511 = vmatprep.subr.mxu0 0.0
    %1512 = vmatpush1.msra.mxu0 %v1492
    %1513 = vmatprep.subr.mxu0 0.0
    %1514 = vmatpush1.msra.mxu0 0.0
    %1515 = vmatprep.subr.mxu0 0.0
    %1516 = vmatpush1.msra.mxu0 0.0
    %1517 = vmatprep.subr.mxu0 0.0
    %1518 = vmatpush1.msra.mxu0 0.0
    %1519 = vmatprep.subr.mxu0 0.0
    %1520 = vmatpush1.msra.mxu0 0.0
    %1521 = vmatprep.subr.mxu0 0.0
    %1522 = vmatpush1.msra.mxu0 0.0
    %1523 = vmatprep.subr.mxu0 0.0
    %1524 = vmatpush1.msra.mxu0 0.0
    %1525 = vmatprep.subr.mxu0 0.0
    %1526 = vmatpush1.msra.mxu0 0.0
    %1527 = vmatprep.subr.mxu0 0.0
    %1528 = vmatpush1.msra.mxu0 0.0
    %1529 = vmatprep.subr.mxu0 0.0
    %1530 = vmatpush1.msra.mxu0 0.0
    %1531 = vmatprep.subr.mxu0 0.0
    %1532 = vmatpush1.msra.mxu0 0.0
    %1533 = vmatprep.subr.mxu0 0.0
    %1534 = vmatpush1.msra.mxu0 0.0
    %1535 = vmatprep.subr.mxu0 0.0
    %1536 = vmatpush1.msra.mxu0 0.0
    %1537 = vmatprep.subr.mxu0 0.0
    %1538 = vmatpush1.msra.mxu0 0.0
    %1539 = vmatprep.subr.mxu0 0.0
    %1540 = vmatpush1.msra.mxu0 0.0
    %1541 = vmatprep.subr.mxu0 0.0
    %1542 = vmatpush1.msra.mxu0 0.0
    %1543 = vmatprep.subr.mxu0 0.0
    %1544 = vmatpush1.msra.mxu0 0.0
    %1545 = vmatprep.subr.mxu0 0.0
    %1546 = vmatpush1.msra.mxu0 0.0
    %1547 = vmatprep.subr.mxu0 0.0
    %1548 = vmatpush1.msra.mxu0 0.0
    %1549 = vmatprep.subr.mxu0 0.0
    %1550 = vmatpush1.msra.mxu0 0.0
    %1551 = vmatprep.subr.mxu0 0.0
    %1552 = vmatpush1.msra.mxu0 0.0
    %1553 = vmatprep.subr.mxu0 0.0
    %1554 = vmatpush1.msra.mxu0 0.0
    %1555 = vmatprep.subr.mxu0 0.0
    %1556 = vmatpush1.msra.mxu0 0.0
    %1557 = vmatprep.subr.mxu0 0.0
    %1558 = vmatpush1.msra.mxu0 0.0
    %1559 = vmatprep.subr.mxu0 0.0
    %1560 = vmatpush1.msra.mxu0 0.0
    %1561 = vmatprep.subr.mxu0 0.0
    %1562 = vmatpush1.msra.mxu0 0.0
    %1563 = vmatprep.subr.mxu0 0.0
    %1564 = vmatpush1.msra.mxu0 0.0
    %1565 = vmatprep.subr.mxu0 0.0
    %1566 = vmatpush1.msra.mxu0 0.0
    %1567 = vmatprep.subr.mxu0 0.0
    %1568 = vmatpush1.msra.mxu0 0.0
    %1569 = vmatprep.mubr.f32.mxu0 0.0
    %1570 = vmatmul.mubr.f32.gmra.mrb[0].mxu0 %v1494
    %v1571 = vpop.f32.mrb[0].mxu0
    %v1572 = vadd.f32 0.0, %v1571
    %v1573 = vpop.f32.mrb[0].mxu0
    %1574 = vmatprep.mubr.f32.mxu0 0.0
    %1575 = vmatmul.mubr.f32.gmra.mrb[0].mxu0 %v1497
    %v1576 = vpop.f32.mrb[0].mxu0
    %v1577 = vadd.f32 0.0, %v1576
    %v1578 = vpop.f32.mrb[0].mxu0
    %1579 = vmatprep.mubr.f32.mxu0 0.0
    %1580 = vmatmul.mubr.f32.gmra.mrb[0].mxu0 %v1500
    %v1581 = vpop.f32.mrb[0].mxu0
    %v1582 = vadd.f32 0.0, %v1581
    %v1583 = vpop.f32.mrb[0].mxu0
    %1584 = vmatprep.mubr.f32.mxu0 0.0
    %1585 = vmatmul.mubr.f32.gmra.mrb[0].mxu0 %v1503
    %v1586 = vpop.f32.mrb[0].mxu0
    %v1587 = vadd.f32 0.0, %v1586
    %v1588 = vpop.f32.mrb[0].mxu0
    %1589 = vdwg.mxu0
    %v1590 = vadd.f32 %v1470, %v1572
    %v1591 = vadd.f32 %v1475, %v1577
    %v1592 = vadd.f32 %v1480, %v1582
    %v1593 = vadd.f32 %v1485, %v1587
    %v1594 = vld [vmem:[%s8] sm:$0x1]
    %v1596 = vlaneseq
    %v1597 = vshrl.u32 %v1596, 7
    %v1598 = vsub.s32 0, %v1597
    %v1599 = vrot.slane %v1594, %v1598
    %v1601 = vadd.f32 %v1590, %v1599
    %v1602 = vadd.f32 %v1591, %v1599
    %v1603 = vadd.f32 %v1592, %v1599
    %v1604 = vadd.f32 %v1593, %v1599
    %v1605 = vmax.f32 %v1601, 0.0
    %v1606 = vmax.f32 %v1602, 0.0
    %v1607 = vmax.f32 %v1603, 0.0
    %v1608 = vmax.f32 %v1604, 0.0
    %1609 = vmatprep.subr.mxu0 0.0
    %1610 = vmatpush1.msra.mxu0 %v1605
    %1611 = vmatprep.subr.mxu0 0.0
    %1612 = vmatpush1.msra.mxu0 %v1606
    %1613 = vmatprep.subr.mxu0 0.0
    %1614 = vmatpush1.msra.mxu0 %v1607
    %1615 = vmatprep.subr.mxu0 0.0
    %1616 = vmatpush1.msra.mxu0 %v1608
    %1617 = vmatprep.subr.mxu0 0.0
    %1618 = vmatpush1.msra.mxu0 0.0
    %1619 = vmatprep.subr.mxu0 0.0
    %1620 = vmatpush1.msra.mxu0 0.0
    %1621 = vmatprep.subr.mxu0 0.0
    %1622 = vmatpush1.msra.mxu0 0.0
    %1623 = vmatprep.subr.mxu0 0.0
    %1624 = vmatpush1.msra.mxu0 0.0
    %1625 = vmatprep.subr.mxu0 0.0
    %1626 = vmatpush1.msra.mxu0 0.0
    %1627 = vmatprep.subr.mxu0 0.0
    %1628 = vmatpush1.msra.mxu0 0.0
    %1629 = vmatprep.subr.mxu0 0.0
    %1630 = vmatpush1.msra.mxu0 0.0
    %1631 = vmatprep.subr.mxu0 0.0
    %1632 = vmatpush1.msra.mxu0 0.0
    %1633 = vmatprep.subr.mxu0 0.0
    %1634 = vmatpush1.msra.mxu0 0.0
    %1635 = vmatprep.subr.mxu0 0.0
    %1636 = vmatpush1.msra.mxu0 0.0
    %1637 = vmatprep.subr.mxu0 0.0
    %1638 = vmatpush1.msra.mxu0 0.0
    %1639 = vmatprep.subr.mxu0 0.0
    %1640 = vmatpush1.msra.mxu0 0.0
    %1641 = vmatprep.subr.mxu0 0.0
    %1642 = vmatpush1.msra.mxu0 0.0
    %1643 = vmatprep.subr.mxu0 0.0
    %1644 = vmatpush1.msra.mxu0 0.0
    %1645 = vmatprep.subr.mxu0 0.0
    %1646 = vmatpush1.msra.mxu0 0.0
    %1647 = vmatprep.subr.mxu0 0.0
    %1648 = vmatpush1.msra.mxu0 0.0
    %1649 = vmatprep.subr.mxu0 0.0
    %1650 = vmatpush1.msra.mxu0 0.0
    %1651 = vmatprep.subr.mxu0 0.0
    %1652 = vmatpush1.msra.mxu0 0.0
    %1653 = vmatprep.subr.mxu0 0.0
    %1654 = vmatpush1.msra.mxu0 0.0
    %1655 = vmatprep.subr.mxu0 0.0
    %1656 = vmatpush1.msra.mxu0 0.0
    %1657 = vmatprep.subr.mxu0 0.0
    %1658 = vmatpush1.msra.mxu0 0.0
    %1659 = vmatprep.subr.mxu0 0.0
    %1660 = vmatpush1.msra.mxu0 0.0
    %1661 = vmatprep.subr.mxu0 0.0
    %1662 = vmatpush1.msra.mxu0 0.0
    %1663 = vmatprep.subr.mxu0 0.0
    %1664 = vmatpush1.msra.mxu0 0.0
    %1665 = vmatprep.subr.mxu0 0.0
    %1666 = vmatpush1.msra.mxu0 0.0
    %1667 = vmatprep.subr.mxu0 0.0
    %1668 = vmatpush1.msra.mxu0 0.0
    %1669 = vmatprep.subr.mxu0 0.0
    %1670 = vmatpush1.msra.mxu0 0.0
    %1671 = vmatprep.subr.mxu0 0.0
    %1672 = vmatpush1.msra.mxu0 0.0
    %1673 = vmatprep.mubr.f32.mxu0 0.0
    %1674 = vmatmul.mubr.f32.gmra.mrb[0].mxu0 %v102
    %v1675 = vpop.f32.mrb[0].mxu0
    %v1676 = vadd.f32 0.0, %v1675
    %v1677 = vpop.f32.mrb[0].mxu0
    %1678 = vmatprep.mubr.f32.mxu0 0.0
    %1679 = vmatmul.mubr.f32.gmra.mrb[0].mxu0 %v105
    %v1680 = vpop.f32.mrb[0].mxu0
    %v1681 = vadd.f32 0.0, %v1680
    %v1682 = vpop.f32.mrb[0].mxu0
    %1683 = vmatprep.mubr.f32.mxu0 0.0
    %1684 = vmatmul.mubr.f32.gmra.mrb[0].mxu0 %v108
    %v1685 = vpop.f32.mrb[0].mxu0
    %v1686 = vadd.f32 0.0, %v1685
    %v1687 = vpop.f32.mrb[0].mxu0
    %1688 = vmatprep.mubr.f32.mxu0 0.0
    %1689 = vmatmul.mubr.f32.gmra.mrb[0].mxu0 %v111
    %v1690 = vpop.f32.mrb[0].mxu0
    %v1691 = vadd.f32 0.0, %v1690
    %v1692 = vpop.f32.mrb[0].mxu0
    %1693 = vdwg.mxu0
    %1694 = vmatprep.subr.mxu0 0.0
    %1695 = vmatpush1.msra.mxu0 %v1605
    %1696 = vmatprep.subr.mxu0 0.0
    %1697 = vmatpush1.msra.mxu0 %v1606
    %1698 = vmatprep.subr.mxu0 0.0
    %1699 = vmatpush1.msra.mxu0 %v1607
    %1700 = vmatprep.subr.mxu0 0.0
    %1701 = vmatpush1.msra.mxu0 %v1608
    %1702 = vmatprep.subr.mxu0 0.0
    %1703 = vmatpush1.msra.mxu0 0.0
    %1704 = vmatprep.subr.mxu0 0.0
    %1705 = vmatpush1.msra.mxu0 0.0
    %1706 = vmatprep.subr.mxu0 0.0
    %1707 = vmatpush1.msra.mxu0 0.0
    %1708 = vmatprep.subr.mxu0 0.0
    %1709 = vmatpush1.msra.mxu0 0.0
    %1710 = vmatprep.subr.mxu0 0.0
    %1711 = vmatpush1.msra.mxu0 0.0
    %1712 = vmatprep.subr.mxu0 0.0
    %1713 = vmatpush1.msra.mxu0 0.0
    %1714 = vmatprep.subr.mxu0 0.0
    %1715 = vmatpush1.msra.mxu0 0.0
    %1716 = vmatprep.subr.mxu0 0.0
    %1717 = vmatpush1.msra.mxu0 0.0
    %1718 = vmatprep.subr.mxu0 0.0
    %1719 = vmatpush1.msra.mxu0 0.0
    %1720 = vmatprep.subr.mxu0 0.0
    %1721 = vmatpush1.msra.mxu0 0.0
    %1722 = vmatprep.subr.mxu0 0.0
    %1723 = vmatpush1.msra.mxu0 0.0
    %1724 = vmatprep.subr.mxu0 0.0
    %1725 = vmatpush1.msra.mxu0 0.0
    %1726 = vmatprep.subr.mxu0 0.0
    %1727 = vmatpush1.msra.mxu0 0.0
    %1728 = vmatprep.subr.mxu0 0.0
    %1729 = vmatpush1.msra.mxu0 0.0
    %1730 = vmatprep.subr.mxu0 0.0
    %1731 = vmatpush1.msra.mxu0 0.0
    %1732 = vmatprep.subr.mxu0 0.0
    %1733 = vmatpush1.msra.mxu0 0.0
    %1734 = vmatprep.subr.mxu0 0.0
    %1735 = vmatpush1.msra.mxu0 0.0
    %1736 = vmatprep.subr.mxu0 0.0
    %1737 = vmatpush1.msra.mxu0 0.0
    %1738 = vmatprep.subr.mxu0 0.0
    %1739 = vmatpush1.msra.mxu0 0.0
    %1740 = vmatprep.subr.mxu0 0.0
    %1741 = vmatpush1.msra.mxu0 0.0
    %1742 = vmatprep.subr.mxu0 0.0
    %1743 = vmatpush1.msra.mxu0 0.0
    %1744 = vmatprep.subr.mxu0 0.0
    %1745 = vmatpush1.msra.mxu0 0.0
    %1746 = vmatprep.subr.mxu0 0.0
    %1747 = vmatpush1.msra.mxu0 0.0
    %1748 = vmatprep.subr.mxu0 0.0
    %1749 = vmatpush1.msra.mxu0 0.0
    %1750 = vmatprep.subr.mxu0 0.0
    %1751 = vmatpush1.msra.mxu0 0.0
    %1752 = vmatprep.subr.mxu0 0.0
    %1753 = vmatpush1.msra.mxu0 0.0
    %1754 = vmatprep.subr.mxu0 0.0
    %1755 = vmatpush1.msra.mxu0 0.0
    %1756 = vmatprep.subr.mxu0 0.0
    %1757 = vmatpush1.msra.mxu0 0.0
    %1758 = vmatprep.mubr.f32.mxu0 0.0
    %1759 = vmatmul.mubr.f32.gmra.mrb[0].mxu0 %v199
    %v1760 = vpop.f32.mrb[0].mxu0
    %v1761 = vadd.f32 0.0, %v1760
    %v1762 = vpop.f32.mrb[0].mxu0
    %1763 = vmatprep.mubr.f32.mxu0 0.0
    %1764 = vmatmul.mubr.f32.gmra.mrb[0].mxu0 %v202
    %v1765 = vpop.f32.mrb[0].mxu0
    %v1766 = vadd.f32 0.0, %v1765
    %v1767 = vpop.f32.mrb[0].mxu0
    %1768 = vmatprep.mubr.f32.mxu0 0.0
    %1769 = vmatmul.mubr.f32.gmra.mrb[0].mxu0 %v205
    %v1770 = vpop.f32.mrb[0].mxu0
    %v1771 = vadd.f32 0.0, %v1770
    %v1772 = vpop.f32.mrb[0].mxu0
    %1773 = vmatprep.mubr.f32.mxu0 0.0
    %1774 = vmatmul.mubr.f32.gmra.mrb[0].mxu0 %v208
    %v1775 = vpop.f32.mrb[0].mxu0
    %v1776 = vadd.f32 0.0, %v1775
    %v1777 = vpop.f32.mrb[0].mxu0
    %1778 = vdwg.mxu0
    %v1779 = vld [vmem:[%s9] sm:$0xff]
    %v1780 = vld [vmem:[%s9 + $0x8] sm:$0xff]
    %v1781 = vld [vmem:[%s9 + $0x10] sm:$0xff]
    %v1782 = vld [vmem:[%s9 + $0x18] sm:$0xff]
    %s1783 = scalar_lea.vmem %s9, 32
    %v1784 = vld [vmem:[%s1783] sm:$0xff]
    %v1785 = vld [vmem:[%s1783 + $0x8] sm:$0xff]
    %v1786 = vld [vmem:[%s1783 + $0x10] sm:$0xff]
    %v1787 = vld [vmem:[%s1783 + $0x18] sm:$0xff]
    %v1789 = vsel %vm100, %v1605, 0
    %v1792 = vsel %vm100, %v1606, 0
    %v1795 = vsel %vm100, %v1607, 0
    %v1798 = vsel %vm100, %v1608, 0
    %1800 = vmatprep.subr.mxu0 0.0
    %1801 = vmatpush1.msra.mxu0 %v1784
    %1802 = vmatprep.subr.mxu0 0.0
    %1803 = vmatpush1.msra.mxu0 %v1785
    %1804 = vmatprep.subr.mxu0 0.0
    %1805 = vmatpush1.msra.mxu0 %v1786
    %1806 = vmatprep.subr.mxu0 0.0
    %1807 = vmatpush1.msra.mxu0 %v1787
    %1808 = vmatprep.subr.mxu0 0.0
    %1809 = vmatpush1.msra.mxu0 0.0
    %1810 = vmatprep.subr.mxu0 0.0
    %1811 = vmatpush1.msra.mxu0 0.0
    %1812 = vmatprep.subr.mxu0 0.0
    %1813 = vmatpush1.msra.mxu0 0.0
    %1814 = vmatprep.subr.mxu0 0.0
    %1815 = vmatpush1.msra.mxu0 0.0
    %1816 = vmatprep.subr.mxu0 0.0
    %1817 = vmatpush1.msra.mxu0 0.0
    %1818 = vmatprep.subr.mxu0 0.0
    %1819 = vmatpush1.msra.mxu0 0.0
    %1820 = vmatprep.subr.mxu0 0.0
    %1821 = vmatpush1.msra.mxu0 0.0
    %1822 = vmatprep.subr.mxu0 0.0
    %1823 = vmatpush1.msra.mxu0 0.0
    %1824 = vmatprep.subr.mxu0 0.0
    %1825 = vmatpush1.msra.mxu0 0.0
    %1826 = vmatprep.subr.mxu0 0.0
    %1827 = vmatpush1.msra.mxu0 0.0
    %1828 = vmatprep.subr.mxu0 0.0
    %1829 = vmatpush1.msra.mxu0 0.0
    %1830 = vmatprep.subr.mxu0 0.0
    %1831 = vmatpush1.msra.mxu0 0.0
    %1832 = vmatprep.subr.mxu0 0.0
    %1833 = vmatpush1.msra.mxu0 0.0
    %1834 = vmatprep.subr.mxu0 0.0
    %1835 = vmatpush1.msra.mxu0 0.0
    %1836 = vmatprep.subr.mxu0 0.0
    %1837 = vmatpush1.msra.mxu0 0.0
    %1838 = vmatprep.subr.mxu0 0.0
    %1839 = vmatpush1.msra.mxu0 0.0
    %1840 = vmatprep.subr.mxu0 0.0
    %1841 = vmatpush1.msra.mxu0 0.0
    %1842 = vmatprep.subr.mxu0 0.0
    %1843 = vmatpush1.msra.mxu0 0.0
    %1844 = vmatprep.subr.mxu0 0.0
    %1845 = vmatpush1.msra.mxu0 0.0
    %1846 = vmatprep.subr.mxu0 0.0
    %1847 = vmatpush1.msra.mxu0 0.0
    %1848 = vmatprep.subr.mxu0 0.0
    %1849 = vmatpush1.msra.mxu0 0.0
    %1850 = vmatprep.subr.mxu0 0.0
    %1851 = vmatpush1.msra.mxu0 0.0
    %1852 = vmatprep.subr.mxu0 0.0
    %1853 = vmatpush1.msra.mxu0 0.0
    %1854 = vmatprep.subr.mxu0 0.0
    %1855 = vmatpush1.msra.mxu0 0.0
    %1856 = vmatprep.subr.mxu0 0.0
    %1857 = vmatpush1.msra.mxu0 0.0
    %1858 = vmatprep.subr.mxu0 0.0
    %1859 = vmatpush1.msra.mxu0 0.0
    %1860 = vmatprep.subr.mxu0 0.0
    %1861 = vmatpush1.msra.mxu0 0.0
    %1862 = vmatprep.subr.mxu0 0.0
    %1863 = vmatpush1.msra.mxu0 0.0
    %1864 = vmatprep.mubr.f32.mxu0 0.0
    %1865 = vmatmul.mubr.f32.gmra.mrb[0].mxu0 %v1789
    %v1866 = vpop.f32.mrb[0].mxu0
    %v1867 = vadd.f32 0.0, %v1866
    %v1868 = vpop.f32.mrb[0].mxu0
    %1869 = vmatprep.mubr.f32.mxu0 0.0
    %1870 = vmatmul.mubr.f32.gmra.mrb[0].mxu0 %v1792
    %v1871 = vpop.f32.mrb[0].mxu0
    %v1872 = vadd.f32 0.0, %v1871
    %v1873 = vpop.f32.mrb[0].mxu0
    %1874 = vmatprep.mubr.f32.mxu0 0.0
    %1875 = vmatmul.mubr.f32.gmra.mrb[0].mxu0 %v1795
    %v1876 = vpop.f32.mrb[0].mxu0
    %v1877 = vadd.f32 0.0, %v1876
    %v1878 = vpop.f32.mrb[0].mxu0
    %1879 = vmatprep.mubr.f32.mxu0 0.0
    %1880 = vmatmul.mubr.f32.gmra.mrb[0].mxu0 %v1798
    %v1881 = vpop.f32.mrb[0].mxu0
    %v1882 = vadd.f32 0.0, %v1881
    %v1883 = vpop.f32.mrb[0].mxu0
    %1884 = vdwg.mxu0
    %v1886 = vsel %vm100, %v1676, 0
    %v1889 = vsel %vm100, %v1681, 0
    %v1892 = vsel %vm100, %v1686, 0
    %v1895 = vsel %vm100, %v1691, 0
    %1897 = vmatprep.subr.mxu0 0.0
    %1898 = vmatpush1.msra.mxu0 %v1779
    %1899 = vmatprep.subr.mxu0 0.0
    %1900 = vmatpush1.msra.mxu0 %v1780
    %1901 = vmatprep.subr.mxu0 0.0
    %1902 = vmatpush1.msra.mxu0 %v1781
    %1903 = vmatprep.subr.mxu0 0.0
    %1904 = vmatpush1.msra.mxu0 %v1782
    %1905 = vmatprep.subr.mxu0 0.0
    %1906 = vmatpush1.msra.mxu0 0.0
    %1907 = vmatprep.subr.mxu0 0.0
    %1908 = vmatpush1.msra.mxu0 0.0
    %1909 = vmatprep.subr.mxu0 0.0
    %1910 = vmatpush1.msra.mxu0 0.0
    %1911 = vmatprep.subr.mxu0 0.0
    %1912 = vmatpush1.msra.mxu0 0.0
    %1913 = vmatprep.subr.mxu0 0.0
    %1914 = vmatpush1.msra.mxu0 0.0
    %1915 = vmatprep.subr.mxu0 0.0
    %1916 = vmatpush1.msra.mxu0 0.0
    %1917 = vmatprep.subr.mxu0 0.0
    %1918 = vmatpush1.msra.mxu0 0.0
    %1919 = vmatprep.subr.mxu0 0.0
    %1920 = vmatpush1.msra.mxu0 0.0
    %1921 = vmatprep.subr.mxu0 0.0
    %1922 = vmatpush1.msra.mxu0 0.0
    %1923 = vmatprep.subr.mxu0 0.0
    %1924 = vmatpush1.msra.mxu0 0.0
    %1925 = vmatprep.subr.mxu0 0.0
    %1926 = vmatpush1.msra.mxu0 0.0
    %1927 = vmatprep.subr.mxu0 0.0
    %1928 = vmatpush1.msra.mxu0 0.0
    %1929 = vmatprep.subr.mxu0 0.0
    %1930 = vmatpush1.msra.mxu0 0.0
    %1931 = vmatprep.subr.mxu0 0.0
    %1932 = vmatpush1.msra.mxu0 0.0
    %1933 = vmatprep.subr.mxu0 0.0
    %1934 = vmatpush1.msra.mxu0 0.0
    %1935 = vmatprep.subr.mxu0 0.0
    %1936 = vmatpush1.msra.mxu0 0.0
    %1937 = vmatprep.subr.mxu0 0.0
    %1938 = vmatpush1.msra.mxu0 0.0
    %1939 = vmatprep.subr.mxu0 0.0
    %1940 = vmatpush1.msra.mxu0 0.0
    %1941 = vmatprep.subr.mxu0 0.0
    %1942 = vmatpush1.msra.mxu0 0.0
    %1943 = vmatprep.subr.mxu0 0.0
    %1944 = vmatpush1.msra.mxu0 0.0
    %1945 = vmatprep.subr.mxu0 0.0
    %1946 = vmatpush1.msra.mxu0 0.0
    %1947 = vmatprep.subr.mxu0 0.0
    %1948 = vmatpush1.msra.mxu0 0.0
    %1949 = vmatprep.subr.mxu0 0.0
    %1950 = vmatpush1.msra.mxu0 0.0
    %1951 = vmatprep.subr.mxu0 0.0
    %1952 = vmatpush1.msra.mxu0 0.0
    %1953 = vmatprep.subr.mxu0 0.0
    %1954 = vmatpush1.msra.mxu0 0.0
    %1955 = vmatprep.subr.mxu0 0.0
    %1956 = vmatpush1.msra.mxu0 0.0
    %1957 = vmatprep.subr.mxu0 0.0
    %1958 = vmatpush1.msra.mxu0 0.0
    %1959 = vmatprep.subr.mxu0 0.0
    %1960 = vmatpush1.msra.mxu0 0.0
    %1961 = vmatprep.mubr.f32.mxu0 0.0
    %1962 = vmatmul.mubr.f32.gmra.mrb[0].mxu0 %v1886
    %v1963 = vpop.f32.mrb[0].mxu0
    %v1964 = vadd.f32 %v1867, %v1963
    %v1965 = vpop.f32.mrb[0].mxu0
    %1966 = vmatprep.mubr.f32.mxu0 0.0
    %1967 = vmatmul.mubr.f32.gmra.mrb[0].mxu0 %v1889
    %v1968 = vpop.f32.mrb[0].mxu0
    %v1969 = vadd.f32 %v1872, %v1968
    %v1970 = vpop.f32.mrb[0].mxu0
    %1971 = vmatprep.mubr.f32.mxu0 0.0
    %1972 = vmatmul.mubr.f32.gmra.mrb[0].mxu0 %v1892
    %v1973 = vpop.f32.mrb[0].mxu0
    %v1974 = vadd.f32 %v1877, %v1973
    %v1975 = vpop.f32.mrb[0].mxu0
    %1976 = vmatprep.mubr.f32.mxu0 0.0
    %1977 = vmatmul.mubr.f32.gmra.mrb[0].mxu0 %v1895
    %v1978 = vpop.f32.mrb[0].mxu0
    %v1979 = vadd.f32 %v1882, %v1978
    %v1980 = vpop.f32.mrb[0].mxu0
    %1981 = vdwg.mxu0
    %s1982 = scalar_lea.vmem %s9, 64
    %v1983 = vld [vmem:[%s1982] sm:$0xff]
    %v1984 = vld [vmem:[%s1982 + $0x8] sm:$0xff]
    %v1985 = vld [vmem:[%s1982 + $0x10] sm:$0xff]
    %v1986 = vld [vmem:[%s1982 + $0x18] sm:$0xff]
    %v1988 = vsel %vm100, %v1761, 0
    %v1991 = vsel %vm100, %v1766, 0
    %v1994 = vsel %vm100, %v1771, 0
    %v1997 = vsel %vm100, %v1776, 0
    %1999 = vmatprep.subr.mxu0 0.0
    %2000 = vmatpush1.msra.mxu0 %v1983
    %2001 = vmatprep.subr.mxu0 0.0
    %2002 = vmatpush1.msra.mxu0 %v1984
    %2003 = vmatprep.subr.mxu0 0.0
    %2004 = vmatpush1.msra.mxu0 %v1985
    %2005 = vmatprep.subr.mxu0 0.0
    %2006 = vmatpush1.msra.mxu0 %v1986
    %2007 = vmatprep.subr.mxu0 0.0
    %2008 = vmatpush1.msra.mxu0 0.0
    %2009 = vmatprep.subr.mxu0 0.0
    %2010 = vmatpush1.msra.mxu0 0.0
    %2011 = vmatprep.subr.mxu0 0.0
    %2012 = vmatpush1.msra.mxu0 0.0
    %2013 = vmatprep.subr.mxu0 0.0
    %2014 = vmatpush1.msra.mxu0 0.0
    %2015 = vmatprep.subr.mxu0 0.0
    %2016 = vmatpush1.msra.mxu0 0.0
    %2017 = vmatprep.subr.mxu0 0.0
    %2018 = vmatpush1.msra.mxu0 0.0
    %2019 = vmatprep.subr.mxu0 0.0
    %2020 = vmatpush1.msra.mxu0 0.0
    %2021 = vmatprep.subr.mxu0 0.0
    %2022 = vmatpush1.msra.mxu0 0.0
    %2023 = vmatprep.subr.mxu0 0.0
    %2024 = vmatpush1.msra.mxu0 0.0
    %2025 = vmatprep.subr.mxu0 0.0
    %2026 = vmatpush1.msra.mxu0 0.0
    %2027 = vmatprep.subr.mxu0 0.0
    %2028 = vmatpush1.msra.mxu0 0.0
    %2029 = vmatprep.subr.mxu0 0.0
    %2030 = vmatpush1.msra.mxu0 0.0
    %2031 = vmatprep.subr.mxu0 0.0
    %2032 = vmatpush1.msra.mxu0 0.0
    %2033 = vmatprep.subr.mxu0 0.0
    %2034 = vmatpush1.msra.mxu0 0.0
    %2035 = vmatprep.subr.mxu0 0.0
    %2036 = vmatpush1.msra.mxu0 0.0
    %2037 = vmatprep.subr.mxu0 0.0
    %2038 = vmatpush1.msra.mxu0 0.0
    %2039 = vmatprep.subr.mxu0 0.0
    %2040 = vmatpush1.msra.mxu0 0.0
    %2041 = vmatprep.subr.mxu0 0.0
    %2042 = vmatpush1.msra.mxu0 0.0
    %2043 = vmatprep.subr.mxu0 0.0
    %2044 = vmatpush1.msra.mxu0 0.0
    %2045 = vmatprep.subr.mxu0 0.0
    %2046 = vmatpush1.msra.mxu0 0.0
    %2047 = vmatprep.subr.mxu0 0.0
    %2048 = vmatpush1.msra.mxu0 0.0
    %2049 = vmatprep.subr.mxu0 0.0
    %2050 = vmatpush1.msra.mxu0 0.0
    %2051 = vmatprep.subr.mxu0 0.0
    %2052 = vmatpush1.msra.mxu0 0.0
    %2053 = vmatprep.subr.mxu0 0.0
    %2054 = vmatpush1.msra.mxu0 0.0
    %2055 = vmatprep.subr.mxu0 0.0
    %2056 = vmatpush1.msra.mxu0 0.0
    %2057 = vmatprep.subr.mxu0 0.0
    %2058 = vmatpush1.msra.mxu0 0.0
    %2059 = vmatprep.subr.mxu0 0.0
    %2060 = vmatpush1.msra.mxu0 0.0
    %2061 = vmatprep.subr.mxu0 0.0
    %2062 = vmatpush1.msra.mxu0 0.0
    %2063 = vmatprep.mubr.f32.mxu0 0.0
    %2064 = vmatmul.mubr.f32.gmra.mrb[0].mxu0 %v1988
    %v2065 = vpop.f32.mrb[0].mxu0
    %v2066 = vadd.f32 0.0, %v2065
    %v2067 = vpop.f32.mrb[0].mxu0
    %2068 = vmatprep.mubr.f32.mxu0 0.0
    %2069 = vmatmul.mubr.f32.gmra.mrb[0].mxu0 %v1991
    %v2070 = vpop.f32.mrb[0].mxu0
    %v2071 = vadd.f32 0.0, %v2070
    %v2072 = vpop.f32.mrb[0].mxu0
    %2073 = vmatprep.mubr.f32.mxu0 0.0
    %2074 = vmatmul.mubr.f32.gmra.mrb[0].mxu0 %v1994
    %v2075 = vpop.f32.mrb[0].mxu0
    %v2076 = vadd.f32 0.0, %v2075
    %v2077 = vpop.f32.mrb[0].mxu0
    %2078 = vmatprep.mubr.f32.mxu0 0.0
    %2079 = vmatmul.mubr.f32.gmra.mrb[0].mxu0 %v1997
    %v2080 = vpop.f32.mrb[0].mxu0
    %v2081 = vadd.f32 0.0, %v2080
    %v2082 = vpop.f32.mrb[0].mxu0
    %2083 = vdwg.mxu0
    %v2084 = vadd.f32 %v1964, %v2066
    %v2085 = vadd.f32 %v1969, %v2071
    %v2086 = vadd.f32 %v1974, %v2076
    %v2087 = vadd.f32 %v1979, %v2081
    %v2088 = vmax.f32 %v2084, 0.0
    %v2089 = vmax.f32 %v2085, 0.0
    %v2090 = vmax.f32 %v2086, 0.0
    %v2091 = vmax.f32 %v2087, 0.0
    %v2092 = vld [vmem:[%s10] sm:$0xff]
    %v2093 = vld [vmem:[%s10 + $0x8] sm:$0xff]
    %vm2094 = vcmask 130048
    %v2096 = vsel %vm2094, %v2088, 0
    %v2099 = vsel %vm2094, %v2089, 0
    %v2102 = vsel %vm2094, %v2090, 0
    %v2105 = vsel %vm2094, %v2091, 0
    %2107 = vmatprep.subr.mxu0 0.0
    %2108 = vmatpush1.msra.mxu0 %v2092
    %2109 = vmatprep.subr.mxu0 0.0
    %2110 = vmatpush1.msra.mxu0 %v2093
    %2111 = vmatprep.subr.mxu0 0.0
    %2112 = vmatpush1.msra.mxu0 0.0
    %2113 = vmatprep.subr.mxu0 0.0
    %2114 = vmatpush1.msra.mxu0 0.0
    %2115 = vmatprep.subr.mxu0 0.0
    %2116 = vmatpush1.msra.mxu0 0.0
    %2117 = vmatprep.subr.mxu0 0.0
    %2118 = vmatpush1.msra.mxu0 0.0
    %2119 = vmatprep.subr.mxu0 0.0
    %2120 = vmatpush1.msra.mxu0 0.0
    %2121 = vmatprep.subr.mxu0 0.0
    %2122 = vmatpush1.msra.mxu0 0.0
    %2123 = vmatprep.subr.mxu0 0.0
    %2124 = vmatpush1.msra.mxu0 0.0
    %2125 = vmatprep.subr.mxu0 0.0
    %2126 = vmatpush1.msra.mxu0 0.0
    %2127 = vmatprep.subr.mxu0 0.0
    %2128 = vmatpush1.msra.mxu0 0.0
    %2129 = vmatprep.subr.mxu0 0.0
    %2130 = vmatpush1.msra.mxu0 0.0
    %2131 = vmatprep.subr.mxu0 0.0
    %2132 = vmatpush1.msra.mxu0 0.0
    %2133 = vmatprep.subr.mxu0 0.0
    %2134 = vmatpush1.msra.mxu0 0.0
    %2135 = vmatprep.subr.mxu0 0.0
    %2136 = vmatpush1.msra.mxu0 0.0
    %2137 = vmatprep.subr.mxu0 0.0
    %2138 = vmatpush1.msra.mxu0 0.0
    %2139 = vmatprep.subr.mxu0 0.0
    %2140 = vmatpush1.msra.mxu0 0.0
    %2141 = vmatprep.subr.mxu0 0.0
    %2142 = vmatpush1.msra.mxu0 0.0
    %2143 = vmatprep.subr.mxu0 0.0
    %2144 = vmatpush1.msra.mxu0 0.0
    %2145 = vmatprep.subr.mxu0 0.0
    %2146 = vmatpush1.msra.mxu0 0.0
    %2147 = vmatprep.subr.mxu0 0.0
    %2148 = vmatpush1.msra.mxu0 0.0
    %2149 = vmatprep.subr.mxu0 0.0
    %2150 = vmatpush1.msra.mxu0 0.0
    %2151 = vmatprep.subr.mxu0 0.0
    %2152 = vmatpush1.msra.mxu0 0.0
    %2153 = vmatprep.subr.mxu0 0.0
    %2154 = vmatpush1.msra.mxu0 0.0
    %2155 = vmatprep.subr.mxu0 0.0
    %2156 = vmatpush1.msra.mxu0 0.0
    %2157 = vmatprep.subr.mxu0 0.0
    %2158 = vmatpush1.msra.mxu0 0.0
    %2159 = vmatprep.subr.mxu0 0.0
    %2160 = vmatpush1.msra.mxu0 0.0
    %2161 = vmatprep.subr.mxu0 0.0
    %2162 = vmatpush1.msra.mxu0 0.0
    %2163 = vmatprep.subr.mxu0 0.0
    %2164 = vmatpush1.msra.mxu0 0.0
    %2165 = vmatprep.subr.mxu0 0.0
    %2166 = vmatpush1.msra.mxu0 0.0
    %2167 = vmatprep.subr.mxu0 0.0
    %2168 = vmatpush1.msra.mxu0 0.0
    %2169 = vmatprep.subr.mxu0 0.0
    %2170 = vmatpush1.msra.mxu0 0.0
    %2171 = vmatprep.mubr.f32.mxu0 0.0
    %2172 = vmatmul.mubr.f32.gmra.mrb[0].mxu0 %v2096
    %v2173 = vpop.f32.mrb[0].mxu0
    %v2174 = vadd.f32 0.0, %v2173
    %v2175 = vpop.f32.mrb[0].mxu0
    %2176 = vmatprep.mubr.f32.mxu0 0.0
    %2177 = vmatmul.mubr.f32.gmra.mrb[0].mxu0 %v2099
    %v2178 = vpop.f32.mrb[0].mxu0
    %v2179 = vadd.f32 0.0, %v2178
    %v2180 = vpop.f32.mrb[0].mxu0
    %2181 = vmatprep.mubr.f32.mxu0 0.0
    %2182 = vmatmul.mubr.f32.gmra.mrb[0].mxu0 %v2102
    %v2183 = vpop.f32.mrb[0].mxu0
    %v2184 = vadd.f32 0.0, %v2183
    %v2185 = vpop.f32.mrb[0].mxu0
    %2186 = vmatprep.mubr.f32.mxu0 0.0
    %2187 = vmatmul.mubr.f32.gmra.mrb[0].mxu0 %v2105
    %v2188 = vpop.f32.mrb[0].mxu0
    %v2189 = vadd.f32 0.0, %v2188
    %v2190 = vpop.f32.mrb[0].mxu0
    %2191 = vdwg.mxu0
    %v2192 = vadd.f32 %v1601, %v2174
    %v2193 = vadd.f32 %v1602, %v2179
    %v2194 = vadd.f32 %v1603, %v2184
    %v2195 = vadd.f32 %v1604, %v2189
    %v2196 = vmax.f32 %v2192, 0.0
    %v2197 = vmax.f32 %v2193, 0.0
    %v2198 = vmax.f32 %v2194, 0.0
    %v2199 = vmax.f32 %v2195, 0.0
    %2200 = vmatprep.subr.mxu0 0.0
    %2201 = vmatpush1.msra.mxu0 %v2196
    %2202 = vmatprep.subr.mxu0 0.0
    %2203 = vmatpush1.msra.mxu0 %v2197
    %2204 = vmatprep.subr.mxu0 0.0
    %2205 = vmatpush1.msra.mxu0 %v2198
    %2206 = vmatprep.subr.mxu0 0.0
    %2207 = vmatpush1.msra.mxu0 %v2199
    %2208 = vmatprep.subr.mxu0 0.0
    %2209 = vmatpush1.msra.mxu0 0.0
    %2210 = vmatprep.subr.mxu0 0.0
    %2211 = vmatpush1.msra.mxu0 0.0
    %2212 = vmatprep.subr.mxu0 0.0
    %2213 = vmatpush1.msra.mxu0 0.0
    %2214 = vmatprep.subr.mxu0 0.0
    %2215 = vmatpush1.msra.mxu0 0.0
    %2216 = vmatprep.subr.mxu0 0.0
    %2217 = vmatpush1.msra.mxu0 0.0
    %2218 = vmatprep.subr.mxu0 0.0
    %2219 = vmatpush1.msra.mxu0 0.0
    %2220 = vmatprep.subr.mxu0 0.0
    %2221 = vmatpush1.msra.mxu0 0.0
    %2222 = vmatprep.subr.mxu0 0.0
    %2223 = vmatpush1.msra.mxu0 0.0
    %2224 = vmatprep.subr.mxu0 0.0
    %2225 = vmatpush1.msra.mxu0 0.0
    %2226 = vmatprep.subr.mxu0 0.0
    %2227 = vmatpush1.msra.mxu0 0.0
    %2228 = vmatprep.subr.mxu0 0.0
    %2229 = vmatpush1.msra.mxu0 0.0
    %2230 = vmatprep.subr.mxu0 0.0
    %2231 = vmatpush1.msra.mxu0 0.0
    %2232 = vmatprep.subr.mxu0 0.0
    %2233 = vmatpush1.msra.mxu0 0.0
    %2234 = vmatprep.subr.mxu0 0.0
    %2235 = vmatpush1.msra.mxu0 0.0
    %2236 = vmatprep.subr.mxu0 0.0
    %2237 = vmatpush1.msra.mxu0 0.0
    %2238 = vmatprep.subr.mxu0 0.0
    %2239 = vmatpush1.msra.mxu0 0.0
    %2240 = vmatprep.subr.mxu0 0.0
    %2241 = vmatpush1.msra.mxu0 0.0
    %2242 = vmatprep.subr.mxu0 0.0
    %2243 = vmatpush1.msra.mxu0 0.0
    %2244 = vmatprep.subr.mxu0 0.0
    %2245 = vmatpush1.msra.mxu0 0.0
    %2246 = vmatprep.subr.mxu0 0.0
    %2247 = vmatpush1.msra.mxu0 0.0
    %2248 = vmatprep.subr.mxu0 0.0
    %2249 = vmatpush1.msra.mxu0 0.0
    %2250 = vmatprep.subr.mxu0 0.0
    %2251 = vmatpush1.msra.mxu0 0.0
    %2252 = vmatprep.subr.mxu0 0.0
    %2253 = vmatpush1.msra.mxu0 0.0
    %2254 = vmatprep.subr.mxu0 0.0
    %2255 = vmatpush1.msra.mxu0 0.0
    %2256 = vmatprep.subr.mxu0 0.0
    %2257 = vmatpush1.msra.mxu0 0.0
    %2258 = vmatprep.subr.mxu0 0.0
    %2259 = vmatpush1.msra.mxu0 0.0
    %2260 = vmatprep.subr.mxu0 0.0
    %2261 = vmatpush1.msra.mxu0 0.0
    %2262 = vmatprep.subr.mxu0 0.0
    %2263 = vmatpush1.msra.mxu0 0.0
    %2264 = vmatprep.mubr.f32.mxu0 0.0
    %2265 = vmatmul.mubr.f32.gmra.mrb[0].mxu0 %v102
    %v2266 = vpop.f32.mrb[0].mxu0
    %v2267 = vadd.f32 0.0, %v2266
    %v2268 = vpop.f32.mrb[0].mxu0
    %2269 = vmatprep.mubr.f32.mxu0 0.0
    %2270 = vmatmul.mubr.f32.gmra.mrb[0].mxu0 %v105
    %v2271 = vpop.f32.mrb[0].mxu0
    %v2272 = vadd.f32 0.0, %v2271
    %v2273 = vpop.f32.mrb[0].mxu0
    %2274 = vmatprep.mubr.f32.mxu0 0.0
    %2275 = vmatmul.mubr.f32.gmra.mrb[0].mxu0 %v108
    %v2276 = vpop.f32.mrb[0].mxu0
    %v2277 = vadd.f32 0.0, %v2276
    %v2278 = vpop.f32.mrb[0].mxu0
    %2279 = vmatprep.mubr.f32.mxu0 0.0
    %2280 = vmatmul.mubr.f32.gmra.mrb[0].mxu0 %v111
    %v2281 = vpop.f32.mrb[0].mxu0
    %v2282 = vadd.f32 0.0, %v2281
    %v2283 = vpop.f32.mrb[0].mxu0
    %2284 = vdwg.mxu0
    %2285 = vmatprep.subr.mxu0 0.0
    %2286 = vmatpush1.msra.mxu0 %v2196
    %2287 = vmatprep.subr.mxu0 0.0
    %2288 = vmatpush1.msra.mxu0 %v2197
    %2289 = vmatprep.subr.mxu0 0.0
    %2290 = vmatpush1.msra.mxu0 %v2198
    %2291 = vmatprep.subr.mxu0 0.0
    %2292 = vmatpush1.msra.mxu0 %v2199
    %2293 = vmatprep.subr.mxu0 0.0
    %2294 = vmatpush1.msra.mxu0 0.0
    %2295 = vmatprep.subr.mxu0 0.0
    %2296 = vmatpush1.msra.mxu0 0.0
    %2297 = vmatprep.subr.mxu0 0.0
    %2298 = vmatpush1.msra.mxu0 0.0
    %2299 = vmatprep.subr.mxu0 0.0
    %2300 = vmatpush1.msra.mxu0 0.0
    %2301 = vmatprep.subr.mxu0 0.0
    %2302 = vmatpush1.msra.mxu0 0.0
    %2303 = vmatprep.subr.mxu0 0.0
    %2304 = vmatpush1.msra.mxu0 0.0
    %2305 = vmatprep.subr.mxu0 0.0
    %2306 = vmatpush1.msra.mxu0 0.0
    %2307 = vmatprep.subr.mxu0 0.0
    %2308 = vmatpush1.msra.mxu0 0.0
    %2309 = vmatprep.subr.mxu0 0.0
    %2310 = vmatpush1.msra.mxu0 0.0
    %2311 = vmatprep.subr.mxu0 0.0
    %2312 = vmatpush1.msra.mxu0 0.0
    %2313 = vmatprep.subr.mxu0 0.0
    %2314 = vmatpush1.msra.mxu0 0.0
    %2315 = vmatprep.subr.mxu0 0.0
    %2316 = vmatpush1.msra.mxu0 0.0
    %2317 = vmatprep.subr.mxu0 0.0
    %2318 = vmatpush1.msra.mxu0 0.0
    %2319 = vmatprep.subr.mxu0 0.0
    %2320 = vmatpush1.msra.mxu0 0.0
    %2321 = vmatprep.subr.mxu0 0.0
    %2322 = vmatpush1.msra.mxu0 0.0
    %2323 = vmatprep.subr.mxu0 0.0
    %2324 = vmatpush1.msra.mxu0 0.0
    %2325 = vmatprep.subr.mxu0 0.0
    %2326 = vmatpush1.msra.mxu0 0.0
    %2327 = vmatprep.subr.mxu0 0.0
    %2328 = vmatpush1.msra.mxu0 0.0
    %2329 = vmatprep.subr.mxu0 0.0
    %2330 = vmatpush1.msra.mxu0 0.0
    %2331 = vmatprep.subr.mxu0 0.0
    %2332 = vmatpush1.msra.mxu0 0.0
    %2333 = vmatprep.subr.mxu0 0.0
    %2334 = vmatpush1.msra.mxu0 0.0
    %2335 = vmatprep.subr.mxu0 0.0
    %2336 = vmatpush1.msra.mxu0 0.0
    %2337 = vmatprep.subr.mxu0 0.0
    %2338 = vmatpush1.msra.mxu0 0.0
    %2339 = vmatprep.subr.mxu0 0.0
    %2340 = vmatpush1.msra.mxu0 0.0
    %2341 = vmatprep.subr.mxu0 0.0
    %2342 = vmatpush1.msra.mxu0 0.0
    %2343 = vmatprep.subr.mxu0 0.0
    %2344 = vmatpush1.msra.mxu0 0.0
    %2345 = vmatprep.subr.mxu0 0.0
    %2346 = vmatpush1.msra.mxu0 0.0
    %2347 = vmatprep.subr.mxu0 0.0
    %2348 = vmatpush1.msra.mxu0 0.0
    %2349 = vmatprep.mubr.f32.mxu0 0.0
    %2350 = vmatmul.mubr.f32.gmra.mrb[0].mxu0 %v199
    %v2351 = vpop.f32.mrb[0].mxu0
    %v2352 = vadd.f32 0.0, %v2351
    %v2353 = vpop.f32.mrb[0].mxu0
    %2354 = vmatprep.mubr.f32.mxu0 0.0
    %2355 = vmatmul.mubr.f32.gmra.mrb[0].mxu0 %v202
    %v2356 = vpop.f32.mrb[0].mxu0
    %v2357 = vadd.f32 0.0, %v2356
    %v2358 = vpop.f32.mrb[0].mxu0
    %2359 = vmatprep.mubr.f32.mxu0 0.0
    %2360 = vmatmul.mubr.f32.gmra.mrb[0].mxu0 %v205
    %v2361 = vpop.f32.mrb[0].mxu0
    %v2362 = vadd.f32 0.0, %v2361
    %v2363 = vpop.f32.mrb[0].mxu0
    %2364 = vmatprep.mubr.f32.mxu0 0.0
    %2365 = vmatmul.mubr.f32.gmra.mrb[0].mxu0 %v208
    %v2366 = vpop.f32.mrb[0].mxu0
    %v2367 = vadd.f32 0.0, %v2366
    %v2368 = vpop.f32.mrb[0].mxu0
    %2369 = vdwg.mxu0
    %v2370 = vld [vmem:[%s11] sm:$0xff]
    %v2371 = vld [vmem:[%s11 + $0x8] sm:$0xff]
    %v2372 = vld [vmem:[%s11 + $0x10] sm:$0xff]
    %v2373 = vld [vmem:[%s11 + $0x18] sm:$0xff]
    %s2374 = scalar_lea.vmem %s11, 32
    %v2375 = vld [vmem:[%s2374] sm:$0xff]
    %v2376 = vld [vmem:[%s2374 + $0x8] sm:$0xff]
    %v2377 = vld [vmem:[%s2374 + $0x10] sm:$0xff]
    %v2378 = vld [vmem:[%s2374 + $0x18] sm:$0xff]
    %v2380 = vsel %vm100, %v2196, 0
    %v2383 = vsel %vm100, %v2197, 0
    %v2386 = vsel %vm100, %v2198, 0
    %v2389 = vsel %vm100, %v2199, 0
    %2391 = vmatprep.subr.mxu0 0.0
    %2392 = vmatpush1.msra.mxu0 %v2375
    %2393 = vmatprep.subr.mxu0 0.0
    %2394 = vmatpush1.msra.mxu0 %v2376
    %2395 = vmatprep.subr.mxu0 0.0
    %2396 = vmatpush1.msra.mxu0 %v2377
    %2397 = vmatprep.subr.mxu0 0.0
    %2398 = vmatpush1.msra.mxu0 %v2378
    %2399 = vmatprep.subr.mxu0 0.0
    %2400 = vmatpush1.msra.mxu0 0.0
    %2401 = vmatprep.subr.mxu0 0.0
    %2402 = vmatpush1.msra.mxu0 0.0
    %2403 = vmatprep.subr.mxu0 0.0
    %2404 = vmatpush1.msra.mxu0 0.0
    %2405 = vmatprep.subr.mxu0 0.0
    %2406 = vmatpush1.msra.mxu0 0.0
    %2407 = vmatprep.subr.mxu0 0.0
    %2408 = vmatpush1.msra.mxu0 0.0
    %2409 = vmatprep.subr.mxu0 0.0
    %2410 = vmatpush1.msra.mxu0 0.0
    %2411 = vmatprep.subr.mxu0 0.0
    %2412 = vmatpush1.msra.mxu0 0.0
    %2413 = vmatprep.subr.mxu0 0.0
    %2414 = vmatpush1.msra.mxu0 0.0
    %2415 = vmatprep.subr.mxu0 0.0
    %2416 = vmatpush1.msra.mxu0 0.0
    %2417 = vmatprep.subr.mxu0 0.0
    %2418 = vmatpush1.msra.mxu0 0.0
    %2419 = vmatprep.subr.mxu0 0.0
    %2420 = vmatpush1.msra.mxu0 0.0
    %2421 = vmatprep.subr.mxu0 0.0
    %2422 = vmatpush1.msra.mxu0 0.0
    %2423 = vmatprep.subr.mxu0 0.0
    %2424 = vmatpush1.msra.mxu0 0.0
    %2425 = vmatprep.subr.mxu0 0.0
    %2426 = vmatpush1.msra.mxu0 0.0
    %2427 = vmatprep.subr.mxu0 0.0
    %2428 = vmatpush1.msra.mxu0 0.0
    %2429 = vmatprep.subr.mxu0 0.0
    %2430 = vmatpush1.msra.mxu0 0.0
    %2431 = vmatprep.subr.mxu0 0.0
    %2432 = vmatpush1.msra.mxu0 0.0
    %2433 = vmatprep.subr.mxu0 0.0
    %2434 = vmatpush1.msra.mxu0 0.0
    %2435 = vmatprep.subr.mxu0 0.0
    %2436 = vmatpush1.msra.mxu0 0.0
    %2437 = vmatprep.subr.mxu0 0.0
    %2438 = vmatpush1.msra.mxu0 0.0
    %2439 = vmatprep.subr.mxu0 0.0
    %2440 = vmatpush1.msra.mxu0 0.0
    %2441 = vmatprep.subr.mxu0 0.0
    %2442 = vmatpush1.msra.mxu0 0.0
    %2443 = vmatprep.subr.mxu0 0.0
    %2444 = vmatpush1.msra.mxu0 0.0
    %2445 = vmatprep.subr.mxu0 0.0
    %2446 = vmatpush1.msra.mxu0 0.0
    %2447 = vmatprep.subr.mxu0 0.0
    %2448 = vmatpush1.msra.mxu0 0.0
    %2449 = vmatprep.subr.mxu0 0.0
    %2450 = vmatpush1.msra.mxu0 0.0
    %2451 = vmatprep.subr.mxu0 0.0
    %2452 = vmatpush1.msra.mxu0 0.0
    %2453 = vmatprep.subr.mxu0 0.0
    %2454 = vmatpush1.msra.mxu0 0.0
    %2455 = vmatprep.mubr.f32.mxu0 0.0
    %2456 = vmatmul.mubr.f32.gmra.mrb[0].mxu0 %v2380
    %v2457 = vpop.f32.mrb[0].mxu0
    %v2458 = vadd.f32 0.0, %v2457
    %v2459 = vpop.f32.mrb[0].mxu0
    %2460 = vmatprep.mubr.f32.mxu0 0.0
    %2461 = vmatmul.mubr.f32.gmra.mrb[0].mxu0 %v2383
    %v2462 = vpop.f32.mrb[0].mxu0
    %v2463 = vadd.f32 0.0, %v2462
    %v2464 = vpop.f32.mrb[0].mxu0
    %2465 = vmatprep.mubr.f32.mxu0 0.0
    %2466 = vmatmul.mubr.f32.gmra.mrb[0].mxu0 %v2386
    %v2467 = vpop.f32.mrb[0].mxu0
    %v2468 = vadd.f32 0.0, %v2467
    %v2469 = vpop.f32.mrb[0].mxu0
    %2470 = vmatprep.mubr.f32.mxu0 0.0
    %2471 = vmatmul.mubr.f32.gmra.mrb[0].mxu0 %v2389
    %v2472 = vpop.f32.mrb[0].mxu0
    %v2473 = vadd.f32 0.0, %v2472
    %v2474 = vpop.f32.mrb[0].mxu0
    %2475 = vdwg.mxu0
    %v2477 = vsel %vm100, %v2267, 0
    %v2480 = vsel %vm100, %v2272, 0
    %v2483 = vsel %vm100, %v2277, 0
    %v2486 = vsel %vm100, %v2282, 0
    %2488 = vmatprep.subr.mxu0 0.0
    %2489 = vmatpush1.msra.mxu0 %v2370
    %2490 = vmatprep.subr.mxu0 0.0
    %2491 = vmatpush1.msra.mxu0 %v2371
    %2492 = vmatprep.subr.mxu0 0.0
    %2493 = vmatpush1.msra.mxu0 %v2372
    %2494 = vmatprep.subr.mxu0 0.0
    %2495 = vmatpush1.msra.mxu0 %v2373
    %2496 = vmatprep.subr.mxu0 0.0
    %2497 = vmatpush1.msra.mxu0 0.0
    %2498 = vmatprep.subr.mxu0 0.0
    %2499 = vmatpush1.msra.mxu0 0.0
    %2500 = vmatprep.subr.mxu0 0.0
    %2501 = vmatpush1.msra.mxu0 0.0
    %2502 = vmatprep.subr.mxu0 0.0
    %2503 = vmatpush1.msra.mxu0 0.0
    %2504 = vmatprep.subr.mxu0 0.0
    %2505 = vmatpush1.msra.mxu0 0.0
    %2506 = vmatprep.subr.mxu0 0.0
    %2507 = vmatpush1.msra.mxu0 0.0
    %2508 = vmatprep.subr.mxu0 0.0
    %2509 = vmatpush1.msra.mxu0 0.0
    %2510 = vmatprep.subr.mxu0 0.0
    %2511 = vmatpush1.msra.mxu0 0.0
    %2512 = vmatprep.subr.mxu0 0.0
    %2513 = vmatpush1.msra.mxu0 0.0
    %2514 = vmatprep.subr.mxu0 0.0
    %2515 = vmatpush1.msra.mxu0 0.0
    %2516 = vmatprep.subr.mxu0 0.0
    %2517 = vmatpush1.msra.mxu0 0.0
    %2518 = vmatprep.subr.mxu0 0.0
    %2519 = vmatpush1.msra.mxu0 0.0
    %2520 = vmatprep.subr.mxu0 0.0
    %2521 = vmatpush1.msra.mxu0 0.0
    %2522 = vmatprep.subr.mxu0 0.0
    %2523 = vmatpush1.msra.mxu0 0.0
    %2524 = vmatprep.subr.mxu0 0.0
    %2525 = vmatpush1.msra.mxu0 0.0
    %2526 = vmatprep.subr.mxu0 0.0
    %2527 = vmatpush1.msra.mxu0 0.0
    %2528 = vmatprep.subr.mxu0 0.0
    %2529 = vmatpush1.msra.mxu0 0.0
    %2530 = vmatprep.subr.mxu0 0.0
    %2531 = vmatpush1.msra.mxu0 0.0
    %2532 = vmatprep.subr.mxu0 0.0
    %2533 = vmatpush1.msra.mxu0 0.0
    %2534 = vmatprep.subr.mxu0 0.0
    %2535 = vmatpush1.msra.mxu0 0.0
    %2536 = vmatprep.subr.mxu0 0.0
    %2537 = vmatpush1.msra.mxu0 0.0
    %2538 = vmatprep.subr.mxu0 0.0
    %2539 = vmatpush1.msra.mxu0 0.0
    %2540 = vmatprep.subr.mxu0 0.0
    %2541 = vmatpush1.msra.mxu0 0.0
    %2542 = vmatprep.subr.mxu0 0.0
    %2543 = vmatpush1.msra.mxu0 0.0
    %2544 = vmatprep.subr.mxu0 0.0
    %2545 = vmatpush1.msra.mxu0 0.0
    %2546 = vmatprep.subr.mxu0 0.0
    %2547 = vmatpush1.msra.mxu0 0.0
    %2548 = vmatprep.subr.mxu0 0.0
    %2549 = vmatpush1.msra.mxu0 0.0
    %2550 = vmatprep.subr.mxu0 0.0
    %2551 = vmatpush1.msra.mxu0 0.0
    %2552 = vmatprep.mubr.f32.mxu0 0.0
    %2553 = vmatmul.mubr.f32.gmra.mrb[0].mxu0 %v2477
    %v2554 = vpop.f32.mrb[0].mxu0
    %v2555 = vadd.f32 %v2458, %v2554
    %v2556 = vpop.f32.mrb[0].mxu0
    %2557 = vmatprep.mubr.f32.mxu0 0.0
    %2558 = vmatmul.mubr.f32.gmra.mrb[0].mxu0 %v2480
    %v2559 = vpop.f32.mrb[0].mxu0
    %v2560 = vadd.f32 %v2463, %v2559
    %v2561 = vpop.f32.mrb[0].mxu0
    %2562 = vmatprep.mubr.f32.mxu0 0.0
    %2563 = vmatmul.mubr.f32.gmra.mrb[0].mxu0 %v2483
    %v2564 = vpop.f32.mrb[0].mxu0
    %v2565 = vadd.f32 %v2468, %v2564
    %v2566 = vpop.f32.mrb[0].mxu0
    %2567 = vmatprep.mubr.f32.mxu0 0.0
    %2568 = vmatmul.mubr.f32.gmra.mrb[0].mxu0 %v2486
    %v2569 = vpop.f32.mrb[0].mxu0
    %v2570 = vadd.f32 %v2473, %v2569
    %v2571 = vpop.f32.mrb[0].mxu0
    %2572 = vdwg.mxu0
    %s2573 = scalar_lea.vmem %s11, 64
    %v2574 = vld [vmem:[%s2573] sm:$0xff]
    %v2575 = vld [vmem:[%s2573 + $0x8] sm:$0xff]
    %v2576 = vld [vmem:[%s2573 + $0x10] sm:$0xff]
    %v2577 = vld [vmem:[%s2573 + $0x18] sm:$0xff]
    %v2579 = vsel %vm100, %v2352, 0
    %v2582 = vsel %vm100, %v2357, 0
    %v2585 = vsel %vm100, %v2362, 0
    %v2588 = vsel %vm100, %v2367, 0
    %2590 = vmatprep.subr.mxu0 0.0
    %2591 = vmatpush1.msra.mxu0 %v2574
    %2592 = vmatprep.subr.mxu0 0.0
    %2593 = vmatpush1.msra.mxu0 %v2575
    %2594 = vmatprep.subr.mxu0 0.0
    %2595 = vmatpush1.msra.mxu0 %v2576
    %2596 = vmatprep.subr.mxu0 0.0
    %2597 = vmatpush1.msra.mxu0 %v2577
    %2598 = vmatprep.subr.mxu0 0.0
    %2599 = vmatpush1.msra.mxu0 0.0
    %2600 = vmatprep.subr.mxu0 0.0
    %2601 = vmatpush1.msra.mxu0 0.0
    %2602 = vmatprep.subr.mxu0 0.0
    %2603 = vmatpush1.msra.mxu0 0.0
    %2604 = vmatprep.subr.mxu0 0.0
    %2605 = vmatpush1.msra.mxu0 0.0
    %2606 = vmatprep.subr.mxu0 0.0
    %2607 = vmatpush1.msra.mxu0 0.0
    %2608 = vmatprep.subr.mxu0 0.0
    %2609 = vmatpush1.msra.mxu0 0.0
    %2610 = vmatprep.subr.mxu0 0.0
    %2611 = vmatpush1.msra.mxu0 0.0
    %2612 = vmatprep.subr.mxu0 0.0
    %2613 = vmatpush1.msra.mxu0 0.0
    %2614 = vmatprep.subr.mxu0 0.0
    %2615 = vmatpush1.msra.mxu0 0.0
    %2616 = vmatprep.subr.mxu0 0.0
    %2617 = vmatpush1.msra.mxu0 0.0
    %2618 = vmatprep.subr.mxu0 0.0
    %2619 = vmatpush1.msra.mxu0 0.0
    %2620 = vmatprep.subr.mxu0 0.0
    %2621 = vmatpush1.msra.mxu0 0.0
    %2622 = vmatprep.subr.mxu0 0.0
    %2623 = vmatpush1.msra.mxu0 0.0
    %2624 = vmatprep.subr.mxu0 0.0
    %2625 = vmatpush1.msra.mxu0 0.0
    %2626 = vmatprep.subr.mxu0 0.0
    %2627 = vmatpush1.msra.mxu0 0.0
    %2628 = vmatprep.subr.mxu0 0.0
    %2629 = vmatpush1.msra.mxu0 0.0
    %2630 = vmatprep.subr.mxu0 0.0
    %2631 = vmatpush1.msra.mxu0 0.0
    %2632 = vmatprep.subr.mxu0 0.0
    %2633 = vmatpush1.msra.mxu0 0.0
    %2634 = vmatprep.subr.mxu0 0.0
    %2635 = vmatpush1.msra.mxu0 0.0
    %2636 = vmatprep.subr.mxu0 0.0
    %2637 = vmatpush1.msra.mxu0 0.0
    %2638 = vmatprep.subr.mxu0 0.0
    %2639 = vmatpush1.msra.mxu0 0.0
    %2640 = vmatprep.subr.mxu0 0.0
    %2641 = vmatpush1.msra.mxu0 0.0
    %2642 = vmatprep.subr.mxu0 0.0
    %2643 = vmatpush1.msra.mxu0 0.0
    %2644 = vmatprep.subr.mxu0 0.0
    %2645 = vmatpush1.msra.mxu0 0.0
    %2646 = vmatprep.subr.mxu0 0.0
    %2647 = vmatpush1.msra.mxu0 0.0
    %2648 = vmatprep.subr.mxu0 0.0
    %2649 = vmatpush1.msra.mxu0 0.0
    %2650 = vmatprep.subr.mxu0 0.0
    %2651 = vmatpush1.msra.mxu0 0.0
    %2652 = vmatprep.subr.mxu0 0.0
    %2653 = vmatpush1.msra.mxu0 0.0
    %2654 = vmatprep.mubr.f32.mxu0 0.0
    %2655 = vmatmul.mubr.f32.gmra.mrb[0].mxu0 %v2579
    %v2656 = vpop.f32.mrb[0].mxu0
    %v2657 = vadd.f32 0.0, %v2656
    %v2658 = vpop.f32.mrb[0].mxu0
    %2659 = vmatprep.mubr.f32.mxu0 0.0
    %2660 = vmatmul.mubr.f32.gmra.mrb[0].mxu0 %v2582
    %v2661 = vpop.f32.mrb[0].mxu0
    %v2662 = vadd.f32 0.0, %v2661
    %v2663 = vpop.f32.mrb[0].mxu0
    %2664 = vmatprep.mubr.f32.mxu0 0.0
    %2665 = vmatmul.mubr.f32.gmra.mrb[0].mxu0 %v2585
    %v2666 = vpop.f32.mrb[0].mxu0
    %v2667 = vadd.f32 0.0, %v2666
    %v2668 = vpop.f32.mrb[0].mxu0
    %2669 = vmatprep.mubr.f32.mxu0 0.0
    %2670 = vmatmul.mubr.f32.gmra.mrb[0].mxu0 %v2588
    %v2671 = vpop.f32.mrb[0].mxu0
    %v2672 = vadd.f32 0.0, %v2671
    %v2673 = vpop.f32.mrb[0].mxu0
    %2674 = vdwg.mxu0
    %v2675 = vadd.f32 %v2555, %v2657
    %v2676 = vadd.f32 %v2560, %v2662
    %v2677 = vadd.f32 %v2565, %v2667
    %v2678 = vadd.f32 %v2570, %v2672
    %v2679 = vmax.f32 %v2675, 0.0
    %v2680 = vmax.f32 %v2676, 0.0
    %v2681 = vmax.f32 %v2677, 0.0
    %v2682 = vmax.f32 %v2678, 0.0
    %v2683 = vld [vmem:[%s12] sm:$0xff]
    %v2684 = vld [vmem:[%s12 + $0x8] sm:$0xff]
    %v2686 = vsel %vm2094, %v2679, 0
    %v2689 = vsel %vm2094, %v2680, 0
    %v2692 = vsel %vm2094, %v2681, 0
    %v2695 = vsel %vm2094, %v2682, 0
    %2697 = vmatprep.subr.mxu0 0.0
    %2698 = vmatpush1.msra.mxu0 %v2683
    %2699 = vmatprep.subr.mxu0 0.0
    %2700 = vmatpush1.msra.mxu0 %v2684
    %2701 = vmatprep.subr.mxu0 0.0
    %2702 = vmatpush1.msra.mxu0 0.0
    %2703 = vmatprep.subr.mxu0 0.0
    %2704 = vmatpush1.msra.mxu0 0.0
    %2705 = vmatprep.subr.mxu0 0.0
    %2706 = vmatpush1.msra.mxu0 0.0
    %2707 = vmatprep.subr.mxu0 0.0
    %2708 = vmatpush1.msra.mxu0 0.0
    %2709 = vmatprep.subr.mxu0 0.0
    %2710 = vmatpush1.msra.mxu0 0.0
    %2711 = vmatprep.subr.mxu0 0.0
    %2712 = vmatpush1.msra.mxu0 0.0
    %2713 = vmatprep.subr.mxu0 0.0
    %2714 = vmatpush1.msra.mxu0 0.0
    %2715 = vmatprep.subr.mxu0 0.0
    %2716 = vmatpush1.msra.mxu0 0.0
    %2717 = vmatprep.subr.mxu0 0.0
    %2718 = vmatpush1.msra.mxu0 0.0
    %2719 = vmatprep.subr.mxu0 0.0
    %2720 = vmatpush1.msra.mxu0 0.0
    %2721 = vmatprep.subr.mxu0 0.0
    %2722 = vmatpush1.msra.mxu0 0.0
    %2723 = vmatprep.subr.mxu0 0.0
    %2724 = vmatpush1.msra.mxu0 0.0
    %2725 = vmatprep.subr.mxu0 0.0
    %2726 = vmatpush1.msra.mxu0 0.0
    %2727 = vmatprep.subr.mxu0 0.0
    %2728 = vmatpush1.msra.mxu0 0.0
    %2729 = vmatprep.subr.mxu0 0.0
    %2730 = vmatpush1.msra.mxu0 0.0
    %2731 = vmatprep.subr.mxu0 0.0
    %2732 = vmatpush1.msra.mxu0 0.0
    %2733 = vmatprep.subr.mxu0 0.0
    %2734 = vmatpush1.msra.mxu0 0.0
    %2735 = vmatprep.subr.mxu0 0.0
    %2736 = vmatpush1.msra.mxu0 0.0
    %2737 = vmatprep.subr.mxu0 0.0
    %2738 = vmatpush1.msra.mxu0 0.0
    %2739 = vmatprep.subr.mxu0 0.0
    %2740 = vmatpush1.msra.mxu0 0.0
    %2741 = vmatprep.subr.mxu0 0.0
    %2742 = vmatpush1.msra.mxu0 0.0
    %2743 = vmatprep.subr.mxu0 0.0
    %2744 = vmatpush1.msra.mxu0 0.0
    %2745 = vmatprep.subr.mxu0 0.0
    %2746 = vmatpush1.msra.mxu0 0.0
    %2747 = vmatprep.subr.mxu0 0.0
    %2748 = vmatpush1.msra.mxu0 0.0
    %2749 = vmatprep.subr.mxu0 0.0
    %2750 = vmatpush1.msra.mxu0 0.0
    %2751 = vmatprep.subr.mxu0 0.0
    %2752 = vmatpush1.msra.mxu0 0.0
    %2753 = vmatprep.subr.mxu0 0.0
    %2754 = vmatpush1.msra.mxu0 0.0
    %2755 = vmatprep.subr.mxu0 0.0
    %2756 = vmatpush1.msra.mxu0 0.0
    %2757 = vmatprep.subr.mxu0 0.0
    %2758 = vmatpush1.msra.mxu0 0.0
    %2759 = vmatprep.subr.mxu0 0.0
    %2760 = vmatpush1.msra.mxu0 0.0
    %2761 = vmatprep.mubr.f32.mxu0 0.0
    %2762 = vmatmul.mubr.f32.gmra.mrb[0].mxu0 %v2686
    %v2763 = vpop.f32.mrb[0].mxu0
    %v2764 = vadd.f32 0.0, %v2763
    %v2765 = vpop.f32.mrb[0].mxu0
    %2766 = vmatprep.mubr.f32.mxu0 0.0
    %2767 = vmatmul.mubr.f32.gmra.mrb[0].mxu0 %v2689
    %v2768 = vpop.f32.mrb[0].mxu0
    %v2769 = vadd.f32 0.0, %v2768
    %v2770 = vpop.f32.mrb[0].mxu0
    %2771 = vmatprep.mubr.f32.mxu0 0.0
    %2772 = vmatmul.mubr.f32.gmra.mrb[0].mxu0 %v2692
    %v2773 = vpop.f32.mrb[0].mxu0
    %v2774 = vadd.f32 0.0, %v2773
    %v2775 = vpop.f32.mrb[0].mxu0
    %2776 = vmatprep.mubr.f32.mxu0 0.0
    %2777 = vmatmul.mubr.f32.gmra.mrb[0].mxu0 %v2695
    %v2778 = vpop.f32.mrb[0].mxu0
    %v2779 = vadd.f32 0.0, %v2778
    %v2780 = vpop.f32.mrb[0].mxu0
    %2781 = vdwg.mxu0
    %v2782 = vadd.f32 %v2192, %v2764
    %v2783 = vadd.f32 %v2193, %v2769
    %v2784 = vadd.f32 %v2194, %v2774
    %v2785 = vadd.f32 %v2195, %v2779
    %v2786 = vmax.f32 %v2782, 0.0
    %v2787 = vmax.f32 %v2783, 0.0
    %v2788 = vmax.f32 %v2784, 0.0
    %v2789 = vmax.f32 %v2785, 0.0
    %v2790 = vld [vmem:[%s13] sm:$0xff]
    %v2791 = vld [vmem:[%s13 + $0x8] sm:$0xff]
    %v2792 = vld [vmem:[%s13 + $0x10] sm:$0xff]
    %v2793 = vld [vmem:[%s13 + $0x18] sm:$0xff]
    %v2794 = vld [vmem:[%s14] sm:$0x1]
    %v2796 = vlaneseq
    %v2797 = vshrl.u32 %v2796, 7
    %v2798 = vsub.s32 0, %v2797
    %v2799 = vrot.slane %v2794, %v2798
    %v2802 = vsel %vm100, %v2786, 0
    %v2805 = vsel %vm100, %v2787, 0
    %v2808 = vsel %vm100, %v2788, 0
    %v2811 = vsel %vm100, %v2789, 0
    %2813 = vmatprep.subr.mxu0 0.0
    %2814 = vmatpush1.msra.mxu0 %v2790
    %2815 = vmatprep.subr.mxu0 0.0
    %2816 = vmatpush1.msra.mxu0 %v2791
    %2817 = vmatprep.subr.mxu0 0.0
    %2818 = vmatpush1.msra.mxu0 %v2792
    %2819 = vmatprep.subr.mxu0 0.0
    %2820 = vmatpush1.msra.mxu0 %v2793
    %2821 = vmatprep.subr.mxu0 0.0
    %2822 = vmatpush1.msra.mxu0 0.0
    %2823 = vmatprep.subr.mxu0 0.0
    %2824 = vmatpush1.msra.mxu0 0.0
    %2825 = vmatprep.subr.mxu0 0.0
    %2826 = vmatpush1.msra.mxu0 0.0
    %2827 = vmatprep.subr.mxu0 0.0
    %2828 = vmatpush1.msra.mxu0 0.0
    %2829 = vmatprep.subr.mxu0 0.0
    %2830 = vmatpush1.msra.mxu0 0.0
    %2831 = vmatprep.subr.mxu0 0.0
    %2832 = vmatpush1.msra.mxu0 0.0
    %2833 = vmatprep.subr.mxu0 0.0
    %2834 = vmatpush1.msra.mxu0 0.0
    %2835 = vmatprep.subr.mxu0 0.0
    %2836 = vmatpush1.msra.mxu0 0.0
    %2837 = vmatprep.subr.mxu0 0.0
    %2838 = vmatpush1.msra.mxu0 0.0
    %2839 = vmatprep.subr.mxu0 0.0
    %2840 = vmatpush1.msra.mxu0 0.0
    %2841 = vmatprep.subr.mxu0 0.0
    %2842 = vmatpush1.msra.mxu0 0.0
    %2843 = vmatprep.subr.mxu0 0.0
    %2844 = vmatpush1.msra.mxu0 0.0
    %2845 = vmatprep.subr.mxu0 0.0
    %2846 = vmatpush1.msra.mxu0 0.0
    %2847 = vmatprep.subr.mxu0 0.0
    %2848 = vmatpush1.msra.mxu0 0.0
    %2849 = vmatprep.subr.mxu0 0.0
    %2850 = vmatpush1.msra.mxu0 0.0
    %2851 = vmatprep.subr.mxu0 0.0
    %2852 = vmatpush1.msra.mxu0 0.0
    %2853 = vmatprep.subr.mxu0 0.0
    %2854 = vmatpush1.msra.mxu0 0.0
    %2855 = vmatprep.subr.mxu0 0.0
    %2856 = vmatpush1.msra.mxu0 0.0
    %2857 = vmatprep.subr.mxu0 0.0
    %2858 = vmatpush1.msra.mxu0 0.0
    %2859 = vmatprep.subr.mxu0 0.0
    %2860 = vmatpush1.msra.mxu0 0.0
    %2861 = vmatprep.subr.mxu0 0.0
    %2862 = vmatpush1.msra.mxu0 0.0
    %2863 = vmatprep.subr.mxu0 0.0
    %2864 = vmatpush1.msra.mxu0 0.0
    %2865 = vmatprep.subr.mxu0 0.0
    %2866 = vmatpush1.msra.mxu0 0.0
    %2867 = vmatprep.subr.mxu0 0.0
    %2868 = vmatpush1.msra.mxu0 0.0
    %2869 = vmatprep.subr.mxu0 0.0
    %2870 = vmatpush1.msra.mxu0 0.0
    %2871 = vmatprep.subr.mxu0 0.0
    %2872 = vmatpush1.msra.mxu0 0.0
    %2873 = vmatprep.subr.mxu0 0.0
    %2874 = vmatpush1.msra.mxu0 0.0
    %2875 = vmatprep.subr.mxu0 0.0
    %2876 = vmatpush1.msra.mxu0 0.0
    %2877 = vmatprep.mubr.f32.mxu0 0.0
    %2878 = vmatmul.mubr.f32.gmra.mrb[0].mxu0 %v2802
    %v2879 = vpop.f32.mrb[0].mxu0
    %v2880 = vadd.f32 %v2799, %v2879
    %v2881 = vpop.f32.mrb[0].mxu0
    %2882 = vmatprep.mubr.f32.mxu0 0.0
    %2883 = vmatmul.mubr.f32.gmra.mrb[0].mxu0 %v2805
    %v2884 = vpop.f32.mrb[0].mxu0
    %v2885 = vadd.f32 %v2799, %v2884
    %v2886 = vpop.f32.mrb[0].mxu0
    %2887 = vmatprep.mubr.f32.mxu0 0.0
    %2888 = vmatmul.mubr.f32.gmra.mrb[0].mxu0 %v2808
    %v2889 = vpop.f32.mrb[0].mxu0
    %v2890 = vadd.f32 %v2799, %v2889
    %v2891 = vpop.f32.mrb[0].mxu0
    %2892 = vmatprep.mubr.f32.mxu0 0.0
    %2893 = vmatmul.mubr.f32.gmra.mrb[0].mxu0 %v2811
    %v2894 = vpop.f32.mrb[0].mxu0
    %v2895 = vadd.f32 %v2799, %v2894
    %v2896 = vpop.f32.mrb[0].mxu0
    %2897 = vdwg.mxu0
    %v2898 = vld [vmem:[%s15] sm:$0xff]
    %v2899 = vld [vmem:[%s15 + $0x8] sm:$0xff]
    %v2900 = vld [vmem:[%s15 + $0x10] sm:$0xff]
    %v2901 = vld [vmem:[%s15 + $0x18] sm:$0xff]
    %v2902 = vld [vmem:[%s15 + $0x20] sm:$0xff]
    %v2903 = vld [vmem:[%s15 + $0x28] sm:$0xff]
    %v2904 = vld [vmem:[%s15 + $0x30] sm:$0xff]
    %v2905 = vld [vmem:[%s15 + $0x38] sm:$0xff]
    %v2906 = vmul.f32 %v2880, %v2880
    %v2907 = vmul.f32 %v2885, %v2885
    %v2908 = vmul.f32 %v2890, %v2890
    %v2909 = vmul.f32 %v2895, %v2895
    %v2910 = vsel %vm2094, %v2906, 0.0
    %2911 = vadd.xlane.f32.xlu0 %v2910
    %v2912 = vpop.xlane.xlu0 %2911
    %v2913 = vsel %vm2094, %v2907, 0.0
    %2914 = vadd.xlane.f32.xlu0 %v2913
    %v2915 = vpop.xlane.xlu0 %2914
    %v2916 = vsel %vm2094, %v2908, 0.0
    %2917 = vadd.xlane.f32.xlu0 %v2916
    %v2918 = vpop.xlane.xlu0 %2917
    %v2919 = vsel %vm2094, %v2909, 0.0
    %2920 = vadd.xlane.f32.xlu0 %v2919
    %v2921 = vpop.xlane.xlu0 %2920
    %v2923 = vsel %vm2094, %v2880, 0
    %v2926 = vsel %vm2094, %v2885, 0
    %v2929 = vsel %vm2094, %v2890, 0
    %v2932 = vsel %vm2094, %v2895, 0
    %v2935 = vsel %vm2094, %v2898, 0
    %v2938 = vsel %vm2094, %v2899, 0
    %v2941 = vsel %vm2094, %v2900, 0
    %v2944 = vsel %vm2094, %v2901, 0
    %v2947 = vsel %vm2094, %v2902, 0
    %v2950 = vsel %vm2094, %v2903, 0
    %v2953 = vsel %vm2094, %v2904, 0
    %v2956 = vsel %vm2094, %v2905, 0
    %2958 = vmatprep.subr.mxu0 0.0
    %2959 = vmatpush1.xpose.msra.mxu0 %v2935
    %2960 = vmatprep.subr.mxu0 0.0
    %2961 = vmatpush1.xpose.msra.mxu0 %v2938
    %2962 = vmatprep.subr.mxu0 0.0
    %2963 = vmatpush1.xpose.msra.mxu0 %v2941
    %2964 = vmatprep.subr.mxu0 0.0
    %2965 = vmatpush1.xpose.msra.mxu0 %v2944
    %2966 = vmatprep.subr.mxu0 0.0
    %2967 = vmatpush1.xpose.msra.mxu0 %v2947
    %2968 = vmatprep.subr.mxu0 0.0
    %2969 = vmatpush1.xpose.msra.mxu0 %v2950
    %2970 = vmatprep.subr.mxu0 0.0
    %2971 = vmatpush1.xpose.msra.mxu0 %v2953
    %2972 = vmatprep.subr.mxu0 0.0
    %2973 = vmatpush1.xpose.msra.mxu0 %v2956
    %2974 = vmatprep.subr.mxu0 0.0
    %2975 = vmatpush1.xpose.msra.mxu0 0.0
    %2976 = vmatprep.subr.mxu0 0.0
    %2977 = vmatpush1.xpose.msra.mxu0 0.0
    %2978 = vmatprep.subr.mxu0 0.0
    %2979 = vmatpush1.xpose.msra.mxu0 0.0
    %2980 = vmatprep.subr.mxu0 0.0
    %2981 = vmatpush1.xpose.msra.mxu0 0.0
    %2982 = vmatprep.subr.mxu0 0.0
    %2983 = vmatpush1.xpose.msra.mxu0 0.0
    %2984 = vmatprep.subr.mxu0 0.0
    %2985 = vmatpush1.xpose.msra.mxu0 0.0
    %2986 = vmatprep.subr.mxu0 0.0
    %2987 = vmatpush1.xpose.msra.mxu0 0.0
    %2988 = vmatprep.subr.mxu0 0.0
    %2989 = vmatpush1.xpose.msra.mxu0 0.0
    %2990 = vmatprep.subr.mxu0 0.0
    %2991 = vmatpush1.xpose.msra.mxu0 0.0
    %2992 = vmatprep.subr.mxu0 0.0
    %2993 = vmatpush1.xpose.msra.mxu0 0.0
    %2994 = vmatprep.subr.mxu0 0.0
    %2995 = vmatpush1.xpose.msra.mxu0 0.0
    %2996 = vmatprep.subr.mxu0 0.0
    %2997 = vmatpush1.xpose.msra.mxu0 0.0
    %2998 = vmatprep.subr.mxu0 0.0
    %2999 = vmatpush1.xpose.msra.mxu0 0.0
    %3000 = vmatprep.subr.mxu0 0.0
    %3001 = vmatpush1.xpose.msra.mxu0 0.0
    %3002 = vmatprep.subr.mxu0 0.0
    %3003 = vmatpush1.xpose.msra.mxu0 0.0
    %3004 = vmatprep.subr.mxu0 0.0
    %3005 = vmatpush1.xpose.msra.mxu0 0.0
    %3006 = vmatprep.subr.mxu0 0.0
    %3007 = vmatpush1.xpose.msra.mxu0 0.0
    %3008 = vmatprep.subr.mxu0 0.0
    %3009 = vmatpush1.xpose.msra.mxu0 0.0
    %3010 = vmatprep.subr.mxu0 0.0
    %3011 = vmatpush1.xpose.msra.mxu0 0.0
    %3012 = vmatprep.subr.mxu0 0.0
    %3013 = vmatpush1.xpose.msra.mxu0 0.0
    %3014 = vmatprep.subr.mxu0 0.0
    %3015 = vmatpush1.xpose.msra.mxu0 0.0
    %3016 = vmatprep.subr.mxu0 0.0
    %3017 = vmatpush1.xpose.msra.mxu0 0.0
    %3018 = vmatprep.subr.mxu0 0.0
    %3019 = vmatpush1.xpose.msra.mxu0 0.0
    %3020 = vmatprep.subr.mxu0 0.0
    %3021 = vmatpush1.xpose.msra.mxu0 0.0
    %3022 = vmatprep.mubr.f32.mxu0 0.0
    %3023 = vmatmul.mubr.f32.gmra.mrb[0].mxu0 %v2923
    %v3024 = vpop.f32.mrb[0].mxu0
    %v3025 = vadd.f32 0.0, %v3024
    %v3026 = vpop.f32.mrb[0].mxu0
    %3027 = vmatprep.mubr.f32.mxu0 0.0
    %3028 = vmatmul.mubr.f32.gmra.mrb[0].mxu0 %v2926
    %v3029 = vpop.f32.mrb[0].mxu0
    %v3030 = vadd.f32 0.0, %v3029
    %v3031 = vpop.f32.mrb[0].mxu0
    %3032 = vmatprep.mubr.f32.mxu0 0.0
    %3033 = vmatmul.mubr.f32.gmra.mrb[0].mxu0 %v2929
    %v3034 = vpop.f32.mrb[0].mxu0
    %v3035 = vadd.f32 0.0, %v3034
    %v3036 = vpop.f32.mrb[0].mxu0
    %3037 = vmatprep.mubr.f32.mxu0 0.0
    %3038 = vmatmul.mubr.f32.gmra.mrb[0].mxu0 %v2932
    %v3039 = vpop.f32.mrb[0].mxu0
    %v3040 = vadd.f32 0.0, %v3039
    %v3041 = vpop.f32.mrb[0].mxu0
    %3042 = vdwg.mxu0
    %v3043 = vmul.f32 %v2898, %v2898
    %v3044 = vmul.f32 %v2899, %v2899
    %v3045 = vmul.f32 %v2900, %v2900
    %v3046 = vmul.f32 %v2901, %v2901
    %v3047 = vmul.f32 %v2902, %v2902
    %v3048 = vmul.f32 %v2903, %v2903
    %v3049 = vmul.f32 %v2904, %v2904
    %v3050 = vmul.f32 %v2905, %v2905
    %v3052 = vsel %vm2094, 1.0, 0
    %v3055 = vsel %vm2094, %v3043, 0
    %v3058 = vsel %vm2094, %v3044, 0
    %v3061 = vsel %vm2094, %v3045, 0
    %v3064 = vsel %vm2094, %v3046, 0
    %v3067 = vsel %vm2094, %v3047, 0
    %v3070 = vsel %vm2094, %v3048, 0
    %v3073 = vsel %vm2094, %v3049, 0
    %v3076 = vsel %vm2094, %v3050, 0
    %3078 = vmatprep.subr.mxu0 0.0
    %3079 = vmatpush1.xpose.msra.mxu0 %v3055
    %3080 = vmatprep.subr.mxu0 0.0
    %3081 = vmatpush1.xpose.msra.mxu0 %v3058
    %3082 = vmatprep.subr.mxu0 0.0
    %3083 = vmatpush1.xpose.msra.mxu0 %v3061
    %3084 = vmatprep.subr.mxu0 0.0
    %3085 = vmatpush1.xpose.msra.mxu0 %v3064
    %3086 = vmatprep.subr.mxu0 0.0
    %3087 = vmatpush1.xpose.msra.mxu0 %v3067
    %3088 = vmatprep.subr.mxu0 0.0
    %3089 = vmatpush1.xpose.msra.mxu0 %v3070
    %3090 = vmatprep.subr.mxu0 0.0
    %3091 = vmatpush1.xpose.msra.mxu0 %v3073
    %3092 = vmatprep.subr.mxu0 0.0
    %3093 = vmatpush1.xpose.msra.mxu0 %v3076
    %3094 = vmatprep.subr.mxu0 0.0
    %3095 = vmatpush1.xpose.msra.mxu0 0.0
    %3096 = vmatprep.subr.mxu0 0.0
    %3097 = vmatpush1.xpose.msra.mxu0 0.0
    %3098 = vmatprep.subr.mxu0 0.0
    %3099 = vmatpush1.xpose.msra.mxu0 0.0
    %3100 = vmatprep.subr.mxu0 0.0
    %3101 = vmatpush1.xpose.msra.mxu0 0.0
    %3102 = vmatprep.subr.mxu0 0.0
    %3103 = vmatpush1.xpose.msra.mxu0 0.0
    %3104 = vmatprep.subr.mxu0 0.0
    %3105 = vmatpush1.xpose.msra.mxu0 0.0
    %3106 = vmatprep.subr.mxu0 0.0
    %3107 = vmatpush1.xpose.msra.mxu0 0.0
    %3108 = vmatprep.subr.mxu0 0.0
    %3109 = vmatpush1.xpose.msra.mxu0 0.0
    %3110 = vmatprep.subr.mxu0 0.0
    %3111 = vmatpush1.xpose.msra.mxu0 0.0
    %3112 = vmatprep.subr.mxu0 0.0
    %3113 = vmatpush1.xpose.msra.mxu0 0.0
    %3114 = vmatprep.subr.mxu0 0.0
    %3115 = vmatpush1.xpose.msra.mxu0 0.0
    %3116 = vmatprep.subr.mxu0 0.0
    %3117 = vmatpush1.xpose.msra.mxu0 0.0
    %3118 = vmatprep.subr.mxu0 0.0
    %3119 = vmatpush1.xpose.msra.mxu0 0.0
    %3120 = vmatprep.subr.mxu0 0.0
    %3121 = vmatpush1.xpose.msra.mxu0 0.0
    %3122 = vmatprep.subr.mxu0 0.0
    %3123 = vmatpush1.xpose.msra.mxu0 0.0
    %3124 = vmatprep.subr.mxu0 0.0
    %3125 = vmatpush1.xpose.msra.mxu0 0.0
    %3126 = vmatprep.subr.mxu0 0.0
    %3127 = vmatpush1.xpose.msra.mxu0 0.0
    %3128 = vmatprep.subr.mxu0 0.0
    %3129 = vmatpush1.xpose.msra.mxu0 0.0
    %3130 = vmatprep.subr.mxu0 0.0
    %3131 = vmatpush1.xpose.msra.mxu0 0.0
    %3132 = vmatprep.subr.mxu0 0.0
    %3133 = vmatpush1.xpose.msra.mxu0 0.0
    %3134 = vmatprep.subr.mxu0 0.0
    %3135 = vmatpush1.xpose.msra.mxu0 0.0
    %3136 = vmatprep.subr.mxu0 0.0
    %3137 = vmatpush1.xpose.msra.mxu0 0.0
    %3138 = vmatprep.subr.mxu0 0.0
    %3139 = vmatpush1.xpose.msra.mxu0 0.0
    %3140 = vmatprep.subr.mxu0 0.0
    %3141 = vmatpush1.xpose.msra.mxu0 0.0
    %3142 = vmatprep.mubr.f32.mxu0 0.0
    %3143 = vmatmul.mubr.f32.gmra.mrb[0].mxu0 %v3052
    %v3144 = vpop.f32.mrb[0].mxu0
    %v3145 = vadd.f32 0.0, %v3144
    %v3146 = vpop.f32.mrb[0].mxu0
    %3147 = vmatprep.mubr.f32.mxu0 0.0
    %3148 = vmatmul.mubr.f32.gmra.mrb[0].mxu0 %v3052
    %v3149 = vpop.f32.mrb[0].mxu0
    %v3150 = vadd.f32 0.0, %v3149
    %v3151 = vpop.f32.mrb[0].mxu0
    %3152 = vmatprep.mubr.f32.mxu0 0.0
    %3153 = vmatmul.mubr.f32.gmra.mrb[0].mxu0 %v3052
    %v3154 = vpop.f32.mrb[0].mxu0
    %v3155 = vadd.f32 0.0, %v3154
    %v3156 = vpop.f32.mrb[0].mxu0
    %3157 = vmatprep.mubr.f32.mxu0 0.0
    %3158 = vmatmul.mubr.f32.gmra.mrb[0].mxu0 %v3052
    %v3159 = vpop.f32.mrb[0].mxu0
    %v3160 = vadd.f32 0.0, %v3159
    %v3161 = vpop.f32.mrb[0].mxu0
    %3162 = vdwg.mxu0
    %v3163 = vmul.f32 %v3025, 2.0
    %v3164 = vmul.f32 %v3030, 2.0
    %v3165 = vmul.f32 %v3035, 2.0
    %v3166 = vmul.f32 %v3040, 2.0
    %v3167 = vsub.f32 %v2912, %v3163
    %v3168 = vsub.f32 %v2915, %v3164
    %v3169 = vsub.f32 %v2918, %v3165
    %v3170 = vsub.f32 %v2921, %v3166
    %v3171 = vadd.f32 %v3167, %v3145
    %v3172 = vadd.f32 %v3168, %v3150
    %v3173 = vadd.f32 %v3169, %v3155
    %v3174 = vadd.f32 %v3170, %v3160
    %vm3175 = vcmask 523264
    %v3176 = vsel %vm3175, %v3171, inf
    %3177 = vmin.xlane.f32.xlu0 %v3176
    %v3178 = vpop.xlane.xlu0 %3177
    %v3179 = vsel %vm3175, %v3172, inf
    %3180 = vmin.xlane.f32.xlu0 %v3179
    %v3181 = vpop.xlane.xlu0 %3180
    %v3182 = vsel %vm3175, %v3173, inf
    %3183 = vmin.xlane.f32.xlu0 %v3182
    %v3184 = vpop.xlane.xlu0 %3183
    %v3185 = vsel %vm3175, %v3174, inf
    %3186 = vmin.xlane.f32.xlu0 %v3185
    %v3187 = vpop.xlane.xlu0 %3186
    %v3188 = vlaneseq
    %v3189 = vand.u32 %v3188, 127
    %vm3190 = vcmp.le.f32.partialorder %v3171, %v3178
    %vm3191 = vcmp.le.f32.partialorder %v3172, %v3181
    %vm3192 = vcmp.le.f32.partialorder %v3173, %v3184
    %vm3193 = vcmp.le.f32.partialorder %v3174, %v3187
    %v3194 = vsel %vm3190, %v3189, 64
    %v3195 = vsel %vm3191, %v3189, 64
    %v3196 = vsel %vm3192, %v3189, 64
    %v3197 = vsel %vm3193, %v3189, 64
    %v3198 = vsel %vm3175, %v3194, 2147483647
    %v3199 = vand.u32 %v3198, 65535
    %v3200 = vshra.s32 %v3198, 16
    %v3201 = vcvt.s32.f32 %v3199
    %v3202 = vcvt.s32.f32 %v3200
    %3203 = vmin.xlane.f32.xlu0 %v3202
    %v3204 = vpop.xlane.xlu0 %3203
    %vm3205 = vcmp.eq.f32.partialorder %v3202, %v3204
    %v3206 = vsel %vm3205, %v3201, inf
    %3207 = vmin.xlane.f32.xlu0 %v3206
    %v3208 = vpop.xlane.xlu0 %3207
    %v3209 = vcvt.f32.s32 %v3208
    %v3210 = vcvt.f32.s32 %v3204
    %v3211 = vshll.u32 %v3210, 16
    %v3212 = vadd.s32 %v3211, %v3209
    %v3213 = vsel %vm3175, %v3195, 2147483647
    %v3214 = vand.u32 %v3213, 65535
    %v3215 = vshra.s32 %v3213, 16
    %v3216 = vcvt.s32.f32 %v3214
    %v3217 = vcvt.s32.f32 %v3215
    %3218 = vmin.xlane.f32.xlu0 %v3217
    %v3219 = vpop.xlane.xlu0 %3218
    %vm3220 = vcmp.eq.f32.partialorder %v3217, %v3219
    %v3221 = vsel %vm3220, %v3216, inf
    %3222 = vmin.xlane.f32.xlu0 %v3221
    %v3223 = vpop.xlane.xlu0 %3222
    %v3224 = vcvt.f32.s32 %v3223
    %v3225 = vcvt.f32.s32 %v3219
    %v3226 = vshll.u32 %v3225, 16
    %v3227 = vadd.s32 %v3226, %v3224
    %v3228 = vsel %vm3175, %v3196, 2147483647
    %v3229 = vand.u32 %v3228, 65535
    %v3230 = vshra.s32 %v3228, 16
    %v3231 = vcvt.s32.f32 %v3229
    %v3232 = vcvt.s32.f32 %v3230
    %3233 = vmin.xlane.f32.xlu0 %v3232
    %v3234 = vpop.xlane.xlu0 %3233
    %vm3235 = vcmp.eq.f32.partialorder %v3232, %v3234
    %v3236 = vsel %vm3235, %v3231, inf
    %3237 = vmin.xlane.f32.xlu0 %v3236
    %v3238 = vpop.xlane.xlu0 %3237
    %v3239 = vcvt.f32.s32 %v3238
    %v3240 = vcvt.f32.s32 %v3234
    %v3241 = vshll.u32 %v3240, 16
    %v3242 = vadd.s32 %v3241, %v3239
    %v3243 = vsel %vm3175, %v3197, 2147483647
    %v3244 = vand.u32 %v3243, 65535
    %v3245 = vshra.s32 %v3243, 16
    %v3246 = vcvt.s32.f32 %v3244
    %v3247 = vcvt.s32.f32 %v3245
    %3248 = vmin.xlane.f32.xlu0 %v3247
    %v3249 = vpop.xlane.xlu0 %3248
    %vm3250 = vcmp.eq.f32.partialorder %v3247, %v3249
    %v3251 = vsel %vm3250, %v3246, inf
    %3252 = vmin.xlane.f32.xlu0 %v3251
    %v3253 = vpop.xlane.xlu0 %3252
    %v3254 = vcvt.f32.s32 %v3253
    %v3255 = vcvt.f32.s32 %v3249
    %v3256 = vshll.u32 %v3255, 16
    %v3257 = vadd.s32 %v3256, %v3254
    %vm3258 = vcmp.eq.s32.totalorder %v3189, %v3212
    %vm3259 = vcmp.eq.s32.totalorder %v3189, %v3227
    %vm3260 = vcmp.eq.s32.totalorder %v3189, %v3242
    %vm3261 = vcmp.eq.s32.totalorder %v3189, %v3257
    %v3262 = vsel %vm3258, 1, 0
    %v3263 = vsel %vm3259, 1, 0
    %v3264 = vsel %vm3260, 1, 0
    %v3265 = vsel %vm3261, 1, 0
    %v3266 = vcvt.s32.f32 %v3262
    %v3267 = vcvt.s32.f32 %v3263
    %v3268 = vcvt.s32.f32 %v3264
    %v3269 = vcvt.s32.f32 %v3265
    %v3271 = vsel %vm3175, %v3266, 0
    %v3274 = vsel %vm3175, %v3267, 0
    %v3277 = vsel %vm3175, %v3268, 0
    %v3280 = vsel %vm3175, %v3269, 0
    %3282 = vmatprep.subr.mxu0 0.0
    %3283 = vmatpush1.msra.mxu0 %v2898
    %3284 = vmatprep.subr.mxu0 0.0
    %3285 = vmatpush1.msra.mxu0 %v2899
    %3286 = vmatprep.subr.mxu0 0.0
    %3287 = vmatpush1.msra.mxu0 %v2900
    %3288 = vmatprep.subr.mxu0 0.0
    %3289 = vmatpush1.msra.mxu0 %v2901
    %3290 = vmatprep.subr.mxu0 0.0
    %3291 = vmatpush1.msra.mxu0 %v2902
    %3292 = vmatprep.subr.mxu0 0.0
    %3293 = vmatpush1.msra.mxu0 %v2903
    %3294 = vmatprep.subr.mxu0 0.0
    %3295 = vmatpush1.msra.mxu0 %v2904
    %3296 = vmatprep.subr.mxu0 0.0
    %3297 = vmatpush1.msra.mxu0 %v2905
    %3298 = vmatprep.subr.mxu0 0.0
    %3299 = vmatpush1.msra.mxu0 0.0
    %3300 = vmatprep.subr.mxu0 0.0
    %3301 = vmatpush1.msra.mxu0 0.0
    %3302 = vmatprep.subr.mxu0 0.0
    %3303 = vmatpush1.msra.mxu0 0.0
    %3304 = vmatprep.subr.mxu0 0.0
    %3305 = vmatpush1.msra.mxu0 0.0
    %3306 = vmatprep.subr.mxu0 0.0
    %3307 = vmatpush1.msra.mxu0 0.0
    %3308 = vmatprep.subr.mxu0 0.0
    %3309 = vmatpush1.msra.mxu0 0.0
    %3310 = vmatprep.subr.mxu0 0.0
    %3311 = vmatpush1.msra.mxu0 0.0
    %3312 = vmatprep.subr.mxu0 0.0
    %3313 = vmatpush1.msra.mxu0 0.0
    %3314 = vmatprep.subr.mxu0 0.0
    %3315 = vmatpush1.msra.mxu0 0.0
    %3316 = vmatprep.subr.mxu0 0.0
    %3317 = vmatpush1.msra.mxu0 0.0
    %3318 = vmatprep.subr.mxu0 0.0
    %3319 = vmatpush1.msra.mxu0 0.0
    %3320 = vmatprep.subr.mxu0 0.0
    %3321 = vmatpush1.msra.mxu0 0.0
    %3322 = vmatprep.subr.mxu0 0.0
    %3323 = vmatpush1.msra.mxu0 0.0
    %3324 = vmatprep.subr.mxu0 0.0
    %3325 = vmatpush1.msra.mxu0 0.0
    %3326 = vmatprep.subr.mxu0 0.0
    %3327 = vmatpush1.msra.mxu0 0.0
    %3328 = vmatprep.subr.mxu0 0.0
    %3329 = vmatpush1.msra.mxu0 0.0
    %3330 = vmatprep.subr.mxu0 0.0
    %3331 = vmatpush1.msra.mxu0 0.0
    %3332 = vmatprep.subr.mxu0 0.0
    %3333 = vmatpush1.msra.mxu0 0.0
    %3334 = vmatprep.subr.mxu0 0.0
    %3335 = vmatpush1.msra.mxu0 0.0
    %3336 = vmatprep.subr.mxu0 0.0
    %3337 = vmatpush1.msra.mxu0 0.0
    %3338 = vmatprep.subr.mxu0 0.0
    %3339 = vmatpush1.msra.mxu0 0.0
    %3340 = vmatprep.subr.mxu0 0.0
    %3341 = vmatpush1.msra.mxu0 0.0
    %3342 = vmatprep.subr.mxu0 0.0
    %3343 = vmatpush1.msra.mxu0 0.0
    %3344 = vmatprep.subr.mxu0 0.0
    %3345 = vmatpush1.msra.mxu0 0.0
    %3346 = vmatprep.mubr.f32.mxu0 0.0
    %3347 = vmatmul.mubr.f32.gmra.mrb[0].mxu0 %v3271
    %v3348 = vpop.f32.mrb[0].mxu0
    %v3349 = vadd.f32 0.0, %v3348
    %v3350 = vpop.f32.mrb[0].mxu0
    %3351 = vmatprep.mubr.f32.mxu0 0.0
    %3352 = vmatmul.mubr.f32.gmra.mrb[0].mxu0 %v3274
    %v3353 = vpop.f32.mrb[0].mxu0
    %v3354 = vadd.f32 0.0, %v3353
    %v3355 = vpop.f32.mrb[0].mxu0
    %3356 = vmatprep.mubr.f32.mxu0 0.0
    %3357 = vmatmul.mubr.f32.gmra.mrb[0].mxu0 %v3277
    %v3358 = vpop.f32.mrb[0].mxu0
    %v3359 = vadd.f32 0.0, %v3358
    %v3360 = vpop.f32.mrb[0].mxu0
    %3361 = vmatprep.mubr.f32.mxu0 0.0
    %3362 = vmatmul.mubr.f32.gmra.mrb[0].mxu0 %v3280
    %v3363 = vpop.f32.mrb[0].mxu0
    %v3364 = vadd.f32 0.0, %v3363
    %v3365 = vpop.f32.mrb[0].mxu0
    %3366 = vdwg.mxu0
    %v3367 = vsub.f32 %v3349, %v2880
    %v3368 = vsub.f32 %v3354, %v2885
    %v3369 = vsub.f32 %v3359, %v2890
    %v3370 = vsub.f32 %v3364, %v2895
    %v3371 = vmul.f32 %v3367, %v3367
    %v3372 = vmul.f32 %v3368, %v3368
    %v3373 = vmul.f32 %v3369, %v3369
    %v3374 = vmul.f32 %v3370, %v3370
    %v3375 = vsel %vm2094, %v3371, 0.0
    %3376 = vadd.xlane.f32.xlu0 %v3375
    %v3377 = vpop.xlane.xlu0 %3376
    %v3378 = vsel %vm2094, %v3372, 0.0
    %3379 = vadd.xlane.f32.xlu0 %v3378
    %v3380 = vpop.xlane.xlu0 %3379
    %v3381 = vsel %vm2094, %v3373, 0.0
    %3382 = vadd.xlane.f32.xlu0 %v3381
    %v3383 = vpop.xlane.xlu0 %3382
    %v3384 = vsel %vm2094, %v3374, 0.0
    %3385 = vadd.xlane.f32.xlu0 %v3384
    %v3386 = vpop.xlane.xlu0 %3385
    %v3387 = vadd.f32 %v3377, %v3380
    %v3388 = vadd.f32 %v3387, %v3383
    %v3389 = vadd.f32 %v3388, %v3386
    %v3390 = vrot.slane %v3389, 4
    %v3391 = vadd.f32 %v3389, %v3390
    %v3392 = vrot.slane %v3391, 2
    %v3393 = vadd.f32 %v3391, %v3392
    %v3394 = vrot.slane %v3393, 1
    %v3395 = vadd.f32 %v3393, %v3394
    %v3396 = vrcp.pop 512.0
    %v3397 = vmul.f32 %v3395, %v3396
    %v3398 = vmul.f32 %v3397, 1.25
    %vm3399 = vcmask 0
    %3400 = vst.msk [vmem:[#allocation2] sm:$0x1] %vm3399, %v3398
    %v3401 = vsel %vm3175, %v3266, 0.0
    %v3402 = vsel %vm3175, %v3267, 0.0
    %v3403 = vadd.f32 %v3401, %v3402
    %v3404 = vsel %vm3175, %v3268, 0.0
    %v3405 = vadd.f32 %v3403, %v3404
    %v3406 = vsel %vm3175, %v3269, 0.0
    %v3407 = vadd.f32 %v3405, %v3406
    %v3408 = vrot.slane %v3407, 4
    %v3409 = vadd.f32 %v3407, %v3408
    %v3410 = vrot.slane %v3409, 2
    %v3411 = vadd.f32 %v3409, %v3410
    %v3412 = vrot.slane %v3411, 1
    %v3413 = vadd.f32 %v3411, %v3412
    %v3414 = vrcp.pop 32.0
    %v3415 = vmul.f32 %v3413, %v3414
    %v3416 = vadd.f32 %v3415, 1e-10
    %v3417 = vlog2.pop %v3416
    %v3418 = vmul.f32 %v3417, 0.6931472
    %v3419 = vmul.f32 %v3415, %v3418
    %v3420 = vsel %vm3175, %v3419, 0.0
    %3421 = vadd.xlane.f32.xlu0 %v3420
    %v3422 = vpop.xlane.xlu0 %3421
    %v3423 = vsub.f32 0.0, %v3422
    %v3424 = vmul.f32 %v3423, 1.442695
    %v3425 = vpow.pop %v3424
    %3426 = vst.msk [vmem:[#allocation4] sm:$0x1] %vm3399, %v3425
    %3427 = vmatprep.subr.mxu0 0.0
    %3428 = vmatpush1.msra.mxu0 %v3349
    %3429 = vmatprep.subr.mxu0 0.0
    %3430 = vmatpush1.msra.mxu0 %v3354
    %3431 = vmatprep.subr.mxu0 0.0
    %3432 = vmatpush1.msra.mxu0 %v3359
    %3433 = vmatprep.subr.mxu0 0.0
    %3434 = vmatpush1.msra.mxu0 %v3364
    %3435 = vmatprep.subr.mxu0 0.0
    %3436 = vmatpush1.msra.mxu0 0.0
    %3437 = vmatprep.subr.mxu0 0.0
    %3438 = vmatpush1.msra.mxu0 0.0
    %3439 = vmatprep.subr.mxu0 0.0
    %3440 = vmatpush1.msra.mxu0 0.0
    %3441 = vmatprep.subr.mxu0 0.0
    %3442 = vmatpush1.msra.mxu0 0.0
    %3443 = vmatprep.subr.mxu0 0.0
    %3444 = vmatpush1.msra.mxu0 0.0
    %3445 = vmatprep.subr.mxu0 0.0
    %3446 = vmatpush1.msra.mxu0 0.0
    %3447 = vmatprep.subr.mxu0 0.0
    %3448 = vmatpush1.msra.mxu0 0.0
    %3449 = vmatprep.subr.mxu0 0.0
    %3450 = vmatpush1.msra.mxu0 0.0
    %3451 = vmatprep.subr.mxu0 0.0
    %3452 = vmatpush1.msra.mxu0 0.0
    %3453 = vmatprep.subr.mxu0 0.0
    %3454 = vmatpush1.msra.mxu0 0.0
    %3455 = vmatprep.subr.mxu0 0.0
    %3456 = vmatpush1.msra.mxu0 0.0
    %3457 = vmatprep.subr.mxu0 0.0
    %3458 = vmatpush1.msra.mxu0 0.0
    %3459 = vmatprep.subr.mxu0 0.0
    %3460 = vmatpush1.msra.mxu0 0.0
    %3461 = vmatprep.subr.mxu0 0.0
    %3462 = vmatpush1.msra.mxu0 0.0
    %3463 = vmatprep.subr.mxu0 0.0
    %3464 = vmatpush1.msra.mxu0 0.0
    %3465 = vmatprep.subr.mxu0 0.0
    %3466 = vmatpush1.msra.mxu0 0.0
    %3467 = vmatprep.subr.mxu0 0.0
    %3468 = vmatpush1.msra.mxu0 0.0
    %3469 = vmatprep.subr.mxu0 0.0
    %3470 = vmatpush1.msra.mxu0 0.0
    %3471 = vmatprep.subr.mxu0 0.0
    %3472 = vmatpush1.msra.mxu0 0.0
    %3473 = vmatprep.subr.mxu0 0.0
    %3474 = vmatpush1.msra.mxu0 0.0
    %3475 = vmatprep.subr.mxu0 0.0
    %3476 = vmatpush1.msra.mxu0 0.0
    %3477 = vmatprep.subr.mxu0 0.0
    %3478 = vmatpush1.msra.mxu0 0.0
    %3479 = vmatprep.subr.mxu0 0.0
    %3480 = vmatpush1.msra.mxu0 0.0
    %3481 = vmatprep.subr.mxu0 0.0
    %3482 = vmatpush1.msra.mxu0 0.0
    %3483 = vmatprep.subr.mxu0 0.0
    %3484 = vmatpush1.msra.mxu0 0.0
    %3485 = vmatprep.subr.mxu0 0.0
    %3486 = vmatpush1.msra.mxu0 0.0
    %3487 = vmatprep.subr.mxu0 0.0
    %3488 = vmatpush1.msra.mxu0 0.0
    %3489 = vmatprep.subr.mxu0 0.0
    %3490 = vmatpush1.msra.mxu0 0.0
    %3491 = vmatprep.mubr.f32.mxu0 0.0
    %3492 = vmatmul.mubr.f32.gmra.mrb[0].mxu0 %v102
    %v3493 = vpop.f32.mrb[0].mxu0
    %v3494 = vadd.f32 0.0, %v3493
    %v3495 = vpop.f32.mrb[0].mxu0
    %3496 = vmatprep.mubr.f32.mxu0 0.0
    %3497 = vmatmul.mubr.f32.gmra.mrb[0].mxu0 %v105
    %v3498 = vpop.f32.mrb[0].mxu0
    %v3499 = vadd.f32 0.0, %v3498
    %v3500 = vpop.f32.mrb[0].mxu0
    %3501 = vmatprep.mubr.f32.mxu0 0.0
    %3502 = vmatmul.mubr.f32.gmra.mrb[0].mxu0 %v108
    %v3503 = vpop.f32.mrb[0].mxu0
    %v3504 = vadd.f32 0.0, %v3503
    %v3505 = vpop.f32.mrb[0].mxu0
    %3506 = vmatprep.mubr.f32.mxu0 0.0
    %3507 = vmatmul.mubr.f32.gmra.mrb[0].mxu0 %v111
    %v3508 = vpop.f32.mrb[0].mxu0
    %v3509 = vadd.f32 0.0, %v3508
    %v3510 = vpop.f32.mrb[0].mxu0
    %3511 = vdwg.mxu0
    %3512 = vmatprep.subr.mxu0 0.0
    %3513 = vmatpush1.msra.mxu0 %v3349
    %3514 = vmatprep.subr.mxu0 0.0
    %3515 = vmatpush1.msra.mxu0 %v3354
    %3516 = vmatprep.subr.mxu0 0.0
    %3517 = vmatpush1.msra.mxu0 %v3359
    %3518 = vmatprep.subr.mxu0 0.0
    %3519 = vmatpush1.msra.mxu0 %v3364
    %3520 = vmatprep.subr.mxu0 0.0
    %3521 = vmatpush1.msra.mxu0 0.0
    %3522 = vmatprep.subr.mxu0 0.0
    %3523 = vmatpush1.msra.mxu0 0.0
    %3524 = vmatprep.subr.mxu0 0.0
    %3525 = vmatpush1.msra.mxu0 0.0
    %3526 = vmatprep.subr.mxu0 0.0
    %3527 = vmatpush1.msra.mxu0 0.0
    %3528 = vmatprep.subr.mxu0 0.0
    %3529 = vmatpush1.msra.mxu0 0.0
    %3530 = vmatprep.subr.mxu0 0.0
    %3531 = vmatpush1.msra.mxu0 0.0
    %3532 = vmatprep.subr.mxu0 0.0
    %3533 = vmatpush1.msra.mxu0 0.0
    %3534 = vmatprep.subr.mxu0 0.0
    %3535 = vmatpush1.msra.mxu0 0.0
    %3536 = vmatprep.subr.mxu0 0.0
    %3537 = vmatpush1.msra.mxu0 0.0
    %3538 = vmatprep.subr.mxu0 0.0
    %3539 = vmatpush1.msra.mxu0 0.0
    %3540 = vmatprep.subr.mxu0 0.0
    %3541 = vmatpush1.msra.mxu0 0.0
    %3542 = vmatprep.subr.mxu0 0.0
    %3543 = vmatpush1.msra.mxu0 0.0
    %3544 = vmatprep.subr.mxu0 0.0
    %3545 = vmatpush1.msra.mxu0 0.0
    %3546 = vmatprep.subr.mxu0 0.0
    %3547 = vmatpush1.msra.mxu0 0.0
    %3548 = vmatprep.subr.mxu0 0.0
    %3549 = vmatpush1.msra.mxu0 0.0
    %3550 = vmatprep.subr.mxu0 0.0
    %3551 = vmatpush1.msra.mxu0 0.0
    %3552 = vmatprep.subr.mxu0 0.0
    %3553 = vmatpush1.msra.mxu0 0.0
    %3554 = vmatprep.subr.mxu0 0.0
    %3555 = vmatpush1.msra.mxu0 0.0
    %3556 = vmatprep.subr.mxu0 0.0
    %3557 = vmatpush1.msra.mxu0 0.0
    %3558 = vmatprep.subr.mxu0 0.0
    %3559 = vmatpush1.msra.mxu0 0.0
    %3560 = vmatprep.subr.mxu0 0.0
    %3561 = vmatpush1.msra.mxu0 0.0
    %3562 = vmatprep.subr.mxu0 0.0
    %3563 = vmatpush1.msra.mxu0 0.0
    %3564 = vmatprep.subr.mxu0 0.0
    %3565 = vmatpush1.msra.mxu0 0.0
    %3566 = vmatprep.subr.mxu0 0.0
    %3567 = vmatpush1.msra.mxu0 0.0
    %3568 = vmatprep.subr.mxu0 0.0
    %3569 = vmatpush1.msra.mxu0 0.0
    %3570 = vmatprep.subr.mxu0 0.0
    %3571 = vmatpush1.msra.mxu0 0.0
    %3572 = vmatprep.subr.mxu0 0.0
    %3573 = vmatpush1.msra.mxu0 0.0
    %3574 = vmatprep.subr.mxu0 0.0
    %3575 = vmatpush1.msra.mxu0 0.0
    %3576 = vmatprep.mubr.f32.mxu0 0.0
    %3577 = vmatmul.mubr.f32.gmra.mrb[0].mxu0 %v199
    %v3578 = vpop.f32.mrb[0].mxu0
    %v3579 = vadd.f32 0.0, %v3578
    %v3580 = vpop.f32.mrb[0].mxu0
    %3581 = vmatprep.mubr.f32.mxu0 0.0
    %3582 = vmatmul.mubr.f32.gmra.mrb[0].mxu0 %v202
    %v3583 = vpop.f32.mrb[0].mxu0
    %v3584 = vadd.f32 0.0, %v3583
    %v3585 = vpop.f32.mrb[0].mxu0
    %3586 = vmatprep.mubr.f32.mxu0 0.0
    %3587 = vmatmul.mubr.f32.gmra.mrb[0].mxu0 %v205
    %v3588 = vpop.f32.mrb[0].mxu0
    %v3589 = vadd.f32 0.0, %v3588
    %v3590 = vpop.f32.mrb[0].mxu0
    %3591 = vmatprep.mubr.f32.mxu0 0.0
    %3592 = vmatmul.mubr.f32.gmra.mrb[0].mxu0 %v208
    %v3593 = vpop.f32.mrb[0].mxu0
    %v3594 = vadd.f32 0.0, %v3593
    %v3595 = vpop.f32.mrb[0].mxu0
    %3596 = vdwg.mxu0
    %v3597 = vld [vmem:[%s16] sm:$0xff]
    %v3598 = vld [vmem:[%s16 + $0x8] sm:$0xff]
    %s3599 = scalar_lea.vmem %s16, 16
    %v3600 = vld [vmem:[%s3599] sm:$0xff]
    %v3601 = vld [vmem:[%s3599 + $0x8] sm:$0xff]
    %v3603 = vsel %vm2094, %v3349, 0
    %v3606 = vsel %vm2094, %v3354, 0
    %v3609 = vsel %vm2094, %v3359, 0
    %v3612 = vsel %vm2094, %v3364, 0
    %3614 = vmatprep.subr.mxu0 0.0
    %3615 = vmatpush1.msra.mxu0 %v3600
    %3616 = vmatprep.subr.mxu0 0.0
    %3617 = vmatpush1.msra.mxu0 %v3601
    %3618 = vmatprep.subr.mxu0 0.0
    %3619 = vmatpush1.msra.mxu0 0.0
    %3620 = vmatprep.subr.mxu0 0.0
    %3621 = vmatpush1.msra.mxu0 0.0
    %3622 = vmatprep.subr.mxu0 0.0
    %3623 = vmatpush1.msra.mxu0 0.0
    %3624 = vmatprep.subr.mxu0 0.0
    %3625 = vmatpush1.msra.mxu0 0.0
    %3626 = vmatprep.subr.mxu0 0.0
    %3627 = vmatpush1.msra.mxu0 0.0
    %3628 = vmatprep.subr.mxu0 0.0
    %3629 = vmatpush1.msra.mxu0 0.0
    %3630 = vmatprep.subr.mxu0 0.0
    %3631 = vmatpush1.msra.mxu0 0.0
    %3632 = vmatprep.subr.mxu0 0.0
    %3633 = vmatpush1.msra.mxu0 0.0
    %3634 = vmatprep.subr.mxu0 0.0
    %3635 = vmatpush1.msra.mxu0 0.0
    %3636 = vmatprep.subr.mxu0 0.0
    %3637 = vmatpush1.msra.mxu0 0.0
    %3638 = vmatprep.subr.mxu0 0.0
    %3639 = vmatpush1.msra.mxu0 0.0
    %3640 = vmatprep.subr.mxu0 0.0
    %3641 = vmatpush1.msra.mxu0 0.0
    %3642 = vmatprep.subr.mxu0 0.0
    %3643 = vmatpush1.msra.mxu0 0.0
    %3644 = vmatprep.subr.mxu0 0.0
    %3645 = vmatpush1.msra.mxu0 0.0
    %3646 = vmatprep.subr.mxu0 0.0
    %3647 = vmatpush1.msra.mxu0 0.0
    %3648 = vmatprep.subr.mxu0 0.0
    %3649 = vmatpush1.msra.mxu0 0.0
    %3650 = vmatprep.subr.mxu0 0.0
    %3651 = vmatpush1.msra.mxu0 0.0
    %3652 = vmatprep.subr.mxu0 0.0
    %3653 = vmatpush1.msra.mxu0 0.0
    %3654 = vmatprep.subr.mxu0 0.0
    %3655 = vmatpush1.msra.mxu0 0.0
    %3656 = vmatprep.subr.mxu0 0.0
    %3657 = vmatpush1.msra.mxu0 0.0
    %3658 = vmatprep.subr.mxu0 0.0
    %3659 = vmatpush1.msra.mxu0 0.0
    %3660 = vmatprep.subr.mxu0 0.0
    %3661 = vmatpush1.msra.mxu0 0.0
    %3662 = vmatprep.subr.mxu0 0.0
    %3663 = vmatpush1.msra.mxu0 0.0
    %3664 = vmatprep.subr.mxu0 0.0
    %3665 = vmatpush1.msra.mxu0 0.0
    %3666 = vmatprep.subr.mxu0 0.0
    %3667 = vmatpush1.msra.mxu0 0.0
    %3668 = vmatprep.subr.mxu0 0.0
    %3669 = vmatpush1.msra.mxu0 0.0
    %3670 = vmatprep.subr.mxu0 0.0
    %3671 = vmatpush1.msra.mxu0 0.0
    %3672 = vmatprep.subr.mxu0 0.0
    %3673 = vmatpush1.msra.mxu0 0.0
    %3674 = vmatprep.subr.mxu0 0.0
    %3675 = vmatpush1.msra.mxu0 0.0
    %3676 = vmatprep.subr.mxu0 0.0
    %3677 = vmatpush1.msra.mxu0 0.0
    %3678 = vmatprep.mubr.f32.mxu0 0.0
    %3679 = vmatmul.mubr.f32.gmra.mrb[0].mxu0 %v3603
    %v3680 = vpop.f32.mrb[0].mxu0
    %v3681 = vadd.f32 0.0, %v3680
    %v3682 = vpop.f32.mrb[0].mxu0
    %3683 = vmatprep.mubr.f32.mxu0 0.0
    %3684 = vmatmul.mubr.f32.gmra.mrb[0].mxu0 %v3606
    %v3685 = vpop.f32.mrb[0].mxu0
    %v3686 = vadd.f32 0.0, %v3685
    %v3687 = vpop.f32.mrb[0].mxu0
    %3688 = vmatprep.mubr.f32.mxu0 0.0
    %3689 = vmatmul.mubr.f32.gmra.mrb[0].mxu0 %v3609
    %v3690 = vpop.f32.mrb[0].mxu0
    %v3691 = vadd.f32 0.0, %v3690
    %v3692 = vpop.f32.mrb[0].mxu0
    %3693 = vmatprep.mubr.f32.mxu0 0.0
    %3694 = vmatmul.mubr.f32.gmra.mrb[0].mxu0 %v3612
    %v3695 = vpop.f32.mrb[0].mxu0
    %v3696 = vadd.f32 0.0, %v3695
    %v3697 = vpop.f32.mrb[0].mxu0
    %3698 = vdwg.mxu0
    %v3700 = vsel %vm2094, %v3494, 0
    %v3703 = vsel %vm2094, %v3499, 0
    %v3706 = vsel %vm2094, %v3504, 0
    %v3709 = vsel %vm2094, %v3509, 0
    %3711 = vmatprep.subr.mxu0 0.0
    %3712 = vmatpush1.msra.mxu0 %v3597
    %3713 = vmatprep.subr.mxu0 0.0
    %3714 = vmatpush1.msra.mxu0 %v3598
    %3715 = vmatprep.subr.mxu0 0.0
    %3716 = vmatpush1.msra.mxu0 0.0
    %3717 = vmatprep.subr.mxu0 0.0
    %3718 = vmatpush1.msra.mxu0 0.0
    %3719 = vmatprep.subr.mxu0 0.0
    %3720 = vmatpush1.msra.mxu0 0.0
    %3721 = vmatprep.subr.mxu0 0.0
    %3722 = vmatpush1.msra.mxu0 0.0
    %3723 = vmatprep.subr.mxu0 0.0
    %3724 = vmatpush1.msra.mxu0 0.0
    %3725 = vmatprep.subr.mxu0 0.0
    %3726 = vmatpush1.msra.mxu0 0.0
    %3727 = vmatprep.subr.mxu0 0.0
    %3728 = vmatpush1.msra.mxu0 0.0
    %3729 = vmatprep.subr.mxu0 0.0
    %3730 = vmatpush1.msra.mxu0 0.0
    %3731 = vmatprep.subr.mxu0 0.0
    %3732 = vmatpush1.msra.mxu0 0.0
    %3733 = vmatprep.subr.mxu0 0.0
    %3734 = vmatpush1.msra.mxu0 0.0
    %3735 = vmatprep.subr.mxu0 0.0
    %3736 = vmatpush1.msra.mxu0 0.0
    %3737 = vmatprep.subr.mxu0 0.0
    %3738 = vmatpush1.msra.mxu0 0.0
    %3739 = vmatprep.subr.mxu0 0.0
    %3740 = vmatpush1.msra.mxu0 0.0
    %3741 = vmatprep.subr.mxu0 0.0
    %3742 = vmatpush1.msra.mxu0 0.0
    %3743 = vmatprep.subr.mxu0 0.0
    %3744 = vmatpush1.msra.mxu0 0.0
    %3745 = vmatprep.subr.mxu0 0.0
    %3746 = vmatpush1.msra.mxu0 0.0
    %3747 = vmatprep.subr.mxu0 0.0
    %3748 = vmatpush1.msra.mxu0 0.0
    %3749 = vmatprep.subr.mxu0 0.0
    %3750 = vmatpush1.msra.mxu0 0.0
    %3751 = vmatprep.subr.mxu0 0.0
    %3752 = vmatpush1.msra.mxu0 0.0
    %3753 = vmatprep.subr.mxu0 0.0
    %3754 = vmatpush1.msra.mxu0 0.0
    %3755 = vmatprep.subr.mxu0 0.0
    %3756 = vmatpush1.msra.mxu0 0.0
    %3757 = vmatprep.subr.mxu0 0.0
    %3758 = vmatpush1.msra.mxu0 0.0
    %3759 = vmatprep.subr.mxu0 0.0
    %3760 = vmatpush1.msra.mxu0 0.0
    %3761 = vmatprep.subr.mxu0 0.0
    %3762 = vmatpush1.msra.mxu0 0.0
    %3763 = vmatprep.subr.mxu0 0.0
    %3764 = vmatpush1.msra.mxu0 0.0
    %3765 = vmatprep.subr.mxu0 0.0
    %3766 = vmatpush1.msra.mxu0 0.0
    %3767 = vmatprep.subr.mxu0 0.0
    %3768 = vmatpush1.msra.mxu0 0.0
    %3769 = vmatprep.subr.mxu0 0.0
    %3770 = vmatpush1.msra.mxu0 0.0
    %3771 = vmatprep.subr.mxu0 0.0
    %3772 = vmatpush1.msra.mxu0 0.0
    %3773 = vmatprep.subr.mxu0 0.0
    %3774 = vmatpush1.msra.mxu0 0.0
    %3775 = vmatprep.mubr.f32.mxu0 0.0
    %3776 = vmatmul.mubr.f32.gmra.mrb[0].mxu0 %v3700
    %v3777 = vpop.f32.mrb[0].mxu0
    %v3778 = vadd.f32 %v3681, %v3777
    %v3779 = vpop.f32.mrb[0].mxu0
    %3780 = vmatprep.mubr.f32.mxu0 0.0
    %3781 = vmatmul.mubr.f32.gmra.mrb[0].mxu0 %v3703
    %v3782 = vpop.f32.mrb[0].mxu0
    %v3783 = vadd.f32 %v3686, %v3782
    %v3784 = vpop.f32.mrb[0].mxu0
    %3785 = vmatprep.mubr.f32.mxu0 0.0
    %3786 = vmatmul.mubr.f32.gmra.mrb[0].mxu0 %v3706
    %v3787 = vpop.f32.mrb[0].mxu0
    %v3788 = vadd.f32 %v3691, %v3787
    %v3789 = vpop.f32.mrb[0].mxu0
    %3790 = vmatprep.mubr.f32.mxu0 0.0
    %3791 = vmatmul.mubr.f32.gmra.mrb[0].mxu0 %v3709
    %v3792 = vpop.f32.mrb[0].mxu0
    %v3793 = vadd.f32 %v3696, %v3792
    %v3794 = vpop.f32.mrb[0].mxu0
    %3795 = vdwg.mxu0
    %s3796 = scalar_lea.vmem %s16, 32
    %v3797 = vld [vmem:[%s3796] sm:$0xff]
    %v3798 = vld [vmem:[%s3796 + $0x8] sm:$0xff]
    %v3800 = vsel %vm2094, %v3579, 0
    %v3803 = vsel %vm2094, %v3584, 0
    %v3806 = vsel %vm2094, %v3589, 0
    %v3809 = vsel %vm2094, %v3594, 0
    %3811 = vmatprep.subr.mxu0 0.0
    %3812 = vmatpush1.msra.mxu0 %v3797
    %3813 = vmatprep.subr.mxu0 0.0
    %3814 = vmatpush1.msra.mxu0 %v3798
    %3815 = vmatprep.subr.mxu0 0.0
    %3816 = vmatpush1.msra.mxu0 0.0
    %3817 = vmatprep.subr.mxu0 0.0
    %3818 = vmatpush1.msra.mxu0 0.0
    %3819 = vmatprep.subr.mxu0 0.0
    %3820 = vmatpush1.msra.mxu0 0.0
    %3821 = vmatprep.subr.mxu0 0.0
    %3822 = vmatpush1.msra.mxu0 0.0
    %3823 = vmatprep.subr.mxu0 0.0
    %3824 = vmatpush1.msra.mxu0 0.0
    %3825 = vmatprep.subr.mxu0 0.0
    %3826 = vmatpush1.msra.mxu0 0.0
    %3827 = vmatprep.subr.mxu0 0.0
    %3828 = vmatpush1.msra.mxu0 0.0
    %3829 = vmatprep.subr.mxu0 0.0
    %3830 = vmatpush1.msra.mxu0 0.0
    %3831 = vmatprep.subr.mxu0 0.0
    %3832 = vmatpush1.msra.mxu0 0.0
    %3833 = vmatprep.subr.mxu0 0.0
    %3834 = vmatpush1.msra.mxu0 0.0
    %3835 = vmatprep.subr.mxu0 0.0
    %3836 = vmatpush1.msra.mxu0 0.0
    %3837 = vmatprep.subr.mxu0 0.0
    %3838 = vmatpush1.msra.mxu0 0.0
    %3839 = vmatprep.subr.mxu0 0.0
    %3840 = vmatpush1.msra.mxu0 0.0
    %3841 = vmatprep.subr.mxu0 0.0
    %3842 = vmatpush1.msra.mxu0 0.0
    %3843 = vmatprep.subr.mxu0 0.0
    %3844 = vmatpush1.msra.mxu0 0.0
    %3845 = vmatprep.subr.mxu0 0.0
    %3846 = vmatpush1.msra.mxu0 0.0
    %3847 = vmatprep.subr.mxu0 0.0
    %3848 = vmatpush1.msra.mxu0 0.0
    %3849 = vmatprep.subr.mxu0 0.0
    %3850 = vmatpush1.msra.mxu0 0.0
    %3851 = vmatprep.subr.mxu0 0.0
    %3852 = vmatpush1.msra.mxu0 0.0
    %3853 = vmatprep.subr.mxu0 0.0
    %3854 = vmatpush1.msra.mxu0 0.0
    %3855 = vmatprep.subr.mxu0 0.0
    %3856 = vmatpush1.msra.mxu0 0.0
    %3857 = vmatprep.subr.mxu0 0.0
    %3858 = vmatpush1.msra.mxu0 0.0
    %3859 = vmatprep.subr.mxu0 0.0
    %3860 = vmatpush1.msra.mxu0 0.0
    %3861 = vmatprep.subr.mxu0 0.0
    %3862 = vmatpush1.msra.mxu0 0.0
    %3863 = vmatprep.subr.mxu0 0.0
    %3864 = vmatpush1.msra.mxu0 0.0
    %3865 = vmatprep.subr.mxu0 0.0
    %3866 = vmatpush1.msra.mxu0 0.0
    %3867 = vmatprep.subr.mxu0 0.0
    %3868 = vmatpush1.msra.mxu0 0.0
    %3869 = vmatprep.subr.mxu0 0.0
    %3870 = vmatpush1.msra.mxu0 0.0
    %3871 = vmatprep.subr.mxu0 0.0
    %3872 = vmatpush1.msra.mxu0 0.0
    %3873 = vmatprep.subr.mxu0 0.0
    %3874 = vmatpush1.msra.mxu0 0.0
    %3875 = vmatprep.mubr.f32.mxu0 0.0
    %3876 = vmatmul.mubr.f32.gmra.mrb[0].mxu0 %v3800
    %v3877 = vpop.f32.mrb[0].mxu0
    %v3878 = vadd.f32 0.0, %v3877
    %v3879 = vpop.f32.mrb[0].mxu0
    %3880 = vmatprep.mubr.f32.mxu0 0.0
    %3881 = vmatmul.mubr.f32.gmra.mrb[0].mxu0 %v3803
    %v3882 = vpop.f32.mrb[0].mxu0
    %v3883 = vadd.f32 0.0, %v3882
    %v3884 = vpop.f32.mrb[0].mxu0
    %3885 = vmatprep.mubr.f32.mxu0 0.0
    %3886 = vmatmul.mubr.f32.gmra.mrb[0].mxu0 %v3806
    %v3887 = vpop.f32.mrb[0].mxu0
    %v3888 = vadd.f32 0.0, %v3887
    %v3889 = vpop.f32.mrb[0].mxu0
    %3890 = vmatprep.mubr.f32.mxu0 0.0
    %3891 = vmatmul.mubr.f32.gmra.mrb[0].mxu0 %v3809
    %v3892 = vpop.f32.mrb[0].mxu0
    %v3893 = vadd.f32 0.0, %v3892
    %v3894 = vpop.f32.mrb[0].mxu0
    %3895 = vdwg.mxu0
    %v3896 = vadd.f32 %v3778, %v3878
    %v3897 = vadd.f32 %v3783, %v3883
    %v3898 = vadd.f32 %v3788, %v3888
    %v3899 = vadd.f32 %v3793, %v3893
    %v3900 = vld [vmem:[%s17] sm:$0x1]
    %v3902 = vlaneseq
    %v3903 = vshrl.u32 %v3902, 7
    %v3904 = vsub.s32 0, %v3903
    %v3905 = vrot.slane %v3900, %v3904
    %v3907 = vadd.f32 %v3896, %v3905
    %v3908 = vadd.f32 %v3897, %v3905
    %v3909 = vadd.f32 %v3898, %v3905
    %v3910 = vadd.f32 %v3899, %v3905
    %v3911 = vmax.f32 %v3907, 0.0
    %v3912 = vmax.f32 %v3908, 0.0
    %v3913 = vmax.f32 %v3909, 0.0
    %v3914 = vmax.f32 %v3910, 0.0
    %3915 = vmatprep.subr.mxu0 0.0
    %3916 = vmatpush1.msra.mxu0 %v3911
    %3917 = vmatprep.subr.mxu0 0.0
    %3918 = vmatpush1.msra.mxu0 %v3912
    %3919 = vmatprep.subr.mxu0 0.0
    %3920 = vmatpush1.msra.mxu0 %v3913
    %3921 = vmatprep.subr.mxu0 0.0
    %3922 = vmatpush1.msra.mxu0 %v3914
    %3923 = vmatprep.subr.mxu0 0.0
    %3924 = vmatpush1.msra.mxu0 0.0
    %3925 = vmatprep.subr.mxu0 0.0
    %3926 = vmatpush1.msra.mxu0 0.0
    %3927 = vmatprep.subr.mxu0 0.0
    %3928 = vmatpush1.msra.mxu0 0.0
    %3929 = vmatprep.subr.mxu0 0.0
    %3930 = vmatpush1.msra.mxu0 0.0
    %3931 = vmatprep.subr.mxu0 0.0
    %3932 = vmatpush1.msra.mxu0 0.0
    %3933 = vmatprep.subr.mxu0 0.0
    %3934 = vmatpush1.msra.mxu0 0.0
    %3935 = vmatprep.subr.mxu0 0.0
    %3936 = vmatpush1.msra.mxu0 0.0
    %3937 = vmatprep.subr.mxu0 0.0
    %3938 = vmatpush1.msra.mxu0 0.0
    %3939 = vmatprep.subr.mxu0 0.0
    %3940 = vmatpush1.msra.mxu0 0.0
    %3941 = vmatprep.subr.mxu0 0.0
    %3942 = vmatpush1.msra.mxu0 0.0
    %3943 = vmatprep.subr.mxu0 0.0
    %3944 = vmatpush1.msra.mxu0 0.0
    %3945 = vmatprep.subr.mxu0 0.0
    %3946 = vmatpush1.msra.mxu0 0.0
    %3947 = vmatprep.subr.mxu0 0.0
    %3948 = vmatpush1.msra.mxu0 0.0
    %3949 = vmatprep.subr.mxu0 0.0
    %3950 = vmatpush1.msra.mxu0 0.0
    %3951 = vmatprep.subr.mxu0 0.0
    %3952 = vmatpush1.msra.mxu0 0.0
    %3953 = vmatprep.subr.mxu0 0.0
    %3954 = vmatpush1.msra.mxu0 0.0
    %3955 = vmatprep.subr.mxu0 0.0
    %3956 = vmatpush1.msra.mxu0 0.0
    %3957 = vmatprep.subr.mxu0 0.0
    %3958 = vmatpush1.msra.mxu0 0.0
    %3959 = vmatprep.subr.mxu0 0.0
    %3960 = vmatpush1.msra.mxu0 0.0
    %3961 = vmatprep.subr.mxu0 0.0
    %3962 = vmatpush1.msra.mxu0 0.0
    %3963 = vmatprep.subr.mxu0 0.0
    %3964 = vmatpush1.msra.mxu0 0.0
    %3965 = vmatprep.subr.mxu0 0.0
    %3966 = vmatpush1.msra.mxu0 0.0
    %3967 = vmatprep.subr.mxu0 0.0
    %3968 = vmatpush1.msra.mxu0 0.0
    %3969 = vmatprep.subr.mxu0 0.0
    %3970 = vmatpush1.msra.mxu0 0.0
    %3971 = vmatprep.subr.mxu0 0.0
    %3972 = vmatpush1.msra.mxu0 0.0
    %3973 = vmatprep.subr.mxu0 0.0
    %3974 = vmatpush1.msra.mxu0 0.0
    %3975 = vmatprep.subr.mxu0 0.0
    %3976 = vmatpush1.msra.mxu0 0.0
    %3977 = vmatprep.subr.mxu0 0.0
    %3978 = vmatpush1.msra.mxu0 0.0
    %3979 = vmatprep.mubr.f32.mxu0 0.0
    %3980 = vmatmul.mubr.f32.gmra.mrb[0].mxu0 %v102
    %v3981 = vpop.f32.mrb[0].mxu0
    %v3982 = vadd.f32 0.0, %v3981
    %v3983 = vpop.f32.mrb[0].mxu0
    %3984 = vmatprep.mubr.f32.mxu0 0.0
    %3985 = vmatmul.mubr.f32.gmra.mrb[0].mxu0 %v105
    %v3986 = vpop.f32.mrb[0].mxu0
    %v3987 = vadd.f32 0.0, %v3986
    %v3988 = vpop.f32.mrb[0].mxu0
    %3989 = vmatprep.mubr.f32.mxu0 0.0
    %3990 = vmatmul.mubr.f32.gmra.mrb[0].mxu0 %v108
    %v3991 = vpop.f32.mrb[0].mxu0
    %v3992 = vadd.f32 0.0, %v3991
    %v3993 = vpop.f32.mrb[0].mxu0
    %3994 = vmatprep.mubr.f32.mxu0 0.0
    %3995 = vmatmul.mubr.f32.gmra.mrb[0].mxu0 %v111
    %v3996 = vpop.f32.mrb[0].mxu0
    %v3997 = vadd.f32 0.0, %v3996
    %v3998 = vpop.f32.mrb[0].mxu0
    %3999 = vdwg.mxu0
    %4000 = vmatprep.subr.mxu0 0.0
    %4001 = vmatpush1.msra.mxu0 %v3911
    %4002 = vmatprep.subr.mxu0 0.0
    %4003 = vmatpush1.msra.mxu0 %v3912
    %4004 = vmatprep.subr.mxu0 0.0
    %4005 = vmatpush1.msra.mxu0 %v3913
    %4006 = vmatprep.subr.mxu0 0.0
    %4007 = vmatpush1.msra.mxu0 %v3914
    %4008 = vmatprep.subr.mxu0 0.0
    %4009 = vmatpush1.msra.mxu0 0.0
    %4010 = vmatprep.subr.mxu0 0.0
    %4011 = vmatpush1.msra.mxu0 0.0
    %4012 = vmatprep.subr.mxu0 0.0
    %4013 = vmatpush1.msra.mxu0 0.0
    %4014 = vmatprep.subr.mxu0 0.0
    %4015 = vmatpush1.msra.mxu0 0.0
    %4016 = vmatprep.subr.mxu0 0.0
    %4017 = vmatpush1.msra.mxu0 0.0
    %4018 = vmatprep.subr.mxu0 0.0
    %4019 = vmatpush1.msra.mxu0 0.0
    %4020 = vmatprep.subr.mxu0 0.0
    %4021 = vmatpush1.msra.mxu0 0.0
    %4022 = vmatprep.subr.mxu0 0.0
    %4023 = vmatpush1.msra.mxu0 0.0
    %4024 = vmatprep.subr.mxu0 0.0
    %4025 = vmatpush1.msra.mxu0 0.0
    %4026 = vmatprep.subr.mxu0 0.0
    %4027 = vmatpush1.msra.mxu0 0.0
    %4028 = vmatprep.subr.mxu0 0.0
    %4029 = vmatpush1.msra.mxu0 0.0
    %4030 = vmatprep.subr.mxu0 0.0
    %4031 = vmatpush1.msra.mxu0 0.0
    %4032 = vmatprep.subr.mxu0 0.0
    %4033 = vmatpush1.msra.mxu0 0.0
    %4034 = vmatprep.subr.mxu0 0.0
    %4035 = vmatpush1.msra.mxu0 0.0
    %4036 = vmatprep.subr.mxu0 0.0
    %4037 = vmatpush1.msra.mxu0 0.0
    %4038 = vmatprep.subr.mxu0 0.0
    %4039 = vmatpush1.msra.mxu0 0.0
    %4040 = vmatprep.subr.mxu0 0.0
    %4041 = vmatpush1.msra.mxu0 0.0
    %4042 = vmatprep.subr.mxu0 0.0
    %4043 = vmatpush1.msra.mxu0 0.0
    %4044 = vmatprep.subr.mxu0 0.0
    %4045 = vmatpush1.msra.mxu0 0.0
    %4046 = vmatprep.subr.mxu0 0.0
    %4047 = vmatpush1.msra.mxu0 0.0
    %4048 = vmatprep.subr.mxu0 0.0
    %4049 = vmatpush1.msra.mxu0 0.0
    %4050 = vmatprep.subr.mxu0 0.0
    %4051 = vmatpush1.msra.mxu0 0.0
    %4052 = vmatprep.subr.mxu0 0.0
    %4053 = vmatpush1.msra.mxu0 0.0
    %4054 = vmatprep.subr.mxu0 0.0
    %4055 = vmatpush1.msra.mxu0 0.0
    %4056 = vmatprep.subr.mxu0 0.0
    %4057 = vmatpush1.msra.mxu0 0.0
    %4058 = vmatprep.subr.mxu0 0.0
    %4059 = vmatpush1.msra.mxu0 0.0
    %4060 = vmatprep.subr.mxu0 0.0
    %4061 = vmatpush1.msra.mxu0 0.0
    %4062 = vmatprep.subr.mxu0 0.0
    %4063 = vmatpush1.msra.mxu0 0.0
    %4064 = vmatprep.mubr.f32.mxu0 0.0
    %4065 = vmatmul.mubr.f32.gmra.mrb[0].mxu0 %v199
    %v4066 = vpop.f32.mrb[0].mxu0
    %v4067 = vadd.f32 0.0, %v4066
    %v4068 = vpop.f32.mrb[0].mxu0
    %4069 = vmatprep.mubr.f32.mxu0 0.0
    %4070 = vmatmul.mubr.f32.gmra.mrb[0].mxu0 %v202
    %v4071 = vpop.f32.mrb[0].mxu0
    %v4072 = vadd.f32 0.0, %v4071
    %v4073 = vpop.f32.mrb[0].mxu0
    %4074 = vmatprep.mubr.f32.mxu0 0.0
    %4075 = vmatmul.mubr.f32.gmra.mrb[0].mxu0 %v205
    %v4076 = vpop.f32.mrb[0].mxu0
    %v4077 = vadd.f32 0.0, %v4076
    %v4078 = vpop.f32.mrb[0].mxu0
    %4079 = vmatprep.mubr.f32.mxu0 0.0
    %4080 = vmatmul.mubr.f32.gmra.mrb[0].mxu0 %v208
    %v4081 = vpop.f32.mrb[0].mxu0
    %v4082 = vadd.f32 0.0, %v4081
    %v4083 = vpop.f32.mrb[0].mxu0
    %4084 = vdwg.mxu0
    %v4085 = vld [vmem:[%s18] sm:$0xff]
    %v4086 = vld [vmem:[%s18 + $0x8] sm:$0xff]
    %v4087 = vld [vmem:[%s18 + $0x10] sm:$0xff]
    %v4088 = vld [vmem:[%s18 + $0x18] sm:$0xff]
    %s4089 = scalar_lea.vmem %s18, 32
    %v4090 = vld [vmem:[%s4089] sm:$0xff]
    %v4091 = vld [vmem:[%s4089 + $0x8] sm:$0xff]
    %v4092 = vld [vmem:[%s4089 + $0x10] sm:$0xff]
    %v4093 = vld [vmem:[%s4089 + $0x18] sm:$0xff]
    %v4095 = vsel %vm100, %v3911, 0
    %v4098 = vsel %vm100, %v3912, 0
    %v4101 = vsel %vm100, %v3913, 0
    %v4104 = vsel %vm100, %v3914, 0
    %4106 = vmatprep.subr.mxu0 0.0
    %4107 = vmatpush1.msra.mxu0 %v4090
    %4108 = vmatprep.subr.mxu0 0.0
    %4109 = vmatpush1.msra.mxu0 %v4091
    %4110 = vmatprep.subr.mxu0 0.0
    %4111 = vmatpush1.msra.mxu0 %v4092
    %4112 = vmatprep.subr.mxu0 0.0
    %4113 = vmatpush1.msra.mxu0 %v4093
    %4114 = vmatprep.subr.mxu0 0.0
    %4115 = vmatpush1.msra.mxu0 0.0
    %4116 = vmatprep.subr.mxu0 0.0
    %4117 = vmatpush1.msra.mxu0 0.0
    %4118 = vmatprep.subr.mxu0 0.0
    %4119 = vmatpush1.msra.mxu0 0.0
    %4120 = vmatprep.subr.mxu0 0.0
    %4121 = vmatpush1.msra.mxu0 0.0
    %4122 = vmatprep.subr.mxu0 0.0
    %4123 = vmatpush1.msra.mxu0 0.0
    %4124 = vmatprep.subr.mxu0 0.0
    %4125 = vmatpush1.msra.mxu0 0.0
    %4126 = vmatprep.subr.mxu0 0.0
    %4127 = vmatpush1.msra.mxu0 0.0
    %4128 = vmatprep.subr.mxu0 0.0
    %4129 = vmatpush1.msra.mxu0 0.0
    %4130 = vmatprep.subr.mxu0 0.0
    %4131 = vmatpush1.msra.mxu0 0.0
    %4132 = vmatprep.subr.mxu0 0.0
    %4133 = vmatpush1.msra.mxu0 0.0
    %4134 = vmatprep.subr.mxu0 0.0
    %4135 = vmatpush1.msra.mxu0 0.0
    %4136 = vmatprep.subr.mxu0 0.0
    %4137 = vmatpush1.msra.mxu0 0.0
    %4138 = vmatprep.subr.mxu0 0.0
    %4139 = vmatpush1.msra.mxu0 0.0
    %4140 = vmatprep.subr.mxu0 0.0
    %4141 = vmatpush1.msra.mxu0 0.0
    %4142 = vmatprep.subr.mxu0 0.0
    %4143 = vmatpush1.msra.mxu0 0.0
    %4144 = vmatprep.subr.mxu0 0.0
    %4145 = vmatpush1.msra.mxu0 0.0
    %4146 = vmatprep.subr.mxu0 0.0
    %4147 = vmatpush1.msra.mxu0 0.0
    %4148 = vmatprep.subr.mxu0 0.0
    %4149 = vmatpush1.msra.mxu0 0.0
    %4150 = vmatprep.subr.mxu0 0.0
    %4151 = vmatpush1.msra.mxu0 0.0
    %4152 = vmatprep.subr.mxu0 0.0
    %4153 = vmatpush1.msra.mxu0 0.0
    %4154 = vmatprep.subr.mxu0 0.0
    %4155 = vmatpush1.msra.mxu0 0.0
    %4156 = vmatprep.subr.mxu0 0.0
    %4157 = vmatpush1.msra.mxu0 0.0
    %4158 = vmatprep.subr.mxu0 0.0
    %4159 = vmatpush1.msra.mxu0 0.0
    %4160 = vmatprep.subr.mxu0 0.0
    %4161 = vmatpush1.msra.mxu0 0.0
    %4162 = vmatprep.subr.mxu0 0.0
    %4163 = vmatpush1.msra.mxu0 0.0
    %4164 = vmatprep.subr.mxu0 0.0
    %4165 = vmatpush1.msra.mxu0 0.0
    %4166 = vmatprep.subr.mxu0 0.0
    %4167 = vmatpush1.msra.mxu0 0.0
    %4168 = vmatprep.subr.mxu0 0.0
    %4169 = vmatpush1.msra.mxu0 0.0
    %4170 = vmatprep.mubr.f32.mxu0 0.0
    %4171 = vmatmul.mubr.f32.gmra.mrb[0].mxu0 %v4095
    %v4172 = vpop.f32.mrb[0].mxu0
    %v4173 = vadd.f32 0.0, %v4172
    %v4174 = vpop.f32.mrb[0].mxu0
    %4175 = vmatprep.mubr.f32.mxu0 0.0
    %4176 = vmatmul.mubr.f32.gmra.mrb[0].mxu0 %v4098
    %v4177 = vpop.f32.mrb[0].mxu0
    %v4178 = vadd.f32 0.0, %v4177
    %v4179 = vpop.f32.mrb[0].mxu0
    %4180 = vmatprep.mubr.f32.mxu0 0.0
    %4181 = vmatmul.mubr.f32.gmra.mrb[0].mxu0 %v4101
    %v4182 = vpop.f32.mrb[0].mxu0
    %v4183 = vadd.f32 0.0, %v4182
    %v4184 = vpop.f32.mrb[0].mxu0
    %4185 = vmatprep.mubr.f32.mxu0 0.0
    %4186 = vmatmul.mubr.f32.gmra.mrb[0].mxu0 %v4104
    %v4187 = vpop.f32.mrb[0].mxu0
    %v4188 = vadd.f32 0.0, %v4187
    %v4189 = vpop.f32.mrb[0].mxu0
    %4190 = vdwg.mxu0
    %v4192 = vsel %vm100, %v3982, 0
    %v4195 = vsel %vm100, %v3987, 0
    %v4198 = vsel %vm100, %v3992, 0
    %v4201 = vsel %vm100, %v3997, 0
    %4203 = vmatprep.subr.mxu0 0.0
    %4204 = vmatpush1.msra.mxu0 %v4085
    %4205 = vmatprep.subr.mxu0 0.0
    %4206 = vmatpush1.msra.mxu0 %v4086
    %4207 = vmatprep.subr.mxu0 0.0
    %4208 = vmatpush1.msra.mxu0 %v4087
    %4209 = vmatprep.subr.mxu0 0.0
    %4210 = vmatpush1.msra.mxu0 %v4088
    %4211 = vmatprep.subr.mxu0 0.0
    %4212 = vmatpush1.msra.mxu0 0.0
    %4213 = vmatprep.subr.mxu0 0.0
    %4214 = vmatpush1.msra.mxu0 0.0
    %4215 = vmatprep.subr.mxu0 0.0
    %4216 = vmatpush1.msra.mxu0 0.0
    %4217 = vmatprep.subr.mxu0 0.0
    %4218 = vmatpush1.msra.mxu0 0.0
    %4219 = vmatprep.subr.mxu0 0.0
    %4220 = vmatpush1.msra.mxu0 0.0
    %4221 = vmatprep.subr.mxu0 0.0
    %4222 = vmatpush1.msra.mxu0 0.0
    %4223 = vmatprep.subr.mxu0 0.0
    %4224 = vmatpush1.msra.mxu0 0.0
    %4225 = vmatprep.subr.mxu0 0.0
    %4226 = vmatpush1.msra.mxu0 0.0
    %4227 = vmatprep.subr.mxu0 0.0
    %4228 = vmatpush1.msra.mxu0 0.0
    %4229 = vmatprep.subr.mxu0 0.0
    %4230 = vmatpush1.msra.mxu0 0.0
    %4231 = vmatprep.subr.mxu0 0.0
    %4232 = vmatpush1.msra.mxu0 0.0
    %4233 = vmatprep.subr.mxu0 0.0
    %4234 = vmatpush1.msra.mxu0 0.0
    %4235 = vmatprep.subr.mxu0 0.0
    %4236 = vmatpush1.msra.mxu0 0.0
    %4237 = vmatprep.subr.mxu0 0.0
    %4238 = vmatpush1.msra.mxu0 0.0
    %4239 = vmatprep.subr.mxu0 0.0
    %4240 = vmatpush1.msra.mxu0 0.0
    %4241 = vmatprep.subr.mxu0 0.0
    %4242 = vmatpush1.msra.mxu0 0.0
    %4243 = vmatprep.subr.mxu0 0.0
    %4244 = vmatpush1.msra.mxu0 0.0
    %4245 = vmatprep.subr.mxu0 0.0
    %4246 = vmatpush1.msra.mxu0 0.0
    %4247 = vmatprep.subr.mxu0 0.0
    %4248 = vmatpush1.msra.mxu0 0.0
    %4249 = vmatprep.subr.mxu0 0.0
    %4250 = vmatpush1.msra.mxu0 0.0
    %4251 = vmatprep.subr.mxu0 0.0
    %4252 = vmatpush1.msra.mxu0 0.0
    %4253 = vmatprep.subr.mxu0 0.0
    %4254 = vmatpush1.msra.mxu0 0.0
    %4255 = vmatprep.subr.mxu0 0.0
    %4256 = vmatpush1.msra.mxu0 0.0
    %4257 = vmatprep.subr.mxu0 0.0
    %4258 = vmatpush1.msra.mxu0 0.0
    %4259 = vmatprep.subr.mxu0 0.0
    %4260 = vmatpush1.msra.mxu0 0.0
    %4261 = vmatprep.subr.mxu0 0.0
    %4262 = vmatpush1.msra.mxu0 0.0
    %4263 = vmatprep.subr.mxu0 0.0
    %4264 = vmatpush1.msra.mxu0 0.0
    %4265 = vmatprep.subr.mxu0 0.0
    %4266 = vmatpush1.msra.mxu0 0.0
    %4267 = vmatprep.mubr.f32.mxu0 0.0
    %4268 = vmatmul.mubr.f32.gmra.mrb[0].mxu0 %v4192
    %v4269 = vpop.f32.mrb[0].mxu0
    %v4270 = vadd.f32 %v4173, %v4269
    %v4271 = vpop.f32.mrb[0].mxu0
    %4272 = vmatprep.mubr.f32.mxu0 0.0
    %4273 = vmatmul.mubr.f32.gmra.mrb[0].mxu0 %v4195
    %v4274 = vpop.f32.mrb[0].mxu0
    %v4275 = vadd.f32 %v4178, %v4274
    %v4276 = vpop.f32.mrb[0].mxu0
    %4277 = vmatprep.mubr.f32.mxu0 0.0
    %4278 = vmatmul.mubr.f32.gmra.mrb[0].mxu0 %v4198
    %v4279 = vpop.f32.mrb[0].mxu0
    %v4280 = vadd.f32 %v4183, %v4279
    %v4281 = vpop.f32.mrb[0].mxu0
    %4282 = vmatprep.mubr.f32.mxu0 0.0
    %4283 = vmatmul.mubr.f32.gmra.mrb[0].mxu0 %v4201
    %v4284 = vpop.f32.mrb[0].mxu0
    %v4285 = vadd.f32 %v4188, %v4284
    %v4286 = vpop.f32.mrb[0].mxu0
    %4287 = vdwg.mxu0
    %s4288 = scalar_lea.vmem %s18, 64
    %v4289 = vld [vmem:[%s4288] sm:$0xff]
    %v4290 = vld [vmem:[%s4288 + $0x8] sm:$0xff]
    %v4291 = vld [vmem:[%s4288 + $0x10] sm:$0xff]
    %v4292 = vld [vmem:[%s4288 + $0x18] sm:$0xff]
    %v4294 = vsel %vm100, %v4067, 0
    %v4297 = vsel %vm100, %v4072, 0
    %v4300 = vsel %vm100, %v4077, 0
    %v4303 = vsel %vm100, %v4082, 0
    %4305 = vmatprep.subr.mxu0 0.0
    %4306 = vmatpush1.msra.mxu0 %v4289
    %4307 = vmatprep.subr.mxu0 0.0
    %4308 = vmatpush1.msra.mxu0 %v4290
    %4309 = vmatprep.subr.mxu0 0.0
    %4310 = vmatpush1.msra.mxu0 %v4291
    %4311 = vmatprep.subr.mxu0 0.0
    %4312 = vmatpush1.msra.mxu0 %v4292
    %4313 = vmatprep.subr.mxu0 0.0
    %4314 = vmatpush1.msra.mxu0 0.0
    %4315 = vmatprep.subr.mxu0 0.0
    %4316 = vmatpush1.msra.mxu0 0.0
    %4317 = vmatprep.subr.mxu0 0.0
    %4318 = vmatpush1.msra.mxu0 0.0
    %4319 = vmatprep.subr.mxu0 0.0
    %4320 = vmatpush1.msra.mxu0 0.0
    %4321 = vmatprep.subr.mxu0 0.0
    %4322 = vmatpush1.msra.mxu0 0.0
    %4323 = vmatprep.subr.mxu0 0.0
    %4324 = vmatpush1.msra.mxu0 0.0
    %4325 = vmatprep.subr.mxu0 0.0
    %4326 = vmatpush1.msra.mxu0 0.0
    %4327 = vmatprep.subr.mxu0 0.0
    %4328 = vmatpush1.msra.mxu0 0.0
    %4329 = vmatprep.subr.mxu0 0.0
    %4330 = vmatpush1.msra.mxu0 0.0
    %4331 = vmatprep.subr.mxu0 0.0
    %4332 = vmatpush1.msra.mxu0 0.0
    %4333 = vmatprep.subr.mxu0 0.0
    %4334 = vmatpush1.msra.mxu0 0.0
    %4335 = vmatprep.subr.mxu0 0.0
    %4336 = vmatpush1.msra.mxu0 0.0
    %4337 = vmatprep.subr.mxu0 0.0
    %4338 = vmatpush1.msra.mxu0 0.0
    %4339 = vmatprep.subr.mxu0 0.0
    %4340 = vmatpush1.msra.mxu0 0.0
    %4341 = vmatprep.subr.mxu0 0.0
    %4342 = vmatpush1.msra.mxu0 0.0
    %4343 = vmatprep.subr.mxu0 0.0
    %4344 = vmatpush1.msra.mxu0 0.0
    %4345 = vmatprep.subr.mxu0 0.0
    %4346 = vmatpush1.msra.mxu0 0.0
    %4347 = vmatprep.subr.mxu0 0.0
    %4348 = vmatpush1.msra.mxu0 0.0
    %4349 = vmatprep.subr.mxu0 0.0
    %4350 = vmatpush1.msra.mxu0 0.0
    %4351 = vmatprep.subr.mxu0 0.0
    %4352 = vmatpush1.msra.mxu0 0.0
    %4353 = vmatprep.subr.mxu0 0.0
    %4354 = vmatpush1.msra.mxu0 0.0
    %4355 = vmatprep.subr.mxu0 0.0
    %4356 = vmatpush1.msra.mxu0 0.0
    %4357 = vmatprep.subr.mxu0 0.0
    %4358 = vmatpush1.msra.mxu0 0.0
    %4359 = vmatprep.subr.mxu0 0.0
    %4360 = vmatpush1.msra.mxu0 0.0
    %4361 = vmatprep.subr.mxu0 0.0
    %4362 = vmatpush1.msra.mxu0 0.0
    %4363 = vmatprep.subr.mxu0 0.0
    %4364 = vmatpush1.msra.mxu0 0.0
    %4365 = vmatprep.subr.mxu0 0.0
    %4366 = vmatpush1.msra.mxu0 0.0
    %4367 = vmatprep.subr.mxu0 0.0
    %4368 = vmatpush1.msra.mxu0 0.0
    %4369 = vmatprep.mubr.f32.mxu0 0.0
    %4370 = vmatmul.mubr.f32.gmra.mrb[0].mxu0 %v4294
    %v4371 = vpop.f32.mrb[0].mxu0
    %v4372 = vadd.f32 0.0, %v4371
    %v4373 = vpop.f32.mrb[0].mxu0
    %4374 = vmatprep.mubr.f32.mxu0 0.0
    %4375 = vmatmul.mubr.f32.gmra.mrb[0].mxu0 %v4297
    %v4376 = vpop.f32.mrb[0].mxu0
    %v4377 = vadd.f32 0.0, %v4376
    %v4378 = vpop.f32.mrb[0].mxu0
    %4379 = vmatprep.mubr.f32.mxu0 0.0
    %4380 = vmatmul.mubr.f32.gmra.mrb[0].mxu0 %v4300
    %v4381 = vpop.f32.mrb[0].mxu0
    %v4382 = vadd.f32 0.0, %v4381
    %v4383 = vpop.f32.mrb[0].mxu0
    %4384 = vmatprep.mubr.f32.mxu0 0.0
    %4385 = vmatmul.mubr.f32.gmra.mrb[0].mxu0 %v4303
    %v4386 = vpop.f32.mrb[0].mxu0
    %v4387 = vadd.f32 0.0, %v4386
    %v4388 = vpop.f32.mrb[0].mxu0
    %4389 = vdwg.mxu0
    %v4390 = vadd.f32 %v4270, %v4372
    %v4391 = vadd.f32 %v4275, %v4377
    %v4392 = vadd.f32 %v4280, %v4382
    %v4393 = vadd.f32 %v4285, %v4387
    %v4394 = vmax.f32 %v4390, 0.0
    %v4395 = vmax.f32 %v4391, 0.0
    %v4396 = vmax.f32 %v4392, 0.0
    %v4397 = vmax.f32 %v4393, 0.0
    %v4398 = vld [vmem:[%s19] sm:$0xff]
    %v4399 = vld [vmem:[%s19 + $0x8] sm:$0xff]
    %v4401 = vsel %vm2094, %v4394, 0
    %v4404 = vsel %vm2094, %v4395, 0
    %v4407 = vsel %vm2094, %v4396, 0
    %v4410 = vsel %vm2094, %v4397, 0
    %4412 = vmatprep.subr.mxu0 0.0
    %4413 = vmatpush1.msra.mxu0 %v4398
    %4414 = vmatprep.subr.mxu0 0.0
    %4415 = vmatpush1.msra.mxu0 %v4399
    %4416 = vmatprep.subr.mxu0 0.0
    %4417 = vmatpush1.msra.mxu0 0.0
    %4418 = vmatprep.subr.mxu0 0.0
    %4419 = vmatpush1.msra.mxu0 0.0
    %4420 = vmatprep.subr.mxu0 0.0
    %4421 = vmatpush1.msra.mxu0 0.0
    %4422 = vmatprep.subr.mxu0 0.0
    %4423 = vmatpush1.msra.mxu0 0.0
    %4424 = vmatprep.subr.mxu0 0.0
    %4425 = vmatpush1.msra.mxu0 0.0
    %4426 = vmatprep.subr.mxu0 0.0
    %4427 = vmatpush1.msra.mxu0 0.0
    %4428 = vmatprep.subr.mxu0 0.0
    %4429 = vmatpush1.msra.mxu0 0.0
    %4430 = vmatprep.subr.mxu0 0.0
    %4431 = vmatpush1.msra.mxu0 0.0
    %4432 = vmatprep.subr.mxu0 0.0
    %4433 = vmatpush1.msra.mxu0 0.0
    %4434 = vmatprep.subr.mxu0 0.0
    %4435 = vmatpush1.msra.mxu0 0.0
    %4436 = vmatprep.subr.mxu0 0.0
    %4437 = vmatpush1.msra.mxu0 0.0
    %4438 = vmatprep.subr.mxu0 0.0
    %4439 = vmatpush1.msra.mxu0 0.0
    %4440 = vmatprep.subr.mxu0 0.0
    %4441 = vmatpush1.msra.mxu0 0.0
    %4442 = vmatprep.subr.mxu0 0.0
    %4443 = vmatpush1.msra.mxu0 0.0
    %4444 = vmatprep.subr.mxu0 0.0
    %4445 = vmatpush1.msra.mxu0 0.0
    %4446 = vmatprep.subr.mxu0 0.0
    %4447 = vmatpush1.msra.mxu0 0.0
    %4448 = vmatprep.subr.mxu0 0.0
    %4449 = vmatpush1.msra.mxu0 0.0
    %4450 = vmatprep.subr.mxu0 0.0
    %4451 = vmatpush1.msra.mxu0 0.0
    %4452 = vmatprep.subr.mxu0 0.0
    %4453 = vmatpush1.msra.mxu0 0.0
    %4454 = vmatprep.subr.mxu0 0.0
    %4455 = vmatpush1.msra.mxu0 0.0
    %4456 = vmatprep.subr.mxu0 0.0
    %4457 = vmatpush1.msra.mxu0 0.0
    %4458 = vmatprep.subr.mxu0 0.0
    %4459 = vmatpush1.msra.mxu0 0.0
    %4460 = vmatprep.subr.mxu0 0.0
    %4461 = vmatpush1.msra.mxu0 0.0
    %4462 = vmatprep.subr.mxu0 0.0
    %4463 = vmatpush1.msra.mxu0 0.0
    %4464 = vmatprep.subr.mxu0 0.0
    %4465 = vmatpush1.msra.mxu0 0.0
    %4466 = vmatprep.subr.mxu0 0.0
    %4467 = vmatpush1.msra.mxu0 0.0
    %4468 = vmatprep.subr.mxu0 0.0
    %4469 = vmatpush1.msra.mxu0 0.0
    %4470 = vmatprep.subr.mxu0 0.0
    %4471 = vmatpush1.msra.mxu0 0.0
    %4472 = vmatprep.subr.mxu0 0.0
    %4473 = vmatpush1.msra.mxu0 0.0
    %4474 = vmatprep.subr.mxu0 0.0
    %4475 = vmatpush1.msra.mxu0 0.0
    %4476 = vmatprep.mubr.f32.mxu0 0.0
    %4477 = vmatmul.mubr.f32.gmra.mrb[0].mxu0 %v4401
    %v4478 = vpop.f32.mrb[0].mxu0
    %v4479 = vadd.f32 0.0, %v4478
    %v4480 = vpop.f32.mrb[0].mxu0
    %4481 = vmatprep.mubr.f32.mxu0 0.0
    %4482 = vmatmul.mubr.f32.gmra.mrb[0].mxu0 %v4404
    %v4483 = vpop.f32.mrb[0].mxu0
    %v4484 = vadd.f32 0.0, %v4483
    %v4485 = vpop.f32.mrb[0].mxu0
    %4486 = vmatprep.mubr.f32.mxu0 0.0
    %4487 = vmatmul.mubr.f32.gmra.mrb[0].mxu0 %v4407
    %v4488 = vpop.f32.mrb[0].mxu0
    %v4489 = vadd.f32 0.0, %v4488
    %v4490 = vpop.f32.mrb[0].mxu0
    %4491 = vmatprep.mubr.f32.mxu0 0.0
    %4492 = vmatmul.mubr.f32.gmra.mrb[0].mxu0 %v4410
    %v4493 = vpop.f32.mrb[0].mxu0
    %v4494 = vadd.f32 0.0, %v4493
    %v4495 = vpop.f32.mrb[0].mxu0
    %4496 = vdwg.mxu0
    %v4497 = vadd.f32 %v3907, %v4479
    %v4498 = vadd.f32 %v3908, %v4484
    %v4499 = vadd.f32 %v3909, %v4489
    %v4500 = vadd.f32 %v3910, %v4494
    %v4501 = vmax.f32 %v4497, 0.0
    %v4502 = vmax.f32 %v4498, 0.0
    %v4503 = vmax.f32 %v4499, 0.0
    %v4504 = vmax.f32 %v4500, 0.0
    %4505 = vmatprep.subr.mxu0 0.0
    %4506 = vmatpush1.msra.mxu0 %v4501
    %4507 = vmatprep.subr.mxu0 0.0
    %4508 = vmatpush1.msra.mxu0 %v4502
    %4509 = vmatprep.subr.mxu0 0.0
    %4510 = vmatpush1.msra.mxu0 %v4503
    %4511 = vmatprep.subr.mxu0 0.0
    %4512 = vmatpush1.msra.mxu0 %v4504
    %4513 = vmatprep.subr.mxu0 0.0
    %4514 = vmatpush1.msra.mxu0 0.0
    %4515 = vmatprep.subr.mxu0 0.0
    %4516 = vmatpush1.msra.mxu0 0.0
    %4517 = vmatprep.subr.mxu0 0.0
    %4518 = vmatpush1.msra.mxu0 0.0
    %4519 = vmatprep.subr.mxu0 0.0
    %4520 = vmatpush1.msra.mxu0 0.0
    %4521 = vmatprep.subr.mxu0 0.0
    %4522 = vmatpush1.msra.mxu0 0.0
    %4523 = vmatprep.subr.mxu0 0.0
    %4524 = vmatpush1.msra.mxu0 0.0
    %4525 = vmatprep.subr.mxu0 0.0
    %4526 = vmatpush1.msra.mxu0 0.0
    %4527 = vmatprep.subr.mxu0 0.0
    %4528 = vmatpush1.msra.mxu0 0.0
    %4529 = vmatprep.subr.mxu0 0.0
    %4530 = vmatpush1.msra.mxu0 0.0
    %4531 = vmatprep.subr.mxu0 0.0
    %4532 = vmatpush1.msra.mxu0 0.0
    %4533 = vmatprep.subr.mxu0 0.0
    %4534 = vmatpush1.msra.mxu0 0.0
    %4535 = vmatprep.subr.mxu0 0.0
    %4536 = vmatpush1.msra.mxu0 0.0
    %4537 = vmatprep.subr.mxu0 0.0
    %4538 = vmatpush1.msra.mxu0 0.0
    %4539 = vmatprep.subr.mxu0 0.0
    %4540 = vmatpush1.msra.mxu0 0.0
    %4541 = vmatprep.subr.mxu0 0.0
    %4542 = vmatpush1.msra.mxu0 0.0
    %4543 = vmatprep.subr.mxu0 0.0
    %4544 = vmatpush1.msra.mxu0 0.0
    %4545 = vmatprep.subr.mxu0 0.0
    %4546 = vmatpush1.msra.mxu0 0.0
    %4547 = vmatprep.subr.mxu0 0.0
    %4548 = vmatpush1.msra.mxu0 0.0
    %4549 = vmatprep.subr.mxu0 0.0
    %4550 = vmatpush1.msra.mxu0 0.0
    %4551 = vmatprep.subr.mxu0 0.0
    %4552 = vmatpush1.msra.mxu0 0.0
    %4553 = vmatprep.subr.mxu0 0.0
    %4554 = vmatpush1.msra.mxu0 0.0
    %4555 = vmatprep.subr.mxu0 0.0
    %4556 = vmatpush1.msra.mxu0 0.0
    %4557 = vmatprep.subr.mxu0 0.0
    %4558 = vmatpush1.msra.mxu0 0.0
    %4559 = vmatprep.subr.mxu0 0.0
    %4560 = vmatpush1.msra.mxu0 0.0
    %4561 = vmatprep.subr.mxu0 0.0
    %4562 = vmatpush1.msra.mxu0 0.0
    %4563 = vmatprep.subr.mxu0 0.0
    %4564 = vmatpush1.msra.mxu0 0.0
    %4565 = vmatprep.subr.mxu0 0.0
    %4566 = vmatpush1.msra.mxu0 0.0
    %4567 = vmatprep.subr.mxu0 0.0
    %4568 = vmatpush1.msra.mxu0 0.0
    %4569 = vmatprep.mubr.f32.mxu0 0.0
    %4570 = vmatmul.mubr.f32.gmra.mrb[0].mxu0 %v102
    %v4571 = vpop.f32.mrb[0].mxu0
    %v4572 = vadd.f32 0.0, %v4571
    %v4573 = vpop.f32.mrb[0].mxu0
    %4574 = vmatprep.mubr.f32.mxu0 0.0
    %4575 = vmatmul.mubr.f32.gmra.mrb[0].mxu0 %v105
    %v4576 = vpop.f32.mrb[0].mxu0
    %v4577 = vadd.f32 0.0, %v4576
    %v4578 = vpop.f32.mrb[0].mxu0
    %4579 = vmatprep.mubr.f32.mxu0 0.0
    %4580 = vmatmul.mubr.f32.gmra.mrb[0].mxu0 %v108
    %v4581 = vpop.f32.mrb[0].mxu0
    %v4582 = vadd.f32 0.0, %v4581
    %v4583 = vpop.f32.mrb[0].mxu0
    %4584 = vmatprep.mubr.f32.mxu0 0.0
    %4585 = vmatmul.mubr.f32.gmra.mrb[0].mxu0 %v111
    %v4586 = vpop.f32.mrb[0].mxu0
    %v4587 = vadd.f32 0.0, %v4586
    %v4588 = vpop.f32.mrb[0].mxu0
    %4589 = vdwg.mxu0
    %4590 = vmatprep.subr.mxu0 0.0
    %4591 = vmatpush1.msra.mxu0 %v4501
    %4592 = vmatprep.subr.mxu0 0.0
    %4593 = vmatpush1.msra.mxu0 %v4502
    %4594 = vmatprep.subr.mxu0 0.0
    %4595 = vmatpush1.msra.mxu0 %v4503
    %4596 = vmatprep.subr.mxu0 0.0
    %4597 = vmatpush1.msra.mxu0 %v4504
    %4598 = vmatprep.subr.mxu0 0.0
    %4599 = vmatpush1.msra.mxu0 0.0
    %4600 = vmatprep.subr.mxu0 0.0
    %4601 = vmatpush1.msra.mxu0 0.0
    %4602 = vmatprep.subr.mxu0 0.0
    %4603 = vmatpush1.msra.mxu0 0.0
    %4604 = vmatprep.subr.mxu0 0.0
    %4605 = vmatpush1.msra.mxu0 0.0
    %4606 = vmatprep.subr.mxu0 0.0
    %4607 = vmatpush1.msra.mxu0 0.0
    %4608 = vmatprep.subr.mxu0 0.0
    %4609 = vmatpush1.msra.mxu0 0.0
    %4610 = vmatprep.subr.mxu0 0.0
    %4611 = vmatpush1.msra.mxu0 0.0
    %4612 = vmatprep.subr.mxu0 0.0
    %4613 = vmatpush1.msra.mxu0 0.0
    %4614 = vmatprep.subr.mxu0 0.0
    %4615 = vmatpush1.msra.mxu0 0.0
    %4616 = vmatprep.subr.mxu0 0.0
    %4617 = vmatpush1.msra.mxu0 0.0
    %4618 = vmatprep.subr.mxu0 0.0
    %4619 = vmatpush1.msra.mxu0 0.0
    %4620 = vmatprep.subr.mxu0 0.0
    %4621 = vmatpush1.msra.mxu0 0.0
    %4622 = vmatprep.subr.mxu0 0.0
    %4623 = vmatpush1.msra.mxu0 0.0
    %4624 = vmatprep.subr.mxu0 0.0
    %4625 = vmatpush1.msra.mxu0 0.0
    %4626 = vmatprep.subr.mxu0 0.0
    %4627 = vmatpush1.msra.mxu0 0.0
    %4628 = vmatprep.subr.mxu0 0.0
    %4629 = vmatpush1.msra.mxu0 0.0
    %4630 = vmatprep.subr.mxu0 0.0
    %4631 = vmatpush1.msra.mxu0 0.0
    %4632 = vmatprep.subr.mxu0 0.0
    %4633 = vmatpush1.msra.mxu0 0.0
    %4634 = vmatprep.subr.mxu0 0.0
    %4635 = vmatpush1.msra.mxu0 0.0
    %4636 = vmatprep.subr.mxu0 0.0
    %4637 = vmatpush1.msra.mxu0 0.0
    %4638 = vmatprep.subr.mxu0 0.0
    %4639 = vmatpush1.msra.mxu0 0.0
    %4640 = vmatprep.subr.mxu0 0.0
    %4641 = vmatpush1.msra.mxu0 0.0
    %4642 = vmatprep.subr.mxu0 0.0
    %4643 = vmatpush1.msra.mxu0 0.0
    %4644 = vmatprep.subr.mxu0 0.0
    %4645 = vmatpush1.msra.mxu0 0.0
    %4646 = vmatprep.subr.mxu0 0.0
    %4647 = vmatpush1.msra.mxu0 0.0
    %4648 = vmatprep.subr.mxu0 0.0
    %4649 = vmatpush1.msra.mxu0 0.0
    %4650 = vmatprep.subr.mxu0 0.0
    %4651 = vmatpush1.msra.mxu0 0.0
    %4652 = vmatprep.subr.mxu0 0.0
    %4653 = vmatpush1.msra.mxu0 0.0
    %4654 = vmatprep.mubr.f32.mxu0 0.0
    %4655 = vmatmul.mubr.f32.gmra.mrb[0].mxu0 %v199
    %v4656 = vpop.f32.mrb[0].mxu0
    %v4657 = vadd.f32 0.0, %v4656
    %v4658 = vpop.f32.mrb[0].mxu0
    %4659 = vmatprep.mubr.f32.mxu0 0.0
    %4660 = vmatmul.mubr.f32.gmra.mrb[0].mxu0 %v202
    %v4661 = vpop.f32.mrb[0].mxu0
    %v4662 = vadd.f32 0.0, %v4661
    %v4663 = vpop.f32.mrb[0].mxu0
    %4664 = vmatprep.mubr.f32.mxu0 0.0
    %4665 = vmatmul.mubr.f32.gmra.mrb[0].mxu0 %v205
    %v4666 = vpop.f32.mrb[0].mxu0
    %v4667 = vadd.f32 0.0, %v4666
    %v4668 = vpop.f32.mrb[0].mxu0
    %4669 = vmatprep.mubr.f32.mxu0 0.0
    %4670 = vmatmul.mubr.f32.gmra.mrb[0].mxu0 %v208
    %v4671 = vpop.f32.mrb[0].mxu0
    %v4672 = vadd.f32 0.0, %v4671
    %v4673 = vpop.f32.mrb[0].mxu0
    %4674 = vdwg.mxu0
    %v4675 = vld [vmem:[%s20] sm:$0xff]
    %v4676 = vld [vmem:[%s20 + $0x8] sm:$0xff]
    %v4677 = vld [vmem:[%s20 + $0x10] sm:$0xff]
    %v4678 = vld [vmem:[%s20 + $0x18] sm:$0xff]
    %s4679 = scalar_lea.vmem %s20, 32
    %v4680 = vld [vmem:[%s4679] sm:$0xff]
    %v4681 = vld [vmem:[%s4679 + $0x8] sm:$0xff]
    %v4682 = vld [vmem:[%s4679 + $0x10] sm:$0xff]
    %v4683 = vld [vmem:[%s4679 + $0x18] sm:$0xff]
    %v4685 = vsel %vm100, %v4501, 0
    %v4688 = vsel %vm100, %v4502, 0
    %v4691 = vsel %vm100, %v4503, 0
    %v4694 = vsel %vm100, %v4504, 0
    %4696 = vmatprep.subr.mxu0 0.0
    %4697 = vmatpush1.msra.mxu0 %v4680
    %4698 = vmatprep.subr.mxu0 0.0
    %4699 = vmatpush1.msra.mxu0 %v4681
    %4700 = vmatprep.subr.mxu0 0.0
    %4701 = vmatpush1.msra.mxu0 %v4682
    %4702 = vmatprep.subr.mxu0 0.0
    %4703 = vmatpush1.msra.mxu0 %v4683
    %4704 = vmatprep.subr.mxu0 0.0
    %4705 = vmatpush1.msra.mxu0 0.0
    %4706 = vmatprep.subr.mxu0 0.0
    %4707 = vmatpush1.msra.mxu0 0.0
    %4708 = vmatprep.subr.mxu0 0.0
    %4709 = vmatpush1.msra.mxu0 0.0
    %4710 = vmatprep.subr.mxu0 0.0
    %4711 = vmatpush1.msra.mxu0 0.0
    %4712 = vmatprep.subr.mxu0 0.0
    %4713 = vmatpush1.msra.mxu0 0.0
    %4714 = vmatprep.subr.mxu0 0.0
    %4715 = vmatpush1.msra.mxu0 0.0
    %4716 = vmatprep.subr.mxu0 0.0
    %4717 = vmatpush1.msra.mxu0 0.0
    %4718 = vmatprep.subr.mxu0 0.0
    %4719 = vmatpush1.msra.mxu0 0.0
    %4720 = vmatprep.subr.mxu0 0.0
    %4721 = vmatpush1.msra.mxu0 0.0
    %4722 = vmatprep.subr.mxu0 0.0
    %4723 = vmatpush1.msra.mxu0 0.0
    %4724 = vmatprep.subr.mxu0 0.0
    %4725 = vmatpush1.msra.mxu0 0.0
    %4726 = vmatprep.subr.mxu0 0.0
    %4727 = vmatpush1.msra.mxu0 0.0
    %4728 = vmatprep.subr.mxu0 0.0
    %4729 = vmatpush1.msra.mxu0 0.0
    %4730 = vmatprep.subr.mxu0 0.0
    %4731 = vmatpush1.msra.mxu0 0.0
    %4732 = vmatprep.subr.mxu0 0.0
    %4733 = vmatpush1.msra.mxu0 0.0
    %4734 = vmatprep.subr.mxu0 0.0
    %4735 = vmatpush1.msra.mxu0 0.0
    %4736 = vmatprep.subr.mxu0 0.0
    %4737 = vmatpush1.msra.mxu0 0.0
    %4738 = vmatprep.subr.mxu0 0.0
    %4739 = vmatpush1.msra.mxu0 0.0
    %4740 = vmatprep.subr.mxu0 0.0
    %4741 = vmatpush1.msra.mxu0 0.0
    %4742 = vmatprep.subr.mxu0 0.0
    %4743 = vmatpush1.msra.mxu0 0.0
    %4744 = vmatprep.subr.mxu0 0.0
    %4745 = vmatpush1.msra.mxu0 0.0
    %4746 = vmatprep.subr.mxu0 0.0
    %4747 = vmatpush1.msra.mxu0 0.0
    %4748 = vmatprep.subr.mxu0 0.0
    %4749 = vmatpush1.msra.mxu0 0.0
    %4750 = vmatprep.subr.mxu0 0.0
    %4751 = vmatpush1.msra.mxu0 0.0
    %4752 = vmatprep.subr.mxu0 0.0
    %4753 = vmatpush1.msra.mxu0 0.0
    %4754 = vmatprep.subr.mxu0 0.0
    %4755 = vmatpush1.msra.mxu0 0.0
    %4756 = vmatprep.subr.mxu0 0.0
    %4757 = vmatpush1.msra.mxu0 0.0
    %4758 = vmatprep.subr.mxu0 0.0
    %4759 = vmatpush1.msra.mxu0 0.0
    %4760 = vmatprep.mubr.f32.mxu0 0.0
    %4761 = vmatmul.mubr.f32.gmra.mrb[0].mxu0 %v4685
    %v4762 = vpop.f32.mrb[0].mxu0
    %v4763 = vadd.f32 0.0, %v4762
    %v4764 = vpop.f32.mrb[0].mxu0
    %4765 = vmatprep.mubr.f32.mxu0 0.0
    %4766 = vmatmul.mubr.f32.gmra.mrb[0].mxu0 %v4688
    %v4767 = vpop.f32.mrb[0].mxu0
    %v4768 = vadd.f32 0.0, %v4767
    %v4769 = vpop.f32.mrb[0].mxu0
    %4770 = vmatprep.mubr.f32.mxu0 0.0
    %4771 = vmatmul.mubr.f32.gmra.mrb[0].mxu0 %v4691
    %v4772 = vpop.f32.mrb[0].mxu0
    %v4773 = vadd.f32 0.0, %v4772
    %v4774 = vpop.f32.mrb[0].mxu0
    %4775 = vmatprep.mubr.f32.mxu0 0.0
    %4776 = vmatmul.mubr.f32.gmra.mrb[0].mxu0 %v4694
    %v4777 = vpop.f32.mrb[0].mxu0
    %v4778 = vadd.f32 0.0, %v4777
    %v4779 = vpop.f32.mrb[0].mxu0
    %4780 = vdwg.mxu0
    %v4782 = vsel %vm100, %v4572, 0
    %v4785 = vsel %vm100, %v4577, 0
    %v4788 = vsel %vm100, %v4582, 0
    %v4791 = vsel %vm100, %v4587, 0
    %4793 = vmatprep.subr.mxu0 0.0
    %4794 = vmatpush1.msra.mxu0 %v4675
    %4795 = vmatprep.subr.mxu0 0.0
    %4796 = vmatpush1.msra.mxu0 %v4676
    %4797 = vmatprep.subr.mxu0 0.0
    %4798 = vmatpush1.msra.mxu0 %v4677
    %4799 = vmatprep.subr.mxu0 0.0
    %4800 = vmatpush1.msra.mxu0 %v4678
    %4801 = vmatprep.subr.mxu0 0.0
    %4802 = vmatpush1.msra.mxu0 0.0
    %4803 = vmatprep.subr.mxu0 0.0
    %4804 = vmatpush1.msra.mxu0 0.0
    %4805 = vmatprep.subr.mxu0 0.0
    %4806 = vmatpush1.msra.mxu0 0.0
    %4807 = vmatprep.subr.mxu0 0.0
    %4808 = vmatpush1.msra.mxu0 0.0
    %4809 = vmatprep.subr.mxu0 0.0
    %4810 = vmatpush1.msra.mxu0 0.0
    %4811 = vmatprep.subr.mxu0 0.0
    %4812 = vmatpush1.msra.mxu0 0.0
    %4813 = vmatprep.subr.mxu0 0.0
    %4814 = vmatpush1.msra.mxu0 0.0
    %4815 = vmatprep.subr.mxu0 0.0
    %4816 = vmatpush1.msra.mxu0 0.0
    %4817 = vmatprep.subr.mxu0 0.0
    %4818 = vmatpush1.msra.mxu0 0.0
    %4819 = vmatprep.subr.mxu0 0.0
    %4820 = vmatpush1.msra.mxu0 0.0
    %4821 = vmatprep.subr.mxu0 0.0
    %4822 = vmatpush1.msra.mxu0 0.0
    %4823 = vmatprep.subr.mxu0 0.0
    %4824 = vmatpush1.msra.mxu0 0.0
    %4825 = vmatprep.subr.mxu0 0.0
    %4826 = vmatpush1.msra.mxu0 0.0
    %4827 = vmatprep.subr.mxu0 0.0
    %4828 = vmatpush1.msra.mxu0 0.0
    %4829 = vmatprep.subr.mxu0 0.0
    %4830 = vmatpush1.msra.mxu0 0.0
    %4831 = vmatprep.subr.mxu0 0.0
    %4832 = vmatpush1.msra.mxu0 0.0
    %4833 = vmatprep.subr.mxu0 0.0
    %4834 = vmatpush1.msra.mxu0 0.0
    %4835 = vmatprep.subr.mxu0 0.0
    %4836 = vmatpush1.msra.mxu0 0.0
    %4837 = vmatprep.subr.mxu0 0.0
    %4838 = vmatpush1.msra.mxu0 0.0
    %4839 = vmatprep.subr.mxu0 0.0
    %4840 = vmatpush1.msra.mxu0 0.0
    %4841 = vmatprep.subr.mxu0 0.0
    %4842 = vmatpush1.msra.mxu0 0.0
    %4843 = vmatprep.subr.mxu0 0.0
    %4844 = vmatpush1.msra.mxu0 0.0
    %4845 = vmatprep.subr.mxu0 0.0
    %4846 = vmatpush1.msra.mxu0 0.0
    %4847 = vmatprep.subr.mxu0 0.0
    %4848 = vmatpush1.msra.mxu0 0.0
    %4849 = vmatprep.subr.mxu0 0.0
    %4850 = vmatpush1.msra.mxu0 0.0
    %4851 = vmatprep.subr.mxu0 0.0
    %4852 = vmatpush1.msra.mxu0 0.0
    %4853 = vmatprep.subr.mxu0 0.0
    %4854 = vmatpush1.msra.mxu0 0.0
    %4855 = vmatprep.subr.mxu0 0.0
    %4856 = vmatpush1.msra.mxu0 0.0
    %4857 = vmatprep.mubr.f32.mxu0 0.0
    %4858 = vmatmul.mubr.f32.gmra.mrb[0].mxu0 %v4782
    %v4859 = vpop.f32.mrb[0].mxu0
    %v4860 = vadd.f32 %v4763, %v4859
    %v4861 = vpop.f32.mrb[0].mxu0
    %4862 = vmatprep.mubr.f32.mxu0 0.0
    %4863 = vmatmul.mubr.f32.gmra.mrb[0].mxu0 %v4785
    %v4864 = vpop.f32.mrb[0].mxu0
    %v4865 = vadd.f32 %v4768, %v4864
    %v4866 = vpop.f32.mrb[0].mxu0
    %4867 = vmatprep.mubr.f32.mxu0 0.0
    %4868 = vmatmul.mubr.f32.gmra.mrb[0].mxu0 %v4788
    %v4869 = vpop.f32.mrb[0].mxu0
    %v4870 = vadd.f32 %v4773, %v4869
    %v4871 = vpop.f32.mrb[0].mxu0
    %4872 = vmatprep.mubr.f32.mxu0 0.0
    %4873 = vmatmul.mubr.f32.gmra.mrb[0].mxu0 %v4791
    %v4874 = vpop.f32.mrb[0].mxu0
    %v4875 = vadd.f32 %v4778, %v4874
    %v4876 = vpop.f32.mrb[0].mxu0
    %4877 = vdwg.mxu0
    %s4878 = scalar_lea.vmem %s20, 64
    %v4879 = vld [vmem:[%s4878] sm:$0xff]
    %v4880 = vld [vmem:[%s4878 + $0x8] sm:$0xff]
    %v4881 = vld [vmem:[%s4878 + $0x10] sm:$0xff]
    %v4882 = vld [vmem:[%s4878 + $0x18] sm:$0xff]
    %v4884 = vsel %vm100, %v4657, 0
    %v4887 = vsel %vm100, %v4662, 0
    %v4890 = vsel %vm100, %v4667, 0
    %v4893 = vsel %vm100, %v4672, 0
    %4895 = vmatprep.subr.mxu0 0.0
    %4896 = vmatpush1.msra.mxu0 %v4879
    %4897 = vmatprep.subr.mxu0 0.0
    %4898 = vmatpush1.msra.mxu0 %v4880
    %4899 = vmatprep.subr.mxu0 0.0
    %4900 = vmatpush1.msra.mxu0 %v4881
    %4901 = vmatprep.subr.mxu0 0.0
    %4902 = vmatpush1.msra.mxu0 %v4882
    %4903 = vmatprep.subr.mxu0 0.0
    %4904 = vmatpush1.msra.mxu0 0.0
    %4905 = vmatprep.subr.mxu0 0.0
    %4906 = vmatpush1.msra.mxu0 0.0
    %4907 = vmatprep.subr.mxu0 0.0
    %4908 = vmatpush1.msra.mxu0 0.0
    %4909 = vmatprep.subr.mxu0 0.0
    %4910 = vmatpush1.msra.mxu0 0.0
    %4911 = vmatprep.subr.mxu0 0.0
    %4912 = vmatpush1.msra.mxu0 0.0
    %4913 = vmatprep.subr.mxu0 0.0
    %4914 = vmatpush1.msra.mxu0 0.0
    %4915 = vmatprep.subr.mxu0 0.0
    %4916 = vmatpush1.msra.mxu0 0.0
    %4917 = vmatprep.subr.mxu0 0.0
    %4918 = vmatpush1.msra.mxu0 0.0
    %4919 = vmatprep.subr.mxu0 0.0
    %4920 = vmatpush1.msra.mxu0 0.0
    %4921 = vmatprep.subr.mxu0 0.0
    %4922 = vmatpush1.msra.mxu0 0.0
    %4923 = vmatprep.subr.mxu0 0.0
    %4924 = vmatpush1.msra.mxu0 0.0
    %4925 = vmatprep.subr.mxu0 0.0
    %4926 = vmatpush1.msra.mxu0 0.0
    %4927 = vmatprep.subr.mxu0 0.0
    %4928 = vmatpush1.msra.mxu0 0.0
    %4929 = vmatprep.subr.mxu0 0.0
    %4930 = vmatpush1.msra.mxu0 0.0
    %4931 = vmatprep.subr.mxu0 0.0
    %4932 = vmatpush1.msra.mxu0 0.0
    %4933 = vmatprep.subr.mxu0 0.0
    %4934 = vmatpush1.msra.mxu0 0.0
    %4935 = vmatprep.subr.mxu0 0.0
    %4936 = vmatpush1.msra.mxu0 0.0
    %4937 = vmatprep.subr.mxu0 0.0
    %4938 = vmatpush1.msra.mxu0 0.0
    %4939 = vmatprep.subr.mxu0 0.0
    %4940 = vmatpush1.msra.mxu0 0.0
    %4941 = vmatprep.subr.mxu0 0.0
    %4942 = vmatpush1.msra.mxu0 0.0
    %4943 = vmatprep.subr.mxu0 0.0
    %4944 = vmatpush1.msra.mxu0 0.0
    %4945 = vmatprep.subr.mxu0 0.0
    %4946 = vmatpush1.msra.mxu0 0.0
    %4947 = vmatprep.subr.mxu0 0.0
    %4948 = vmatpush1.msra.mxu0 0.0
    %4949 = vmatprep.subr.mxu0 0.0
    %4950 = vmatpush1.msra.mxu0 0.0
    %4951 = vmatprep.subr.mxu0 0.0
    %4952 = vmatpush1.msra.mxu0 0.0
    %4953 = vmatprep.subr.mxu0 0.0
    %4954 = vmatpush1.msra.mxu0 0.0
    %4955 = vmatprep.subr.mxu0 0.0
    %4956 = vmatpush1.msra.mxu0 0.0
    %4957 = vmatprep.subr.mxu0 0.0
    %4958 = vmatpush1.msra.mxu0 0.0
    %4959 = vmatprep.mubr.f32.mxu0 0.0
    %4960 = vmatmul.mubr.f32.gmra.mrb[0].mxu0 %v4884
    %v4961 = vpop.f32.mrb[0].mxu0
    %v4962 = vadd.f32 0.0, %v4961
    %v4963 = vpop.f32.mrb[0].mxu0
    %4964 = vmatprep.mubr.f32.mxu0 0.0
    %4965 = vmatmul.mubr.f32.gmra.mrb[0].mxu0 %v4887
    %v4966 = vpop.f32.mrb[0].mxu0
    %v4967 = vadd.f32 0.0, %v4966
    %v4968 = vpop.f32.mrb[0].mxu0
    %4969 = vmatprep.mubr.f32.mxu0 0.0
    %4970 = vmatmul.mubr.f32.gmra.mrb[0].mxu0 %v4890
    %v4971 = vpop.f32.mrb[0].mxu0
    %v4972 = vadd.f32 0.0, %v4971
    %v4973 = vpop.f32.mrb[0].mxu0
    %4974 = vmatprep.mubr.f32.mxu0 0.0
    %4975 = vmatmul.mubr.f32.gmra.mrb[0].mxu0 %v4893
    %v4976 = vpop.f32.mrb[0].mxu0
    %v4977 = vadd.f32 0.0, %v4976
    %v4978 = vpop.f32.mrb[0].mxu0
    %4979 = vdwg.mxu0
    %v4980 = vadd.f32 %v4860, %v4962
    %v4981 = vadd.f32 %v4865, %v4967
    %v4982 = vadd.f32 %v4870, %v4972
    %v4983 = vadd.f32 %v4875, %v4977
    %v4984 = vmax.f32 %v4980, 0.0
    %v4985 = vmax.f32 %v4981, 0.0
    %v4986 = vmax.f32 %v4982, 0.0
    %v4987 = vmax.f32 %v4983, 0.0
    %v4988 = vld [vmem:[%s21] sm:$0xff]
    %v4989 = vld [vmem:[%s21 + $0x8] sm:$0xff]
    %v4991 = vsel %vm2094, %v4984, 0
    %v4994 = vsel %vm2094, %v4985, 0
    %v4997 = vsel %vm2094, %v4986, 0
    %v5000 = vsel %vm2094, %v4987, 0
    %5002 = vmatprep.subr.mxu0 0.0
    %5003 = vmatpush1.msra.mxu0 %v4988
    %5004 = vmatprep.subr.mxu0 0.0
    %5005 = vmatpush1.msra.mxu0 %v4989
    %5006 = vmatprep.subr.mxu0 0.0
    %5007 = vmatpush1.msra.mxu0 0.0
    %5008 = vmatprep.subr.mxu0 0.0
    %5009 = vmatpush1.msra.mxu0 0.0
    %5010 = vmatprep.subr.mxu0 0.0
    %5011 = vmatpush1.msra.mxu0 0.0
    %5012 = vmatprep.subr.mxu0 0.0
    %5013 = vmatpush1.msra.mxu0 0.0
    %5014 = vmatprep.subr.mxu0 0.0
    %5015 = vmatpush1.msra.mxu0 0.0
    %5016 = vmatprep.subr.mxu0 0.0
    %5017 = vmatpush1.msra.mxu0 0.0
    %5018 = vmatprep.subr.mxu0 0.0
    %5019 = vmatpush1.msra.mxu0 0.0
    %5020 = vmatprep.subr.mxu0 0.0
    %5021 = vmatpush1.msra.mxu0 0.0
    %5022 = vmatprep.subr.mxu0 0.0
    %5023 = vmatpush1.msra.mxu0 0.0
    %5024 = vmatprep.subr.mxu0 0.0
    %5025 = vmatpush1.msra.mxu0 0.0
    %5026 = vmatprep.subr.mxu0 0.0
    %5027 = vmatpush1.msra.mxu0 0.0
    %5028 = vmatprep.subr.mxu0 0.0
    %5029 = vmatpush1.msra.mxu0 0.0
    %5030 = vmatprep.subr.mxu0 0.0
    %5031 = vmatpush1.msra.mxu0 0.0
    %5032 = vmatprep.subr.mxu0 0.0
    %5033 = vmatpush1.msra.mxu0 0.0
    %5034 = vmatprep.subr.mxu0 0.0
    %5035 = vmatpush1.msra.mxu0 0.0
    %5036 = vmatprep.subr.mxu0 0.0
    %5037 = vmatpush1.msra.mxu0 0.0
    %5038 = vmatprep.subr.mxu0 0.0
    %5039 = vmatpush1.msra.mxu0 0.0
    %5040 = vmatprep.subr.mxu0 0.0
    %5041 = vmatpush1.msra.mxu0 0.0
    %5042 = vmatprep.subr.mxu0 0.0
    %5043 = vmatpush1.msra.mxu0 0.0
    %5044 = vmatprep.subr.mxu0 0.0
    %5045 = vmatpush1.msra.mxu0 0.0
    %5046 = vmatprep.subr.mxu0 0.0
    %5047 = vmatpush1.msra.mxu0 0.0
    %5048 = vmatprep.subr.mxu0 0.0
    %5049 = vmatpush1.msra.mxu0 0.0
    %5050 = vmatprep.subr.mxu0 0.0
    %5051 = vmatpush1.msra.mxu0 0.0
    %5052 = vmatprep.subr.mxu0 0.0
    %5053 = vmatpush1.msra.mxu0 0.0
    %5054 = vmatprep.subr.mxu0 0.0
    %5055 = vmatpush1.msra.mxu0 0.0
    %5056 = vmatprep.subr.mxu0 0.0
    %5057 = vmatpush1.msra.mxu0 0.0
    %5058 = vmatprep.subr.mxu0 0.0
    %5059 = vmatpush1.msra.mxu0 0.0
    %5060 = vmatprep.subr.mxu0 0.0
    %5061 = vmatpush1.msra.mxu0 0.0
    %5062 = vmatprep.subr.mxu0 0.0
    %5063 = vmatpush1.msra.mxu0 0.0
    %5064 = vmatprep.subr.mxu0 0.0
    %5065 = vmatpush1.msra.mxu0 0.0
    %5066 = vmatprep.mubr.f32.mxu0 0.0
    %5067 = vmatmul.mubr.f32.gmra.mrb[0].mxu0 %v4991
    %v5068 = vpop.f32.mrb[0].mxu0
    %v5069 = vadd.f32 0.0, %v5068
    %v5070 = vpop.f32.mrb[0].mxu0
    %5071 = vmatprep.mubr.f32.mxu0 0.0
    %5072 = vmatmul.mubr.f32.gmra.mrb[0].mxu0 %v4994
    %v5073 = vpop.f32.mrb[0].mxu0
    %v5074 = vadd.f32 0.0, %v5073
    %v5075 = vpop.f32.mrb[0].mxu0
    %5076 = vmatprep.mubr.f32.mxu0 0.0
    %5077 = vmatmul.mubr.f32.gmra.mrb[0].mxu0 %v4997
    %v5078 = vpop.f32.mrb[0].mxu0
    %v5079 = vadd.f32 0.0, %v5078
    %v5080 = vpop.f32.mrb[0].mxu0
    %5081 = vmatprep.mubr.f32.mxu0 0.0
    %5082 = vmatmul.mubr.f32.gmra.mrb[0].mxu0 %v5000
    %v5083 = vpop.f32.mrb[0].mxu0
    %v5084 = vadd.f32 0.0, %v5083
    %v5085 = vpop.f32.mrb[0].mxu0
    %5086 = vdwg.mxu0
    %v5087 = vadd.f32 %v4497, %v5069
    %v5088 = vadd.f32 %v4498, %v5074
    %v5089 = vadd.f32 %v4499, %v5079
    %v5090 = vadd.f32 %v4500, %v5084
    %v5091 = vmax.f32 %v5087, 0.0
    %v5092 = vmax.f32 %v5088, 0.0
    %v5093 = vmax.f32 %v5089, 0.0
    %v5094 = vmax.f32 %v5090, 0.0
    %5095 = vmatprep.subr.mxu0 0.0
    %5096 = vmatpush1.msra.mxu0 %v5091
    %5097 = vmatprep.subr.mxu0 0.0
    %5098 = vmatpush1.msra.mxu0 %v5092
    %5099 = vmatprep.subr.mxu0 0.0
    %5100 = vmatpush1.msra.mxu0 %v5093
    %5101 = vmatprep.subr.mxu0 0.0
    %5102 = vmatpush1.msra.mxu0 %v5094
    %5103 = vmatprep.subr.mxu0 0.0
    %5104 = vmatpush1.msra.mxu0 0.0
    %5105 = vmatprep.subr.mxu0 0.0
    %5106 = vmatpush1.msra.mxu0 0.0
    %5107 = vmatprep.subr.mxu0 0.0
    %5108 = vmatpush1.msra.mxu0 0.0
    %5109 = vmatprep.subr.mxu0 0.0
    %5110 = vmatpush1.msra.mxu0 0.0
    %5111 = vmatprep.subr.mxu0 0.0
    %5112 = vmatpush1.msra.mxu0 0.0
    %5113 = vmatprep.subr.mxu0 0.0
    %5114 = vmatpush1.msra.mxu0 0.0
    %5115 = vmatprep.subr.mxu0 0.0
    %5116 = vmatpush1.msra.mxu0 0.0
    %5117 = vmatprep.subr.mxu0 0.0
    %5118 = vmatpush1.msra.mxu0 0.0
    %5119 = vmatprep.subr.mxu0 0.0
    %5120 = vmatpush1.msra.mxu0 0.0
    %5121 = vmatprep.subr.mxu0 0.0
    %5122 = vmatpush1.msra.mxu0 0.0
    %5123 = vmatprep.subr.mxu0 0.0
    %5124 = vmatpush1.msra.mxu0 0.0
    %5125 = vmatprep.subr.mxu0 0.0
    %5126 = vmatpush1.msra.mxu0 0.0
    %5127 = vmatprep.subr.mxu0 0.0
    %5128 = vmatpush1.msra.mxu0 0.0
    %5129 = vmatprep.subr.mxu0 0.0
    %5130 = vmatpush1.msra.mxu0 0.0
    %5131 = vmatprep.subr.mxu0 0.0
    %5132 = vmatpush1.msra.mxu0 0.0
    %5133 = vmatprep.subr.mxu0 0.0
    %5134 = vmatpush1.msra.mxu0 0.0
    %5135 = vmatprep.subr.mxu0 0.0
    %5136 = vmatpush1.msra.mxu0 0.0
    %5137 = vmatprep.subr.mxu0 0.0
    %5138 = vmatpush1.msra.mxu0 0.0
    %5139 = vmatprep.subr.mxu0 0.0
    %5140 = vmatpush1.msra.mxu0 0.0
    %5141 = vmatprep.subr.mxu0 0.0
    %5142 = vmatpush1.msra.mxu0 0.0
    %5143 = vmatprep.subr.mxu0 0.0
    %5144 = vmatpush1.msra.mxu0 0.0
    %5145 = vmatprep.subr.mxu0 0.0
    %5146 = vmatpush1.msra.mxu0 0.0
    %5147 = vmatprep.subr.mxu0 0.0
    %5148 = vmatpush1.msra.mxu0 0.0
    %5149 = vmatprep.subr.mxu0 0.0
    %5150 = vmatpush1.msra.mxu0 0.0
    %5151 = vmatprep.subr.mxu0 0.0
    %5152 = vmatpush1.msra.mxu0 0.0
    %5153 = vmatprep.subr.mxu0 0.0
    %5154 = vmatpush1.msra.mxu0 0.0
    %5155 = vmatprep.subr.mxu0 0.0
    %5156 = vmatpush1.msra.mxu0 0.0
    %5157 = vmatprep.subr.mxu0 0.0
    %5158 = vmatpush1.msra.mxu0 0.0
    %5159 = vmatprep.mubr.f32.mxu0 0.0
    %5160 = vmatmul.mubr.f32.gmra.mrb[0].mxu0 %v102
    %v5161 = vpop.f32.mrb[0].mxu0
    %v5162 = vadd.f32 0.0, %v5161
    %v5163 = vpop.f32.mrb[0].mxu0
    %5164 = vmatprep.mubr.f32.mxu0 0.0
    %5165 = vmatmul.mubr.f32.gmra.mrb[0].mxu0 %v105
    %v5166 = vpop.f32.mrb[0].mxu0
    %v5167 = vadd.f32 0.0, %v5166
    %v5168 = vpop.f32.mrb[0].mxu0
    %5169 = vmatprep.mubr.f32.mxu0 0.0
    %5170 = vmatmul.mubr.f32.gmra.mrb[0].mxu0 %v108
    %v5171 = vpop.f32.mrb[0].mxu0
    %v5172 = vadd.f32 0.0, %v5171
    %v5173 = vpop.f32.mrb[0].mxu0
    %5174 = vmatprep.mubr.f32.mxu0 0.0
    %5175 = vmatmul.mubr.f32.gmra.mrb[0].mxu0 %v111
    %v5176 = vpop.f32.mrb[0].mxu0
    %v5177 = vadd.f32 0.0, %v5176
    %v5178 = vpop.f32.mrb[0].mxu0
    %5179 = vdwg.mxu0
    %5180 = vmatprep.subr.mxu0 0.0
    %5181 = vmatpush1.msra.mxu0 %v5091
    %5182 = vmatprep.subr.mxu0 0.0
    %5183 = vmatpush1.msra.mxu0 %v5092
    %5184 = vmatprep.subr.mxu0 0.0
    %5185 = vmatpush1.msra.mxu0 %v5093
    %5186 = vmatprep.subr.mxu0 0.0
    %5187 = vmatpush1.msra.mxu0 %v5094
    %5188 = vmatprep.subr.mxu0 0.0
    %5189 = vmatpush1.msra.mxu0 0.0
    %5190 = vmatprep.subr.mxu0 0.0
    %5191 = vmatpush1.msra.mxu0 0.0
    %5192 = vmatprep.subr.mxu0 0.0
    %5193 = vmatpush1.msra.mxu0 0.0
    %5194 = vmatprep.subr.mxu0 0.0
    %5195 = vmatpush1.msra.mxu0 0.0
    %5196 = vmatprep.subr.mxu0 0.0
    %5197 = vmatpush1.msra.mxu0 0.0
    %5198 = vmatprep.subr.mxu0 0.0
    %5199 = vmatpush1.msra.mxu0 0.0
    %5200 = vmatprep.subr.mxu0 0.0
    %5201 = vmatpush1.msra.mxu0 0.0
    %5202 = vmatprep.subr.mxu0 0.0
    %5203 = vmatpush1.msra.mxu0 0.0
    %5204 = vmatprep.subr.mxu0 0.0
    %5205 = vmatpush1.msra.mxu0 0.0
    %5206 = vmatprep.subr.mxu0 0.0
    %5207 = vmatpush1.msra.mxu0 0.0
    %5208 = vmatprep.subr.mxu0 0.0
    %5209 = vmatpush1.msra.mxu0 0.0
    %5210 = vmatprep.subr.mxu0 0.0
    %5211 = vmatpush1.msra.mxu0 0.0
    %5212 = vmatprep.subr.mxu0 0.0
    %5213 = vmatpush1.msra.mxu0 0.0
    %5214 = vmatprep.subr.mxu0 0.0
    %5215 = vmatpush1.msra.mxu0 0.0
    %5216 = vmatprep.subr.mxu0 0.0
    %5217 = vmatpush1.msra.mxu0 0.0
    %5218 = vmatprep.subr.mxu0 0.0
    %5219 = vmatpush1.msra.mxu0 0.0
    %5220 = vmatprep.subr.mxu0 0.0
    %5221 = vmatpush1.msra.mxu0 0.0
    %5222 = vmatprep.subr.mxu0 0.0
    %5223 = vmatpush1.msra.mxu0 0.0
    %5224 = vmatprep.subr.mxu0 0.0
    %5225 = vmatpush1.msra.mxu0 0.0
    %5226 = vmatprep.subr.mxu0 0.0
    %5227 = vmatpush1.msra.mxu0 0.0
    %5228 = vmatprep.subr.mxu0 0.0
    %5229 = vmatpush1.msra.mxu0 0.0
    %5230 = vmatprep.subr.mxu0 0.0
    %5231 = vmatpush1.msra.mxu0 0.0
    %5232 = vmatprep.subr.mxu0 0.0
    %5233 = vmatpush1.msra.mxu0 0.0
    %5234 = vmatprep.subr.mxu0 0.0
    %5235 = vmatpush1.msra.mxu0 0.0
    %5236 = vmatprep.subr.mxu0 0.0
    %5237 = vmatpush1.msra.mxu0 0.0
    %5238 = vmatprep.subr.mxu0 0.0
    %5239 = vmatpush1.msra.mxu0 0.0
    %5240 = vmatprep.subr.mxu0 0.0
    %5241 = vmatpush1.msra.mxu0 0.0
    %5242 = vmatprep.subr.mxu0 0.0
    %5243 = vmatpush1.msra.mxu0 0.0
    %5244 = vmatprep.mubr.f32.mxu0 0.0
    %5245 = vmatmul.mubr.f32.gmra.mrb[0].mxu0 %v199
    %v5246 = vpop.f32.mrb[0].mxu0
    %v5247 = vadd.f32 0.0, %v5246
    %v5248 = vpop.f32.mrb[0].mxu0
    %5249 = vmatprep.mubr.f32.mxu0 0.0
    %5250 = vmatmul.mubr.f32.gmra.mrb[0].mxu0 %v202
    %v5251 = vpop.f32.mrb[0].mxu0
    %v5252 = vadd.f32 0.0, %v5251
    %v5253 = vpop.f32.mrb[0].mxu0
    %5254 = vmatprep.mubr.f32.mxu0 0.0
    %5255 = vmatmul.mubr.f32.gmra.mrb[0].mxu0 %v205
    %v5256 = vpop.f32.mrb[0].mxu0
    %v5257 = vadd.f32 0.0, %v5256
    %v5258 = vpop.f32.mrb[0].mxu0
    %5259 = vmatprep.mubr.f32.mxu0 0.0
    %5260 = vmatmul.mubr.f32.gmra.mrb[0].mxu0 %v208
    %v5261 = vpop.f32.mrb[0].mxu0
    %v5262 = vadd.f32 0.0, %v5261
    %v5263 = vpop.f32.mrb[0].mxu0
    %5264 = vdwg.mxu0
    %v5265 = vld [vmem:[%s22] sm:$0xff]
    %v5266 = vld [vmem:[%s22 + $0x8] sm:$0xff]
    %v5267 = vld [vmem:[%s22 + $0x10] sm:$0xff]
    %v5268 = vld [vmem:[%s22 + $0x18] sm:$0xff]
    %s5269 = scalar_lea.vmem %s22, 32
    %v5270 = vld [vmem:[%s5269] sm:$0xff]
    %v5271 = vld [vmem:[%s5269 + $0x8] sm:$0xff]
    %v5272 = vld [vmem:[%s5269 + $0x10] sm:$0xff]
    %v5273 = vld [vmem:[%s5269 + $0x18] sm:$0xff]
    %v5275 = vsel %vm100, %v5091, 0
    %v5278 = vsel %vm100, %v5092, 0
    %v5281 = vsel %vm100, %v5093, 0
    %v5284 = vsel %vm100, %v5094, 0
    %5286 = vmatprep.subr.mxu0 0.0
    %5287 = vmatpush1.msra.mxu0 %v5270
    %5288 = vmatprep.subr.mxu0 0.0
    %5289 = vmatpush1.msra.mxu0 %v5271
    %5290 = vmatprep.subr.mxu0 0.0
    %5291 = vmatpush1.msra.mxu0 %v5272
    %5292 = vmatprep.subr.mxu0 0.0
    %5293 = vmatpush1.msra.mxu0 %v5273
    %5294 = vmatprep.subr.mxu0 0.0
    %5295 = vmatpush1.msra.mxu0 0.0
    %5296 = vmatprep.subr.mxu0 0.0
    %5297 = vmatpush1.msra.mxu0 0.0
    %5298 = vmatprep.subr.mxu0 0.0
    %5299 = vmatpush1.msra.mxu0 0.0
    %5300 = vmatprep.subr.mxu0 0.0
    %5301 = vmatpush1.msra.mxu0 0.0
    %5302 = vmatprep.subr.mxu0 0.0
    %5303 = vmatpush1.msra.mxu0 0.0
    %5304 = vmatprep.subr.mxu0 0.0
    %5305 = vmatpush1.msra.mxu0 0.0
    %5306 = vmatprep.subr.mxu0 0.0
    %5307 = vmatpush1.msra.mxu0 0.0
    %5308 = vmatprep.subr.mxu0 0.0
    %5309 = vmatpush1.msra.mxu0 0.0
    %5310 = vmatprep.subr.mxu0 0.0
    %5311 = vmatpush1.msra.mxu0 0.0
    %5312 = vmatprep.subr.mxu0 0.0
    %5313 = vmatpush1.msra.mxu0 0.0
    %5314 = vmatprep.subr.mxu0 0.0
    %5315 = vmatpush1.msra.mxu0 0.0
    %5316 = vmatprep.subr.mxu0 0.0
    %5317 = vmatpush1.msra.mxu0 0.0
    %5318 = vmatprep.subr.mxu0 0.0
    %5319 = vmatpush1.msra.mxu0 0.0
    %5320 = vmatprep.subr.mxu0 0.0
    %5321 = vmatpush1.msra.mxu0 0.0
    %5322 = vmatprep.subr.mxu0 0.0
    %5323 = vmatpush1.msra.mxu0 0.0
    %5324 = vmatprep.subr.mxu0 0.0
    %5325 = vmatpush1.msra.mxu0 0.0
    %5326 = vmatprep.subr.mxu0 0.0
    %5327 = vmatpush1.msra.mxu0 0.0
    %5328 = vmatprep.subr.mxu0 0.0
    %5329 = vmatpush1.msra.mxu0 0.0
    %5330 = vmatprep.subr.mxu0 0.0
    %5331 = vmatpush1.msra.mxu0 0.0
    %5332 = vmatprep.subr.mxu0 0.0
    %5333 = vmatpush1.msra.mxu0 0.0
    %5334 = vmatprep.subr.mxu0 0.0
    %5335 = vmatpush1.msra.mxu0 0.0
    %5336 = vmatprep.subr.mxu0 0.0
    %5337 = vmatpush1.msra.mxu0 0.0
    %5338 = vmatprep.subr.mxu0 0.0
    %5339 = vmatpush1.msra.mxu0 0.0
    %5340 = vmatprep.subr.mxu0 0.0
    %5341 = vmatpush1.msra.mxu0 0.0
    %5342 = vmatprep.subr.mxu0 0.0
    %5343 = vmatpush1.msra.mxu0 0.0
    %5344 = vmatprep.subr.mxu0 0.0
    %5345 = vmatpush1.msra.mxu0 0.0
    %5346 = vmatprep.subr.mxu0 0.0
    %5347 = vmatpush1.msra.mxu0 0.0
    %5348 = vmatprep.subr.mxu0 0.0
    %5349 = vmatpush1.msra.mxu0 0.0
    %5350 = vmatprep.mubr.f32.mxu0 0.0
    %5351 = vmatmul.mubr.f32.gmra.mrb[0].mxu0 %v5275
    %v5352 = vpop.f32.mrb[0].mxu0
    %v5353 = vadd.f32 0.0, %v5352
    %v5354 = vpop.f32.mrb[0].mxu0
    %5355 = vmatprep.mubr.f32.mxu0 0.0
    %5356 = vmatmul.mubr.f32.gmra.mrb[0].mxu0 %v5278
    %v5357 = vpop.f32.mrb[0].mxu0
    %v5358 = vadd.f32 0.0, %v5357
    %v5359 = vpop.f32.mrb[0].mxu0
    %5360 = vmatprep.mubr.f32.mxu0 0.0
    %5361 = vmatmul.mubr.f32.gmra.mrb[0].mxu0 %v5281
    %v5362 = vpop.f32.mrb[0].mxu0
    %v5363 = vadd.f32 0.0, %v5362
    %v5364 = vpop.f32.mrb[0].mxu0
    %5365 = vmatprep.mubr.f32.mxu0 0.0
    %5366 = vmatmul.mubr.f32.gmra.mrb[0].mxu0 %v5284
    %v5367 = vpop.f32.mrb[0].mxu0
    %v5368 = vadd.f32 0.0, %v5367
    %v5369 = vpop.f32.mrb[0].mxu0
    %5370 = vdwg.mxu0
    %v5372 = vsel %vm100, %v5162, 0
    %v5375 = vsel %vm100, %v5167, 0
    %v5378 = vsel %vm100, %v5172, 0
    %v5381 = vsel %vm100, %v5177, 0
    %5383 = vmatprep.subr.mxu0 0.0
    %5384 = vmatpush1.msra.mxu0 %v5265
    %5385 = vmatprep.subr.mxu0 0.0
    %5386 = vmatpush1.msra.mxu0 %v5266
    %5387 = vmatprep.subr.mxu0 0.0
    %5388 = vmatpush1.msra.mxu0 %v5267
    %5389 = vmatprep.subr.mxu0 0.0
    %5390 = vmatpush1.msra.mxu0 %v5268
    %5391 = vmatprep.subr.mxu0 0.0
    %5392 = vmatpush1.msra.mxu0 0.0
    %5393 = vmatprep.subr.mxu0 0.0
    %5394 = vmatpush1.msra.mxu0 0.0
    %5395 = vmatprep.subr.mxu0 0.0
    %5396 = vmatpush1.msra.mxu0 0.0
    %5397 = vmatprep.subr.mxu0 0.0
    %5398 = vmatpush1.msra.mxu0 0.0
    %5399 = vmatprep.subr.mxu0 0.0
    %5400 = vmatpush1.msra.mxu0 0.0
    %5401 = vmatprep.subr.mxu0 0.0
    %5402 = vmatpush1.msra.mxu0 0.0
    %5403 = vmatprep.subr.mxu0 0.0
    %5404 = vmatpush1.msra.mxu0 0.0
    %5405 = vmatprep.subr.mxu0 0.0
    %5406 = vmatpush1.msra.mxu0 0.0
    %5407 = vmatprep.subr.mxu0 0.0
    %5408 = vmatpush1.msra.mxu0 0.0
    %5409 = vmatprep.subr.mxu0 0.0
    %5410 = vmatpush1.msra.mxu0 0.0
    %5411 = vmatprep.subr.mxu0 0.0
    %5412 = vmatpush1.msra.mxu0 0.0
    %5413 = vmatprep.subr.mxu0 0.0
    %5414 = vmatpush1.msra.mxu0 0.0
    %5415 = vmatprep.subr.mxu0 0.0
    %5416 = vmatpush1.msra.mxu0 0.0
    %5417 = vmatprep.subr.mxu0 0.0
    %5418 = vmatpush1.msra.mxu0 0.0
    %5419 = vmatprep.subr.mxu0 0.0
    %5420 = vmatpush1.msra.mxu0 0.0
    %5421 = vmatprep.subr.mxu0 0.0
    %5422 = vmatpush1.msra.mxu0 0.0
    %5423 = vmatprep.subr.mxu0 0.0
    %5424 = vmatpush1.msra.mxu0 0.0
    %5425 = vmatprep.subr.mxu0 0.0
    %5426 = vmatpush1.msra.mxu0 0.0
    %5427 = vmatprep.subr.mxu0 0.0
    %5428 = vmatpush1.msra.mxu0 0.0
    %5429 = vmatprep.subr.mxu0 0.0
    %5430 = vmatpush1.msra.mxu0 0.0
    %5431 = vmatprep.subr.mxu0 0.0
    %5432 = vmatpush1.msra.mxu0 0.0
    %5433 = vmatprep.subr.mxu0 0.0
    %5434 = vmatpush1.msra.mxu0 0.0
    %5435 = vmatprep.subr.mxu0 0.0
    %5436 = vmatpush1.msra.mxu0 0.0
    %5437 = vmatprep.subr.mxu0 0.0
    %5438 = vmatpush1.msra.mxu0 0.0
    %5439 = vmatprep.subr.mxu0 0.0
    %5440 = vmatpush1.msra.mxu0 0.0
    %5441 = vmatprep.subr.mxu0 0.0
    %5442 = vmatpush1.msra.mxu0 0.0
    %5443 = vmatprep.subr.mxu0 0.0
    %5444 = vmatpush1.msra.mxu0 0.0
    %5445 = vmatprep.subr.mxu0 0.0
    %5446 = vmatpush1.msra.mxu0 0.0
    %5447 = vmatprep.mubr.f32.mxu0 0.0
    %5448 = vmatmul.mubr.f32.gmra.mrb[0].mxu0 %v5372
    %v5449 = vpop.f32.mrb[0].mxu0
    %v5450 = vadd.f32 %v5353, %v5449
    %v5451 = vpop.f32.mrb[0].mxu0
    %5452 = vmatprep.mubr.f32.mxu0 0.0
    %5453 = vmatmul.mubr.f32.gmra.mrb[0].mxu0 %v5375
    %v5454 = vpop.f32.mrb[0].mxu0
    %v5455 = vadd.f32 %v5358, %v5454
    %v5456 = vpop.f32.mrb[0].mxu0
    %5457 = vmatprep.mubr.f32.mxu0 0.0
    %5458 = vmatmul.mubr.f32.gmra.mrb[0].mxu0 %v5378
    %v5459 = vpop.f32.mrb[0].mxu0
    %v5460 = vadd.f32 %v5363, %v5459
    %v5461 = vpop.f32.mrb[0].mxu0
    %5462 = vmatprep.mubr.f32.mxu0 0.0
    %5463 = vmatmul.mubr.f32.gmra.mrb[0].mxu0 %v5381
    %v5464 = vpop.f32.mrb[0].mxu0
    %v5465 = vadd.f32 %v5368, %v5464
    %v5466 = vpop.f32.mrb[0].mxu0
    %5467 = vdwg.mxu0
    %s5468 = scalar_lea.vmem %s22, 64
    %v5469 = vld [vmem:[%s5468] sm:$0xff]
    %v5470 = vld [vmem:[%s5468 + $0x8] sm:$0xff]
    %v5471 = vld [vmem:[%s5468 + $0x10] sm:$0xff]
    %v5472 = vld [vmem:[%s5468 + $0x18] sm:$0xff]
    %v5474 = vsel %vm100, %v5247, 0
    %v5477 = vsel %vm100, %v5252, 0
    %v5480 = vsel %vm100, %v5257, 0
    %v5483 = vsel %vm100, %v5262, 0
    %5485 = vmatprep.subr.mxu0 0.0
    %5486 = vmatpush1.msra.mxu0 %v5469
    %5487 = vmatprep.subr.mxu0 0.0
    %5488 = vmatpush1.msra.mxu0 %v5470
    %5489 = vmatprep.subr.mxu0 0.0
    %5490 = vmatpush1.msra.mxu0 %v5471
    %5491 = vmatprep.subr.mxu0 0.0
    %5492 = vmatpush1.msra.mxu0 %v5472
    %5493 = vmatprep.subr.mxu0 0.0
    %5494 = vmatpush1.msra.mxu0 0.0
    %5495 = vmatprep.subr.mxu0 0.0
    %5496 = vmatpush1.msra.mxu0 0.0
    %5497 = vmatprep.subr.mxu0 0.0
    %5498 = vmatpush1.msra.mxu0 0.0
    %5499 = vmatprep.subr.mxu0 0.0
    %5500 = vmatpush1.msra.mxu0 0.0
    %5501 = vmatprep.subr.mxu0 0.0
    %5502 = vmatpush1.msra.mxu0 0.0
    %5503 = vmatprep.subr.mxu0 0.0
    %5504 = vmatpush1.msra.mxu0 0.0
    %5505 = vmatprep.subr.mxu0 0.0
    %5506 = vmatpush1.msra.mxu0 0.0
    %5507 = vmatprep.subr.mxu0 0.0
    %5508 = vmatpush1.msra.mxu0 0.0
    %5509 = vmatprep.subr.mxu0 0.0
    %5510 = vmatpush1.msra.mxu0 0.0
    %5511 = vmatprep.subr.mxu0 0.0
    %5512 = vmatpush1.msra.mxu0 0.0
    %5513 = vmatprep.subr.mxu0 0.0
    %5514 = vmatpush1.msra.mxu0 0.0
    %5515 = vmatprep.subr.mxu0 0.0
    %5516 = vmatpush1.msra.mxu0 0.0
    %5517 = vmatprep.subr.mxu0 0.0
    %5518 = vmatpush1.msra.mxu0 0.0
    %5519 = vmatprep.subr.mxu0 0.0
    %5520 = vmatpush1.msra.mxu0 0.0
    %5521 = vmatprep.subr.mxu0 0.0
    %5522 = vmatpush1.msra.mxu0 0.0
    %5523 = vmatprep.subr.mxu0 0.0
    %5524 = vmatpush1.msra.mxu0 0.0
    %5525 = vmatprep.subr.mxu0 0.0
    %5526 = vmatpush1.msra.mxu0 0.0
    %5527 = vmatprep.subr.mxu0 0.0
    %5528 = vmatpush1.msra.mxu0 0.0
    %5529 = vmatprep.subr.mxu0 0.0
    %5530 = vmatpush1.msra.mxu0 0.0
    %5531 = vmatprep.subr.mxu0 0.0
    %5532 = vmatpush1.msra.mxu0 0.0
    %5533 = vmatprep.subr.mxu0 0.0
    %5534 = vmatpush1.msra.mxu0 0.0
    %5535 = vmatprep.subr.mxu0 0.0
    %5536 = vmatpush1.msra.mxu0 0.0
    %5537 = vmatprep.subr.mxu0 0.0
    %5538 = vmatpush1.msra.mxu0 0.0
    %5539 = vmatprep.subr.mxu0 0.0
    %5540 = vmatpush1.msra.mxu0 0.0
    %5541 = vmatprep.subr.mxu0 0.0
    %5542 = vmatpush1.msra.mxu0 0.0
    %5543 = vmatprep.subr.mxu0 0.0
    %5544 = vmatpush1.msra.mxu0 0.0
    %5545 = vmatprep.subr.mxu0 0.0
    %5546 = vmatpush1.msra.mxu0 0.0
    %5547 = vmatprep.subr.mxu0 0.0
    %5548 = vmatpush1.msra.mxu0 0.0
    %5549 = vmatprep.mubr.f32.mxu0 0.0
    %5550 = vmatmul.mubr.f32.gmra.mrb[0].mxu0 %v5474
    %v5551 = vpop.f32.mrb[0].mxu0
    %v5552 = vadd.f32 0.0, %v5551
    %v5553 = vpop.f32.mrb[0].mxu0
    %5554 = vmatprep.mubr.f32.mxu0 0.0
    %5555 = vmatmul.mubr.f32.gmra.mrb[0].mxu0 %v5477
    %v5556 = vpop.f32.mrb[0].mxu0
    %v5557 = vadd.f32 0.0, %v5556
    %v5558 = vpop.f32.mrb[0].mxu0
    %5559 = vmatprep.mubr.f32.mxu0 0.0
    %5560 = vmatmul.mubr.f32.gmra.mrb[0].mxu0 %v5480
    %v5561 = vpop.f32.mrb[0].mxu0
    %v5562 = vadd.f32 0.0, %v5561
    %v5563 = vpop.f32.mrb[0].mxu0
    %5564 = vmatprep.mubr.f32.mxu0 0.0
    %5565 = vmatmul.mubr.f32.gmra.mrb[0].mxu0 %v5483
    %v5566 = vpop.f32.mrb[0].mxu0
    %v5567 = vadd.f32 0.0, %v5566
    %v5568 = vpop.f32.mrb[0].mxu0
    %5569 = vdwg.mxu0
    %v5570 = vadd.f32 %v5450, %v5552
    %v5571 = vadd.f32 %v5455, %v5557
    %v5572 = vadd.f32 %v5460, %v5562
    %v5573 = vadd.f32 %v5465, %v5567
    %v5574 = vld [vmem:[%s23] sm:$0x1]
    %v5576 = vlaneseq
    %v5577 = vshrl.u32 %v5576, 7
    %v5578 = vsub.s32 0, %v5577
    %v5579 = vrot.slane %v5574, %v5578
    %v5581 = vadd.f32 %v5570, %v5579
    %v5582 = vadd.f32 %v5571, %v5579
    %v5583 = vadd.f32 %v5572, %v5579
    %v5584 = vadd.f32 %v5573, %v5579
    %v5585 = vmax.f32 %v5581, 0.0
    %v5586 = vmax.f32 %v5582, 0.0
    %v5587 = vmax.f32 %v5583, 0.0
    %v5588 = vmax.f32 %v5584, 0.0
    %5589 = vmatprep.subr.mxu0 0.0
    %5590 = vmatpush1.msra.mxu0 %v5585
    %5591 = vmatprep.subr.mxu0 0.0
    %5592 = vmatpush1.msra.mxu0 %v5586
    %5593 = vmatprep.subr.mxu0 0.0
    %5594 = vmatpush1.msra.mxu0 %v5587
    %5595 = vmatprep.subr.mxu0 0.0
    %5596 = vmatpush1.msra.mxu0 %v5588
    %5597 = vmatprep.subr.mxu0 0.0
    %5598 = vmatpush1.msra.mxu0 0.0
    %5599 = vmatprep.subr.mxu0 0.0
    %5600 = vmatpush1.msra.mxu0 0.0
    %5601 = vmatprep.subr.mxu0 0.0
    %5602 = vmatpush1.msra.mxu0 0.0
    %5603 = vmatprep.subr.mxu0 0.0
    %5604 = vmatpush1.msra.mxu0 0.0
    %5605 = vmatprep.subr.mxu0 0.0
    %5606 = vmatpush1.msra.mxu0 0.0
    %5607 = vmatprep.subr.mxu0 0.0
    %5608 = vmatpush1.msra.mxu0 0.0
    %5609 = vmatprep.subr.mxu0 0.0
    %5610 = vmatpush1.msra.mxu0 0.0
    %5611 = vmatprep.subr.mxu0 0.0
    %5612 = vmatpush1.msra.mxu0 0.0
    %5613 = vmatprep.subr.mxu0 0.0
    %5614 = vmatpush1.msra.mxu0 0.0
    %5615 = vmatprep.subr.mxu0 0.0
    %5616 = vmatpush1.msra.mxu0 0.0
    %5617 = vmatprep.subr.mxu0 0.0
    %5618 = vmatpush1.msra.mxu0 0.0
    %5619 = vmatprep.subr.mxu0 0.0
    %5620 = vmatpush1.msra.mxu0 0.0
    %5621 = vmatprep.subr.mxu0 0.0
    %5622 = vmatpush1.msra.mxu0 0.0
    %5623 = vmatprep.subr.mxu0 0.0
    %5624 = vmatpush1.msra.mxu0 0.0
    %5625 = vmatprep.subr.mxu0 0.0
    %5626 = vmatpush1.msra.mxu0 0.0
    %5627 = vmatprep.subr.mxu0 0.0
    %5628 = vmatpush1.msra.mxu0 0.0
    %5629 = vmatprep.subr.mxu0 0.0
    %5630 = vmatpush1.msra.mxu0 0.0
    %5631 = vmatprep.subr.mxu0 0.0
    %5632 = vmatpush1.msra.mxu0 0.0
    %5633 = vmatprep.subr.mxu0 0.0
    %5634 = vmatpush1.msra.mxu0 0.0
    %5635 = vmatprep.subr.mxu0 0.0
    %5636 = vmatpush1.msra.mxu0 0.0
    %5637 = vmatprep.subr.mxu0 0.0
    %5638 = vmatpush1.msra.mxu0 0.0
    %5639 = vmatprep.subr.mxu0 0.0
    %5640 = vmatpush1.msra.mxu0 0.0
    %5641 = vmatprep.subr.mxu0 0.0
    %5642 = vmatpush1.msra.mxu0 0.0
    %5643 = vmatprep.subr.mxu0 0.0
    %5644 = vmatpush1.msra.mxu0 0.0
    %5645 = vmatprep.subr.mxu0 0.0
    %5646 = vmatpush1.msra.mxu0 0.0
    %5647 = vmatprep.subr.mxu0 0.0
    %5648 = vmatpush1.msra.mxu0 0.0
    %5649 = vmatprep.subr.mxu0 0.0
    %5650 = vmatpush1.msra.mxu0 0.0
    %5651 = vmatprep.subr.mxu0 0.0
    %5652 = vmatpush1.msra.mxu0 0.0
    %5653 = vmatprep.mubr.f32.mxu0 0.0
    %5654 = vmatmul.mubr.f32.gmra.mrb[0].mxu0 %v102
    %v5655 = vpop.f32.mrb[0].mxu0
    %v5656 = vadd.f32 0.0, %v5655
    %v5657 = vpop.f32.mrb[0].mxu0
    %5658 = vmatprep.mubr.f32.mxu0 0.0
    %5659 = vmatmul.mubr.f32.gmra.mrb[0].mxu0 %v105
    %v5660 = vpop.f32.mrb[0].mxu0
    %v5661 = vadd.f32 0.0, %v5660
    %v5662 = vpop.f32.mrb[0].mxu0
    %5663 = vmatprep.mubr.f32.mxu0 0.0
    %5664 = vmatmul.mubr.f32.gmra.mrb[0].mxu0 %v108
    %v5665 = vpop.f32.mrb[0].mxu0
    %v5666 = vadd.f32 0.0, %v5665
    %v5667 = vpop.f32.mrb[0].mxu0
    %5668 = vmatprep.mubr.f32.mxu0 0.0
    %5669 = vmatmul.mubr.f32.gmra.mrb[0].mxu0 %v111
    %v5670 = vpop.f32.mrb[0].mxu0
    %v5671 = vadd.f32 0.0, %v5670
    %v5672 = vpop.f32.mrb[0].mxu0
    %5673 = vdwg.mxu0
    %5674 = vmatprep.subr.mxu0 0.0
    %5675 = vmatpush1.msra.mxu0 %v5585
    %5676 = vmatprep.subr.mxu0 0.0
    %5677 = vmatpush1.msra.mxu0 %v5586
    %5678 = vmatprep.subr.mxu0 0.0
    %5679 = vmatpush1.msra.mxu0 %v5587
    %5680 = vmatprep.subr.mxu0 0.0
    %5681 = vmatpush1.msra.mxu0 %v5588
    %5682 = vmatprep.subr.mxu0 0.0
    %5683 = vmatpush1.msra.mxu0 0.0
    %5684 = vmatprep.subr.mxu0 0.0
    %5685 = vmatpush1.msra.mxu0 0.0
    %5686 = vmatprep.subr.mxu0 0.0
    %5687 = vmatpush1.msra.mxu0 0.0
    %5688 = vmatprep.subr.mxu0 0.0
    %5689 = vmatpush1.msra.mxu0 0.0
    %5690 = vmatprep.subr.mxu0 0.0
    %5691 = vmatpush1.msra.mxu0 0.0
    %5692 = vmatprep.subr.mxu0 0.0
    %5693 = vmatpush1.msra.mxu0 0.0
    %5694 = vmatprep.subr.mxu0 0.0
    %5695 = vmatpush1.msra.mxu0 0.0
    %5696 = vmatprep.subr.mxu0 0.0
    %5697 = vmatpush1.msra.mxu0 0.0
    %5698 = vmatprep.subr.mxu0 0.0
    %5699 = vmatpush1.msra.mxu0 0.0
    %5700 = vmatprep.subr.mxu0 0.0
    %5701 = vmatpush1.msra.mxu0 0.0
    %5702 = vmatprep.subr.mxu0 0.0
    %5703 = vmatpush1.msra.mxu0 0.0
    %5704 = vmatprep.subr.mxu0 0.0
    %5705 = vmatpush1.msra.mxu0 0.0
    %5706 = vmatprep.subr.mxu0 0.0
    %5707 = vmatpush1.msra.mxu0 0.0
    %5708 = vmatprep.subr.mxu0 0.0
    %5709 = vmatpush1.msra.mxu0 0.0
    %5710 = vmatprep.subr.mxu0 0.0
    %5711 = vmatpush1.msra.mxu0 0.0
    %5712 = vmatprep.subr.mxu0 0.0
    %5713 = vmatpush1.msra.mxu0 0.0
    %5714 = vmatprep.subr.mxu0 0.0
    %5715 = vmatpush1.msra.mxu0 0.0
    %5716 = vmatprep.subr.mxu0 0.0
    %5717 = vmatpush1.msra.mxu0 0.0
    %5718 = vmatprep.subr.mxu0 0.0
    %5719 = vmatpush1.msra.mxu0 0.0
    %5720 = vmatprep.subr.mxu0 0.0
    %5721 = vmatpush1.msra.mxu0 0.0
    %5722 = vmatprep.subr.mxu0 0.0
    %5723 = vmatpush1.msra.mxu0 0.0
    %5724 = vmatprep.subr.mxu0 0.0
    %5725 = vmatpush1.msra.mxu0 0.0
    %5726 = vmatprep.subr.mxu0 0.0
    %5727 = vmatpush1.msra.mxu0 0.0
    %5728 = vmatprep.subr.mxu0 0.0
    %5729 = vmatpush1.msra.mxu0 0.0
    %5730 = vmatprep.subr.mxu0 0.0
    %5731 = vmatpush1.msra.mxu0 0.0
    %5732 = vmatprep.subr.mxu0 0.0
    %5733 = vmatpush1.msra.mxu0 0.0
    %5734 = vmatprep.subr.mxu0 0.0
    %5735 = vmatpush1.msra.mxu0 0.0
    %5736 = vmatprep.subr.mxu0 0.0
    %5737 = vmatpush1.msra.mxu0 0.0
    %5738 = vmatprep.mubr.f32.mxu0 0.0
    %5739 = vmatmul.mubr.f32.gmra.mrb[0].mxu0 %v199
    %v5740 = vpop.f32.mrb[0].mxu0
    %v5741 = vadd.f32 0.0, %v5740
    %v5742 = vpop.f32.mrb[0].mxu0
    %5743 = vmatprep.mubr.f32.mxu0 0.0
    %5744 = vmatmul.mubr.f32.gmra.mrb[0].mxu0 %v202
    %v5745 = vpop.f32.mrb[0].mxu0
    %v5746 = vadd.f32 0.0, %v5745
    %v5747 = vpop.f32.mrb[0].mxu0
    %5748 = vmatprep.mubr.f32.mxu0 0.0
    %5749 = vmatmul.mubr.f32.gmra.mrb[0].mxu0 %v205
    %v5750 = vpop.f32.mrb[0].mxu0
    %v5751 = vadd.f32 0.0, %v5750
    %v5752 = vpop.f32.mrb[0].mxu0
    %5753 = vmatprep.mubr.f32.mxu0 0.0
    %5754 = vmatmul.mubr.f32.gmra.mrb[0].mxu0 %v208
    %v5755 = vpop.f32.mrb[0].mxu0
    %v5756 = vadd.f32 0.0, %v5755
    %v5757 = vpop.f32.mrb[0].mxu0
    %5758 = vdwg.mxu0
    %v5759 = vld [vmem:[%s24] sm:$0xff]
    %v5760 = vld [vmem:[%s24 + $0x8] sm:$0xff]
    %v5761 = vld [vmem:[%s24 + $0x10] sm:$0xff]
    %v5762 = vld [vmem:[%s24 + $0x18] sm:$0xff]
    %s5763 = scalar_lea.vmem %s24, 32
    %v5764 = vld [vmem:[%s5763] sm:$0xff]
    %v5765 = vld [vmem:[%s5763 + $0x8] sm:$0xff]
    %v5766 = vld [vmem:[%s5763 + $0x10] sm:$0xff]
    %v5767 = vld [vmem:[%s5763 + $0x18] sm:$0xff]
    %v5769 = vsel %vm100, %v5585, 0
    %v5772 = vsel %vm100, %v5586, 0
    %v5775 = vsel %vm100, %v5587, 0
    %v5778 = vsel %vm100, %v5588, 0
    %5780 = vmatprep.subr.mxu0 0.0
    %5781 = vmatpush1.msra.mxu0 %v5764
    %5782 = vmatprep.subr.mxu0 0.0
    %5783 = vmatpush1.msra.mxu0 %v5765
    %5784 = vmatprep.subr.mxu0 0.0
    %5785 = vmatpush1.msra.mxu0 %v5766
    %5786 = vmatprep.subr.mxu0 0.0
    %5787 = vmatpush1.msra.mxu0 %v5767
    %5788 = vmatprep.subr.mxu0 0.0
    %5789 = vmatpush1.msra.mxu0 0.0
    %5790 = vmatprep.subr.mxu0 0.0
    %5791 = vmatpush1.msra.mxu0 0.0
    %5792 = vmatprep.subr.mxu0 0.0
    %5793 = vmatpush1.msra.mxu0 0.0
    %5794 = vmatprep.subr.mxu0 0.0
    %5795 = vmatpush1.msra.mxu0 0.0
    %5796 = vmatprep.subr.mxu0 0.0
    %5797 = vmatpush1.msra.mxu0 0.0
    %5798 = vmatprep.subr.mxu0 0.0
    %5799 = vmatpush1.msra.mxu0 0.0
    %5800 = vmatprep.subr.mxu0 0.0
    %5801 = vmatpush1.msra.mxu0 0.0
    %5802 = vmatprep.subr.mxu0 0.0
    %5803 = vmatpush1.msra.mxu0 0.0
    %5804 = vmatprep.subr.mxu0 0.0
    %5805 = vmatpush1.msra.mxu0 0.0
    %5806 = vmatprep.subr.mxu0 0.0
    %5807 = vmatpush1.msra.mxu0 0.0
    %5808 = vmatprep.subr.mxu0 0.0
    %5809 = vmatpush1.msra.mxu0 0.0
    %5810 = vmatprep.subr.mxu0 0.0
    %5811 = vmatpush1.msra.mxu0 0.0
    %5812 = vmatprep.subr.mxu0 0.0
    %5813 = vmatpush1.msra.mxu0 0.0
    %5814 = vmatprep.subr.mxu0 0.0
    %5815 = vmatpush1.msra.mxu0 0.0
    %5816 = vmatprep.subr.mxu0 0.0
    %5817 = vmatpush1.msra.mxu0 0.0
    %5818 = vmatprep.subr.mxu0 0.0
    %5819 = vmatpush1.msra.mxu0 0.0
    %5820 = vmatprep.subr.mxu0 0.0
    %5821 = vmatpush1.msra.mxu0 0.0
    %5822 = vmatprep.subr.mxu0 0.0
    %5823 = vmatpush1.msra.mxu0 0.0
    %5824 = vmatprep.subr.mxu0 0.0
    %5825 = vmatpush1.msra.mxu0 0.0
    %5826 = vmatprep.subr.mxu0 0.0
    %5827 = vmatpush1.msra.mxu0 0.0
    %5828 = vmatprep.subr.mxu0 0.0
    %5829 = vmatpush1.msra.mxu0 0.0
    %5830 = vmatprep.subr.mxu0 0.0
    %5831 = vmatpush1.msra.mxu0 0.0
    %5832 = vmatprep.subr.mxu0 0.0
    %5833 = vmatpush1.msra.mxu0 0.0
    %5834 = vmatprep.subr.mxu0 0.0
    %5835 = vmatpush1.msra.mxu0 0.0
    %5836 = vmatprep.subr.mxu0 0.0
    %5837 = vmatpush1.msra.mxu0 0.0
    %5838 = vmatprep.subr.mxu0 0.0
    %5839 = vmatpush1.msra.mxu0 0.0
    %5840 = vmatprep.subr.mxu0 0.0
    %5841 = vmatpush1.msra.mxu0 0.0
    %5842 = vmatprep.subr.mxu0 0.0
    %5843 = vmatpush1.msra.mxu0 0.0
    %5844 = vmatprep.mubr.f32.mxu0 0.0
    %5845 = vmatmul.mubr.f32.gmra.mrb[0].mxu0 %v5769
    %v5846 = vpop.f32.mrb[0].mxu0
    %v5847 = vadd.f32 0.0, %v5846
    %v5848 = vpop.f32.mrb[0].mxu0
    %5849 = vmatprep.mubr.f32.mxu0 0.0
    %5850 = vmatmul.mubr.f32.gmra.mrb[0].mxu0 %v5772
    %v5851 = vpop.f32.mrb[0].mxu0
    %v5852 = vadd.f32 0.0, %v5851
    %v5853 = vpop.f32.mrb[0].mxu0
    %5854 = vmatprep.mubr.f32.mxu0 0.0
    %5855 = vmatmul.mubr.f32.gmra.mrb[0].mxu0 %v5775
    %v5856 = vpop.f32.mrb[0].mxu0
    %v5857 = vadd.f32 0.0, %v5856
    %v5858 = vpop.f32.mrb[0].mxu0
    %5859 = vmatprep.mubr.f32.mxu0 0.0
    %5860 = vmatmul.mubr.f32.gmra.mrb[0].mxu0 %v5778
    %v5861 = vpop.f32.mrb[0].mxu0
    %v5862 = vadd.f32 0.0, %v5861
    %v5863 = vpop.f32.mrb[0].mxu0
    %5864 = vdwg.mxu0
    %v5866 = vsel %vm100, %v5656, 0
    %v5869 = vsel %vm100, %v5661, 0
    %v5872 = vsel %vm100, %v5666, 0
    %v5875 = vsel %vm100, %v5671, 0
    %5877 = vmatprep.subr.mxu0 0.0
    %5878 = vmatpush1.msra.mxu0 %v5759
    %5879 = vmatprep.subr.mxu0 0.0
    %5880 = vmatpush1.msra.mxu0 %v5760
    %5881 = vmatprep.subr.mxu0 0.0
    %5882 = vmatpush1.msra.mxu0 %v5761
    %5883 = vmatprep.subr.mxu0 0.0
    %5884 = vmatpush1.msra.mxu0 %v5762
    %5885 = vmatprep.subr.mxu0 0.0
    %5886 = vmatpush1.msra.mxu0 0.0
    %5887 = vmatprep.subr.mxu0 0.0
    %5888 = vmatpush1.msra.mxu0 0.0
    %5889 = vmatprep.subr.mxu0 0.0
    %5890 = vmatpush1.msra.mxu0 0.0
    %5891 = vmatprep.subr.mxu0 0.0
    %5892 = vmatpush1.msra.mxu0 0.0
    %5893 = vmatprep.subr.mxu0 0.0
    %5894 = vmatpush1.msra.mxu0 0.0
    %5895 = vmatprep.subr.mxu0 0.0
    %5896 = vmatpush1.msra.mxu0 0.0
    %5897 = vmatprep.subr.mxu0 0.0
    %5898 = vmatpush1.msra.mxu0 0.0
    %5899 = vmatprep.subr.mxu0 0.0
    %5900 = vmatpush1.msra.mxu0 0.0
    %5901 = vmatprep.subr.mxu0 0.0
    %5902 = vmatpush1.msra.mxu0 0.0
    %5903 = vmatprep.subr.mxu0 0.0
    %5904 = vmatpush1.msra.mxu0 0.0
    %5905 = vmatprep.subr.mxu0 0.0
    %5906 = vmatpush1.msra.mxu0 0.0
    %5907 = vmatprep.subr.mxu0 0.0
    %5908 = vmatpush1.msra.mxu0 0.0
    %5909 = vmatprep.subr.mxu0 0.0
    %5910 = vmatpush1.msra.mxu0 0.0
    %5911 = vmatprep.subr.mxu0 0.0
    %5912 = vmatpush1.msra.mxu0 0.0
    %5913 = vmatprep.subr.mxu0 0.0
    %5914 = vmatpush1.msra.mxu0 0.0
    %5915 = vmatprep.subr.mxu0 0.0
    %5916 = vmatpush1.msra.mxu0 0.0
    %5917 = vmatprep.subr.mxu0 0.0
    %5918 = vmatpush1.msra.mxu0 0.0
    %5919 = vmatprep.subr.mxu0 0.0
    %5920 = vmatpush1.msra.mxu0 0.0
    %5921 = vmatprep.subr.mxu0 0.0
    %5922 = vmatpush1.msra.mxu0 0.0
    %5923 = vmatprep.subr.mxu0 0.0
    %5924 = vmatpush1.msra.mxu0 0.0
    %5925 = vmatprep.subr.mxu0 0.0
    %5926 = vmatpush1.msra.mxu0 0.0
    %5927 = vmatprep.subr.mxu0 0.0
    %5928 = vmatpush1.msra.mxu0 0.0
    %5929 = vmatprep.subr.mxu0 0.0
    %5930 = vmatpush1.msra.mxu0 0.0
    %5931 = vmatprep.subr.mxu0 0.0
    %5932 = vmatpush1.msra.mxu0 0.0
    %5933 = vmatprep.subr.mxu0 0.0
    %5934 = vmatpush1.msra.mxu0 0.0
    %5935 = vmatprep.subr.mxu0 0.0
    %5936 = vmatpush1.msra.mxu0 0.0
    %5937 = vmatprep.subr.mxu0 0.0
    %5938 = vmatpush1.msra.mxu0 0.0
    %5939 = vmatprep.subr.mxu0 0.0
    %5940 = vmatpush1.msra.mxu0 0.0
    %5941 = vmatprep.mubr.f32.mxu0 0.0
    %5942 = vmatmul.mubr.f32.gmra.mrb[0].mxu0 %v5866
    %v5943 = vpop.f32.mrb[0].mxu0
    %v5944 = vadd.f32 %v5847, %v5943
    %v5945 = vpop.f32.mrb[0].mxu0
    %5946 = vmatprep.mubr.f32.mxu0 0.0
    %5947 = vmatmul.mubr.f32.gmra.mrb[0].mxu0 %v5869
    %v5948 = vpop.f32.mrb[0].mxu0
    %v5949 = vadd.f32 %v5852, %v5948
    %v5950 = vpop.f32.mrb[0].mxu0
    %5951 = vmatprep.mubr.f32.mxu0 0.0
    %5952 = vmatmul.mubr.f32.gmra.mrb[0].mxu0 %v5872
    %v5953 = vpop.f32.mrb[0].mxu0
    %v5954 = vadd.f32 %v5857, %v5953
    %v5955 = vpop.f32.mrb[0].mxu0
    %5956 = vmatprep.mubr.f32.mxu0 0.0
    %5957 = vmatmul.mubr.f32.gmra.mrb[0].mxu0 %v5875
    %v5958 = vpop.f32.mrb[0].mxu0
    %v5959 = vadd.f32 %v5862, %v5958
    %v5960 = vpop.f32.mrb[0].mxu0
    %5961 = vdwg.mxu0
    %s5962 = scalar_lea.vmem %s24, 64
    %v5963 = vld [vmem:[%s5962] sm:$0xff]
    %v5964 = vld [vmem:[%s5962 + $0x8] sm:$0xff]
    %v5965 = vld [vmem:[%s5962 + $0x10] sm:$0xff]
    %v5966 = vld [vmem:[%s5962 + $0x18] sm:$0xff]
    %v5968 = vsel %vm100, %v5741, 0
    %v5971 = vsel %vm100, %v5746, 0
    %v5974 = vsel %vm100, %v5751, 0
    %v5977 = vsel %vm100, %v5756, 0
    %5979 = vmatprep.subr.mxu0 0.0
    %5980 = vmatpush1.msra.mxu0 %v5963
    %5981 = vmatprep.subr.mxu0 0.0
    %5982 = vmatpush1.msra.mxu0 %v5964
    %5983 = vmatprep.subr.mxu0 0.0
    %5984 = vmatpush1.msra.mxu0 %v5965
    %5985 = vmatprep.subr.mxu0 0.0
    %5986 = vmatpush1.msra.mxu0 %v5966
    %5987 = vmatprep.subr.mxu0 0.0
    %5988 = vmatpush1.msra.mxu0 0.0
    %5989 = vmatprep.subr.mxu0 0.0
    %5990 = vmatpush1.msra.mxu0 0.0
    %5991 = vmatprep.subr.mxu0 0.0
    %5992 = vmatpush1.msra.mxu0 0.0
    %5993 = vmatprep.subr.mxu0 0.0
    %5994 = vmatpush1.msra.mxu0 0.0
    %5995 = vmatprep.subr.mxu0 0.0
    %5996 = vmatpush1.msra.mxu0 0.0
    %5997 = vmatprep.subr.mxu0 0.0
    %5998 = vmatpush1.msra.mxu0 0.0
    %5999 = vmatprep.subr.mxu0 0.0
    %6000 = vmatpush1.msra.mxu0 0.0
    %6001 = vmatprep.subr.mxu0 0.0
    %6002 = vmatpush1.msra.mxu0 0.0
    %6003 = vmatprep.subr.mxu0 0.0
    %6004 = vmatpush1.msra.mxu0 0.0
    %6005 = vmatprep.subr.mxu0 0.0
    %6006 = vmatpush1.msra.mxu0 0.0
    %6007 = vmatprep.subr.mxu0 0.0
    %6008 = vmatpush1.msra.mxu0 0.0
    %6009 = vmatprep.subr.mxu0 0.0
    %6010 = vmatpush1.msra.mxu0 0.0
    %6011 = vmatprep.subr.mxu0 0.0
    %6012 = vmatpush1.msra.mxu0 0.0
    %6013 = vmatprep.subr.mxu0 0.0
    %6014 = vmatpush1.msra.mxu0 0.0
    %6015 = vmatprep.subr.mxu0 0.0
    %6016 = vmatpush1.msra.mxu0 0.0
    %6017 = vmatprep.subr.mxu0 0.0
    %6018 = vmatpush1.msra.mxu0 0.0
    %6019 = vmatprep.subr.mxu0 0.0
    %6020 = vmatpush1.msra.mxu0 0.0
    %6021 = vmatprep.subr.mxu0 0.0
    %6022 = vmatpush1.msra.mxu0 0.0
    %6023 = vmatprep.subr.mxu0 0.0
    %6024 = vmatpush1.msra.mxu0 0.0
    %6025 = vmatprep.subr.mxu0 0.0
    %6026 = vmatpush1.msra.mxu0 0.0
    %6027 = vmatprep.subr.mxu0 0.0
    %6028 = vmatpush1.msra.mxu0 0.0
    %6029 = vmatprep.subr.mxu0 0.0
    %6030 = vmatpush1.msra.mxu0 0.0
    %6031 = vmatprep.subr.mxu0 0.0
    %6032 = vmatpush1.msra.mxu0 0.0
    %6033 = vmatprep.subr.mxu0 0.0
    %6034 = vmatpush1.msra.mxu0 0.0
    %6035 = vmatprep.subr.mxu0 0.0
    %6036 = vmatpush1.msra.mxu0 0.0
    %6037 = vmatprep.subr.mxu0 0.0
    %6038 = vmatpush1.msra.mxu0 0.0
    %6039 = vmatprep.subr.mxu0 0.0
    %6040 = vmatpush1.msra.mxu0 0.0
    %6041 = vmatprep.subr.mxu0 0.0
    %6042 = vmatpush1.msra.mxu0 0.0
    %6043 = vmatprep.mubr.f32.mxu0 0.0
    %6044 = vmatmul.mubr.f32.gmra.mrb[0].mxu0 %v5968
    %v6045 = vpop.f32.mrb[0].mxu0
    %v6046 = vadd.f32 0.0, %v6045
    %v6047 = vpop.f32.mrb[0].mxu0
    %6048 = vmatprep.mubr.f32.mxu0 0.0
    %6049 = vmatmul.mubr.f32.gmra.mrb[0].mxu0 %v5971
    %v6050 = vpop.f32.mrb[0].mxu0
    %v6051 = vadd.f32 0.0, %v6050
    %v6052 = vpop.f32.mrb[0].mxu0
    %6053 = vmatprep.mubr.f32.mxu0 0.0
    %6054 = vmatmul.mubr.f32.gmra.mrb[0].mxu0 %v5974
    %v6055 = vpop.f32.mrb[0].mxu0
    %v6056 = vadd.f32 0.0, %v6055
    %v6057 = vpop.f32.mrb[0].mxu0
    %6058 = vmatprep.mubr.f32.mxu0 0.0
    %6059 = vmatmul.mubr.f32.gmra.mrb[0].mxu0 %v5977
    %v6060 = vpop.f32.mrb[0].mxu0
    %v6061 = vadd.f32 0.0, %v6060
    %v6062 = vpop.f32.mrb[0].mxu0
    %6063 = vdwg.mxu0
    %v6064 = vadd.f32 %v5944, %v6046
    %v6065 = vadd.f32 %v5949, %v6051
    %v6066 = vadd.f32 %v5954, %v6056
    %v6067 = vadd.f32 %v5959, %v6061
    %v6068 = vld [vmem:[%s25] sm:$0x1]
    %v6070 = vlaneseq
    %v6071 = vshrl.u32 %v6070, 7
    %v6072 = vsub.s32 0, %v6071
    %v6073 = vrot.slane %v6068, %v6072
    %v6075 = vadd.f32 %v6064, %v6073
    %v6076 = vadd.f32 %v6065, %v6073
    %v6077 = vadd.f32 %v6066, %v6073
    %v6078 = vadd.f32 %v6067, %v6073
    %6079 = vst.msk [vmem:[%s26] sm:$0xff] %vm298, %v6075
    %6080 = vst.msk [vmem:[%s26 + $0x8] sm:$0xff] %vm298, %v6076
    %6081 = vst.msk [vmem:[%s26 + $0x10] sm:$0xff] %vm298, %v6077
    %6082 = vst.msk [vmem:[%s26 + $0x18] sm:$0xff] %vm298, %v6078
    // Predicated region
    $region106: #{speech_vqvae_forward.1} parent=1 // pred_check
      _
    $region107: #{speech_vqvae_forward.1} parent=1 // pred_check_branch
      %6084 = sbr.rel (0) target = $region109
    $region108: #{speech_vqvae_forward.1} parent=1 // pred_region
      _
    $region109: #{speech_vqvae_forward.1} parent=1 // pred_fallthru
      _
    // Predicated region
    $region110: #{speech_vqvae_forward.1} parent=1 // pred_check
      _
    $region111: #{speech_vqvae_forward.1} parent=1 // pred_check_branch
      %6086 = sbr.rel (0) target = $region113
    $region112: #{speech_vqvae_forward.1} parent=1 // pred_region
      %s6088 = ssub.s32 16, 16
      %6089 = vsyncadd [#allocation3], %s6088
      %s6091 = sshll.u32 [#allocation2], 4
      %s6092 = int_to_ptr.vmem [resolvable:$true] %s6091
      %6094 = dma.vmem_to_hbm [thread:$0]  %s6092, 16, %s27, [#allocation3]
    $region113: #{speech_vqvae_forward.1} parent=1 // pred_fallthru
      _
    // Predicated region
    $region114: #{speech_vqvae_forward.1} parent=1 // pred_check
      _
    $region115: #{speech_vqvae_forward.1} parent=1 // pred_check_branch
      %6096 = sbr.rel (0) target = $region117
    $region116: #{speech_vqvae_forward.1} parent=1 // pred_region
      %s6098 = ssub.s32 16, 16
      %6099 = vsyncadd [#allocation5], %s6098
      %s6101 = sshll.u32 [#allocation4], 4
      %s6102 = int_to_ptr.vmem [resolvable:$true] %s6101
      %6104 = dma.vmem_to_hbm [thread:$0]  %s6102, 16, %s28, [#allocation5]
    $region117: #{speech_vqvae_forward.1} parent=1 // pred_fallthru
      _
    // Predicated region
    $region118: #{speech_vqvae_forward.1} parent=1 // pred_check
      _
    $region119: #{speech_vqvae_forward.1} parent=1 // pred_check_branch
      %6106 = sbr.rel (0) target = $region121
    $region120: #{speech_vqvae_forward.1} parent=1 // pred_region
      _
    $region121: #{speech_vqvae_forward.1} parent=1 // pred_fallthru
      _
    // Predicated region
    $region122: #{speech_vqvae_forward.1} parent=1 // pred_check
      _
    $region123: #{speech_vqvae_forward.1} parent=1 // pred_check_branch
      %6108 = sbr.rel (0) target = $region125
    $region124: #{speech_vqvae_forward.1} parent=1 // pred_region
      %6109 = dma.done [#allocation3], 16
    $region125: #{speech_vqvae_forward.1} parent=1 // pred_fallthru
      _
    // Predicated region
    $region126: #{speech_vqvae_forward.1} parent=1 // pred_check
      _
    $region127: #{speech_vqvae_forward.1} parent=1 // pred_check_branch
      %6111 = sbr.rel (0) target = $region129
    $region128: #{speech_vqvae_forward.1} parent=1 // pred_region
      %6112 = dma.done [#allocation5], 16
    $region129: #{speech_vqvae_forward.1} parent=1 // pred_fallthru
      _
    %6113 = vsyncpa [#allocation3], 1
    %6114 = vsyncpa [#allocation5], 1

</llo_original>
